<compile_context>
chip_gen: v5e
topology: v5e:2x2
jax: 0.10.0
libtpu: 0.0.40
codegen_flags: <defaults>
</compile_context>

<pallas_src>
import functools

import jax
import jax.numpy as jnp
from jax import lax
from jax.experimental import pallas as pl
from jax.experimental.pallas import tpu as pltpu


# ---- layout constants (28x28 input, 5x5 convs with pad=2, 2x2 pools) ----
K = 5
C1_OUT, C2_IN, C2_OUT = 16, 16, 32
WR1 = 32                  # row stride of the conv1 flat layout (28 valid + 4 pad)
L1 = 28 * WR1             # 896 conv1 output rows / image (row = h*32 + w)
WP2 = 20                  # row stride of the zero-padded conv2 input layout
L2 = 14 * WP2             # 280 conv2 output rows / image (row = i*20 + j)
FLAT2 = 368               # padded conv2-input rows (>= 4*20+4 + 280, mult of 8)
N_FEAT = 7 * 7 * C2_OUT   # 1568 classifier features


# ---------------------------------------------------------------------------
# Fused kernel: conv1 + pool1 + conv2 + pool2 + linear, one batch tile / step
# ---------------------------------------------------------------------------
def fused_cnn_kernel(p1_ref, w1_ref, b1_ref, w2_ref, b2_ref, wf_ref, bf_ref,
                     out_ref, c1_ref, p1pad_ref, c2_ref, *, bt, nc):
    # ---------------- conv1 (1->16, 5x5, pad 2) + bias + ReLU ----------------
    # bf16 patches x bf16 weights on the MXU, f32 accumulation.
    patches1 = p1_ref[...].reshape(bt * L1, K * K)             # (bt*896, 25) bf16
    c1 = jnp.dot(patches1, w1_ref[...], preferred_element_type=jnp.float32)
    c1 = jnp.maximum(c1 + b1_ref[...], 0.0)                    # (bt*896, 16) f32
    c1_ref[...] = c1.reshape(bt, L1, C1_OUT)                   # single write pass

    # ------ pool1 (2x2, stride 2) + placement into padded conv2 input -------
    # Full re-zero every step: scratch is per-core VMEM, so this stays correct
    # when the "parallel" grid axis is split across TensorCores (v7x megacore).
    p1pad_ref[...] = jnp.zeros_like(p1pad_ref)
    for i in range(14):
        base = 2 * i * WR1                                     # conv1 row (2i, 0)
        a = c1_ref[:, pl.ds(base,           14, 2), :]         # (2i,   2j)
        b = c1_ref[:, pl.ds(base + 1,       14, 2), :]         # (2i,   2j+1)
        c = c1_ref[:, pl.ds(base + WR1,     14, 2), :]         # (2i+1, 2j)
        d = c1_ref[:, pl.ds(base + WR1 + 1, 14, 2), :]         # (2i+1, 2j+1)
        blk = jnp.maximum(jnp.maximum(a, b), jnp.maximum(c, d))    # (bt,14,16)
        p1pad_ref[:, pl.ds((i + 2) * WP2 + 2, 14), :] = blk

    # ---- conv2 (16->32, 5x5, pad 2): dh-split im2col, 5 accumulated matmuls ----
    # Per dh: only 5 taps (K=80) are lane-concatenated, cast to bf16, multiplied
    # on the MXU and accumulated into the f32 c2 scratch -> 5x smaller live
    # patch value than the single K=400 formulation (no spills).
    kblk = K * C2_IN                                           # 80
    for dh in range(K):
        taps = [p1pad_ref[:, pl.ds(dh * WP2 + dw, L2), :] for dw in range(K)]
        patches2 = jnp.concatenate(taps, axis=-1)              # (bt, 280, 80) f32
        patches2 = patches2.reshape(bt * L2, kblk).astype(w2_ref.dtype)
        part = jnp.dot(patches2, w2_ref[pl.ds(dh * kblk, kblk), :],
                       preferred_element_type=jnp.float32)     # (bt*280, 32) f32
        part = part.reshape(bt, L2, C2_OUT)
        if dh == 0:
            c2_ref[...] = part
        elif dh < K - 1:
            c2_ref[...] += part
        else:                                                  # fold bias+ReLU in
            c2_ref[...] = jnp.maximum(c2_ref[...] + part + b2_ref[...], 0.0)

    # ------------- pool2 (2x2, stride 2) fused with the final Linear --------
    # Vectorized over the 7 output columns per row; the classifier is accumulated
    # as 49 tiny matmuls against row-slices of wf -> no 49-way lane concat.
    logits = jnp.zeros((bt, nc), jnp.float32)
    for pi in range(7):
        r0 = 2 * pi * WP2
        a = c2_ref[:, pl.ds(r0,           7, 2), :]            # (2pi,   2pj)
        b = c2_ref[:, pl.ds(r0 + 1,       7, 2), :]            # (2pi,   2pj+1)
        c = c2_ref[:, pl.ds(r0 + WP2,     7, 2), :]            # (2pi+1, 2pj)
        d = c2_ref[:, pl.ds(r0 + WP2 + 1, 7, 2), :]            # (2pi+1, 2pj+1)
        m = jnp.maximum(jnp.maximum(a, b), jnp.maximum(c, d))  # (bt, 7, 32)
        for pj in range(7):
            w_blk = wf_ref[pl.ds((pi * 7 + pj) * C2_OUT, C2_OUT), :]   # (32, nc)
            logits = logits + jnp.dot(m[:, pj, :], w_blk,
                                      preferred_element_type=jnp.float32)
    out_ref[...] = (logits + bf_ref[...])[:, None, :].astype(out_ref.dtype)


# ---------------------------------------------------------------------------
# Host-side glue: im2col for layer 1 + weight permutations + pallas_call
# ---------------------------------------------------------------------------
def _im2col_conv1(x_nchw):
    """NCHW (B,1,28,28) -> (B, 896, 25): row = h*32 + w (w>=28 is zero pad),
    lane t = dh*5 + dw of the 5x5 receptive field (padding=2)."""
    xpad = jnp.pad(x_nchw[:, 0], ((0, 0), (2, 2), (2, 2)))      # (B, 32, 32)
    taps = [xpad[:, dh:dh + 28, dw:dw + 28]
            for dh in range(K) for dw in range(K)]
    p = jnp.stack(taps, axis=-1)                                # (B, 28, 28, 25)
    p = jnp.pad(p, ((0, 0), (0, 0), (0, WR1 - 28), (0, 0)))     # (B, 28, 32, 25)
    return p.reshape(x_nchw.shape[0], L1, K * K)


def custom_cnn_forward(x_nchw, params, *, block_b=16):
    w1, b1, w2, b2, wf, bf = params
    B = x_nchw.shape[0]
    nc = wf.shape[0]

    # Batch tile: cap at block_b, but keep the grid length >= 2 whenever B >= 2
    # so both TensorCores of a v7x chip get work from the "parallel" grid axis.
    bt = max(1, min(block_b, -(-B // 2)))
    Bp = -(-B // bt) * bt

    # Conv1 patches in bf16: halves the dominant HBM stream and the input VMEM
    # blocks while keeping f32 accumulation on the MXU.
    patches = _im2col_conv1(x_nchw).astype(jnp.bfloat16)        # (B, 896, 25)
    if Bp != B:
        patches = jnp.pad(patches, ((0, Bp - B), (0, 0), (0, 0)))

    # OIHW -> (dh*5+dw [, ci]) x co ; classifier permuted to (pi,pj,c)-major.
    w1k = jnp.transpose(w1, (2, 3, 1, 0)).reshape(K * K, C1_OUT).astype(jnp.bfloat16)
    w2k = jnp.transpose(w2, (2, 3, 1, 0)).reshape(K * K * C2_IN, C2_OUT).astype(jnp.bfloat16)
    wfk = jnp.transpose(wf.reshape(nc, C2_OUT, 7, 7), (2, 3, 1, 0)).reshape(N_FEAT, nc)

    kern = functools.partial(fused_cnn_kernel, bt=bt, nc=nc)
    out = pl.pallas_call(
        kern,
        out_shape=jax.ShapeDtypeStruct((Bp, 1, nc), jnp.float32),
        grid=(Bp // bt,),
        in_specs=[
            pl.BlockSpec((bt, L1, K * K), lambda bi: (bi, 0, 0)),
            pl.BlockSpec((K * K, C1_OUT), lambda bi: (0, 0)),
            pl.BlockSpec((1, C1_OUT), lambda bi: (0, 0)),
            pl.BlockSpec((K * K * C2_IN, C2_OUT), lambda bi: (0, 0)),
            pl.BlockSpec((1, C2_OUT), lambda bi: (0, 0)),
            pl.BlockSpec((N_FEAT, nc), lambda bi: (0, 0)),
            pl.BlockSpec((1, nc), lambda bi: (0, 0)),
        ],
        out_specs=pl.BlockSpec((bt, 1, nc), lambda bi: (bi, 0, 0)),
        scratch_shapes=[
            pltpu.VMEM((bt, L1, C1_OUT), jnp.float32),     # conv1 output
            pltpu.VMEM((bt, FLAT2, C2_IN), jnp.float32),   # padded pooled-1 map
            pltpu.VMEM((bt, L2, C2_OUT), jnp.float32),     # conv2 accumulator
        ],
        compiler_params=pltpu.CompilerParams(
            dimension_semantics=("parallel",),
            vmem_limit_bytes=40 * 1024 * 1024,   # sized for bt=16 incl. 128-lane padding
        ),
    )(patches, w1k, b1.reshape(1, C1_OUT), w2k, b2.reshape(1, C2_OUT),
      wfk, bf.reshape(1, nc))
    return out[:B, 0, :]


# ---------------------------------------------------------------------------
# Pure-JAX reference (PyTorch semantics) for verification
# ---------------------------------------------------------------------------
def ref_forward(x, w1, b1, w2, b2, wf, bf):
    def conv(x, w, b):
        y = lax.conv_general_dilated(
            x, w, window_strides=(1, 1), padding=((2, 2), (2, 2)),
            dimension_numbers=('NCHW', 'OIHW', 'NCHW'),
            precision=lax.Precision.HIGHEST)
        return jax.nn.relu(y + b[None, :, None, None])

    def pool(x):
        return lax.reduce_window(x, -jnp.inf, lax.max,
                                 (1, 1, 2, 2), (1, 1, 2, 2), 'VALID')

    h = pool(conv(x, w1, b1))
    h = pool(conv(h, w2, b2))
    h = h.reshape(h.shape[0], -1)                    # c-major flatten (PyTorch .view)
    return jnp.dot(h, wf.T, precision=lax.Precision.HIGHEST) + bf


# ---------------------------------------------------------------------------
if __name__ == "__main__":
    key = jax.random.PRNGKey(0)
    ks = jax.random.split(key, 7)
    B, num_classes = 2, 10

    x = jax.random.normal(ks[0], (B, 1, 28, 28), jnp.float32)
    w1 = 0.10 * jax.random.normal(ks[1], (16, 1, 5, 5), jnp.float32)
    b1 = 0.10 * jax.random.normal(ks[2], (16,), jnp.float32)
    w2 = 0.05 * jax.random.normal(ks[3], (32, 16, 5, 5), jnp.float32)
    b2 = 0.05 * jax.random.normal(ks[4], (32,), jnp.float32)
    wf = 0.02 * jax.random.normal(ks[5], (num_classes, 32 * 7 * 7), jnp.float32)
    bf = 0.02 * jax.random.normal(ks[6], (num_classes,), jnp.float32)
    params = (w1, b1, w2, b2, wf, bf)

    fwd = jax.jit(functools.partial(custom_cnn_forward, block_b=16))
    out = jax.block_until_ready(fwd(x, params))
    assert out.shape == (B, num_classes), out.shape

    ref = ref_forward(x, *params)
    err = float(jnp.max(jnp.abs(out - ref)))
    assert err < 5e-2, f"mismatch vs reference: max abs err = {err}"

    print("KERNEL_OK")
</pallas_src>

<mosaic_0001>
module attributes {stable_mosaic.version = 11 : i64} {
  func.func @fused_cnn_kernel(%arg0: i32, %arg1: memref<1x896x25xbf16, #tpu.memory_space<vmem>>, %arg2: memref<25x16xbf16, #tpu.memory_space<vmem>>, %arg3: memref<1x16xf32, #tpu.memory_space<vmem>>, %arg4: memref<400x32xbf16, #tpu.memory_space<vmem>>, %arg5: memref<1x32xf32, #tpu.memory_space<vmem>>, %arg6: memref<1568x10xf32, #tpu.memory_space<vmem>>, %arg7: memref<1x10xf32, #tpu.memory_space<vmem>>, %arg8: memref<1x1x10xf32, #tpu.memory_space<vmem>>, %arg9: memref<1x896x16xf32, #tpu.memory_space<vmem>>, %arg10: memref<1x368x16xf32, #tpu.memory_space<vmem>>, %arg11: memref<1x280x32xf32, #tpu.memory_space<vmem>>) attributes {dimension_semantics = [#tpu.dimension_semantics<parallel>], iteration_bounds = array<i64: 2>, scalar_prefetch = 0 : i64, scratch_operands = 3 : i64, tpu.core_type = #tpu.core_type<tc>, window_params = [{transform_indices = @transform_0, window_bounds = array<i64: 1, 896, 25>}, {pipeline_mode = #tpu.pipeline_mode<synchronous>, transform_indices = @transform_1, window_bounds = array<i64: 25, 16>}, {pipeline_mode = #tpu.pipeline_mode<synchronous>, transform_indices = @transform_2, window_bounds = array<i64: 1, 16>}, {pipeline_mode = #tpu.pipeline_mode<synchronous>, transform_indices = @transform_3, window_bounds = array<i64: 400, 32>}, {pipeline_mode = #tpu.pipeline_mode<synchronous>, transform_indices = @transform_4, window_bounds = array<i64: 1, 32>}, {pipeline_mode = #tpu.pipeline_mode<synchronous>, transform_indices = @transform_5, window_bounds = array<i64: 1568, 10>}, {pipeline_mode = #tpu.pipeline_mode<synchronous>, transform_indices = @transform_6, window_bounds = array<i64: 1, 10>}, {transform_indices = @transform_7, window_bounds = array<i64: 1, 1, 10>}]} {
    %c0 = arith.constant 0 : index
    %c0_0 = arith.constant 0 : index
    %c0_1 = arith.constant 0 : index
    %0 = vector.load %arg1[%c0, %c0_0, %c0_1] : memref<1x896x25xbf16, #tpu.memory_space<vmem>>, vector<1x896x25xbf16>
    %1 = vector.shape_cast %0 : vector<1x896x25xbf16> to vector<896x25xbf16>
    %c0_2 = arith.constant 0 : index
    %c0_3 = arith.constant 0 : index
    %2 = vector.load %arg2[%c0_2, %c0_3] : memref<25x16xbf16, #tpu.memory_space<vmem>>, vector<25x16xbf16>
    %cst = arith.constant dense<0.000000e+00> : vector<896x16xf32>
    %3 = tpu.matmul %1, %2, %cst {dimension_numbers = #tpu.dot_dimension_numbers<[1], [0], [0], [1], [0, 0, 1, 1], [], []>} : vector<896x25xbf16>, vector<25x16xbf16>, vector<896x16xf32> -> vector<896x16xf32>
    %c0_4 = arith.constant 0 : index
    %c0_5 = arith.constant 0 : index
    %4 = vector.load %arg3[%c0_4, %c0_5] : memref<1x16xf32, #tpu.memory_space<vmem>>, vector<1x16xf32>
    %5 = vector.broadcast %4 : vector<1x16xf32> to vector<896x16xf32>
    %6 = arith.addf %3, %5 : vector<896x16xf32>
    %cst_6 = arith.constant 0.000000e+00 : f32
    %7 = vector.broadcast %cst_6 : f32 to vector<896x16xf32>
    %8 = arith.maximumf %6, %7 : vector<896x16xf32>
    %9 = vector.shape_cast %8 : vector<896x16xf32> to vector<1x896x16xf32>
    %c0_7 = arith.constant 0 : index
    %c0_8 = arith.constant 0 : index
    %c0_9 = arith.constant 0 : index
    %10 = vector.load %arg9[%c0_7, %c0_8, %c0_9] : memref<1x896x16xf32, #tpu.memory_space<vmem>>, vector<1x896x16xf32>
    tpu.vector_store %arg9[%c0_7, %c0_8, %c0_9], %9 {strides = array<i32>} : memref<1x896x16xf32, #tpu.memory_space<vmem>>, vector<1x896x16xf32>,
    %cst_10 = arith.constant 0.000000e+00 : f32
    %11 = vector.broadcast %cst_10 : f32 to vector<1x368x16xf32>
    %c0_11 = arith.constant 0 : index
    %c0_12 = arith.constant 0 : index
    %c0_13 = arith.constant 0 : index
    %12 = vector.load %arg10[%c0_11, %c0_12, %c0_13] : memref<1x368x16xf32, #tpu.memory_space<vmem>>, vector<1x368x16xf32>
    tpu.vector_store %arg10[%c0_11, %c0_12, %c0_13], %11 {strides = array<i32>} : memref<1x368x16xf32, #tpu.memory_space<vmem>>, vector<1x368x16xf32>,
    %c0_14 = arith.constant 0 : index
    %c0_15 = arith.constant 0 : index
    %c0_16 = arith.constant 0 : index
    %13 = tpu.strided_load %arg9[%c0_14, %c0_15, %c0_16] {strides = array<i32: 1, 2, 1>} : memref<1x896x16xf32, #tpu.memory_space<vmem>>, vector<1x14x16xf32>
    %c0_17 = arith.constant 0 : index
    %c1 = arith.constant 1 : index
    %c0_18 = arith.constant 0 : index
    %14 = tpu.strided_load %arg9[%c0_17, %c1, %c0_18] {strides = array<i32: 1, 2, 1>} : memref<1x896x16xf32, #tpu.memory_space<vmem>>, vector<1x14x16xf32>
    %c0_19 = arith.constant 0 : index
    %c32 = arith.constant 32 : index
    %c0_20 = arith.constant 0 : index
    %15 = tpu.strided_load %arg9[%c0_19, %c32, %c0_20] {strides = array<i32: 1, 2, 1>} : memref<1x896x16xf32, #tpu.memory_space<vmem>>, vector<1x14x16xf32>
    %c0_21 = arith.constant 0 : index
    %c33 = arith.constant 33 : index
    %c0_22 = arith.constant 0 : index
    %16 = tpu.strided_load %arg9[%c0_21, %c33, %c0_22] {strides = array<i32: 1, 2, 1>} : memref<1x896x16xf32, #tpu.memory_space<vmem>>, vector<1x14x16xf32>
    %17 = arith.maximumf %13, %14 : vector<1x14x16xf32>
    %18 = arith.maximumf %15, %16 : vector<1x14x16xf32>
    %19 = arith.maximumf %17, %18 : vector<1x14x16xf32>
    %c0_23 = arith.constant 0 : index
    %c42 = arith.constant 42 : index
    %c0_24 = arith.constant 0 : index
    %20 = vector.load %arg10[%c0_23, %c42, %c0_24] : memref<1x368x16xf32, #tpu.memory_space<vmem>>, vector<1x14x16xf32>
    tpu.vector_store %arg10[%c0_23, %c42, %c0_24], %19 {strides = array<i32>} : memref<1x368x16xf32, #tpu.memory_space<vmem>>, vector<1x14x16xf32>,
    %c0_25 = arith.constant 0 : index
    %c64 = arith.constant 64 : index
    %c0_26 = arith.constant 0 : index
    %21 = tpu.strided_load %arg9[%c0_25, %c64, %c0_26] {strides = array<i32: 1, 2, 1>} : memref<1x896x16xf32, #tpu.memory_space<vmem>>, vector<1x14x16xf32>
    %c0_27 = arith.constant 0 : index
    %c65 = arith.constant 65 : index
    %c0_28 = arith.constant 0 : index
    %22 = tpu.strided_load %arg9[%c0_27, %c65, %c0_28] {strides = array<i32: 1, 2, 1>} : memref<1x896x16xf32, #tpu.memory_space<vmem>>, vector<1x14x16xf32>
    %c0_29 = arith.constant 0 : index
    %c96 = arith.constant 96 : index
    %c0_30 = arith.constant 0 : index
    %23 = tpu.strided_load %arg9[%c0_29, %c96, %c0_30] {strides = array<i32: 1, 2, 1>} : memref<1x896x16xf32, #tpu.memory_space<vmem>>, vector<1x14x16xf32>
    %c0_31 = arith.constant 0 : index
    %c97 = arith.constant 97 : index
    %c0_32 = arith.constant 0 : index
    %24 = tpu.strided_load %arg9[%c0_31, %c97, %c0_32] {strides = array<i32: 1, 2, 1>} : memref<1x896x16xf32, #tpu.memory_space<vmem>>, vector<1x14x16xf32>
    %25 = arith.maximumf %21, %22 : vector<1x14x16xf32>
    %26 = arith.maximumf %23, %24 : vector<1x14x16xf32>
    %27 = arith.maximumf %25, %26 : vector<1x14x16xf32>
    %c0_33 = arith.constant 0 : index
    %c62 = arith.constant 62 : index
    %c0_34 = arith.constant 0 : index
    %28 = vector.load %arg10[%c0_33, %c62, %c0_34] : memref<1x368x16xf32, #tpu.memory_space<vmem>>, vector<1x14x16xf32>
    tpu.vector_store %arg10[%c0_33, %c62, %c0_34], %27 {strides = array<i32>} : memref<1x368x16xf32, #tpu.memory_space<vmem>>, vector<1x14x16xf32>,
    %c0_35 = arith.constant 0 : index
    %c128 = arith.constant 128 : index
    %c0_36 = arith.constant 0 : index
    %29 = tpu.strided_load %arg9[%c0_35, %c128, %c0_36] {strides = array<i32: 1, 2, 1>} : memref<1x896x16xf32, #tpu.memory_space<vmem>>, vector<1x14x16xf32>
    %c0_37 = arith.constant 0 : index
    %c129 = arith.constant 129 : index
    %c0_38 = arith.constant 0 : index
    %30 = tpu.strided_load %arg9[%c0_37, %c129, %c0_38] {strides = array<i32: 1, 2, 1>} : memref<1x896x16xf32, #tpu.memory_space<vmem>>, vector<1x14x16xf32>
    %c0_39 = arith.constant 0 : index
    %c160 = arith.constant 160 : index
    %c0_40 = arith.constant 0 : index
    %31 = tpu.strided_load %arg9[%c0_39, %c160, %c0_40] {strides = array<i32: 1, 2, 1>} : memref<1x896x16xf32, #tpu.memory_space<vmem>>, vector<1x14x16xf32>
    %c0_41 = arith.constant 0 : index
    %c161 = arith.constant 161 : index
    %c0_42 = arith.constant 0 : index
    %32 = tpu.strided_load %arg9[%c0_41, %c161, %c0_42] {strides = array<i32: 1, 2, 1>} : memref<1x896x16xf32, #tpu.memory_space<vmem>>, vector<1x14x16xf32>
    %33 = arith.maximumf %29, %30 : vector<1x14x16xf32>
    %34 = arith.maximumf %31, %32 : vector<1x14x16xf32>
    %35 = arith.maximumf %33, %34 : vector<1x14x16xf32>
    %c0_43 = arith.constant 0 : index
    %c82 = arith.constant 82 : index
    %c0_44 = arith.constant 0 : index
    %36 = vector.load %arg10[%c0_43, %c82, %c0_44] : memref<1x368x16xf32, #tpu.memory_space<vmem>>, vector<1x14x16xf32>
    tpu.vector_store %arg10[%c0_43, %c82, %c0_44], %35 {strides = array<i32>} : memref<1x368x16xf32, #tpu.memory_space<vmem>>, vector<1x14x16xf32>,
    %c0_45 = arith.constant 0 : index
    %c192 = arith.constant 192 : index
    %c0_46 = arith.constant 0 : index
    %37 = tpu.strided_load %arg9[%c0_45, %c192, %c0_46] {strides = array<i32: 1, 2, 1>} : memref<1x896x16xf32, #tpu.memory_space<vmem>>, vector<1x14x16xf32>
    %c0_47 = arith.constant 0 : index
    %c193 = arith.constant 193 : index
    %c0_48 = arith.constant 0 : index
    %38 = tpu.strided_load %arg9[%c0_47, %c193, %c0_48] {strides = array<i32: 1, 2, 1>} : memref<1x896x16xf32, #tpu.memory_space<vmem>>, vector<1x14x16xf32>
    %c0_49 = arith.constant 0 : index
    %c224 = arith.constant 224 : index
    %c0_50 = arith.constant 0 : index
    %39 = tpu.strided_load %arg9[%c0_49, %c224, %c0_50] {strides = array<i32: 1, 2, 1>} : memref<1x896x16xf32, #tpu.memory_space<vmem>>, vector<1x14x16xf32>
    %c0_51 = arith.constant 0 : index
    %c225 = arith.constant 225 : index
    %c0_52 = arith.constant 0 : index
    %40 = tpu.strided_load %arg9[%c0_51, %c225, %c0_52] {strides = array<i32: 1, 2, 1>} : memref<1x896x16xf32, #tpu.memory_space<vmem>>, vector<1x14x16xf32>
    %41 = arith.maximumf %37, %38 : vector<1x14x16xf32>
    %42 = arith.maximumf %39, %40 : vector<1x14x16xf32>
    %43 = arith.maximumf %41, %42 : vector<1x14x16xf32>
    %c0_53 = arith.constant 0 : index
    %c102 = arith.constant 102 : index
    %c0_54 = arith.constant 0 : index
    %44 = vector.load %arg10[%c0_53, %c102, %c0_54] : memref<1x368x16xf32, #tpu.memory_space<vmem>>, vector<1x14x16xf32>
    tpu.vector_store %arg10[%c0_53, %c102, %c0_54], %43 {strides = array<i32>} : memref<1x368x16xf32, #tpu.memory_space<vmem>>, vector<1x14x16xf32>,
    %c0_55 = arith.constant 0 : index
    %c256 = arith.constant 256 : index
    %c0_56 = arith.constant 0 : index
    %45 = tpu.strided_load %arg9[%c0_55, %c256, %c0_56] {strides = array<i32: 1, 2, 1>} : memref<1x896x16xf32, #tpu.memory_space<vmem>>, vector<1x14x16xf32>
    %c0_57 = arith.constant 0 : index
    %c257 = arith.constant 257 : index
    %c0_58 = arith.constant 0 : index
    %46 = tpu.strided_load %arg9[%c0_57, %c257, %c0_58] {strides = array<i32: 1, 2, 1>} : memref<1x896x16xf32, #tpu.memory_space<vmem>>, vector<1x14x16xf32>
    %c0_59 = arith.constant 0 : index
    %c288 = arith.constant 288 : index
    %c0_60 = arith.constant 0 : index
    %47 = tpu.strided_load %arg9[%c0_59, %c288, %c0_60] {strides = array<i32: 1, 2, 1>} : memref<1x896x16xf32, #tpu.memory_space<vmem>>, vector<1x14x16xf32>
    %c0_61 = arith.constant 0 : index
    %c289 = arith.constant 289 : index
    %c0_62 = arith.constant 0 : index
    %48 = tpu.strided_load %arg9[%c0_61, %c289, %c0_62] {strides = array<i32: 1, 2, 1>} : memref<1x896x16xf32, #tpu.memory_space<vmem>>, vector<1x14x16xf32>
    %49 = arith.maximumf %45, %46 : vector<1x14x16xf32>
    %50 = arith.maximumf %47, %48 : vector<1x14x16xf32>
    %51 = arith.maximumf %49, %50 : vector<1x14x16xf32>
    %c0_63 = arith.constant 0 : index
    %c122 = arith.constant 122 : index
    %c0_64 = arith.constant 0 : index
    %52 = vector.load %arg10[%c0_63, %c122, %c0_64] : memref<1x368x16xf32, #tpu.memory_space<vmem>>, vector<1x14x16xf32>
    tpu.vector_store %arg10[%c0_63, %c122, %c0_64], %51 {strides = array<i32>} : memref<1x368x16xf32, #tpu.memory_space<vmem>>, vector<1x14x16xf32>,
    %c0_65 = arith.constant 0 : index
    %c320 = arith.constant 320 : index
    %c0_66 = arith.constant 0 : index
    %53 = tpu.strided_load %arg9[%c0_65, %c320, %c0_66] {strides = array<i32: 1, 2, 1>} : memref<1x896x16xf32, #tpu.memory_space<vmem>>, vector<1x14x16xf32>
    %c0_67 = arith.constant 0 : index
    %c321 = arith.constant 321 : index
    %c0_68 = arith.constant 0 : index
    %54 = tpu.strided_load %arg9[%c0_67, %c321, %c0_68] {strides = array<i32: 1, 2, 1>} : memref<1x896x16xf32, #tpu.memory_space<vmem>>, vector<1x14x16xf32>
    %c0_69 = arith.constant 0 : index
    %c352 = arith.constant 352 : index
    %c0_70 = arith.constant 0 : index
    %55 = tpu.strided_load %arg9[%c0_69, %c352, %c0_70] {strides = array<i32: 1, 2, 1>} : memref<1x896x16xf32, #tpu.memory_space<vmem>>, vector<1x14x16xf32>
    %c0_71 = arith.constant 0 : index
    %c353 = arith.constant 353 : index
    %c0_72 = arith.constant 0 : index
    %56 = tpu.strided_load %arg9[%c0_71, %c353, %c0_72] {strides = array<i32: 1, 2, 1>} : memref<1x896x16xf32, #tpu.memory_space<vmem>>, vector<1x14x16xf32>
    %57 = arith.maximumf %53, %54 : vector<1x14x16xf32>
    %58 = arith.maximumf %55, %56 : vector<1x14x16xf32>
    %59 = arith.maximumf %57, %58 : vector<1x14x16xf32>
    %c0_73 = arith.constant 0 : index
    %c142 = arith.constant 142 : index
    %c0_74 = arith.constant 0 : index
    %60 = vector.load %arg10[%c0_73, %c142, %c0_74] : memref<1x368x16xf32, #tpu.memory_space<vmem>>, vector<1x14x16xf32>
    tpu.vector_store %arg10[%c0_73, %c142, %c0_74], %59 {strides = array<i32>} : memref<1x368x16xf32, #tpu.memory_space<vmem>>, vector<1x14x16xf32>,
    %c0_75 = arith.constant 0 : index
    %c384 = arith.constant 384 : index
    %c0_76 = arith.constant 0 : index
    %61 = tpu.strided_load %arg9[%c0_75, %c384, %c0_76] {strides = array<i32: 1, 2, 1>} : memref<1x896x16xf32, #tpu.memory_space<vmem>>, vector<1x14x16xf32>
    %c0_77 = arith.constant 0 : index
    %c385 = arith.constant 385 : index
    %c0_78 = arith.constant 0 : index
    %62 = tpu.strided_load %arg9[%c0_77, %c385, %c0_78] {strides = array<i32: 1, 2, 1>} : memref<1x896x16xf32, #tpu.memory_space<vmem>>, vector<1x14x16xf32>
    %c0_79 = arith.constant 0 : index
    %c416 = arith.constant 416 : index
    %c0_80 = arith.constant 0 : index
    %63 = tpu.strided_load %arg9[%c0_79, %c416, %c0_80] {strides = array<i32: 1, 2, 1>} : memref<1x896x16xf32, #tpu.memory_space<vmem>>, vector<1x14x16xf32>
    %c0_81 = arith.constant 0 : index
    %c417 = arith.constant 417 : index
    %c0_82 = arith.constant 0 : index
    %64 = tpu.strided_load %arg9[%c0_81, %c417, %c0_82] {strides = array<i32: 1, 2, 1>} : memref<1x896x16xf32, #tpu.memory_space<vmem>>, vector<1x14x16xf32>
    %65 = arith.maximumf %61, %62 : vector<1x14x16xf32>
    %66 = arith.maximumf %63, %64 : vector<1x14x16xf32>
    %67 = arith.maximumf %65, %66 : vector<1x14x16xf32>
    %c0_83 = arith.constant 0 : index
    %c162 = arith.constant 162 : index
    %c0_84 = arith.constant 0 : index
    %68 = vector.load %arg10[%c0_83, %c162, %c0_84] : memref<1x368x16xf32, #tpu.memory_space<vmem>>, vector<1x14x16xf32>
    tpu.vector_store %arg10[%c0_83, %c162, %c0_84], %67 {strides = array<i32>} : memref<1x368x16xf32, #tpu.memory_space<vmem>>, vector<1x14x16xf32>,
    %c0_85 = arith.constant 0 : index
    %c448 = arith.constant 448 : index
    %c0_86 = arith.constant 0 : index
    %69 = tpu.strided_load %arg9[%c0_85, %c448, %c0_86] {strides = array<i32: 1, 2, 1>} : memref<1x896x16xf32, #tpu.memory_space<vmem>>, vector<1x14x16xf32>
    %c0_87 = arith.constant 0 : index
    %c449 = arith.constant 449 : index
    %c0_88 = arith.constant 0 : index
    %70 = tpu.strided_load %arg9[%c0_87, %c449, %c0_88] {strides = array<i32: 1, 2, 1>} : memref<1x896x16xf32, #tpu.memory_space<vmem>>, vector<1x14x16xf32>
    %c0_89 = arith.constant 0 : index
    %c480 = arith.constant 480 : index
    %c0_90 = arith.constant 0 : index
    %71 = tpu.strided_load %arg9[%c0_89, %c480, %c0_90] {strides = array<i32: 1, 2, 1>} : memref<1x896x16xf32, #tpu.memory_space<vmem>>, vector<1x14x16xf32>
    %c0_91 = arith.constant 0 : index
    %c481 = arith.constant 481 : index
    %c0_92 = arith.constant 0 : index
    %72 = tpu.strided_load %arg9[%c0_91, %c481, %c0_92] {strides = array<i32: 1, 2, 1>} : memref<1x896x16xf32, #tpu.memory_space<vmem>>, vector<1x14x16xf32>
    %73 = arith.maximumf %69, %70 : vector<1x14x16xf32>
    %74 = arith.maximumf %71, %72 : vector<1x14x16xf32>
    %75 = arith.maximumf %73, %74 : vector<1x14x16xf32>
    %c0_93 = arith.constant 0 : index
    %c182 = arith.constant 182 : index
    %c0_94 = arith.constant 0 : index
    %76 = vector.load %arg10[%c0_93, %c182, %c0_94] : memref<1x368x16xf32, #tpu.memory_space<vmem>>, vector<1x14x16xf32>
    tpu.vector_store %arg10[%c0_93, %c182, %c0_94], %75 {strides = array<i32>} : memref<1x368x16xf32, #tpu.memory_space<vmem>>, vector<1x14x16xf32>,
    %c0_95 = arith.constant 0 : index
    %c512 = arith.constant 512 : index
    %c0_96 = arith.constant 0 : index
    %77 = tpu.strided_load %arg9[%c0_95, %c512, %c0_96] {strides = array<i32: 1, 2, 1>} : memref<1x896x16xf32, #tpu.memory_space<vmem>>, vector<1x14x16xf32>
    %c0_97 = arith.constant 0 : index
    %c513 = arith.constant 513 : index
    %c0_98 = arith.constant 0 : index
    %78 = tpu.strided_load %arg9[%c0_97, %c513, %c0_98] {strides = array<i32: 1, 2, 1>} : memref<1x896x16xf32, #tpu.memory_space<vmem>>, vector<1x14x16xf32>
    %c0_99 = arith.constant 0 : index
    %c544 = arith.constant 544 : index
    %c0_100 = arith.constant 0 : index
    %79 = tpu.strided_load %arg9[%c0_99, %c544, %c0_100] {strides = array<i32: 1, 2, 1>} : memref<1x896x16xf32, #tpu.memory_space<vmem>>, vector<1x14x16xf32>
    %c0_101 = arith.constant 0 : index
    %c545 = arith.constant 545 : index
    %c0_102 = arith.constant 0 : index
    %80 = tpu.strided_load %arg9[%c0_101, %c545, %c0_102] {strides = array<i32: 1, 2, 1>} : memref<1x896x16xf32, #tpu.memory_space<vmem>>, vector<1x14x16xf32>
    %81 = arith.maximumf %77, %78 : vector<1x14x16xf32>
    %82 = arith.maximumf %79, %80 : vector<1x14x16xf32>
    %83 = arith.maximumf %81, %82 : vector<1x14x16xf32>
    %c0_103 = arith.constant 0 : index
    %c202 = arith.constant 202 : index
    %c0_104 = arith.constant 0 : index
    %84 = vector.load %arg10[%c0_103, %c202, %c0_104] : memref<1x368x16xf32, #tpu.memory_space<vmem>>, vector<1x14x16xf32>
    tpu.vector_store %arg10[%c0_103, %c202, %c0_104], %83 {strides = array<i32>} : memref<1x368x16xf32, #tpu.memory_space<vmem>>, vector<1x14x16xf32>,
    %c0_105 = arith.constant 0 : index
    %c576 = arith.constant 576 : index
    %c0_106 = arith.constant 0 : index
    %85 = tpu.strided_load %arg9[%c0_105, %c576, %c0_106] {strides = array<i32: 1, 2, 1>} : memref<1x896x16xf32, #tpu.memory_space<vmem>>, vector<1x14x16xf32>
    %c0_107 = arith.constant 0 : index
    %c577 = arith.constant 577 : index
    %c0_108 = arith.constant 0 : index
    %86 = tpu.strided_load %arg9[%c0_107, %c577, %c0_108] {strides = array<i32: 1, 2, 1>} : memref<1x896x16xf32, #tpu.memory_space<vmem>>, vector<1x14x16xf32>
    %c0_109 = arith.constant 0 : index
    %c608 = arith.constant 608 : index
    %c0_110 = arith.constant 0 : index
    %87 = tpu.strided_load %arg9[%c0_109, %c608, %c0_110] {strides = array<i32: 1, 2, 1>} : memref<1x896x16xf32, #tpu.memory_space<vmem>>, vector<1x14x16xf32>
    %c0_111 = arith.constant 0 : index
    %c609 = arith.constant 609 : index
    %c0_112 = arith.constant 0 : index
    %88 = tpu.strided_load %arg9[%c0_111, %c609, %c0_112] {strides = array<i32: 1, 2, 1>} : memref<1x896x16xf32, #tpu.memory_space<vmem>>, vector<1x14x16xf32>
    %89 = arith.maximumf %85, %86 : vector<1x14x16xf32>
    %90 = arith.maximumf %87, %88 : vector<1x14x16xf32>
    %91 = arith.maximumf %89, %90 : vector<1x14x16xf32>
    %c0_113 = arith.constant 0 : index
    %c222 = arith.constant 222 : index
    %c0_114 = arith.constant 0 : index
    %92 = vector.load %arg10[%c0_113, %c222, %c0_114] : memref<1x368x16xf32, #tpu.memory_space<vmem>>, vector<1x14x16xf32>
    tpu.vector_store %arg10[%c0_113, %c222, %c0_114], %91 {strides = array<i32>} : memref<1x368x16xf32, #tpu.memory_space<vmem>>, vector<1x14x16xf32>,
    %c0_115 = arith.constant 0 : index
    %c640 = arith.constant 640 : index
    %c0_116 = arith.constant 0 : index
    %93 = tpu.strided_load %arg9[%c0_115, %c640, %c0_116] {strides = array<i32: 1, 2, 1>} : memref<1x896x16xf32, #tpu.memory_space<vmem>>, vector<1x14x16xf32>
    %c0_117 = arith.constant 0 : index
    %c641 = arith.constant 641 : index
    %c0_118 = arith.constant 0 : index
    %94 = tpu.strided_load %arg9[%c0_117, %c641, %c0_118] {strides = array<i32: 1, 2, 1>} : memref<1x896x16xf32, #tpu.memory_space<vmem>>, vector<1x14x16xf32>
    %c0_119 = arith.constant 0 : index
    %c672 = arith.constant 672 : index
    %c0_120 = arith.constant 0 : index
    %95 = tpu.strided_load %arg9[%c0_119, %c672, %c0_120] {strides = array<i32: 1, 2, 1>} : memref<1x896x16xf32, #tpu.memory_space<vmem>>, vector<1x14x16xf32>
    %c0_121 = arith.constant 0 : index
    %c673 = arith.constant 673 : index
    %c0_122 = arith.constant 0 : index
    %96 = tpu.strided_load %arg9[%c0_121, %c673, %c0_122] {strides = array<i32: 1, 2, 1>} : memref<1x896x16xf32, #tpu.memory_space<vmem>>, vector<1x14x16xf32>
    %97 = arith.maximumf %93, %94 : vector<1x14x16xf32>
    %98 = arith.maximumf %95, %96 : vector<1x14x16xf32>
    %99 = arith.maximumf %97, %98 : vector<1x14x16xf32>
    %c0_123 = arith.constant 0 : index
    %c242 = arith.constant 242 : index
    %c0_124 = arith.constant 0 : index
    %100 = vector.load %arg10[%c0_123, %c242, %c0_124] : memref<1x368x16xf32, #tpu.memory_space<vmem>>, vector<1x14x16xf32>
    tpu.vector_store %arg10[%c0_123, %c242, %c0_124], %99 {strides = array<i32>} : memref<1x368x16xf32, #tpu.memory_space<vmem>>, vector<1x14x16xf32>,
    %c0_125 = arith.constant 0 : index
    %c704 = arith.constant 704 : index
    %c0_126 = arith.constant 0 : index
    %101 = tpu.strided_load %arg9[%c0_125, %c704, %c0_126] {strides = array<i32: 1, 2, 1>} : memref<1x896x16xf32, #tpu.memory_space<vmem>>, vector<1x14x16xf32>
    %c0_127 = arith.constant 0 : index
    %c705 = arith.constant 705 : index
    %c0_128 = arith.constant 0 : index
    %102 = tpu.strided_load %arg9[%c0_127, %c705, %c0_128] {strides = array<i32: 1, 2, 1>} : memref<1x896x16xf32, #tpu.memory_space<vmem>>, vector<1x14x16xf32>
    %c0_129 = arith.constant 0 : index
    %c736 = arith.constant 736 : index
    %c0_130 = arith.constant 0 : index
    %103 = tpu.strided_load %arg9[%c0_129, %c736, %c0_130] {strides = array<i32: 1, 2, 1>} : memref<1x896x16xf32, #tpu.memory_space<vmem>>, vector<1x14x16xf32>
    %c0_131 = arith.constant 0 : index
    %c737 = arith.constant 737 : index
    %c0_132 = arith.constant 0 : index
    %104 = tpu.strided_load %arg9[%c0_131, %c737, %c0_132] {strides = array<i32: 1, 2, 1>} : memref<1x896x16xf32, #tpu.memory_space<vmem>>, vector<1x14x16xf32>
    %105 = arith.maximumf %101, %102 : vector<1x14x16xf32>
    %106 = arith.maximumf %103, %104 : vector<1x14x16xf32>
    %107 = arith.maximumf %105, %106 : vector<1x14x16xf32>
    %c0_133 = arith.constant 0 : index
    %c262 = arith.constant 262 : index
    %c0_134 = arith.constant 0 : index
    %108 = vector.load %arg10[%c0_133, %c262, %c0_134] : memref<1x368x16xf32, #tpu.memory_space<vmem>>, vector<1x14x16xf32>
    tpu.vector_store %arg10[%c0_133, %c262, %c0_134], %107 {strides = array<i32>} : memref<1x368x16xf32, #tpu.memory_space<vmem>>, vector<1x14x16xf32>,
    %c0_135 = arith.constant 0 : index
    %c768 = arith.constant 768 : index
    %c0_136 = arith.constant 0 : index
    %109 = tpu.strided_load %arg9[%c0_135, %c768, %c0_136] {strides = array<i32: 1, 2, 1>} : memref<1x896x16xf32, #tpu.memory_space<vmem>>, vector<1x14x16xf32>
    %c0_137 = arith.constant 0 : index
    %c769 = arith.constant 769 : index
    %c0_138 = arith.constant 0 : index
    %110 = tpu.strided_load %arg9[%c0_137, %c769, %c0_138] {strides = array<i32: 1, 2, 1>} : memref<1x896x16xf32, #tpu.memory_space<vmem>>, vector<1x14x16xf32>
    %c0_139 = arith.constant 0 : index
    %c800 = arith.constant 800 : index
    %c0_140 = arith.constant 0 : index
    %111 = tpu.strided_load %arg9[%c0_139, %c800, %c0_140] {strides = array<i32: 1, 2, 1>} : memref<1x896x16xf32, #tpu.memory_space<vmem>>, vector<1x14x16xf32>
    %c0_141 = arith.constant 0 : index
    %c801 = arith.constant 801 : index
    %c0_142 = arith.constant 0 : index
    %112 = tpu.strided_load %arg9[%c0_141, %c801, %c0_142] {strides = array<i32: 1, 2, 1>} : memref<1x896x16xf32, #tpu.memory_space<vmem>>, vector<1x14x16xf32>
    %113 = arith.maximumf %109, %110 : vector<1x14x16xf32>
    %114 = arith.maximumf %111, %112 : vector<1x14x16xf32>
    %115 = arith.maximumf %113, %114 : vector<1x14x16xf32>
    %c0_143 = arith.constant 0 : index
    %c282 = arith.constant 282 : index
    %c0_144 = arith.constant 0 : index
    %116 = vector.load %arg10[%c0_143, %c282, %c0_144] : memref<1x368x16xf32, #tpu.memory_space<vmem>>, vector<1x14x16xf32>
    tpu.vector_store %arg10[%c0_143, %c282, %c0_144], %115 {strides = array<i32>} : memref<1x368x16xf32, #tpu.memory_space<vmem>>, vector<1x14x16xf32>,
    %c0_145 = arith.constant 0 : index
    %c832 = arith.constant 832 : index
    %c0_146 = arith.constant 0 : index
    %117 = tpu.strided_load %arg9[%c0_145, %c832, %c0_146] {strides = array<i32: 1, 2, 1>} : memref<1x896x16xf32, #tpu.memory_space<vmem>>, vector<1x14x16xf32>
    %c0_147 = arith.constant 0 : index
    %c833 = arith.constant 833 : index
    %c0_148 = arith.constant 0 : index
    %118 = tpu.strided_load %arg9[%c0_147, %c833, %c0_148] {strides = array<i32: 1, 2, 1>} : memref<1x896x16xf32, #tpu.memory_space<vmem>>, vector<1x14x16xf32>
    %c0_149 = arith.constant 0 : index
    %c864 = arith.constant 864 : index
    %c0_150 = arith.constant 0 : index
    %119 = tpu.strided_load %arg9[%c0_149, %c864, %c0_150] {strides = array<i32: 1, 2, 1>} : memref<1x896x16xf32, #tpu.memory_space<vmem>>, vector<1x14x16xf32>
    %c0_151 = arith.constant 0 : index
    %c865 = arith.constant 865 : index
    %c0_152 = arith.constant 0 : index
    %120 = tpu.strided_load %arg9[%c0_151, %c865, %c0_152] {strides = array<i32: 1, 2, 1>} : memref<1x896x16xf32, #tpu.memory_space<vmem>>, vector<1x14x16xf32>
    %121 = arith.maximumf %117, %118 : vector<1x14x16xf32>
    %122 = arith.maximumf %119, %120 : vector<1x14x16xf32>
    %123 = arith.maximumf %121, %122 : vector<1x14x16xf32>
    %c0_153 = arith.constant 0 : index
    %c302 = arith.constant 302 : index
    %c0_154 = arith.constant 0 : index
    %124 = vector.load %arg10[%c0_153, %c302, %c0_154] : memref<1x368x16xf32, #tpu.memory_space<vmem>>, vector<1x14x16xf32>
    tpu.vector_store %arg10[%c0_153, %c302, %c0_154], %123 {strides = array<i32>} : memref<1x368x16xf32, #tpu.memory_space<vmem>>, vector<1x14x16xf32>,
    %c0_155 = arith.constant 0 : index
    %c0_156 = arith.constant 0 : index
    %c0_157 = arith.constant 0 : index
    %125 = vector.load %arg10[%c0_155, %c0_156, %c0_157] : memref<1x368x16xf32, #tpu.memory_space<vmem>>, vector<1x280x16xf32>
    %c0_158 = arith.constant 0 : index
    %c1_159 = arith.constant 1 : index
    %c0_160 = arith.constant 0 : index
    %126 = vector.load %arg10[%c0_158, %c1_159, %c0_160] : memref<1x368x16xf32, #tpu.memory_space<vmem>>, vector<1x280x16xf32>
    %c0_161 = arith.constant 0 : index
    %c2 = arith.constant 2 : index
    %c0_162 = arith.constant 0 : index
    %127 = vector.load %arg10[%c0_161, %c2, %c0_162] : memref<1x368x16xf32, #tpu.memory_space<vmem>>, vector<1x280x16xf32>
    %c0_163 = arith.constant 0 : index
    %c3 = arith.constant 3 : index
    %c0_164 = arith.constant 0 : index
    %128 = vector.load %arg10[%c0_163, %c3, %c0_164] : memref<1x368x16xf32, #tpu.memory_space<vmem>>, vector<1x280x16xf32>
    %c0_165 = arith.constant 0 : index
    %c4 = arith.constant 4 : index
    %c0_166 = arith.constant 0 : index
    %129 = vector.load %arg10[%c0_165, %c4, %c0_166] : memref<1x368x16xf32, #tpu.memory_space<vmem>>, vector<1x280x16xf32>
    %130 = tpu.concatenate %125, %126, %127, %128, %129 in 2 : vector<1x280x16xf32>, vector<1x280x16xf32>, vector<1x280x16xf32>, vector<1x280x16xf32>, vector<1x280x16xf32> -> vector<1x280x80xf32>
    %131 = vector.shape_cast %130 : vector<1x280x80xf32> to vector<280x80xf32>
    %132 = arith.truncf %131 : vector<280x80xf32> to vector<280x80xbf16>
    %c0_167 = arith.constant 0 : index
    %c0_168 = arith.constant 0 : index
    %133 = vector.load %arg4[%c0_167, %c0_168] : memref<400x32xbf16, #tpu.memory_space<vmem>>, vector<80x32xbf16>
    %cst_169 = arith.constant dense<0.000000e+00> : vector<280x32xf32>
    %134 = tpu.matmul %132, %133, %cst_169 {dimension_numbers = #tpu.dot_dimension_numbers<[1], [0], [0], [1], [0, 0, 1, 1], [], []>} : vector<280x80xbf16>, vector<80x32xbf16>, vector<280x32xf32> -> vector<280x32xf32>
    %135 = vector.shape_cast %134 : vector<280x32xf32> to vector<1x280x32xf32>
    %c0_170 = arith.constant 0 : index
    %c0_171 = arith.constant 0 : index
    %c0_172 = arith.constant 0 : index
    %136 = vector.load %arg11[%c0_170, %c0_171, %c0_172] : memref<1x280x32xf32, #tpu.memory_space<vmem>>, vector<1x280x32xf32>
    tpu.vector_store %arg11[%c0_170, %c0_171, %c0_172], %135 {strides = array<i32>} : memref<1x280x32xf32, #tpu.memory_space<vmem>>, vector<1x280x32xf32>,
    %c0_173 = arith.constant 0 : index
    %c20 = arith.constant 20 : index
    %c0_174 = arith.constant 0 : index
    %137 = vector.load %arg10[%c0_173, %c20, %c0_174] : memref<1x368x16xf32, #tpu.memory_space<vmem>>, vector<1x280x16xf32>
    %c0_175 = arith.constant 0 : index
    %c21 = arith.constant 21 : index
    %c0_176 = arith.constant 0 : index
    %138 = vector.load %arg10[%c0_175, %c21, %c0_176] : memref<1x368x16xf32, #tpu.memory_space<vmem>>, vector<1x280x16xf32>
    %c0_177 = arith.constant 0 : index
    %c22 = arith.constant 22 : index
    %c0_178 = arith.constant 0 : index
    %139 = vector.load %arg10[%c0_177, %c22, %c0_178] : memref<1x368x16xf32, #tpu.memory_space<vmem>>, vector<1x280x16xf32>
    %c0_179 = arith.constant 0 : index
    %c23 = arith.constant 23 : index
    %c0_180 = arith.constant 0 : index
    %140 = vector.load %arg10[%c0_179, %c23, %c0_180] : memref<1x368x16xf32, #tpu.memory_space<vmem>>, vector<1x280x16xf32>
    %c0_181 = arith.constant 0 : index
    %c24 = arith.constant 24 : index
    %c0_182 = arith.constant 0 : index
    %141 = vector.load %arg10[%c0_181, %c24, %c0_182] : memref<1x368x16xf32, #tpu.memory_space<vmem>>, vector<1x280x16xf32>
    %142 = tpu.concatenate %137, %138, %139, %140, %141 in 2 : vector<1x280x16xf32>, vector<1x280x16xf32>, vector<1x280x16xf32>, vector<1x280x16xf32>, vector<1x280x16xf32> -> vector<1x280x80xf32>
    %143 = vector.shape_cast %142 : vector<1x280x80xf32> to vector<280x80xf32>
    %144 = arith.truncf %143 : vector<280x80xf32> to vector<280x80xbf16>
    %c80 = arith.constant 80 : index
    %c0_183 = arith.constant 0 : index
    %145 = vector.load %arg4[%c80, %c0_183] : memref<400x32xbf16, #tpu.memory_space<vmem>>, vector<80x32xbf16>
    %cst_184 = arith.constant dense<0.000000e+00> : vector<280x32xf32>
    %146 = tpu.matmul %144, %145, %cst_184 {dimension_numbers = #tpu.dot_dimension_numbers<[1], [0], [0], [1], [0, 0, 1, 1], [], []>} : vector<280x80xbf16>, vector<80x32xbf16>, vector<280x32xf32> -> vector<280x32xf32>
    %147 = vector.shape_cast %146 : vector<280x32xf32> to vector<1x280x32xf32>
    %c0_185 = arith.constant 0 : index
    %c0_186 = arith.constant 0 : index
    %c0_187 = arith.constant 0 : index
    %148 = vector.load %arg11[%c0_185, %c0_186, %c0_187] : memref<1x280x32xf32, #tpu.memory_space<vmem>>, vector<1x280x32xf32>
    %149 = arith.addf %148, %147 : vector<1x280x32xf32>
    %c0_188 = arith.constant 0 : index
    %c0_189 = arith.constant 0 : index
    %c0_190 = arith.constant 0 : index
    %150 = vector.load %arg11[%c0_188, %c0_189, %c0_190] : memref<1x280x32xf32, #tpu.memory_space<vmem>>, vector<1x280x32xf32>
    tpu.vector_store %arg11[%c0_188, %c0_189, %c0_190], %149 {strides = array<i32>} : memref<1x280x32xf32, #tpu.memory_space<vmem>>, vector<1x280x32xf32>,
    %c0_191 = arith.constant 0 : index
    %c40 = arith.constant 40 : index
    %c0_192 = arith.constant 0 : index
    %151 = vector.load %arg10[%c0_191, %c40, %c0_192] : memref<1x368x16xf32, #tpu.memory_space<vmem>>, vector<1x280x16xf32>
    %c0_193 = arith.constant 0 : index
    %c41 = arith.constant 41 : index
    %c0_194 = arith.constant 0 : index
    %152 = vector.load %arg10[%c0_193, %c41, %c0_194] : memref<1x368x16xf32, #tpu.memory_space<vmem>>, vector<1x280x16xf32>
    %c0_195 = arith.constant 0 : index
    %c42_196 = arith.constant 42 : index
    %c0_197 = arith.constant 0 : index
    %153 = vector.load %arg10[%c0_195, %c42_196, %c0_197] : memref<1x368x16xf32, #tpu.memory_space<vmem>>, vector<1x280x16xf32>
    %c0_198 = arith.constant 0 : index
    %c43 = arith.constant 43 : index
    %c0_199 = arith.constant 0 : index
    %154 = vector.load %arg10[%c0_198, %c43, %c0_199] : memref<1x368x16xf32, #tpu.memory_space<vmem>>, vector<1x280x16xf32>
    %c0_200 = arith.constant 0 : index
    %c44 = arith.constant 44 : index
    %c0_201 = arith.constant 0 : index
    %155 = vector.load %arg10[%c0_200, %c44, %c0_201] : memref<1x368x16xf32, #tpu.memory_space<vmem>>, vector<1x280x16xf32>
    %156 = tpu.concatenate %151, %152, %153, %154, %155 in 2 : vector<1x280x16xf32>, vector<1x280x16xf32>, vector<1x280x16xf32>, vector<1x280x16xf32>, vector<1x280x16xf32> -> vector<1x280x80xf32>
    %157 = vector.shape_cast %156 : vector<1x280x80xf32> to vector<280x80xf32>
    %158 = arith.truncf %157 : vector<280x80xf32> to vector<280x80xbf16>
    %c160_202 = arith.constant 160 : index
    %c0_203 = arith.constant 0 : index
    %159 = vector.load %arg4[%c160_202, %c0_203] : memref<400x32xbf16, #tpu.memory_space<vmem>>, vector<80x32xbf16>
    %cst_204 = arith.constant dense<0.000000e+00> : vector<280x32xf32>
    %160 = tpu.matmul %158, %159, %cst_204 {dimension_numbers = #tpu.dot_dimension_numbers<[1], [0], [0], [1], [0, 0, 1, 1], [], []>} : vector<280x80xbf16>, vector<80x32xbf16>, vector<280x32xf32> -> vector<280x32xf32>
    %161 = vector.shape_cast %160 : vector<280x32xf32> to vector<1x280x32xf32>
    %c0_205 = arith.constant 0 : index
    %c0_206 = arith.constant 0 : index
    %c0_207 = arith.constant 0 : index
    %162 = vector.load %arg11[%c0_205, %c0_206, %c0_207] : memref<1x280x32xf32, #tpu.memory_space<vmem>>, vector<1x280x32xf32>
    %163 = arith.addf %162, %161 : vector<1x280x32xf32>
    %c0_208 = arith.constant 0 : index
    %c0_209 = arith.constant 0 : index
    %c0_210 = arith.constant 0 : index
    %164 = vector.load %arg11[%c0_208, %c0_209, %c0_210] : memref<1x280x32xf32, #tpu.memory_space<vmem>>, vector<1x280x32xf32>
    tpu.vector_store %arg11[%c0_208, %c0_209, %c0_210], %163 {strides = array<i32>} : memref<1x280x32xf32, #tpu.memory_space<vmem>>, vector<1x280x32xf32>,
    %c0_211 = arith.constant 0 : index
    %c60 = arith.constant 60 : index
    %c0_212 = arith.constant 0 : index
    %165 = vector.load %arg10[%c0_211, %c60, %c0_212] : memref<1x368x16xf32, #tpu.memory_space<vmem>>, vector<1x280x16xf32>
    %c0_213 = arith.constant 0 : index
    %c61 = arith.constant 61 : index
    %c0_214 = arith.constant 0 : index
    %166 = vector.load %arg10[%c0_213, %c61, %c0_214] : memref<1x368x16xf32, #tpu.memory_space<vmem>>, vector<1x280x16xf32>
    %c0_215 = arith.constant 0 : index
    %c62_216 = arith.constant 62 : index
    %c0_217 = arith.constant 0 : index
    %167 = vector.load %arg10[%c0_215, %c62_216, %c0_217] : memref<1x368x16xf32, #tpu.memory_space<vmem>>, vector<1x280x16xf32>
    %c0_218 = arith.constant 0 : index
    %c63 = arith.constant 63 : index
    %c0_219 = arith.constant 0 : index
    %168 = vector.load %arg10[%c0_218, %c63, %c0_219] : memref<1x368x16xf32, #tpu.memory_space<vmem>>, vector<1x280x16xf32>
    %c0_220 = arith.constant 0 : index
    %c64_221 = arith.constant 64 : index
    %c0_222 = arith.constant 0 : index
    %169 = vector.load %arg10[%c0_220, %c64_221, %c0_222] : memref<1x368x16xf32, #tpu.memory_space<vmem>>, vector<1x280x16xf32>
    %170 = tpu.concatenate %165, %166, %167, %168, %169 in 2 : vector<1x280x16xf32>, vector<1x280x16xf32>, vector<1x280x16xf32>, vector<1x280x16xf32>, vector<1x280x16xf32> -> vector<1x280x80xf32>
    %171 = vector.shape_cast %170 : vector<1x280x80xf32> to vector<280x80xf32>
    %172 = arith.truncf %171 : vector<280x80xf32> to vector<280x80xbf16>
    %c240 = arith.constant 240 : index
    %c0_223 = arith.constant 0 : index
    %173 = vector.load %arg4[%c240, %c0_223] : memref<400x32xbf16, #tpu.memory_space<vmem>>, vector<80x32xbf16>
    %cst_224 = arith.constant dense<0.000000e+00> : vector<280x32xf32>
    %174 = tpu.matmul %172, %173, %cst_224 {dimension_numbers = #tpu.dot_dimension_numbers<[1], [0], [0], [1], [0, 0, 1, 1], [], []>} : vector<280x80xbf16>, vector<80x32xbf16>, vector<280x32xf32> -> vector<280x32xf32>
    %175 = vector.shape_cast %174 : vector<280x32xf32> to vector<1x280x32xf32>
    %c0_225 = arith.constant 0 : index
    %c0_226 = arith.constant 0 : index
    %c0_227 = arith.constant 0 : index
    %176 = vector.load %arg11[%c0_225, %c0_226, %c0_227] : memref<1x280x32xf32, #tpu.memory_space<vmem>>, vector<1x280x32xf32>
    %177 = arith.addf %176, %175 : vector<1x280x32xf32>
    %c0_228 = arith.constant 0 : index
    %c0_229 = arith.constant 0 : index
    %c0_230 = arith.constant 0 : index
    %178 = vector.load %arg11[%c0_228, %c0_229, %c0_230] : memref<1x280x32xf32, #tpu.memory_space<vmem>>, vector<1x280x32xf32>
    tpu.vector_store %arg11[%c0_228, %c0_229, %c0_230], %177 {strides = array<i32>} : memref<1x280x32xf32, #tpu.memory_space<vmem>>, vector<1x280x32xf32>,
    %c0_231 = arith.constant 0 : index
    %c80_232 = arith.constant 80 : index
    %c0_233 = arith.constant 0 : index
    %179 = vector.load %arg10[%c0_231, %c80_232, %c0_233] : memref<1x368x16xf32, #tpu.memory_space<vmem>>, vector<1x280x16xf32>
    %c0_234 = arith.constant 0 : index
    %c81 = arith.constant 81 : index
    %c0_235 = arith.constant 0 : index
    %180 = vector.load %arg10[%c0_234, %c81, %c0_235] : memref<1x368x16xf32, #tpu.memory_space<vmem>>, vector<1x280x16xf32>
    %c0_236 = arith.constant 0 : index
    %c82_237 = arith.constant 82 : index
    %c0_238 = arith.constant 0 : index
    %181 = vector.load %arg10[%c0_236, %c82_237, %c0_238] : memref<1x368x16xf32, #tpu.memory_space<vmem>>, vector<1x280x16xf32>
    %c0_239 = arith.constant 0 : index
    %c83 = arith.constant 83 : index
    %c0_240 = arith.constant 0 : index
    %182 = vector.load %arg10[%c0_239, %c83, %c0_240] : memref<1x368x16xf32, #tpu.memory_space<vmem>>, vector<1x280x16xf32>
    %c0_241 = arith.constant 0 : index
    %c84 = arith.constant 84 : index
    %c0_242 = arith.constant 0 : index
    %183 = vector.load %arg10[%c0_241, %c84, %c0_242] : memref<1x368x16xf32, #tpu.memory_space<vmem>>, vector<1x280x16xf32>
    %184 = tpu.concatenate %179, %180, %181, %182, %183 in 2 : vector<1x280x16xf32>, vector<1x280x16xf32>, vector<1x280x16xf32>, vector<1x280x16xf32>, vector<1x280x16xf32> -> vector<1x280x80xf32>
    %185 = vector.shape_cast %184 : vector<1x280x80xf32> to vector<280x80xf32>
    %186 = arith.truncf %185 : vector<280x80xf32> to vector<280x80xbf16>
    %c320_243 = arith.constant 320 : index
    %c0_244 = arith.constant 0 : index
    %187 = vector.load %arg4[%c320_243, %c0_244] : memref<400x32xbf16, #tpu.memory_space<vmem>>, vector<80x32xbf16>
    %cst_245 = arith.constant dense<0.000000e+00> : vector<280x32xf32>
    %188 = tpu.matmul %186, %187, %cst_245 {dimension_numbers = #tpu.dot_dimension_numbers<[1], [0], [0], [1], [0, 0, 1, 1], [], []>} : vector<280x80xbf16>, vector<80x32xbf16>, vector<280x32xf32> -> vector<280x32xf32>
    %189 = vector.shape_cast %188 : vector<280x32xf32> to vector<1x280x32xf32>
    %c0_246 = arith.constant 0 : index
    %c0_247 = arith.constant 0 : index
    %c0_248 = arith.constant 0 : index
    %190 = vector.load %arg11[%c0_246, %c0_247, %c0_248] : memref<1x280x32xf32, #tpu.memory_space<vmem>>, vector<1x280x32xf32>
    %191 = arith.addf %190, %189 : vector<1x280x32xf32>
    %c0_249 = arith.constant 0 : index
    %c0_250 = arith.constant 0 : index
    %192 = vector.load %arg5[%c0_249, %c0_250] : memref<1x32xf32, #tpu.memory_space<vmem>>, vector<1x32xf32>
    %193 = vector.shape_cast %192 : vector<1x32xf32> to vector<1x1x32xf32>
    %194 = vector.broadcast %193 : vector<1x1x32xf32> to vector<1x280x32xf32>
    %195 = arith.addf %191, %194 : vector<1x280x32xf32>
    %cst_251 = arith.constant 0.000000e+00 : f32
    %196 = vector.broadcast %cst_251 : f32 to vector<1x280x32xf32>
    %197 = arith.maximumf %195, %196 : vector<1x280x32xf32>
    %c0_252 = arith.constant 0 : index
    %c0_253 = arith.constant 0 : index
    %c0_254 = arith.constant 0 : index
    %198 = vector.load %arg11[%c0_252, %c0_253, %c0_254] : memref<1x280x32xf32, #tpu.memory_space<vmem>>, vector<1x280x32xf32>
    tpu.vector_store %arg11[%c0_252, %c0_253, %c0_254], %197 {strides = array<i32>} : memref<1x280x32xf32, #tpu.memory_space<vmem>>, vector<1x280x32xf32>,
    %cst_255 = arith.constant 0.000000e+00 : f32
    %199 = vector.broadcast %cst_255 : f32 to vector<1x10xf32>
    %c0_256 = arith.constant 0 : index
    %c0_257 = arith.constant 0 : index
    %c0_258 = arith.constant 0 : index
    %200 = tpu.strided_load %arg11[%c0_256, %c0_257, %c0_258] {strides = array<i32: 1, 2, 1>} : memref<1x280x32xf32, #tpu.memory_space<vmem>>, vector<1x7x32xf32>
    %c0_259 = arith.constant 0 : index
    %c1_260 = arith.constant 1 : index
    %c0_261 = arith.constant 0 : index
    %201 = tpu.strided_load %arg11[%c0_259, %c1_260, %c0_261] {strides = array<i32: 1, 2, 1>} : memref<1x280x32xf32, #tpu.memory_space<vmem>>, vector<1x7x32xf32>
    %c0_262 = arith.constant 0 : index
    %c20_263 = arith.constant 20 : index
    %c0_264 = arith.constant 0 : index
    %202 = tpu.strided_load %arg11[%c0_262, %c20_263, %c0_264] {strides = array<i32: 1, 2, 1>} : memref<1x280x32xf32, #tpu.memory_space<vmem>>, vector<1x7x32xf32>
    %c0_265 = arith.constant 0 : index
    %c21_266 = arith.constant 21 : index
    %c0_267 = arith.constant 0 : index
    %203 = tpu.strided_load %arg11[%c0_265, %c21_266, %c0_267] {strides = array<i32: 1, 2, 1>} : memref<1x280x32xf32, #tpu.memory_space<vmem>>, vector<1x7x32xf32>
    %204 = arith.maximumf %200, %201 : vector<1x7x32xf32>
    %205 = arith.maximumf %202, %203 : vector<1x7x32xf32>
    %206 = arith.maximumf %204, %205 : vector<1x7x32xf32>
    %c0_268 = arith.constant 0 : index
    %c0_269 = arith.constant 0 : index
    %207 = vector.load %arg6[%c0_268, %c0_269] : memref<1568x10xf32, #tpu.memory_space<vmem>>, vector<32x10xf32>
    %208 = vector.extract_strided_slice %206 {offsets = [0, 0, 0], sizes = [1, 1, 32], strides = [1, 1, 1]} : vector<1x7x32xf32> to vector<1x1x32xf32>
    %209 = vector.shape_cast %208 : vector<1x1x32xf32> to vector<1x32xf32>
    %cst_270 = arith.constant dense<0.000000e+00> : vector<1x10xf32>
    %210 = tpu.matmul %209, %207, %cst_270 {dimension_numbers = #tpu.dot_dimension_numbers<[1], [0], [0], [1], [0, 0, 1, 1], [], []>} : vector<1x32xf32>, vector<32x10xf32>, vector<1x10xf32> -> vector<1x10xf32>
    %211 = arith.addf %199, %210 : vector<1x10xf32>
    %c32_271 = arith.constant 32 : index
    %c0_272 = arith.constant 0 : index
    %212 = vector.load %arg6[%c32_271, %c0_272] : memref<1568x10xf32, #tpu.memory_space<vmem>>, vector<32x10xf32>
    %213 = vector.extract_strided_slice %206 {offsets = [0, 1, 0], sizes = [1, 1, 32], strides = [1, 1, 1]} : vector<1x7x32xf32> to vector<1x1x32xf32>
    %214 = vector.shape_cast %213 : vector<1x1x32xf32> to vector<1x32xf32>
    %cst_273 = arith.constant dense<0.000000e+00> : vector<1x10xf32>
    %215 = tpu.matmul %214, %212, %cst_273 {dimension_numbers = #tpu.dot_dimension_numbers<[1], [0], [0], [1], [0, 0, 1, 1], [], []>} : vector<1x32xf32>, vector<32x10xf32>, vector<1x10xf32> -> vector<1x10xf32>
    %216 = arith.addf %211, %215 : vector<1x10xf32>
    %c64_274 = arith.constant 64 : index
    %c0_275 = arith.constant 0 : index
    %217 = vector.load %arg6[%c64_274, %c0_275] : memref<1568x10xf32, #tpu.memory_space<vmem>>, vector<32x10xf32>
    %218 = vector.extract_strided_slice %206 {offsets = [0, 2, 0], sizes = [1, 1, 32], strides = [1, 1, 1]} : vector<1x7x32xf32> to vector<1x1x32xf32>
    %219 = vector.shape_cast %218 : vector<1x1x32xf32> to vector<1x32xf32>
    %cst_276 = arith.constant dense<0.000000e+00> : vector<1x10xf32>
    %220 = tpu.matmul %219, %217, %cst_276 {dimension_numbers = #tpu.dot_dimension_numbers<[1], [0], [0], [1], [0, 0, 1, 1], [], []>} : vector<1x32xf32>, vector<32x10xf32>, vector<1x10xf32> -> vector<1x10xf32>
    %221 = arith.addf %216, %220 : vector<1x10xf32>
    %c96_277 = arith.constant 96 : index
    %c0_278 = arith.constant 0 : index
    %222 = vector.load %arg6[%c96_277, %c0_278] : memref<1568x10xf32, #tpu.memory_space<vmem>>, vector<32x10xf32>
    %223 = vector.extract_strided_slice %206 {offsets = [0, 3, 0], sizes = [1, 1, 32], strides = [1, 1, 1]} : vector<1x7x32xf32> to vector<1x1x32xf32>
    %224 = vector.shape_cast %223 : vector<1x1x32xf32> to vector<1x32xf32>
    %cst_279 = arith.constant dense<0.000000e+00> : vector<1x10xf32>
    %225 = tpu.matmul %224, %222, %cst_279 {dimension_numbers = #tpu.dot_dimension_numbers<[1], [0], [0], [1], [0, 0, 1, 1], [], []>} : vector<1x32xf32>, vector<32x10xf32>, vector<1x10xf32> -> vector<1x10xf32>
    %226 = arith.addf %221, %225 : vector<1x10xf32>
    %c128_280 = arith.constant 128 : index
    %c0_281 = arith.constant 0 : index
    %227 = vector.load %arg6[%c128_280, %c0_281] : memref<1568x10xf32, #tpu.memory_space<vmem>>, vector<32x10xf32>
    %228 = vector.extract_strided_slice %206 {offsets = [0, 4, 0], sizes = [1, 1, 32], strides = [1, 1, 1]} : vector<1x7x32xf32> to vector<1x1x32xf32>
    %229 = vector.shape_cast %228 : vector<1x1x32xf32> to vector<1x32xf32>
    %cst_282 = arith.constant dense<0.000000e+00> : vector<1x10xf32>
    %230 = tpu.matmul %229, %227, %cst_282 {dimension_numbers = #tpu.dot_dimension_numbers<[1], [0], [0], [1], [0, 0, 1, 1], [], []>} : vector<1x32xf32>, vector<32x10xf32>, vector<1x10xf32> -> vector<1x10xf32>
    %231 = arith.addf %226, %230 : vector<1x10xf32>
    %c160_283 = arith.constant 160 : index
    %c0_284 = arith.constant 0 : index
    %232 = vector.load %arg6[%c160_283, %c0_284] : memref<1568x10xf32, #tpu.memory_space<vmem>>, vector<32x10xf32>
    %233 = vector.extract_strided_slice %206 {offsets = [0, 5, 0], sizes = [1, 1, 32], strides = [1, 1, 1]} : vector<1x7x32xf32> to vector<1x1x32xf32>
    %234 = vector.shape_cast %233 : vector<1x1x32xf32> to vector<1x32xf32>
    %cst_285 = arith.constant dense<0.000000e+00> : vector<1x10xf32>
    %235 = tpu.matmul %234, %232, %cst_285 {dimension_numbers = #tpu.dot_dimension_numbers<[1], [0], [0], [1], [0, 0, 1, 1], [], []>} : vector<1x32xf32>, vector<32x10xf32>, vector<1x10xf32> -> vector<1x10xf32>
    %236 = arith.addf %231, %235 : vector<1x10xf32>
    %c192_286 = arith.constant 192 : index
    %c0_287 = arith.constant 0 : index
    %237 = vector.load %arg6[%c192_286, %c0_287] : memref<1568x10xf32, #tpu.memory_space<vmem>>, vector<32x10xf32>
    %238 = vector.extract_strided_slice %206 {offsets = [0, 6, 0], sizes = [1, 1, 32], strides = [1, 1, 1]} : vector<1x7x32xf32> to vector<1x1x32xf32>
    %239 = vector.shape_cast %238 : vector<1x1x32xf32> to vector<1x32xf32>
    %cst_288 = arith.constant dense<0.000000e+00> : vector<1x10xf32>
    %240 = tpu.matmul %239, %237, %cst_288 {dimension_numbers = #tpu.dot_dimension_numbers<[1], [0], [0], [1], [0, 0, 1, 1], [], []>} : vector<1x32xf32>, vector<32x10xf32>, vector<1x10xf32> -> vector<1x10xf32>
    %241 = arith.addf %236, %240 : vector<1x10xf32>
    %c0_289 = arith.constant 0 : index
    %c40_290 = arith.constant 40 : index
    %c0_291 = arith.constant 0 : index
    %242 = tpu.strided_load %arg11[%c0_289, %c40_290, %c0_291] {strides = array<i32: 1, 2, 1>} : memref<1x280x32xf32, #tpu.memory_space<vmem>>, vector<1x7x32xf32>
    %c0_292 = arith.constant 0 : index
    %c41_293 = arith.constant 41 : index
    %c0_294 = arith.constant 0 : index
    %243 = tpu.strided_load %arg11[%c0_292, %c41_293, %c0_294] {strides = array<i32: 1, 2, 1>} : memref<1x280x32xf32, #tpu.memory_space<vmem>>, vector<1x7x32xf32>
    %c0_295 = arith.constant 0 : index
    %c60_296 = arith.constant 60 : index
    %c0_297 = arith.constant 0 : index
    %244 = tpu.strided_load %arg11[%c0_295, %c60_296, %c0_297] {strides = array<i32: 1, 2, 1>} : memref<1x280x32xf32, #tpu.memory_space<vmem>>, vector<1x7x32xf32>
    %c0_298 = arith.constant 0 : index
    %c61_299 = arith.constant 61 : index
    %c0_300 = arith.constant 0 : index
    %245 = tpu.strided_load %arg11[%c0_298, %c61_299, %c0_300] {strides = array<i32: 1, 2, 1>} : memref<1x280x32xf32, #tpu.memory_space<vmem>>, vector<1x7x32xf32>
    %246 = arith.maximumf %242, %243 : vector<1x7x32xf32>
    %247 = arith.maximumf %244, %245 : vector<1x7x32xf32>
    %248 = arith.maximumf %246, %247 : vector<1x7x32xf32>
    %c224_301 = arith.constant 224 : index
    %c0_302 = arith.constant 0 : index
    %249 = vector.load %arg6[%c224_301, %c0_302] : memref<1568x10xf32, #tpu.memory_space<vmem>>, vector<32x10xf32>
    %250 = vector.extract_strided_slice %248 {offsets = [0, 0, 0], sizes = [1, 1, 32], strides = [1, 1, 1]} : vector<1x7x32xf32> to vector<1x1x32xf32>
    %251 = vector.shape_cast %250 : vector<1x1x32xf32> to vector<1x32xf32>
    %cst_303 = arith.constant dense<0.000000e+00> : vector<1x10xf32>
    %252 = tpu.matmul %251, %249, %cst_303 {dimension_numbers = #tpu.dot_dimension_numbers<[1], [0], [0], [1], [0, 0, 1, 1], [], []>} : vector<1x32xf32>, vector<32x10xf32>, vector<1x10xf32> -> vector<1x10xf32>
    %253 = arith.addf %241, %252 : vector<1x10xf32>
    %c256_304 = arith.constant 256 : index
    %c0_305 = arith.constant 0 : index
    %254 = vector.load %arg6[%c256_304, %c0_305] : memref<1568x10xf32, #tpu.memory_space<vmem>>, vector<32x10xf32>
    %255 = vector.extract_strided_slice %248 {offsets = [0, 1, 0], sizes = [1, 1, 32], strides = [1, 1, 1]} : vector<1x7x32xf32> to vector<1x1x32xf32>
    %256 = vector.shape_cast %255 : vector<1x1x32xf32> to vector<1x32xf32>
    %cst_306 = arith.constant dense<0.000000e+00> : vector<1x10xf32>
    %257 = tpu.matmul %256, %254, %cst_306 {dimension_numbers = #tpu.dot_dimension_numbers<[1], [0], [0], [1], [0, 0, 1, 1], [], []>} : vector<1x32xf32>, vector<32x10xf32>, vector<1x10xf32> -> vector<1x10xf32>
    %258 = arith.addf %253, %257 : vector<1x10xf32>
    %c288_307 = arith.constant 288 : index
    %c0_308 = arith.constant 0 : index
    %259 = vector.load %arg6[%c288_307, %c0_308] : memref<1568x10xf32, #tpu.memory_space<vmem>>, vector<32x10xf32>
    %260 = vector.extract_strided_slice %248 {offsets = [0, 2, 0], sizes = [1, 1, 32], strides = [1, 1, 1]} : vector<1x7x32xf32> to vector<1x1x32xf32>
    %261 = vector.shape_cast %260 : vector<1x1x32xf32> to vector<1x32xf32>
    %cst_309 = arith.constant dense<0.000000e+00> : vector<1x10xf32>
    %262 = tpu.matmul %261, %259, %cst_309 {dimension_numbers = #tpu.dot_dimension_numbers<[1], [0], [0], [1], [0, 0, 1, 1], [], []>} : vector<1x32xf32>, vector<32x10xf32>, vector<1x10xf32> -> vector<1x10xf32>
    %263 = arith.addf %258, %262 : vector<1x10xf32>
    %c320_310 = arith.constant 320 : index
    %c0_311 = arith.constant 0 : index
    %264 = vector.load %arg6[%c320_310, %c0_311] : memref<1568x10xf32, #tpu.memory_space<vmem>>, vector<32x10xf32>
    %265 = vector.extract_strided_slice %248 {offsets = [0, 3, 0], sizes = [1, 1, 32], strides = [1, 1, 1]} : vector<1x7x32xf32> to vector<1x1x32xf32>
    %266 = vector.shape_cast %265 : vector<1x1x32xf32> to vector<1x32xf32>
    %cst_312 = arith.constant dense<0.000000e+00> : vector<1x10xf32>
    %267 = tpu.matmul %266, %264, %cst_312 {dimension_numbers = #tpu.dot_dimension_numbers<[1], [0], [0], [1], [0, 0, 1, 1], [], []>} : vector<1x32xf32>, vector<32x10xf32>, vector<1x10xf32> -> vector<1x10xf32>
    %268 = arith.addf %263, %267 : vector<1x10xf32>
    %c352_313 = arith.constant 352 : index
    %c0_314 = arith.constant 0 : index
    %269 = vector.load %arg6[%c352_313, %c0_314] : memref<1568x10xf32, #tpu.memory_space<vmem>>, vector<32x10xf32>
    %270 = vector.extract_strided_slice %248 {offsets = [0, 4, 0], sizes = [1, 1, 32], strides = [1, 1, 1]} : vector<1x7x32xf32> to vector<1x1x32xf32>
    %271 = vector.shape_cast %270 : vector<1x1x32xf32> to vector<1x32xf32>
    %cst_315 = arith.constant dense<0.000000e+00> : vector<1x10xf32>
    %272 = tpu.matmul %271, %269, %cst_315 {dimension_numbers = #tpu.dot_dimension_numbers<[1], [0], [0], [1], [0, 0, 1, 1], [], []>} : vector<1x32xf32>, vector<32x10xf32>, vector<1x10xf32> -> vector<1x10xf32>
    %273 = arith.addf %268, %272 : vector<1x10xf32>
    %c384_316 = arith.constant 384 : index
    %c0_317 = arith.constant 0 : index
    %274 = vector.load %arg6[%c384_316, %c0_317] : memref<1568x10xf32, #tpu.memory_space<vmem>>, vector<32x10xf32>
    %275 = vector.extract_strided_slice %248 {offsets = [0, 5, 0], sizes = [1, 1, 32], strides = [1, 1, 1]} : vector<1x7x32xf32> to vector<1x1x32xf32>
    %276 = vector.shape_cast %275 : vector<1x1x32xf32> to vector<1x32xf32>
    %cst_318 = arith.constant dense<0.000000e+00> : vector<1x10xf32>
    %277 = tpu.matmul %276, %274, %cst_318 {dimension_numbers = #tpu.dot_dimension_numbers<[1], [0], [0], [1], [0, 0, 1, 1], [], []>} : vector<1x32xf32>, vector<32x10xf32>, vector<1x10xf32> -> vector<1x10xf32>
    %278 = arith.addf %273, %277 : vector<1x10xf32>
    %c416_319 = arith.constant 416 : index
    %c0_320 = arith.constant 0 : index
    %279 = vector.load %arg6[%c416_319, %c0_320] : memref<1568x10xf32, #tpu.memory_space<vmem>>, vector<32x10xf32>
    %280 = vector.extract_strided_slice %248 {offsets = [0, 6, 0], sizes = [1, 1, 32], strides = [1, 1, 1]} : vector<1x7x32xf32> to vector<1x1x32xf32>
    %281 = vector.shape_cast %280 : vector<1x1x32xf32> to vector<1x32xf32>
    %cst_321 = arith.constant dense<0.000000e+00> : vector<1x10xf32>
    %282 = tpu.matmul %281, %279, %cst_321 {dimension_numbers = #tpu.dot_dimension_numbers<[1], [0], [0], [1], [0, 0, 1, 1], [], []>} : vector<1x32xf32>, vector<32x10xf32>, vector<1x10xf32> -> vector<1x10xf32>
    %283 = arith.addf %278, %282 : vector<1x10xf32>
    %c0_322 = arith.constant 0 : index
    %c80_323 = arith.constant 80 : index
    %c0_324 = arith.constant 0 : index
    %284 = tpu.strided_load %arg11[%c0_322, %c80_323, %c0_324] {strides = array<i32: 1, 2, 1>} : memref<1x280x32xf32, #tpu.memory_space<vmem>>, vector<1x7x32xf32>
    %c0_325 = arith.constant 0 : index
    %c81_326 = arith.constant 81 : index
    %c0_327 = arith.constant 0 : index
    %285 = tpu.strided_load %arg11[%c0_325, %c81_326, %c0_327] {strides = array<i32: 1, 2, 1>} : memref<1x280x32xf32, #tpu.memory_space<vmem>>, vector<1x7x32xf32>
    %c0_328 = arith.constant 0 : index
    %c100 = arith.constant 100 : index
    %c0_329 = arith.constant 0 : index
    %286 = tpu.strided_load %arg11[%c0_328, %c100, %c0_329] {strides = array<i32: 1, 2, 1>} : memref<1x280x32xf32, #tpu.memory_space<vmem>>, vector<1x7x32xf32>
    %c0_330 = arith.constant 0 : index
    %c101 = arith.constant 101 : index
    %c0_331 = arith.constant 0 : index
    %287 = tpu.strided_load %arg11[%c0_330, %c101, %c0_331] {strides = array<i32: 1, 2, 1>} : memref<1x280x32xf32, #tpu.memory_space<vmem>>, vector<1x7x32xf32>
    %288 = arith.maximumf %284, %285 : vector<1x7x32xf32>
    %289 = arith.maximumf %286, %287 : vector<1x7x32xf32>
    %290 = arith.maximumf %288, %289 : vector<1x7x32xf32>
    %c448_332 = arith.constant 448 : index
    %c0_333 = arith.constant 0 : index
    %291 = vector.load %arg6[%c448_332, %c0_333] : memref<1568x10xf32, #tpu.memory_space<vmem>>, vector<32x10xf32>
    %292 = vector.extract_strided_slice %290 {offsets = [0, 0, 0], sizes = [1, 1, 32], strides = [1, 1, 1]} : vector<1x7x32xf32> to vector<1x1x32xf32>
    %293 = vector.shape_cast %292 : vector<1x1x32xf32> to vector<1x32xf32>
    %cst_334 = arith.constant dense<0.000000e+00> : vector<1x10xf32>
    %294 = tpu.matmul %293, %291, %cst_334 {dimension_numbers = #tpu.dot_dimension_numbers<[1], [0], [0], [1], [0, 0, 1, 1], [], []>} : vector<1x32xf32>, vector<32x10xf32>, vector<1x10xf32> -> vector<1x10xf32>
    %295 = arith.addf %283, %294 : vector<1x10xf32>
    %c480_335 = arith.constant 480 : index
    %c0_336 = arith.constant 0 : index
    %296 = vector.load %arg6[%c480_335, %c0_336] : memref<1568x10xf32, #tpu.memory_space<vmem>>, vector<32x10xf32>
    %297 = vector.extract_strided_slice %290 {offsets = [0, 1, 0], sizes = [1, 1, 32], strides = [1, 1, 1]} : vector<1x7x32xf32> to vector<1x1x32xf32>
    %298 = vector.shape_cast %297 : vector<1x1x32xf32> to vector<1x32xf32>
    %cst_337 = arith.constant dense<0.000000e+00> : vector<1x10xf32>
    %299 = tpu.matmul %298, %296, %cst_337 {dimension_numbers = #tpu.dot_dimension_numbers<[1], [0], [0], [1], [0, 0, 1, 1], [], []>} : vector<1x32xf32>, vector<32x10xf32>, vector<1x10xf32> -> vector<1x10xf32>
    %300 = arith.addf %295, %299 : vector<1x10xf32>
    %c512_338 = arith.constant 512 : index
    %c0_339 = arith.constant 0 : index
    %301 = vector.load %arg6[%c512_338, %c0_339] : memref<1568x10xf32, #tpu.memory_space<vmem>>, vector<32x10xf32>
    %302 = vector.extract_strided_slice %290 {offsets = [0, 2, 0], sizes = [1, 1, 32], strides = [1, 1, 1]} : vector<1x7x32xf32> to vector<1x1x32xf32>
    %303 = vector.shape_cast %302 : vector<1x1x32xf32> to vector<1x32xf32>
    %cst_340 = arith.constant dense<0.000000e+00> : vector<1x10xf32>
    %304 = tpu.matmul %303, %301, %cst_340 {dimension_numbers = #tpu.dot_dimension_numbers<[1], [0], [0], [1], [0, 0, 1, 1], [], []>} : vector<1x32xf32>, vector<32x10xf32>, vector<1x10xf32> -> vector<1x10xf32>
    %305 = arith.addf %300, %304 : vector<1x10xf32>
    %c544_341 = arith.constant 544 : index
    %c0_342 = arith.constant 0 : index
    %306 = vector.load %arg6[%c544_341, %c0_342] : memref<1568x10xf32, #tpu.memory_space<vmem>>, vector<32x10xf32>
    %307 = vector.extract_strided_slice %290 {offsets = [0, 3, 0], sizes = [1, 1, 32], strides = [1, 1, 1]} : vector<1x7x32xf32> to vector<1x1x32xf32>
    %308 = vector.shape_cast %307 : vector<1x1x32xf32> to vector<1x32xf32>
    %cst_343 = arith.constant dense<0.000000e+00> : vector<1x10xf32>
    %309 = tpu.matmul %308, %306, %cst_343 {dimension_numbers = #tpu.dot_dimension_numbers<[1], [0], [0], [1], [0, 0, 1, 1], [], []>} : vector<1x32xf32>, vector<32x10xf32>, vector<1x10xf32> -> vector<1x10xf32>
    %310 = arith.addf %305, %309 : vector<1x10xf32>
    %c576_344 = arith.constant 576 : index
    %c0_345 = arith.constant 0 : index
    %311 = vector.load %arg6[%c576_344, %c0_345] : memref<1568x10xf32, #tpu.memory_space<vmem>>, vector<32x10xf32>
    %312 = vector.extract_strided_slice %290 {offsets = [0, 4, 0], sizes = [1, 1, 32], strides = [1, 1, 1]} : vector<1x7x32xf32> to vector<1x1x32xf32>
    %313 = vector.shape_cast %312 : vector<1x1x32xf32> to vector<1x32xf32>
    %cst_346 = arith.constant dense<0.000000e+00> : vector<1x10xf32>
    %314 = tpu.matmul %313, %311, %cst_346 {dimension_numbers = #tpu.dot_dimension_numbers<[1], [0], [0], [1], [0, 0, 1, 1], [], []>} : vector<1x32xf32>, vector<32x10xf32>, vector<1x10xf32> -> vector<1x10xf32>
    %315 = arith.addf %310, %314 : vector<1x10xf32>
    %c608_347 = arith.constant 608 : index
    %c0_348 = arith.constant 0 : index
    %316 = vector.load %arg6[%c608_347, %c0_348] : memref<1568x10xf32, #tpu.memory_space<vmem>>, vector<32x10xf32>
    %317 = vector.extract_strided_slice %290 {offsets = [0, 5, 0], sizes = [1, 1, 32], strides = [1, 1, 1]} : vector<1x7x32xf32> to vector<1x1x32xf32>
    %318 = vector.shape_cast %317 : vector<1x1x32xf32> to vector<1x32xf32>
    %cst_349 = arith.constant dense<0.000000e+00> : vector<1x10xf32>
    %319 = tpu.matmul %318, %316, %cst_349 {dimension_numbers = #tpu.dot_dimension_numbers<[1], [0], [0], [1], [0, 0, 1, 1], [], []>} : vector<1x32xf32>, vector<32x10xf32>, vector<1x10xf32> -> vector<1x10xf32>
    %320 = arith.addf %315, %319 : vector<1x10xf32>
    %c640_350 = arith.constant 640 : index
    %c0_351 = arith.constant 0 : index
    %321 = vector.load %arg6[%c640_350, %c0_351] : memref<1568x10xf32, #tpu.memory_space<vmem>>, vector<32x10xf32>
    %322 = vector.extract_strided_slice %290 {offsets = [0, 6, 0], sizes = [1, 1, 32], strides = [1, 1, 1]} : vector<1x7x32xf32> to vector<1x1x32xf32>
    %323 = vector.shape_cast %322 : vector<1x1x32xf32> to vector<1x32xf32>
    %cst_352 = arith.constant dense<0.000000e+00> : vector<1x10xf32>
    %324 = tpu.matmul %323, %321, %cst_352 {dimension_numbers = #tpu.dot_dimension_numbers<[1], [0], [0], [1], [0, 0, 1, 1], [], []>} : vector<1x32xf32>, vector<32x10xf32>, vector<1x10xf32> -> vector<1x10xf32>
    %325 = arith.addf %320, %324 : vector<1x10xf32>
    %c0_353 = arith.constant 0 : index
    %c120 = arith.constant 120 : index
    %c0_354 = arith.constant 0 : index
    %326 = tpu.strided_load %arg11[%c0_353, %c120, %c0_354] {strides = array<i32: 1, 2, 1>} : memref<1x280x32xf32, #tpu.memory_space<vmem>>, vector<1x7x32xf32>
    %c0_355 = arith.constant 0 : index
    %c121 = arith.constant 121 : index
    %c0_356 = arith.constant 0 : index
    %327 = tpu.strided_load %arg11[%c0_355, %c121, %c0_356] {strides = array<i32: 1, 2, 1>} : memref<1x280x32xf32, #tpu.memory_space<vmem>>, vector<1x7x32xf32>
    %c0_357 = arith.constant 0 : index
    %c140 = arith.constant 140 : index
    %c0_358 = arith.constant 0 : index
    %328 = tpu.strided_load %arg11[%c0_357, %c140, %c0_358] {strides = array<i32: 1, 2, 1>} : memref<1x280x32xf32, #tpu.memory_space<vmem>>, vector<1x7x32xf32>
    %c0_359 = arith.constant 0 : index
    %c141 = arith.constant 141 : index
    %c0_360 = arith.constant 0 : index
    %329 = tpu.strided_load %arg11[%c0_359, %c141, %c0_360] {strides = array<i32: 1, 2, 1>} : memref<1x280x32xf32, #tpu.memory_space<vmem>>, vector<1x7x32xf32>
    %330 = arith.maximumf %326, %327 : vector<1x7x32xf32>
    %331 = arith.maximumf %328, %329 : vector<1x7x32xf32>
    %332 = arith.maximumf %330, %331 : vector<1x7x32xf32>
    %c672_361 = arith.constant 672 : index
    %c0_362 = arith.constant 0 : index
    %333 = vector.load %arg6[%c672_361, %c0_362] : memref<1568x10xf32, #tpu.memory_space<vmem>>, vector<32x10xf32>
    %334 = vector.extract_strided_slice %332 {offsets = [0, 0, 0], sizes = [1, 1, 32], strides = [1, 1, 1]} : vector<1x7x32xf32> to vector<1x1x32xf32>
    %335 = vector.shape_cast %334 : vector<1x1x32xf32> to vector<1x32xf32>
    %cst_363 = arith.constant dense<0.000000e+00> : vector<1x10xf32>
    %336 = tpu.matmul %335, %333, %cst_363 {dimension_numbers = #tpu.dot_dimension_numbers<[1], [0], [0], [1], [0, 0, 1, 1], [], []>} : vector<1x32xf32>, vector<32x10xf32>, vector<1x10xf32> -> vector<1x10xf32>
    %337 = arith.addf %325, %336 : vector<1x10xf32>
    %c704_364 = arith.constant 704 : index
    %c0_365 = arith.constant 0 : index
    %338 = vector.load %arg6[%c704_364, %c0_365] : memref<1568x10xf32, #tpu.memory_space<vmem>>, vector<32x10xf32>
    %339 = vector.extract_strided_slice %332 {offsets = [0, 1, 0], sizes = [1, 1, 32], strides = [1, 1, 1]} : vector<1x7x32xf32> to vector<1x1x32xf32>
    %340 = vector.shape_cast %339 : vector<1x1x32xf32> to vector<1x32xf32>
    %cst_366 = arith.constant dense<0.000000e+00> : vector<1x10xf32>
    %341 = tpu.matmul %340, %338, %cst_366 {dimension_numbers = #tpu.dot_dimension_numbers<[1], [0], [0], [1], [0, 0, 1, 1], [], []>} : vector<1x32xf32>, vector<32x10xf32>, vector<1x10xf32> -> vector<1x10xf32>
    %342 = arith.addf %337, %341 : vector<1x10xf32>
    %c736_367 = arith.constant 736 : index
    %c0_368 = arith.constant 0 : index
    %343 = vector.load %arg6[%c736_367, %c0_368] : memref<1568x10xf32, #tpu.memory_space<vmem>>, vector<32x10xf32>
    %344 = vector.extract_strided_slice %332 {offsets = [0, 2, 0], sizes = [1, 1, 32], strides = [1, 1, 1]} : vector<1x7x32xf32> to vector<1x1x32xf32>
    %345 = vector.shape_cast %344 : vector<1x1x32xf32> to vector<1x32xf32>
    %cst_369 = arith.constant dense<0.000000e+00> : vector<1x10xf32>
    %346 = tpu.matmul %345, %343, %cst_369 {dimension_numbers = #tpu.dot_dimension_numbers<[1], [0], [0], [1], [0, 0, 1, 1], [], []>} : vector<1x32xf32>, vector<32x10xf32>, vector<1x10xf32> -> vector<1x10xf32>
    %347 = arith.addf %342, %346 : vector<1x10xf32>
    %c768_370 = arith.constant 768 : index
    %c0_371 = arith.constant 0 : index
    %348 = vector.load %arg6[%c768_370, %c0_371] : memref<1568x10xf32, #tpu.memory_space<vmem>>, vector<32x10xf32>
    %349 = vector.extract_strided_slice %332 {offsets = [0, 3, 0], sizes = [1, 1, 32], strides = [1, 1, 1]} : vector<1x7x32xf32> to vector<1x1x32xf32>
    %350 = vector.shape_cast %349 : vector<1x1x32xf32> to vector<1x32xf32>
    %cst_372 = arith.constant dense<0.000000e+00> : vector<1x10xf32>
    %351 = tpu.matmul %350, %348, %cst_372 {dimension_numbers = #tpu.dot_dimension_numbers<[1], [0], [0], [1], [0, 0, 1, 1], [], []>} : vector<1x32xf32>, vector<32x10xf32>, vector<1x10xf32> -> vector<1x10xf32>
    %352 = arith.addf %347, %351 : vector<1x10xf32>
    %c800_373 = arith.constant 800 : index
    %c0_374 = arith.constant 0 : index
    %353 = vector.load %arg6[%c800_373, %c0_374] : memref<1568x10xf32, #tpu.memory_space<vmem>>, vector<32x10xf32>
    %354 = vector.extract_strided_slice %332 {offsets = [0, 4, 0], sizes = [1, 1, 32], strides = [1, 1, 1]} : vector<1x7x32xf32> to vector<1x1x32xf32>
    %355 = vector.shape_cast %354 : vector<1x1x32xf32> to vector<1x32xf32>
    %cst_375 = arith.constant dense<0.000000e+00> : vector<1x10xf32>
    %356 = tpu.matmul %355, %353, %cst_375 {dimension_numbers = #tpu.dot_dimension_numbers<[1], [0], [0], [1], [0, 0, 1, 1], [], []>} : vector<1x32xf32>, vector<32x10xf32>, vector<1x10xf32> -> vector<1x10xf32>
    %357 = arith.addf %352, %356 : vector<1x10xf32>
    %c832_376 = arith.constant 832 : index
    %c0_377 = arith.constant 0 : index
    %358 = vector.load %arg6[%c832_376, %c0_377] : memref<1568x10xf32, #tpu.memory_space<vmem>>, vector<32x10xf32>
    %359 = vector.extract_strided_slice %332 {offsets = [0, 5, 0], sizes = [1, 1, 32], strides = [1, 1, 1]} : vector<1x7x32xf32> to vector<1x1x32xf32>
    %360 = vector.shape_cast %359 : vector<1x1x32xf32> to vector<1x32xf32>
    %cst_378 = arith.constant dense<0.000000e+00> : vector<1x10xf32>
    %361 = tpu.matmul %360, %358, %cst_378 {dimension_numbers = #tpu.dot_dimension_numbers<[1], [0], [0], [1], [0, 0, 1, 1], [], []>} : vector<1x32xf32>, vector<32x10xf32>, vector<1x10xf32> -> vector<1x10xf32>
    %362 = arith.addf %357, %361 : vector<1x10xf32>
    %c864_379 = arith.constant 864 : index
    %c0_380 = arith.constant 0 : index
    %363 = vector.load %arg6[%c864_379, %c0_380] : memref<1568x10xf32, #tpu.memory_space<vmem>>, vector<32x10xf32>
    %364 = vector.extract_strided_slice %332 {offsets = [0, 6, 0], sizes = [1, 1, 32], strides = [1, 1, 1]} : vector<1x7x32xf32> to vector<1x1x32xf32>
    %365 = vector.shape_cast %364 : vector<1x1x32xf32> to vector<1x32xf32>
    %cst_381 = arith.constant dense<0.000000e+00> : vector<1x10xf32>
    %366 = tpu.matmul %365, %363, %cst_381 {dimension_numbers = #tpu.dot_dimension_numbers<[1], [0], [0], [1], [0, 0, 1, 1], [], []>} : vector<1x32xf32>, vector<32x10xf32>, vector<1x10xf32> -> vector<1x10xf32>
    %367 = arith.addf %362, %366 : vector<1x10xf32>
    %c0_382 = arith.constant 0 : index
    %c160_383 = arith.constant 160 : index
    %c0_384 = arith.constant 0 : index
    %368 = tpu.strided_load %arg11[%c0_382, %c160_383, %c0_384] {strides = array<i32: 1, 2, 1>} : memref<1x280x32xf32, #tpu.memory_space<vmem>>, vector<1x7x32xf32>
    %c0_385 = arith.constant 0 : index
    %c161_386 = arith.constant 161 : index
    %c0_387 = arith.constant 0 : index
    %369 = tpu.strided_load %arg11[%c0_385, %c161_386, %c0_387] {strides = array<i32: 1, 2, 1>} : memref<1x280x32xf32, #tpu.memory_space<vmem>>, vector<1x7x32xf32>
    %c0_388 = arith.constant 0 : index
    %c180 = arith.constant 180 : index
    %c0_389 = arith.constant 0 : index
    %370 = tpu.strided_load %arg11[%c0_388, %c180, %c0_389] {strides = array<i32: 1, 2, 1>} : memref<1x280x32xf32, #tpu.memory_space<vmem>>, vector<1x7x32xf32>
    %c0_390 = arith.constant 0 : index
    %c181 = arith.constant 181 : index
    %c0_391 = arith.constant 0 : index
    %371 = tpu.strided_load %arg11[%c0_390, %c181, %c0_391] {strides = array<i32: 1, 2, 1>} : memref<1x280x32xf32, #tpu.memory_space<vmem>>, vector<1x7x32xf32>
    %372 = arith.maximumf %368, %369 : vector<1x7x32xf32>
    %373 = arith.maximumf %370, %371 : vector<1x7x32xf32>
    %374 = arith.maximumf %372, %373 : vector<1x7x32xf32>
    %c896 = arith.constant 896 : index
    %c0_392 = arith.constant 0 : index
    %375 = vector.load %arg6[%c896, %c0_392] : memref<1568x10xf32, #tpu.memory_space<vmem>>, vector<32x10xf32>
    %376 = vector.extract_strided_slice %374 {offsets = [0, 0, 0], sizes = [1, 1, 32], strides = [1, 1, 1]} : vector<1x7x32xf32> to vector<1x1x32xf32>
    %377 = vector.shape_cast %376 : vector<1x1x32xf32> to vector<1x32xf32>
    %cst_393 = arith.constant dense<0.000000e+00> : vector<1x10xf32>
    %378 = tpu.matmul %377, %375, %cst_393 {dimension_numbers = #tpu.dot_dimension_numbers<[1], [0], [0], [1], [0, 0, 1, 1], [], []>} : vector<1x32xf32>, vector<32x10xf32>, vector<1x10xf32> -> vector<1x10xf32>
    %379 = arith.addf %367, %378 : vector<1x10xf32>
    %c928 = arith.constant 928 : index
    %c0_394 = arith.constant 0 : index
    %380 = vector.load %arg6[%c928, %c0_394] : memref<1568x10xf32, #tpu.memory_space<vmem>>, vector<32x10xf32>
    %381 = vector.extract_strided_slice %374 {offsets = [0, 1, 0], sizes = [1, 1, 32], strides = [1, 1, 1]} : vector<1x7x32xf32> to vector<1x1x32xf32>
    %382 = vector.shape_cast %381 : vector<1x1x32xf32> to vector<1x32xf32>
    %cst_395 = arith.constant dense<0.000000e+00> : vector<1x10xf32>
    %383 = tpu.matmul %382, %380, %cst_395 {dimension_numbers = #tpu.dot_dimension_numbers<[1], [0], [0], [1], [0, 0, 1, 1], [], []>} : vector<1x32xf32>, vector<32x10xf32>, vector<1x10xf32> -> vector<1x10xf32>
    %384 = arith.addf %379, %383 : vector<1x10xf32>
    %c960 = arith.constant 960 : index
    %c0_396 = arith.constant 0 : index
    %385 = vector.load %arg6[%c960, %c0_396] : memref<1568x10xf32, #tpu.memory_space<vmem>>, vector<32x10xf32>
    %386 = vector.extract_strided_slice %374 {offsets = [0, 2, 0], sizes = [1, 1, 32], strides = [1, 1, 1]} : vector<1x7x32xf32> to vector<1x1x32xf32>
    %387 = vector.shape_cast %386 : vector<1x1x32xf32> to vector<1x32xf32>
    %cst_397 = arith.constant dense<0.000000e+00> : vector<1x10xf32>
    %388 = tpu.matmul %387, %385, %cst_397 {dimension_numbers = #tpu.dot_dimension_numbers<[1], [0], [0], [1], [0, 0, 1, 1], [], []>} : vector<1x32xf32>, vector<32x10xf32>, vector<1x10xf32> -> vector<1x10xf32>
    %389 = arith.addf %384, %388 : vector<1x10xf32>
    %c992 = arith.constant 992 : index
    %c0_398 = arith.constant 0 : index
    %390 = vector.load %arg6[%c992, %c0_398] : memref<1568x10xf32, #tpu.memory_space<vmem>>, vector<32x10xf32>
    %391 = vector.extract_strided_slice %374 {offsets = [0, 3, 0], sizes = [1, 1, 32], strides = [1, 1, 1]} : vector<1x7x32xf32> to vector<1x1x32xf32>
    %392 = vector.shape_cast %391 : vector<1x1x32xf32> to vector<1x32xf32>
    %cst_399 = arith.constant dense<0.000000e+00> : vector<1x10xf32>
    %393 = tpu.matmul %392, %390, %cst_399 {dimension_numbers = #tpu.dot_dimension_numbers<[1], [0], [0], [1], [0, 0, 1, 1], [], []>} : vector<1x32xf32>, vector<32x10xf32>, vector<1x10xf32> -> vector<1x10xf32>
    %394 = arith.addf %389, %393 : vector<1x10xf32>
    %c1024 = arith.constant 1024 : index
    %c0_400 = arith.constant 0 : index
    %395 = vector.load %arg6[%c1024, %c0_400] : memref<1568x10xf32, #tpu.memory_space<vmem>>, vector<32x10xf32>
    %396 = vector.extract_strided_slice %374 {offsets = [0, 4, 0], sizes = [1, 1, 32], strides = [1, 1, 1]} : vector<1x7x32xf32> to vector<1x1x32xf32>
    %397 = vector.shape_cast %396 : vector<1x1x32xf32> to vector<1x32xf32>
    %cst_401 = arith.constant dense<0.000000e+00> : vector<1x10xf32>
    %398 = tpu.matmul %397, %395, %cst_401 {dimension_numbers = #tpu.dot_dimension_numbers<[1], [0], [0], [1], [0, 0, 1, 1], [], []>} : vector<1x32xf32>, vector<32x10xf32>, vector<1x10xf32> -> vector<1x10xf32>
    %399 = arith.addf %394, %398 : vector<1x10xf32>
    %c1056 = arith.constant 1056 : index
    %c0_402 = arith.constant 0 : index
    %400 = vector.load %arg6[%c1056, %c0_402] : memref<1568x10xf32, #tpu.memory_space<vmem>>, vector<32x10xf32>
    %401 = vector.extract_strided_slice %374 {offsets = [0, 5, 0], sizes = [1, 1, 32], strides = [1, 1, 1]} : vector<1x7x32xf32> to vector<1x1x32xf32>
    %402 = vector.shape_cast %401 : vector<1x1x32xf32> to vector<1x32xf32>
    %cst_403 = arith.constant dense<0.000000e+00> : vector<1x10xf32>
    %403 = tpu.matmul %402, %400, %cst_403 {dimension_numbers = #tpu.dot_dimension_numbers<[1], [0], [0], [1], [0, 0, 1, 1], [], []>} : vector<1x32xf32>, vector<32x10xf32>, vector<1x10xf32> -> vector<1x10xf32>
    %404 = arith.addf %399, %403 : vector<1x10xf32>
    %c1088 = arith.constant 1088 : index
    %c0_404 = arith.constant 0 : index
    %405 = vector.load %arg6[%c1088, %c0_404] : memref<1568x10xf32, #tpu.memory_space<vmem>>, vector<32x10xf32>
    %406 = vector.extract_strided_slice %374 {offsets = [0, 6, 0], sizes = [1, 1, 32], strides = [1, 1, 1]} : vector<1x7x32xf32> to vector<1x1x32xf32>
    %407 = vector.shape_cast %406 : vector<1x1x32xf32> to vector<1x32xf32>
    %cst_405 = arith.constant dense<0.000000e+00> : vector<1x10xf32>
    %408 = tpu.matmul %407, %405, %cst_405 {dimension_numbers = #tpu.dot_dimension_numbers<[1], [0], [0], [1], [0, 0, 1, 1], [], []>} : vector<1x32xf32>, vector<32x10xf32>, vector<1x10xf32> -> vector<1x10xf32>
    %409 = arith.addf %404, %408 : vector<1x10xf32>
    %c0_406 = arith.constant 0 : index
    %c200 = arith.constant 200 : index
    %c0_407 = arith.constant 0 : index
    %410 = tpu.strided_load %arg11[%c0_406, %c200, %c0_407] {strides = array<i32: 1, 2, 1>} : memref<1x280x32xf32, #tpu.memory_space<vmem>>, vector<1x7x32xf32>
    %c0_408 = arith.constant 0 : index
    %c201 = arith.constant 201 : index
    %c0_409 = arith.constant 0 : index
    %411 = tpu.strided_load %arg11[%c0_408, %c201, %c0_409] {strides = array<i32: 1, 2, 1>} : memref<1x280x32xf32, #tpu.memory_space<vmem>>, vector<1x7x32xf32>
    %c0_410 = arith.constant 0 : index
    %c220 = arith.constant 220 : index
    %c0_411 = arith.constant 0 : index
    %412 = tpu.strided_load %arg11[%c0_410, %c220, %c0_411] {strides = array<i32: 1, 2, 1>} : memref<1x280x32xf32, #tpu.memory_space<vmem>>, vector<1x7x32xf32>
    %c0_412 = arith.constant 0 : index
    %c221 = arith.constant 221 : index
    %c0_413 = arith.constant 0 : index
    %413 = tpu.strided_load %arg11[%c0_412, %c221, %c0_413] {strides = array<i32: 1, 2, 1>} : memref<1x280x32xf32, #tpu.memory_space<vmem>>, vector<1x7x32xf32>
    %414 = arith.maximumf %410, %411 : vector<1x7x32xf32>
    %415 = arith.maximumf %412, %413 : vector<1x7x32xf32>
    %416 = arith.maximumf %414, %415 : vector<1x7x32xf32>
    %c1120 = arith.constant 1120 : index
    %c0_414 = arith.constant 0 : index
    %417 = vector.load %arg6[%c1120, %c0_414] : memref<1568x10xf32, #tpu.memory_space<vmem>>, vector<32x10xf32>
    %418 = vector.extract_strided_slice %416 {offsets = [0, 0, 0], sizes = [1, 1, 32], strides = [1, 1, 1]} : vector<1x7x32xf32> to vector<1x1x32xf32>
    %419 = vector.shape_cast %418 : vector<1x1x32xf32> to vector<1x32xf32>
    %cst_415 = arith.constant dense<0.000000e+00> : vector<1x10xf32>
    %420 = tpu.matmul %419, %417, %cst_415 {dimension_numbers = #tpu.dot_dimension_numbers<[1], [0], [0], [1], [0, 0, 1, 1], [], []>} : vector<1x32xf32>, vector<32x10xf32>, vector<1x10xf32> -> vector<1x10xf32>
    %421 = arith.addf %409, %420 : vector<1x10xf32>
    %c1152 = arith.constant 1152 : index
    %c0_416 = arith.constant 0 : index
    %422 = vector.load %arg6[%c1152, %c0_416] : memref<1568x10xf32, #tpu.memory_space<vmem>>, vector<32x10xf32>
    %423 = vector.extract_strided_slice %416 {offsets = [0, 1, 0], sizes = [1, 1, 32], strides = [1, 1, 1]} : vector<1x7x32xf32> to vector<1x1x32xf32>
    %424 = vector.shape_cast %423 : vector<1x1x32xf32> to vector<1x32xf32>
    %cst_417 = arith.constant dense<0.000000e+00> : vector<1x10xf32>
    %425 = tpu.matmul %424, %422, %cst_417 {dimension_numbers = #tpu.dot_dimension_numbers<[1], [0], [0], [1], [0, 0, 1, 1], [], []>} : vector<1x32xf32>, vector<32x10xf32>, vector<1x10xf32> -> vector<1x10xf32>
    %426 = arith.addf %421, %425 : vector<1x10xf32>
    %c1184 = arith.constant 1184 : index
    %c0_418 = arith.constant 0 : index
    %427 = vector.load %arg6[%c1184, %c0_418] : memref<1568x10xf32, #tpu.memory_space<vmem>>, vector<32x10xf32>
    %428 = vector.extract_strided_slice %416 {offsets = [0, 2, 0], sizes = [1, 1, 32], strides = [1, 1, 1]} : vector<1x7x32xf32> to vector<1x1x32xf32>
    %429 = vector.shape_cast %428 : vector<1x1x32xf32> to vector<1x32xf32>
    %cst_419 = arith.constant dense<0.000000e+00> : vector<1x10xf32>
    %430 = tpu.matmul %429, %427, %cst_419 {dimension_numbers = #tpu.dot_dimension_numbers<[1], [0], [0], [1], [0, 0, 1, 1], [], []>} : vector<1x32xf32>, vector<32x10xf32>, vector<1x10xf32> -> vector<1x10xf32>
    %431 = arith.addf %426, %430 : vector<1x10xf32>
    %c1216 = arith.constant 1216 : index
    %c0_420 = arith.constant 0 : index
    %432 = vector.load %arg6[%c1216, %c0_420] : memref<1568x10xf32, #tpu.memory_space<vmem>>, vector<32x10xf32>
    %433 = vector.extract_strided_slice %416 {offsets = [0, 3, 0], sizes = [1, 1, 32], strides = [1, 1, 1]} : vector<1x7x32xf32> to vector<1x1x32xf32>
    %434 = vector.shape_cast %433 : vector<1x1x32xf32> to vector<1x32xf32>
    %cst_421 = arith.constant dense<0.000000e+00> : vector<1x10xf32>
    %435 = tpu.matmul %434, %432, %cst_421 {dimension_numbers = #tpu.dot_dimension_numbers<[1], [0], [0], [1], [0, 0, 1, 1], [], []>} : vector<1x32xf32>, vector<32x10xf32>, vector<1x10xf32> -> vector<1x10xf32>
    %436 = arith.addf %431, %435 : vector<1x10xf32>
    %c1248 = arith.constant 1248 : index
    %c0_422 = arith.constant 0 : index
    %437 = vector.load %arg6[%c1248, %c0_422] : memref<1568x10xf32, #tpu.memory_space<vmem>>, vector<32x10xf32>
    %438 = vector.extract_strided_slice %416 {offsets = [0, 4, 0], sizes = [1, 1, 32], strides = [1, 1, 1]} : vector<1x7x32xf32> to vector<1x1x32xf32>
    %439 = vector.shape_cast %438 : vector<1x1x32xf32> to vector<1x32xf32>
    %cst_423 = arith.constant dense<0.000000e+00> : vector<1x10xf32>
    %440 = tpu.matmul %439, %437, %cst_423 {dimension_numbers = #tpu.dot_dimension_numbers<[1], [0], [0], [1], [0, 0, 1, 1], [], []>} : vector<1x32xf32>, vector<32x10xf32>, vector<1x10xf32> -> vector<1x10xf32>
    %441 = arith.addf %436, %440 : vector<1x10xf32>
    %c1280 = arith.constant 1280 : index
    %c0_424 = arith.constant 0 : index
    %442 = vector.load %arg6[%c1280, %c0_424] : memref<1568x10xf32, #tpu.memory_space<vmem>>, vector<32x10xf32>
    %443 = vector.extract_strided_slice %416 {offsets = [0, 5, 0], sizes = [1, 1, 32], strides = [1, 1, 1]} : vector<1x7x32xf32> to vector<1x1x32xf32>
    %444 = vector.shape_cast %443 : vector<1x1x32xf32> to vector<1x32xf32>
    %cst_425 = arith.constant dense<0.000000e+00> : vector<1x10xf32>
    %445 = tpu.matmul %444, %442, %cst_425 {dimension_numbers = #tpu.dot_dimension_numbers<[1], [0], [0], [1], [0, 0, 1, 1], [], []>} : vector<1x32xf32>, vector<32x10xf32>, vector<1x10xf32> -> vector<1x10xf32>
    %446 = arith.addf %441, %445 : vector<1x10xf32>
    %c1312 = arith.constant 1312 : index
    %c0_426 = arith.constant 0 : index
    %447 = vector.load %arg6[%c1312, %c0_426] : memref<1568x10xf32, #tpu.memory_space<vmem>>, vector<32x10xf32>
    %448 = vector.extract_strided_slice %416 {offsets = [0, 6, 0], sizes = [1, 1, 32], strides = [1, 1, 1]} : vector<1x7x32xf32> to vector<1x1x32xf32>
    %449 = vector.shape_cast %448 : vector<1x1x32xf32> to vector<1x32xf32>
    %cst_427 = arith.constant dense<0.000000e+00> : vector<1x10xf32>
    %450 = tpu.matmul %449, %447, %cst_427 {dimension_numbers = #tpu.dot_dimension_numbers<[1], [0], [0], [1], [0, 0, 1, 1], [], []>} : vector<1x32xf32>, vector<32x10xf32>, vector<1x10xf32> -> vector<1x10xf32>
    %451 = arith.addf %446, %450 : vector<1x10xf32>
    %c0_428 = arith.constant 0 : index
    %c240_429 = arith.constant 240 : index
    %c0_430 = arith.constant 0 : index
    %452 = tpu.strided_load %arg11[%c0_428, %c240_429, %c0_430] {strides = array<i32: 1, 2, 1>} : memref<1x280x32xf32, #tpu.memory_space<vmem>>, vector<1x7x32xf32>
    %c0_431 = arith.constant 0 : index
    %c241 = arith.constant 241 : index
    %c0_432 = arith.constant 0 : index
    %453 = tpu.strided_load %arg11[%c0_431, %c241, %c0_432] {strides = array<i32: 1, 2, 1>} : memref<1x280x32xf32, #tpu.memory_space<vmem>>, vector<1x7x32xf32>
    %c0_433 = arith.constant 0 : index
    %c260 = arith.constant 260 : index
    %c0_434 = arith.constant 0 : index
    %454 = tpu.strided_load %arg11[%c0_433, %c260, %c0_434] {strides = array<i32: 1, 2, 1>} : memref<1x280x32xf32, #tpu.memory_space<vmem>>, vector<1x7x32xf32>
    %c0_435 = arith.constant 0 : index
    %c261 = arith.constant 261 : index
    %c0_436 = arith.constant 0 : index
    %455 = tpu.strided_load %arg11[%c0_435, %c261, %c0_436] {strides = array<i32: 1, 2, 1>} : memref<1x280x32xf32, #tpu.memory_space<vmem>>, vector<1x7x32xf32>
    %456 = arith.maximumf %452, %453 : vector<1x7x32xf32>
    %457 = arith.maximumf %454, %455 : vector<1x7x32xf32>
    %458 = arith.maximumf %456, %457 : vector<1x7x32xf32>
    %c1344 = arith.constant 1344 : index
    %c0_437 = arith.constant 0 : index
    %459 = vector.load %arg6[%c1344, %c0_437] : memref<1568x10xf32, #tpu.memory_space<vmem>>, vector<32x10xf32>
    %460 = vector.extract_strided_slice %458 {offsets = [0, 0, 0], sizes = [1, 1, 32], strides = [1, 1, 1]} : vector<1x7x32xf32> to vector<1x1x32xf32>
    %461 = vector.shape_cast %460 : vector<1x1x32xf32> to vector<1x32xf32>
    %cst_438 = arith.constant dense<0.000000e+00> : vector<1x10xf32>
    %462 = tpu.matmul %461, %459, %cst_438 {dimension_numbers = #tpu.dot_dimension_numbers<[1], [0], [0], [1], [0, 0, 1, 1], [], []>} : vector<1x32xf32>, vector<32x10xf32>, vector<1x10xf32> -> vector<1x10xf32>
    %463 = arith.addf %451, %462 : vector<1x10xf32>
    %c1376 = arith.constant 1376 : index
    %c0_439 = arith.constant 0 : index
    %464 = vector.load %arg6[%c1376, %c0_439] : memref<1568x10xf32, #tpu.memory_space<vmem>>, vector<32x10xf32>
    %465 = vector.extract_strided_slice %458 {offsets = [0, 1, 0], sizes = [1, 1, 32], strides = [1, 1, 1]} : vector<1x7x32xf32> to vector<1x1x32xf32>
    %466 = vector.shape_cast %465 : vector<1x1x32xf32> to vector<1x32xf32>
    %cst_440 = arith.constant dense<0.000000e+00> : vector<1x10xf32>
    %467 = tpu.matmul %466, %464, %cst_440 {dimension_numbers = #tpu.dot_dimension_numbers<[1], [0], [0], [1], [0, 0, 1, 1], [], []>} : vector<1x32xf32>, vector<32x10xf32>, vector<1x10xf32> -> vector<1x10xf32>
    %468 = arith.addf %463, %467 : vector<1x10xf32>
    %c1408 = arith.constant 1408 : index
    %c0_441 = arith.constant 0 : index
    %469 = vector.load %arg6[%c1408, %c0_441] : memref<1568x10xf32, #tpu.memory_space<vmem>>, vector<32x10xf32>
    %470 = vector.extract_strided_slice %458 {offsets = [0, 2, 0], sizes = [1, 1, 32], strides = [1, 1, 1]} : vector<1x7x32xf32> to vector<1x1x32xf32>
    %471 = vector.shape_cast %470 : vector<1x1x32xf32> to vector<1x32xf32>
    %cst_442 = arith.constant dense<0.000000e+00> : vector<1x10xf32>
    %472 = tpu.matmul %471, %469, %cst_442 {dimension_numbers = #tpu.dot_dimension_numbers<[1], [0], [0], [1], [0, 0, 1, 1], [], []>} : vector<1x32xf32>, vector<32x10xf32>, vector<1x10xf32> -> vector<1x10xf32>
    %473 = arith.addf %468, %472 : vector<1x10xf32>
    %c1440 = arith.constant 1440 : index
    %c0_443 = arith.constant 0 : index
    %474 = vector.load %arg6[%c1440, %c0_443] : memref<1568x10xf32, #tpu.memory_space<vmem>>, vector<32x10xf32>
    %475 = vector.extract_strided_slice %458 {offsets = [0, 3, 0], sizes = [1, 1, 32], strides = [1, 1, 1]} : vector<1x7x32xf32> to vector<1x1x32xf32>
    %476 = vector.shape_cast %475 : vector<1x1x32xf32> to vector<1x32xf32>
    %cst_444 = arith.constant dense<0.000000e+00> : vector<1x10xf32>
    %477 = tpu.matmul %476, %474, %cst_444 {dimension_numbers = #tpu.dot_dimension_numbers<[1], [0], [0], [1], [0, 0, 1, 1], [], []>} : vector<1x32xf32>, vector<32x10xf32>, vector<1x10xf32> -> vector<1x10xf32>
    %478 = arith.addf %473, %477 : vector<1x10xf32>
    %c1472 = arith.constant 1472 : index
    %c0_445 = arith.constant 0 : index
    %479 = vector.load %arg6[%c1472, %c0_445] : memref<1568x10xf32, #tpu.memory_space<vmem>>, vector<32x10xf32>
    %480 = vector.extract_strided_slice %458 {offsets = [0, 4, 0], sizes = [1, 1, 32], strides = [1, 1, 1]} : vector<1x7x32xf32> to vector<1x1x32xf32>
    %481 = vector.shape_cast %480 : vector<1x1x32xf32> to vector<1x32xf32>
    %cst_446 = arith.constant dense<0.000000e+00> : vector<1x10xf32>
    %482 = tpu.matmul %481, %479, %cst_446 {dimension_numbers = #tpu.dot_dimension_numbers<[1], [0], [0], [1], [0, 0, 1, 1], [], []>} : vector<1x32xf32>, vector<32x10xf32>, vector<1x10xf32> -> vector<1x10xf32>
    %483 = arith.addf %478, %482 : vector<1x10xf32>
    %c1504 = arith.constant 1504 : index
    %c0_447 = arith.constant 0 : index
    %484 = vector.load %arg6[%c1504, %c0_447] : memref<1568x10xf32, #tpu.memory_space<vmem>>, vector<32x10xf32>
    %485 = vector.extract_strided_slice %458 {offsets = [0, 5, 0], sizes = [1, 1, 32], strides = [1, 1, 1]} : vector<1x7x32xf32> to vector<1x1x32xf32>
    %486 = vector.shape_cast %485 : vector<1x1x32xf32> to vector<1x32xf32>
    %cst_448 = arith.constant dense<0.000000e+00> : vector<1x10xf32>
    %487 = tpu.matmul %486, %484, %cst_448 {dimension_numbers = #tpu.dot_dimension_numbers<[1], [0], [0], [1], [0, 0, 1, 1], [], []>} : vector<1x32xf32>, vector<32x10xf32>, vector<1x10xf32> -> vector<1x10xf32>
    %488 = arith.addf %483, %487 : vector<1x10xf32>
    %c1536 = arith.constant 1536 : index
    %c0_449 = arith.constant 0 : index
    %489 = vector.load %arg6[%c1536, %c0_449] : memref<1568x10xf32, #tpu.memory_space<vmem>>, vector<32x10xf32>
    %490 = vector.extract_strided_slice %458 {offsets = [0, 6, 0], sizes = [1, 1, 32], strides = [1, 1, 1]} : vector<1x7x32xf32> to vector<1x1x32xf32>
    %491 = vector.shape_cast %490 : vector<1x1x32xf32> to vector<1x32xf32>
    %cst_450 = arith.constant dense<0.000000e+00> : vector<1x10xf32>
    %492 = tpu.matmul %491, %489, %cst_450 {dimension_numbers = #tpu.dot_dimension_numbers<[1], [0], [0], [1], [0, 0, 1, 1], [], []>} : vector<1x32xf32>, vector<32x10xf32>, vector<1x10xf32> -> vector<1x10xf32>
    %493 = arith.addf %488, %492 : vector<1x10xf32>
    %c0_451 = arith.constant 0 : index
    %c0_452 = arith.constant 0 : index
    %494 = vector.load %arg7[%c0_451, %c0_452] : memref<1x10xf32, #tpu.memory_space<vmem>>, vector<1x10xf32>
    %495 = arith.addf %493, %494 : vector<1x10xf32>
    %496 = vector.shape_cast %495 : vector<1x10xf32> to vector<1x1x10xf32>
    %c0_453 = arith.constant 0 : index
    %c0_454 = arith.constant 0 : index
    %c0_455 = arith.constant 0 : index
    %497 = vector.load %arg8[%c0_453, %c0_454, %c0_455] : memref<1x1x10xf32, #tpu.memory_space<vmem>>, vector<1x1x10xf32>
    tpu.vector_store %arg8[%c0_453, %c0_454, %c0_455], %496 {strides = array<i32>} : memref<1x1x10xf32, #tpu.memory_space<vmem>>, vector<1x1x10xf32>,
    return
  }
  func.func @transform_0(%arg0: i32) -> (i32, i32, i32) {
    %c0_i32 = arith.constant 0 : i32
    %c0_i32_0 = arith.constant 0 : i32
    %c0_i32_1 = arith.constant 0 : i32
    return %arg0, %c0_i32, %c0_i32_0 : i32, i32, i32
  }
  func.func @transform_1(%arg0: i32) -> (i32, i32) {
    %c0_i32 = arith.constant 0 : i32
    %c0_i32_0 = arith.constant 0 : i32
    %c0_i32_1 = arith.constant 0 : i32
    return %c0_i32, %c0_i32_0 : i32, i32
  }
  func.func @transform_2(%arg0: i32) -> (i32, i32) {
    %c0_i32 = arith.constant 0 : i32
    %c0_i32_0 = arith.constant 0 : i32
    %c0_i32_1 = arith.constant 0 : i32
    return %c0_i32, %c0_i32_0 : i32, i32
  }
  func.func @transform_3(%arg0: i32) -> (i32, i32) {
    %c0_i32 = arith.constant 0 : i32
    %c0_i32_0 = arith.constant 0 : i32
    %c0_i32_1 = arith.constant 0 : i32
    return %c0_i32, %c0_i32_0 : i32, i32
  }
  func.func @transform_4(%arg0: i32) -> (i32, i32) {
    %c0_i32 = arith.constant 0 : i32
    %c0_i32_0 = arith.constant 0 : i32
    %c0_i32_1 = arith.constant 0 : i32
    return %c0_i32, %c0_i32_0 : i32, i32
  }
  func.func @transform_5(%arg0: i32) -> (i32, i32) {
    %c0_i32 = arith.constant 0 : i32
    %c0_i32_0 = arith.constant 0 : i32
    %c0_i32_1 = arith.constant 0 : i32
    return %c0_i32, %c0_i32_0 : i32, i32
  }
  func.func @transform_6(%arg0: i32) -> (i32, i32) {
    %c0_i32 = arith.constant 0 : i32
    %c0_i32_0 = arith.constant 0 : i32
    %c0_i32_1 = arith.constant 0 : i32
    return %c0_i32, %c0_i32_0 : i32, i32
  }
  func.func @transform_7(%arg0: i32) -> (i32, i32, i32) {
    %c0_i32 = arith.constant 0 : i32
    %c0_i32_0 = arith.constant 0 : i32
    %c0_i32_1 = arith.constant 0 : i32
    return %arg0, %c0_i32, %c0_i32_0 : i32, i32, i32
  }
}

</mosaic_0001>

<llo_original>
// kernel: custom_cnn_forward.1
$region0: #{custom_cnn_forward.1}
  #allocation0 [shape = 'u32[]', space=smem, size = 0x4, offset = 0x4, fixed_abs, tag = 'smem constant byte address 0x4 - core index']
  #allocation1 [shape = 'u32[72,128]{1,0:T(1,128)}', space=vmem, size = 0x9000, scoped, tag = 'internal scratch']
  #allocation2 [shape = 'f32[1,896,16]{2,1,0:T(8,128)}', space=vmem, size = 0x70000, scoped, tag = 'scratch operand']
  #allocation3 [shape = 'f32[1,368,16]{2,1,0:T(8,128)}', space=vmem, size = 0x2e000, scoped, tag = 'scratch operand']
  #allocation4 [shape = 'f32[1,280,32]{2,1,0:T(8,128)}', space=vmem, size = 0x23000, scoped, tag = 'scratch operand']
  %s0 = inlined_call_operand.vmem [shape: bf16[2,896,25], index: 0, kind: input, shape index: {}]
  %s1 = inlined_call_operand.vmem [shape: bf16[25,16], index: 1, kind: input, shape index: {}]
  %s2 = inlined_call_operand.vmem [shape: f32[1,16], index: 2, kind: input, shape index: {}]
  %s3 = inlined_call_operand.vmem [shape: bf16[400,32], index: 3, kind: input, shape index: {}]
  %s4 = inlined_call_operand.vmem [shape: f32[1,32], index: 4, kind: input, shape index: {}]
  %s5 = inlined_call_operand.vmem [shape: f32[1568,10], index: 5, kind: input, shape index: {}]
  %s6 = inlined_call_operand.vmem [shape: f32[1,10], index: 6, kind: input, shape index: {}]
  %s7 = inlined_call_operand.hbm [shape: f32[2,1,10], index: 7, kind: output, shape index: {}]
  %s8 = sld [smem:[#allocation0]]
  $region61: #{custom_cnn_forward.1} parent=0
    _
  %s10 = ssub.s32 1, %s8
  %s11 = scalar_select 0, %s10, %s8
  $region1: #{custom_cnn_forward.1} parent=0
    #allocation5 [shape = 'u8[1024]{0}', space=vmem, size = 0x400, scoped, tag = 'output window, operand 0']
    #allocation6 [shape = 's32[2]{0}', space=sflag, size = 0x8, scoped, tag = 'scoped memory for custom_cnn_forward.1']
    %12 = vsyncpa [#allocation6], 0
    %s13 = scalar_lea.sflag [#allocation6], 1
    %14 = vsyncpa %s13, 0
    loop: start=0, step=1, limit=4
    $region2: #{custom_cnn_forward.1} parent=1 // loop_pre_header
      _
    $region3: #{custom_cnn_forward.1} parent=1 // loop_header
      %s16 = sphi 0, %s20
      %p17 = scmp.ge.s32.totalorder %s16, 4
      %s26 = sphi 0, %s28
      %s29 = sphi 0, %s26
      %s30 = sphi 0, %s29
      %s46 = sphi 0, %s30
      %s50 = sphi 0, %s50
      %s52 = sphi 0, %s50
      %s53 = sphi 0, %s52
      %s67 = sphi 0, %s53
      %s71 = sphi 0, %s71
      %s73 = sphi 0, %s71
      %s74 = sphi 0, %s73
      %s88 = sphi 0, %s74
      %s92 = sphi 0, %s92
      %s94 = sphi 0, %s92
      %s95 = sphi 0, %s94
      %s109 = sphi 0, %s95
      %s113 = sphi 0, %s113
      %s115 = sphi 0, %s113
      %s116 = sphi 0, %s115
      %s130 = sphi 0, %s116
      %s134 = sphi 0, %s134
      %s136 = sphi 0, %s134
      %s137 = sphi 0, %s136
      %s151 = sphi 0, %s137
      %s155 = sphi 0, %s155
      %s157 = sphi 0, %s155
      %s158 = sphi 0, %s157
      %s172 = sphi 0, %s158
      %s178 = sphi 0, %s180
      %s181 = sphi 0, %s178
      %s182 = sphi 0, %s181
      %s198 = sphi 0, %s182
    $region4: #{custom_cnn_forward.1} parent=1 // loop_header_branch
      %19 = sbr.rel (%p17) target = $region8
    $region5: #{custom_cnn_forward.1} parent=1 // loop_body
      %s21 = ssub.s32 %s16, 1
      %s22 = ssub.s32 %s16, 2
      %s23 = sadd.s32 %s16, 1
      %s24 = ssub.s32 %s16, %s23
      %p25 = scmp.eq.s32.totalorder %s24, 0
      %s27 = sadd.s32 %s26, 1
      %s28 = scalar_select %p25, %s26, %s27
      %p31 = pneg %p25
      %p32 = scmp.eq.s32.totalorder %s16, 1
      %p33 = por %p31, %p32
      %p34 = scmp.ne.s32.totalorder %s26, %s29
      %p35 = scmp.eq.s32.totalorder %s16, 0
      %p36 = por %p34, %p35
      %p37 = scmp.ne.s32.totalorder %s26, %s29
      %p38 = scmp.eq.s32.totalorder %s21, 1
      %p39 = por %p37, %p38
      %p40 = scmp.ne.s32.totalorder %s29, %s30
      %p41 = scmp.eq.s32.totalorder %s21, 0
      %p42 = por %p40, %p41
      %p43 = scmp.ne.s32.totalorder %s29, %s30
      %p44 = scmp.eq.s32.totalorder %s22, 1
      %p45 = por %p43, %p44
      %p47 = scmp.ne.s32.totalorder %s30, %s46
      %p48 = scmp.eq.s32.totalorder %s22, 0
      %p49 = por %p47, %p48
      %s51 = sadd.s32 %s50, 1
      %p54 = scmp.eq.s32.totalorder %s16, 1
      %p55 = scmp.ne.s32.totalorder %s50, %s52
      %p56 = scmp.eq.s32.totalorder %s16, 0
      %p57 = por %p55, %p56
      %p58 = scmp.ne.s32.totalorder %s50, %s52
      %p59 = scmp.eq.s32.totalorder %s21, 1
      %p60 = por %p58, %p59
      %p61 = scmp.ne.s32.totalorder %s52, %s53
      %p62 = scmp.eq.s32.totalorder %s21, 0
      %p63 = por %p61, %p62
      %p64 = scmp.ne.s32.totalorder %s52, %s53
      %p65 = scmp.eq.s32.totalorder %s22, 1
      %p66 = por %p64, %p65
      %p68 = scmp.ne.s32.totalorder %s53, %s67
      %p69 = scmp.eq.s32.totalorder %s22, 0
      %p70 = por %p68, %p69
      %s72 = sadd.s32 %s71, 1
      %p75 = scmp.eq.s32.totalorder %s16, 1
      %p76 = scmp.ne.s32.totalorder %s71, %s73
      %p77 = scmp.eq.s32.totalorder %s16, 0
      %p78 = por %p76, %p77
      %p79 = scmp.ne.s32.totalorder %s71, %s73
      %p80 = scmp.eq.s32.totalorder %s21, 1
      %p81 = por %p79, %p80
      %p82 = scmp.ne.s32.totalorder %s73, %s74
      %p83 = scmp.eq.s32.totalorder %s21, 0
      %p84 = por %p82, %p83
      %p85 = scmp.ne.s32.totalorder %s73, %s74
      %p86 = scmp.eq.s32.totalorder %s22, 1
      %p87 = por %p85, %p86
      %p89 = scmp.ne.s32.totalorder %s74, %s88
      %p90 = scmp.eq.s32.totalorder %s22, 0
      %p91 = por %p89, %p90
      %s93 = sadd.s32 %s92, 1
      %p96 = scmp.eq.s32.totalorder %s16, 1
      %p97 = scmp.ne.s32.totalorder %s92, %s94
      %p98 = scmp.eq.s32.totalorder %s16, 0
      %p99 = por %p97, %p98
      %p100 = scmp.ne.s32.totalorder %s92, %s94
      %p101 = scmp.eq.s32.totalorder %s21, 1
      %p102 = por %p100, %p101
      %p103 = scmp.ne.s32.totalorder %s94, %s95
      %p104 = scmp.eq.s32.totalorder %s21, 0
      %p105 = por %p103, %p104
      %p106 = scmp.ne.s32.totalorder %s94, %s95
      %p107 = scmp.eq.s32.totalorder %s22, 1
      %p108 = por %p106, %p107
      %p110 = scmp.ne.s32.totalorder %s95, %s109
      %p111 = scmp.eq.s32.totalorder %s22, 0
      %p112 = por %p110, %p111
      %s114 = sadd.s32 %s113, 1
      %p117 = scmp.eq.s32.totalorder %s16, 1
      %p118 = scmp.ne.s32.totalorder %s113, %s115
      %p119 = scmp.eq.s32.totalorder %s16, 0
      %p120 = por %p118, %p119
      %p121 = scmp.ne.s32.totalorder %s113, %s115
      %p122 = scmp.eq.s32.totalorder %s21, 1
      %p123 = por %p121, %p122
      %p124 = scmp.ne.s32.totalorder %s115, %s116
      %p125 = scmp.eq.s32.totalorder %s21, 0
      %p126 = por %p124, %p125
      %p127 = scmp.ne.s32.totalorder %s115, %s116
      %p128 = scmp.eq.s32.totalorder %s22, 1
      %p129 = por %p127, %p128
      %p131 = scmp.ne.s32.totalorder %s116, %s130
      %p132 = scmp.eq.s32.totalorder %s22, 0
      %p133 = por %p131, %p132
      %s135 = sadd.s32 %s134, 1
      %p138 = scmp.eq.s32.totalorder %s16, 1
      %p139 = scmp.ne.s32.totalorder %s134, %s136
      %p140 = scmp.eq.s32.totalorder %s16, 0
      %p141 = por %p139, %p140
      %p142 = scmp.ne.s32.totalorder %s134, %s136
      %p143 = scmp.eq.s32.totalorder %s21, 1
      %p144 = por %p142, %p143
      %p145 = scmp.ne.s32.totalorder %s136, %s137
      %p146 = scmp.eq.s32.totalorder %s21, 0
      %p147 = por %p145, %p146
      %p148 = scmp.ne.s32.totalorder %s136, %s137
      %p149 = scmp.eq.s32.totalorder %s22, 1
      %p150 = por %p148, %p149
      %p152 = scmp.ne.s32.totalorder %s137, %s151
      %p153 = scmp.eq.s32.totalorder %s22, 0
      %p154 = por %p152, %p153
      %s156 = sadd.s32 %s155, 1
      %p159 = scmp.eq.s32.totalorder %s16, 1
      %p160 = scmp.ne.s32.totalorder %s155, %s157
      %p161 = scmp.eq.s32.totalorder %s16, 0
      %p162 = por %p160, %p161
      %p163 = scmp.ne.s32.totalorder %s155, %s157
      %p164 = scmp.eq.s32.totalorder %s21, 1
      %p165 = por %p163, %p164
      %p166 = scmp.ne.s32.totalorder %s157, %s158
      %p167 = scmp.eq.s32.totalorder %s21, 0
      %p168 = por %p166, %p167
      %p169 = scmp.ne.s32.totalorder %s157, %s158
      %p170 = scmp.eq.s32.totalorder %s22, 1
      %p171 = por %p169, %p170
      %p173 = scmp.ne.s32.totalorder %s158, %s172
      %p174 = scmp.eq.s32.totalorder %s22, 0
      %p175 = por %p173, %p174
      %s176 = ssub.s32 %s16, %s23
      %p177 = scmp.eq.s32.totalorder %s176, 0
      %s179 = sadd.s32 %s178, 1
      %s180 = scalar_select %p177, %s178, %s179
      %p183 = pneg %p177
      %p184 = scmp.eq.s32.totalorder %s16, 1
      %p185 = por %p183, %p184
      %p186 = scmp.ne.s32.totalorder %s178, %s181
      %p187 = scmp.eq.s32.totalorder %s16, 0
      %p188 = por %p186, %p187
      %p189 = scmp.ne.s32.totalorder %s178, %s181
      %p190 = scmp.eq.s32.totalorder %s21, 1
      %p191 = por %p189, %p190
      %p192 = scmp.ne.s32.totalorder %s181, %s182
      %p193 = scmp.eq.s32.totalorder %s21, 0
      %p194 = por %p192, %p193
      %p195 = scmp.ne.s32.totalorder %s181, %s182
      %p196 = scmp.eq.s32.totalorder %s22, 1
      %p197 = por %p195, %p196
      %p199 = scmp.ne.s32.totalorder %s182, %s198
      %p200 = scmp.eq.s32.totalorder %s22, 0
      %p201 = por %p199, %p200
      %p202 = scmp.le.s32.totalorder 1, %s16
      %p203 = scmp.lt.s32.totalorder %s16, 3
      %p204 = pnand %p202, %p203
      %p205 = pneg %p204
      // Predicated region
      $region9: #{custom_cnn_forward.1} parent=5 // pred_check
        _
      $region10: #{custom_cnn_forward.1} parent=5 // pred_check_branch
        %207 = sbr.rel (%p204) target = $region12
      $region11: #{custom_cnn_forward.1} parent=5 // pred_region
        %s208 = ssub.s32 %s16, 1
        // Predicated region
        $region13: #{custom_cnn_forward.1} parent=11 // pred_check
          %p209 = pneg %p63
        $region14: #{custom_cnn_forward.1} parent=11 // pred_check_branch
          %211 = sbr.rel (%p209) target = $region16
        $region15: #{custom_cnn_forward.1} parent=11 // pred_region
          _
        $region16: #{custom_cnn_forward.1} parent=11 // pred_fallthru
          _
        // Predicated region
        $region17: #{custom_cnn_forward.1} parent=11 // pred_check
          %p212 = pneg %p84
        $region18: #{custom_cnn_forward.1} parent=11 // pred_check_branch
          %214 = sbr.rel (%p212) target = $region20
        $region19: #{custom_cnn_forward.1} parent=11 // pred_region
          _
        $region20: #{custom_cnn_forward.1} parent=11 // pred_fallthru
          _
        // Predicated region
        $region21: #{custom_cnn_forward.1} parent=11 // pred_check
          %p215 = pneg %p105
        $region22: #{custom_cnn_forward.1} parent=11 // pred_check_branch
          %217 = sbr.rel (%p215) target = $region24
        $region23: #{custom_cnn_forward.1} parent=11 // pred_region
          _
        $region24: #{custom_cnn_forward.1} parent=11 // pred_fallthru
          _
        // Predicated region
        $region25: #{custom_cnn_forward.1} parent=11 // pred_check
          %p218 = pneg %p126
        $region26: #{custom_cnn_forward.1} parent=11 // pred_check_branch
          %220 = sbr.rel (%p218) target = $region28
        $region27: #{custom_cnn_forward.1} parent=11 // pred_region
          _
        $region28: #{custom_cnn_forward.1} parent=11 // pred_fallthru
          _
        // Predicated region
        $region29: #{custom_cnn_forward.1} parent=11 // pred_check
          %p221 = pneg %p147
        $region30: #{custom_cnn_forward.1} parent=11 // pred_check_branch
          %223 = sbr.rel (%p221) target = $region32
        $region31: #{custom_cnn_forward.1} parent=11 // pred_region
          _
        $region32: #{custom_cnn_forward.1} parent=11 // pred_fallthru
          _
        // Predicated region
        $region33: #{custom_cnn_forward.1} parent=11 // pred_check
          %p224 = pneg %p168
        $region34: #{custom_cnn_forward.1} parent=11 // pred_check_branch
          %226 = sbr.rel (%p224) target = $region36
        $region35: #{custom_cnn_forward.1} parent=11 // pred_region
          _
        $region36: #{custom_cnn_forward.1} parent=11 // pred_fallthru
          _
      $region12: #{custom_cnn_forward.1} parent=5 // pred_fallthru
        _
      %p227 = scmp.lt.s32.totalorder %s16, 2
      // Predicated region
      $region37: #{custom_cnn_forward.1} parent=5 // pred_check
        %p228 = pneg %p227
      $region38: #{custom_cnn_forward.1} parent=5 // pred_check_branch
        %230 = sbr.rel (%p228) target = $region40
      $region39: #{custom_cnn_forward.1} parent=5 // pred_region
        // Predicated region
        $region41: #{custom_cnn_forward.1} parent=39 // pred_check
          %p231 = pneg %p36
        $region42: #{custom_cnn_forward.1} parent=39 // pred_check_branch
          %233 = sbr.rel (%p231) target = $region44
        $region43: #{custom_cnn_forward.1} parent=39 // pred_region
          %p234 = scmp.lt.s32.totalorder %s16, 1
          %s235 = scalar_select %p234, %s16, 1
          %s236 = smul.addr %s235, 112
          %s237 = smul.addr %s236, 4
          %s238 = scalar_lea.vmem %s0, %s237
        $region44: #{custom_cnn_forward.1} parent=39 // pred_fallthru
          _
      $region40: #{custom_cnn_forward.1} parent=5 // pred_fallthru
        _
      %p239 = scmp.le.s32.totalorder 1, %s16
      %p240 = scmp.lt.s32.totalorder %s16, 3
      %p241 = pnand %p239, %p240
      %p242 = pneg %p241
      // Predicated region
      $region45: #{custom_cnn_forward.1} parent=5 // pred_check
        _
      $region46: #{custom_cnn_forward.1} parent=5 // pred_check_branch
        %244 = sbr.rel (%p241) target = $region48
      $region47: #{custom_cnn_forward.1} parent=5 // pred_region
        %s245 = ssub.s32 %s16, 1
        %p246 = scmp.lt.s32.totalorder %s21, 1
        %s247 = scalar_select %p246, %s21, 1
        %s248 = smul.addr %s247, 112
        %s249 = smul.addr %s248, 4
        %s250 = scalar_lea.vmem %s0, %s249
        %p251 = pneg %p42
        %p252 = pneg %p39
        %p253 = pneg %p63
        %p254 = pneg %p60
        %p255 = pneg %p84
        %p256 = pneg %p81
        %p257 = pneg %p105
        %p258 = pneg %p102
        %p259 = pneg %p126
        %p260 = pneg %p123
        %p261 = pneg %p147
        %p262 = pneg %p144
        %p263 = pneg %p168
        %p264 = pneg %p165
        %p265 = pneg %p194
        %p266 = pneg %p191
        %s267 = sand.u32 %s181, 1
        %s268 = scalar_lea.sflag [#allocation6], %s267
        %s269 = sand.u32 %s181, 1
        %s270 = scalar_lea.vmem [#allocation5], %s269
        %p271 = scmp.lt.s32.totalorder %s21, 1
        %s272 = scalar_select %p271, %s21, 1
        %s273 = smul.addr %s272, 112
        %s274 = smul.addr %s273, 4
        %s275 = scalar_lea.vmem %s0, %s274
        %v277 = vld [vmem:[%s275] sm:$0xf]
        %v278 = vld [vmem:[%s275 + $0x4] sm:$0xf]
        %v279 = vld [vmem:[%s275 + $0x8] sm:$0xf]
        %v280 = vld [vmem:[%s275 + $0xc] sm:$0xf]
        %v281 = vld [vmem:[%s275 + $0x10] sm:$0xf]
        %v282 = vld [vmem:[%s275 + $0x14] sm:$0xf]
        %v283 = vld [vmem:[%s275 + $0x18] sm:$0xf]
        %v284 = vld [vmem:[%s275 + $0x1c] sm:$0xf]
        %v285 = vld [vmem:[%s275 + $0x20] sm:$0xf]
        %v286 = vld [vmem:[%s275 + $0x24] sm:$0xf]
        %v287 = vld [vmem:[%s275 + $0x28] sm:$0xf]
        %v288 = vld [vmem:[%s275 + $0x2c] sm:$0xf]
        %v289 = vld [vmem:[%s275 + $0x30] sm:$0xf]
        %v290 = vld [vmem:[%s275 + $0x34] sm:$0xf]
        %v291 = vld [vmem:[%s275 + $0x38] sm:$0xf]
        %v292 = vld [vmem:[%s275 + $0x3c] sm:$0xf]
        %v293 = vld [vmem:[%s275 + $0x40] sm:$0xf]
        %v294 = vld [vmem:[%s275 + $0x44] sm:$0xf]
        %v295 = vld [vmem:[%s275 + $0x48] sm:$0xf]
        %v296 = vld [vmem:[%s275 + $0x4c] sm:$0xf]
        %v297 = vld [vmem:[%s275 + $0x50] sm:$0xf]
        %v298 = vld [vmem:[%s275 + $0x54] sm:$0xf]
        %v299 = vld [vmem:[%s275 + $0x58] sm:$0xf]
        %v300 = vld [vmem:[%s275 + $0x5c] sm:$0xf]
        %v301 = vld [vmem:[%s275 + $0x60] sm:$0xf]
        %v302 = vld [vmem:[%s275 + $0x64] sm:$0xf]
        %v303 = vld [vmem:[%s275 + $0x68] sm:$0xf]
        %v304 = vld [vmem:[%s275 + $0x6c] sm:$0xf]
        %v305 = vld [vmem:[%s275 + $0x70] sm:$0xf]
        %v306 = vld [vmem:[%s275 + $0x74] sm:$0xf]
        %v307 = vld [vmem:[%s275 + $0x78] sm:$0xf]
        %v308 = vld [vmem:[%s275 + $0x7c] sm:$0xf]
        %v309 = vld [vmem:[%s275 + $0x80] sm:$0xf]
        %v310 = vld [vmem:[%s275 + $0x84] sm:$0xf]
        %v311 = vld [vmem:[%s275 + $0x88] sm:$0xf]
        %v312 = vld [vmem:[%s275 + $0x8c] sm:$0xf]
        %v313 = vld [vmem:[%s275 + $0x90] sm:$0xf]
        %v314 = vld [vmem:[%s275 + $0x94] sm:$0xf]
        %v315 = vld [vmem:[%s275 + $0x98] sm:$0xf]
        %v316 = vld [vmem:[%s275 + $0x9c] sm:$0xf]
        %v317 = vld [vmem:[%s275 + $0xa0] sm:$0xf]
        %v318 = vld [vmem:[%s275 + $0xa4] sm:$0xf]
        %v319 = vld [vmem:[%s275 + $0xa8] sm:$0xf]
        %v320 = vld [vmem:[%s275 + $0xac] sm:$0xf]
        %v321 = vld [vmem:[%s275 + $0xb0] sm:$0xf]
        %v322 = vld [vmem:[%s275 + $0xb4] sm:$0xf]
        %v323 = vld [vmem:[%s275 + $0xb8] sm:$0xf]
        %v324 = vld [vmem:[%s275 + $0xbc] sm:$0xf]
        %v325 = vld [vmem:[%s275 + $0xc0] sm:$0xf]
        %v326 = vld [vmem:[%s275 + $0xc4] sm:$0xf]
        %v327 = vld [vmem:[%s275 + $0xc8] sm:$0xf]
        %v328 = vld [vmem:[%s275 + $0xcc] sm:$0xf]
        %v329 = vld [vmem:[%s275 + $0xd0] sm:$0xf]
        %v330 = vld [vmem:[%s275 + $0xd4] sm:$0xf]
        %v331 = vld [vmem:[%s275 + $0xd8] sm:$0xf]
        %v332 = vld [vmem:[%s275 + $0xdc] sm:$0xf]
        %v333 = vld [vmem:[%s275 + $0xe0] sm:$0xf]
        %v334 = vld [vmem:[%s275 + $0xe4] sm:$0xf]
        %v335 = vld [vmem:[%s275 + $0xe8] sm:$0xf]
        %v336 = vld [vmem:[%s275 + $0xec] sm:$0xf]
        %v337 = vld [vmem:[%s275 + $0xf0] sm:$0xf]
        %v338 = vld [vmem:[%s275 + $0xf4] sm:$0xf]
        %v339 = vld [vmem:[%s275 + $0xf8] sm:$0xf]
        %v340 = vld [vmem:[%s275 + $0xfc] sm:$0xf]
        %v341 = vld [vmem:[%s275 + $0x100] sm:$0xf]
        %v342 = vld [vmem:[%s275 + $0x104] sm:$0xf]
        %v343 = vld [vmem:[%s275 + $0x108] sm:$0xf]
        %v344 = vld [vmem:[%s275 + $0x10c] sm:$0xf]
        %v345 = vld [vmem:[%s275 + $0x110] sm:$0xf]
        %v346 = vld [vmem:[%s275 + $0x114] sm:$0xf]
        %v347 = vld [vmem:[%s275 + $0x118] sm:$0xf]
        %v348 = vld [vmem:[%s275 + $0x11c] sm:$0xf]
        %v349 = vld [vmem:[%s275 + $0x120] sm:$0xf]
        %v350 = vld [vmem:[%s275 + $0x124] sm:$0xf]
        %v351 = vld [vmem:[%s275 + $0x128] sm:$0xf]
        %v352 = vld [vmem:[%s275 + $0x12c] sm:$0xf]
        %v353 = vld [vmem:[%s275 + $0x130] sm:$0xf]
        %v354 = vld [vmem:[%s275 + $0x134] sm:$0xf]
        %v355 = vld [vmem:[%s275 + $0x138] sm:$0xf]
        %v356 = vld [vmem:[%s275 + $0x13c] sm:$0xf]
        %v357 = vld [vmem:[%s275 + $0x140] sm:$0xf]
        %v358 = vld [vmem:[%s275 + $0x144] sm:$0xf]
        %v359 = vld [vmem:[%s275 + $0x148] sm:$0xf]
        %v360 = vld [vmem:[%s275 + $0x14c] sm:$0xf]
        %v361 = vld [vmem:[%s275 + $0x150] sm:$0xf]
        %v362 = vld [vmem:[%s275 + $0x154] sm:$0xf]
        %v363 = vld [vmem:[%s275 + $0x158] sm:$0xf]
        %v364 = vld [vmem:[%s275 + $0x15c] sm:$0xf]
        %v365 = vld [vmem:[%s275 + $0x160] sm:$0xf]
        %v366 = vld [vmem:[%s275 + $0x164] sm:$0xf]
        %v367 = vld [vmem:[%s275 + $0x168] sm:$0xf]
        %v368 = vld [vmem:[%s275 + $0x16c] sm:$0xf]
        %v369 = vld [vmem:[%s275 + $0x170] sm:$0xf]
        %v370 = vld [vmem:[%s275 + $0x174] sm:$0xf]
        %v371 = vld [vmem:[%s275 + $0x178] sm:$0xf]
        %v372 = vld [vmem:[%s275 + $0x17c] sm:$0xf]
        %v373 = vld [vmem:[%s275 + $0x180] sm:$0xf]
        %v374 = vld [vmem:[%s275 + $0x184] sm:$0xf]
        %v375 = vld [vmem:[%s275 + $0x188] sm:$0xf]
        %v376 = vld [vmem:[%s275 + $0x18c] sm:$0xf]
        %v377 = vld [vmem:[%s275 + $0x190] sm:$0xf]
        %v378 = vld [vmem:[%s275 + $0x194] sm:$0xf]
        %v379 = vld [vmem:[%s275 + $0x198] sm:$0xf]
        %v380 = vld [vmem:[%s275 + $0x19c] sm:$0xf]
        %v381 = vld [vmem:[%s275 + $0x1a0] sm:$0xf]
        %v382 = vld [vmem:[%s275 + $0x1a4] sm:$0xf]
        %v383 = vld [vmem:[%s275 + $0x1a8] sm:$0xf]
        %v384 = vld [vmem:[%s275 + $0x1ac] sm:$0xf]
        %v385 = vld [vmem:[%s275 + $0x1b0] sm:$0xf]
        %v386 = vld [vmem:[%s275 + $0x1b4] sm:$0xf]
        %v387 = vld [vmem:[%s275 + $0x1b8] sm:$0xf]
        %v388 = vld [vmem:[%s275 + $0x1bc] sm:$0xf]
        %v389 = vld [vmem:[%s1] sm:$0xf]
        %v390 = vld [vmem:[%s1 + $0x4] sm:$0xf]
        %v391 = vld [vmem:[%s1 + $0x8] sm:$0xf]
        %v392 = vld [vmem:[%s1 + $0xc] sm:$0x1]
        %v393 = vld [vmem:[%s2] sm:$0x1]
        %v395 = vperm.slane %v393, 0
        %v509 = vunpack.c.l.b16 %v277
        %v510 = vunpack.c.l.b16 %v278
        %v511 = vunpack.c.l.b16 %v279
        %v512 = vunpack.c.l.b16 %v280
        %v513 = vunpack.c.l.b16 %v281
        %v514 = vunpack.c.l.b16 %v282
        %v515 = vunpack.c.l.b16 %v283
        %v516 = vunpack.c.l.b16 %v284
        %v517 = vunpack.c.l.b16 %v285
        %v518 = vunpack.c.l.b16 %v286
        %v519 = vunpack.c.l.b16 %v287
        %v520 = vunpack.c.l.b16 %v288
        %v521 = vunpack.c.l.b16 %v289
        %v522 = vunpack.c.l.b16 %v290
        %v523 = vunpack.c.l.b16 %v291
        %v524 = vunpack.c.l.b16 %v292
        %v525 = vunpack.c.l.b16 %v293
        %v526 = vunpack.c.l.b16 %v294
        %v527 = vunpack.c.l.b16 %v295
        %v528 = vunpack.c.l.b16 %v296
        %v529 = vunpack.c.l.b16 %v297
        %v530 = vunpack.c.l.b16 %v298
        %v531 = vunpack.c.l.b16 %v299
        %v532 = vunpack.c.l.b16 %v300
        %v533 = vunpack.c.l.b16 %v301
        %v534 = vunpack.c.l.b16 %v302
        %v535 = vunpack.c.l.b16 %v303
        %v536 = vunpack.c.l.b16 %v304
        %v537 = vunpack.c.l.b16 %v305
        %v538 = vunpack.c.l.b16 %v306
        %v539 = vunpack.c.l.b16 %v307
        %v540 = vunpack.c.l.b16 %v308
        %v541 = vunpack.c.l.b16 %v309
        %v542 = vunpack.c.l.b16 %v310
        %v543 = vunpack.c.l.b16 %v311
        %v544 = vunpack.c.l.b16 %v312
        %v545 = vunpack.c.l.b16 %v313
        %v546 = vunpack.c.l.b16 %v314
        %v547 = vunpack.c.l.b16 %v315
        %v548 = vunpack.c.l.b16 %v316
        %v549 = vunpack.c.l.b16 %v317
        %v550 = vunpack.c.l.b16 %v318
        %v551 = vunpack.c.l.b16 %v319
        %v552 = vunpack.c.l.b16 %v320
        %v553 = vunpack.c.l.b16 %v321
        %v554 = vunpack.c.l.b16 %v322
        %v555 = vunpack.c.l.b16 %v323
        %v556 = vunpack.c.l.b16 %v324
        %v557 = vunpack.c.l.b16 %v325
        %v558 = vunpack.c.l.b16 %v326
        %v559 = vunpack.c.l.b16 %v327
        %v560 = vunpack.c.l.b16 %v328
        %v561 = vunpack.c.l.b16 %v329
        %v562 = vunpack.c.l.b16 %v330
        %v563 = vunpack.c.l.b16 %v331
        %v564 = vunpack.c.l.b16 %v332
        %v565 = vunpack.c.l.b16 %v333
        %v566 = vunpack.c.l.b16 %v334
        %v567 = vunpack.c.l.b16 %v335
        %v568 = vunpack.c.l.b16 %v336
        %v569 = vunpack.c.l.b16 %v337
        %v570 = vunpack.c.l.b16 %v338
        %v571 = vunpack.c.l.b16 %v339
        %v572 = vunpack.c.l.b16 %v340
        %v573 = vunpack.c.l.b16 %v341
        %v574 = vunpack.c.l.b16 %v342
        %v575 = vunpack.c.l.b16 %v343
        %v576 = vunpack.c.l.b16 %v344
        %v577 = vunpack.c.l.b16 %v345
        %v578 = vunpack.c.l.b16 %v346
        %v579 = vunpack.c.l.b16 %v347
        %v580 = vunpack.c.l.b16 %v348
        %v581 = vunpack.c.l.b16 %v349
        %v582 = vunpack.c.l.b16 %v350
        %v583 = vunpack.c.l.b16 %v351
        %v584 = vunpack.c.l.b16 %v352
        %v585 = vunpack.c.l.b16 %v353
        %v586 = vunpack.c.l.b16 %v354
        %v587 = vunpack.c.l.b16 %v355
        %v588 = vunpack.c.l.b16 %v356
        %v589 = vunpack.c.l.b16 %v357
        %v590 = vunpack.c.l.b16 %v358
        %v591 = vunpack.c.l.b16 %v359
        %v592 = vunpack.c.l.b16 %v360
        %v593 = vunpack.c.l.b16 %v361
        %v594 = vunpack.c.l.b16 %v362
        %v595 = vunpack.c.l.b16 %v363
        %v596 = vunpack.c.l.b16 %v364
        %v597 = vunpack.c.l.b16 %v365
        %v598 = vunpack.c.l.b16 %v366
        %v599 = vunpack.c.l.b16 %v367
        %v600 = vunpack.c.l.b16 %v368
        %v601 = vunpack.c.l.b16 %v369
        %v602 = vunpack.c.l.b16 %v370
        %v603 = vunpack.c.l.b16 %v371
        %v604 = vunpack.c.l.b16 %v372
        %v605 = vunpack.c.l.b16 %v373
        %v606 = vunpack.c.l.b16 %v374
        %v607 = vunpack.c.l.b16 %v375
        %v608 = vunpack.c.l.b16 %v376
        %v609 = vunpack.c.l.b16 %v377
        %v610 = vunpack.c.l.b16 %v378
        %v611 = vunpack.c.l.b16 %v379
        %v612 = vunpack.c.l.b16 %v380
        %v613 = vunpack.c.l.b16 %v381
        %v614 = vunpack.c.l.b16 %v382
        %v615 = vunpack.c.l.b16 %v383
        %v616 = vunpack.c.l.b16 %v384
        %v617 = vunpack.c.l.b16 %v385
        %v618 = vunpack.c.l.b16 %v386
        %v619 = vunpack.c.l.b16 %v387
        %v620 = vunpack.c.l.b16 %v388
        %v621 = vpack.c.b16 %v510, %v509
        %v622 = vpack.c.b16 %v512, %v511
        %v623 = vpack.c.b16 %v514, %v513
        %v624 = vpack.c.b16 %v516, %v515
        %v625 = vpack.c.b16 %v518, %v517
        %v626 = vpack.c.b16 %v520, %v519
        %v627 = vpack.c.b16 %v522, %v521
        %v628 = vpack.c.b16 %v524, %v523
        %v629 = vpack.c.b16 %v526, %v525
        %v630 = vpack.c.b16 %v528, %v527
        %v631 = vpack.c.b16 %v530, %v529
        %v632 = vpack.c.b16 %v532, %v531
        %v633 = vpack.c.b16 %v534, %v533
        %v634 = vpack.c.b16 %v536, %v535
        %v635 = vpack.c.b16 %v538, %v537
        %v636 = vpack.c.b16 %v540, %v539
        %v637 = vpack.c.b16 %v542, %v541
        %v638 = vpack.c.b16 %v544, %v543
        %v639 = vpack.c.b16 %v546, %v545
        %v640 = vpack.c.b16 %v548, %v547
        %v641 = vpack.c.b16 %v550, %v549
        %v642 = vpack.c.b16 %v552, %v551
        %v643 = vpack.c.b16 %v554, %v553
        %v644 = vpack.c.b16 %v556, %v555
        %v645 = vpack.c.b16 %v558, %v557
        %v646 = vpack.c.b16 %v560, %v559
        %v647 = vpack.c.b16 %v562, %v561
        %v648 = vpack.c.b16 %v564, %v563
        %v649 = vpack.c.b16 %v566, %v565
        %v650 = vpack.c.b16 %v568, %v567
        %v651 = vpack.c.b16 %v570, %v569
        %v652 = vpack.c.b16 %v572, %v571
        %v653 = vpack.c.b16 %v574, %v573
        %v654 = vpack.c.b16 %v576, %v575
        %v655 = vpack.c.b16 %v578, %v577
        %v656 = vpack.c.b16 %v580, %v579
        %v657 = vpack.c.b16 %v582, %v581
        %v658 = vpack.c.b16 %v584, %v583
        %v659 = vpack.c.b16 %v586, %v585
        %v660 = vpack.c.b16 %v588, %v587
        %v661 = vpack.c.b16 %v590, %v589
        %v662 = vpack.c.b16 %v592, %v591
        %v663 = vpack.c.b16 %v594, %v593
        %v664 = vpack.c.b16 %v596, %v595
        %v665 = vpack.c.b16 %v598, %v597
        %v666 = vpack.c.b16 %v600, %v599
        %v667 = vpack.c.b16 %v602, %v601
        %v668 = vpack.c.b16 %v604, %v603
        %v669 = vpack.c.b16 %v606, %v605
        %v670 = vpack.c.b16 %v608, %v607
        %v671 = vpack.c.b16 %v610, %v609
        %v672 = vpack.c.b16 %v612, %v611
        %v673 = vpack.c.b16 %v614, %v613
        %v674 = vpack.c.b16 %v616, %v615
        %v675 = vpack.c.b16 %v618, %v617
        %v676 = vpack.c.b16 %v620, %v619
        %v681 = vunpack.c.l.b16 %v389
        %v682 = vunpack.c.l.b16 %v390
        %v683 = vunpack.c.l.b16 %v391
        %v684 = vunpack.c.l.b16 %v392
        %v685 = vpack.c.b16 %v682, %v681
        %v686 = vpack.c.b16 %v684, %v683
        %vm688 = vcmask 203776
        %v690 = vsel %vm688, %v621, 0
        %v693 = vsel %vm688, %v622, 0
        %v696 = vsel %vm688, %v623, 0
        %v699 = vsel %vm688, %v624, 0
        %v702 = vsel %vm688, %v625, 0
        %v705 = vsel %vm688, %v626, 0
        %v708 = vsel %vm688, %v627, 0
        %v711 = vsel %vm688, %v628, 0
        %v714 = vsel %vm688, %v629, 0
        %v717 = vsel %vm688, %v630, 0
        %v720 = vsel %vm688, %v631, 0
        %v723 = vsel %vm688, %v632, 0
        %v726 = vsel %vm688, %v633, 0
        %v729 = vsel %vm688, %v634, 0
        %v732 = vsel %vm688, %v635, 0
        %v735 = vsel %vm688, %v636, 0
        %v738 = vsel %vm688, %v637, 0
        %v741 = vsel %vm688, %v638, 0
        %v744 = vsel %vm688, %v639, 0
        %v747 = vsel %vm688, %v640, 0
        %v750 = vsel %vm688, %v641, 0
        %v753 = vsel %vm688, %v642, 0
        %v756 = vsel %vm688, %v643, 0
        %v759 = vsel %vm688, %v644, 0
        %v762 = vsel %vm688, %v645, 0
        %v765 = vsel %vm688, %v646, 0
        %v768 = vsel %vm688, %v647, 0
        %v771 = vsel %vm688, %v648, 0
        %v774 = vsel %vm688, %v649, 0
        %v777 = vsel %vm688, %v650, 0
        %v780 = vsel %vm688, %v651, 0
        %v783 = vsel %vm688, %v652, 0
        %v786 = vsel %vm688, %v653, 0
        %v789 = vsel %vm688, %v654, 0
        %v792 = vsel %vm688, %v655, 0
        %v795 = vsel %vm688, %v656, 0
        %v798 = vsel %vm688, %v657, 0
        %v801 = vsel %vm688, %v658, 0
        %v804 = vsel %vm688, %v659, 0
        %v807 = vsel %vm688, %v660, 0
        %v810 = vsel %vm688, %v661, 0
        %v813 = vsel %vm688, %v662, 0
        %v816 = vsel %vm688, %v663, 0
        %v819 = vsel %vm688, %v664, 0
        %v822 = vsel %vm688, %v665, 0
        %v825 = vsel %vm688, %v666, 0
        %v828 = vsel %vm688, %v667, 0
        %v831 = vsel %vm688, %v668, 0
        %v834 = vsel %vm688, %v669, 0
        %v837 = vsel %vm688, %v670, 0
        %v840 = vsel %vm688, %v671, 0
        %v843 = vsel %vm688, %v672, 0
        %v846 = vsel %vm688, %v673, 0
        %v849 = vsel %vm688, %v674, 0
        %v852 = vsel %vm688, %v675, 0
        %v855 = vsel %vm688, %v676, 0
        %vm857 = vcmask 1043456
        %vm858 = vcmask 1044480
        %v859 = vsel %vm857, 4294967295, 65535
        %v860 = vsel %vm858, %v859, 0
        %v862 = vand.u32 %v686, %v860
        %864 = vmatpush.bf16.msra.mxu0 0
        %865 = vmatpush.bf16.msra.mxu0 0
        %866 = vmatpush.bf16.msra.mxu0 0
        %867 = vmatpush.bf16.msra.mxu0 0
        %868 = vmatpush.bf16.msra.mxu0 0
        %869 = vmatpush.bf16.msra.mxu0 0
        %870 = vmatpush.bf16.msra.mxu0 %v862
        %871 = vmatpush.bf16.msra.mxu0 %v685
        %872 = vmatmul.bf16.gmra.mxu0 %v690
        %v873 = vpop.f32.mrf.mxu0
        %v874 = vadd.f32 %v395, %v873
        %v875 = vpop.f32.mrf.mxu0
        %v876 = vadd.f32 %v395, %v875
        %877 = vmatmul.bf16.gmra.mxu0 %v693
        %v878 = vpop.f32.mrf.mxu0
        %v879 = vadd.f32 %v395, %v878
        %v880 = vpop.f32.mrf.mxu0
        %v881 = vadd.f32 %v395, %v880
        %882 = vmatmul.bf16.gmra.mxu0 %v696
        %v883 = vpop.f32.mrf.mxu0
        %v884 = vadd.f32 %v395, %v883
        %v885 = vpop.f32.mrf.mxu0
        %v886 = vadd.f32 %v395, %v885
        %887 = vmatmul.bf16.gmra.mxu0 %v699
        %v888 = vpop.f32.mrf.mxu0
        %v889 = vadd.f32 %v395, %v888
        %v890 = vpop.f32.mrf.mxu0
        %v891 = vadd.f32 %v395, %v890
        %892 = vmatmul.bf16.gmra.mxu0 %v702
        %v893 = vpop.f32.mrf.mxu0
        %v894 = vadd.f32 %v395, %v893
        %v895 = vpop.f32.mrf.mxu0
        %v896 = vadd.f32 %v395, %v895
        %897 = vmatmul.bf16.gmra.mxu0 %v705
        %v898 = vpop.f32.mrf.mxu0
        %v899 = vadd.f32 %v395, %v898
        %v900 = vpop.f32.mrf.mxu0
        %v901 = vadd.f32 %v395, %v900
        %902 = vmatmul.bf16.gmra.mxu0 %v708
        %v903 = vpop.f32.mrf.mxu0
        %v904 = vadd.f32 %v395, %v903
        %v905 = vpop.f32.mrf.mxu0
        %v906 = vadd.f32 %v395, %v905
        %907 = vmatmul.bf16.gmra.mxu0 %v711
        %v908 = vpop.f32.mrf.mxu0
        %v909 = vadd.f32 %v395, %v908
        %v910 = vpop.f32.mrf.mxu0
        %v911 = vadd.f32 %v395, %v910
        %912 = vmatmul.bf16.gmra.mxu0 %v714
        %v913 = vpop.f32.mrf.mxu0
        %v914 = vadd.f32 %v395, %v913
        %v915 = vpop.f32.mrf.mxu0
        %v916 = vadd.f32 %v395, %v915
        %917 = vmatmul.bf16.gmra.mxu0 %v717
        %v918 = vpop.f32.mrf.mxu0
        %v919 = vadd.f32 %v395, %v918
        %v920 = vpop.f32.mrf.mxu0
        %v921 = vadd.f32 %v395, %v920
        %922 = vmatmul.bf16.gmra.mxu0 %v720
        %v923 = vpop.f32.mrf.mxu0
        %v924 = vadd.f32 %v395, %v923
        %v925 = vpop.f32.mrf.mxu0
        %v926 = vadd.f32 %v395, %v925
        %927 = vmatmul.bf16.gmra.mxu0 %v723
        %v928 = vpop.f32.mrf.mxu0
        %v929 = vadd.f32 %v395, %v928
        %v930 = vpop.f32.mrf.mxu0
        %v931 = vadd.f32 %v395, %v930
        %932 = vmatmul.bf16.gmra.mxu0 %v726
        %v933 = vpop.f32.mrf.mxu0
        %v934 = vadd.f32 %v395, %v933
        %v935 = vpop.f32.mrf.mxu0
        %v936 = vadd.f32 %v395, %v935
        %937 = vmatmul.bf16.gmra.mxu0 %v729
        %v938 = vpop.f32.mrf.mxu0
        %v939 = vadd.f32 %v395, %v938
        %v940 = vpop.f32.mrf.mxu0
        %v941 = vadd.f32 %v395, %v940
        %942 = vmatmul.bf16.gmra.mxu0 %v732
        %v943 = vpop.f32.mrf.mxu0
        %v944 = vadd.f32 %v395, %v943
        %v945 = vpop.f32.mrf.mxu0
        %v946 = vadd.f32 %v395, %v945
        %947 = vmatmul.bf16.gmra.mxu0 %v735
        %v948 = vpop.f32.mrf.mxu0
        %v949 = vadd.f32 %v395, %v948
        %v950 = vpop.f32.mrf.mxu0
        %v951 = vadd.f32 %v395, %v950
        %952 = vmatmul.bf16.gmra.mxu0 %v738
        %v953 = vpop.f32.mrf.mxu0
        %v954 = vadd.f32 %v395, %v953
        %v955 = vpop.f32.mrf.mxu0
        %v956 = vadd.f32 %v395, %v955
        %957 = vmatmul.bf16.gmra.mxu0 %v741
        %v958 = vpop.f32.mrf.mxu0
        %v959 = vadd.f32 %v395, %v958
        %v960 = vpop.f32.mrf.mxu0
        %v961 = vadd.f32 %v395, %v960
        %962 = vmatmul.bf16.gmra.mxu0 %v744
        %v963 = vpop.f32.mrf.mxu0
        %v964 = vadd.f32 %v395, %v963
        %v965 = vpop.f32.mrf.mxu0
        %v966 = vadd.f32 %v395, %v965
        %967 = vmatmul.bf16.gmra.mxu0 %v747
        %v968 = vpop.f32.mrf.mxu0
        %v969 = vadd.f32 %v395, %v968
        %v970 = vpop.f32.mrf.mxu0
        %v971 = vadd.f32 %v395, %v970
        %972 = vmatmul.bf16.gmra.mxu0 %v750
        %v973 = vpop.f32.mrf.mxu0
        %v974 = vadd.f32 %v395, %v973
        %v975 = vpop.f32.mrf.mxu0
        %v976 = vadd.f32 %v395, %v975
        %977 = vmatmul.bf16.gmra.mxu0 %v753
        %v978 = vpop.f32.mrf.mxu0
        %v979 = vadd.f32 %v395, %v978
        %v980 = vpop.f32.mrf.mxu0
        %v981 = vadd.f32 %v395, %v980
        %982 = vmatmul.bf16.gmra.mxu0 %v756
        %v983 = vpop.f32.mrf.mxu0
        %v984 = vadd.f32 %v395, %v983
        %v985 = vpop.f32.mrf.mxu0
        %v986 = vadd.f32 %v395, %v985
        %987 = vmatmul.bf16.gmra.mxu0 %v759
        %v988 = vpop.f32.mrf.mxu0
        %v989 = vadd.f32 %v395, %v988
        %v990 = vpop.f32.mrf.mxu0
        %v991 = vadd.f32 %v395, %v990
        %992 = vmatmul.bf16.gmra.mxu0 %v762
        %v993 = vpop.f32.mrf.mxu0
        %v994 = vadd.f32 %v395, %v993
        %v995 = vpop.f32.mrf.mxu0
        %v996 = vadd.f32 %v395, %v995
        %997 = vmatmul.bf16.gmra.mxu0 %v765
        %v998 = vpop.f32.mrf.mxu0
        %v999 = vadd.f32 %v395, %v998
        %v1000 = vpop.f32.mrf.mxu0
        %v1001 = vadd.f32 %v395, %v1000
        %1002 = vmatmul.bf16.gmra.mxu0 %v768
        %v1003 = vpop.f32.mrf.mxu0
        %v1004 = vadd.f32 %v395, %v1003
        %v1005 = vpop.f32.mrf.mxu0
        %v1006 = vadd.f32 %v395, %v1005
        %1007 = vmatmul.bf16.gmra.mxu0 %v771
        %v1008 = vpop.f32.mrf.mxu0
        %v1009 = vadd.f32 %v395, %v1008
        %v1010 = vpop.f32.mrf.mxu0
        %v1011 = vadd.f32 %v395, %v1010
        %1012 = vmatmul.bf16.gmra.mxu0 %v774
        %v1013 = vpop.f32.mrf.mxu0
        %v1014 = vadd.f32 %v395, %v1013
        %v1015 = vpop.f32.mrf.mxu0
        %v1016 = vadd.f32 %v395, %v1015
        %1017 = vmatmul.bf16.gmra.mxu0 %v777
        %v1018 = vpop.f32.mrf.mxu0
        %v1019 = vadd.f32 %v395, %v1018
        %v1020 = vpop.f32.mrf.mxu0
        %v1021 = vadd.f32 %v395, %v1020
        %1022 = vmatmul.bf16.gmra.mxu0 %v780
        %v1023 = vpop.f32.mrf.mxu0
        %v1024 = vadd.f32 %v395, %v1023
        %v1025 = vpop.f32.mrf.mxu0
        %v1026 = vadd.f32 %v395, %v1025
        %1027 = vmatmul.bf16.gmra.mxu0 %v783
        %v1028 = vpop.f32.mrf.mxu0
        %v1029 = vadd.f32 %v395, %v1028
        %v1030 = vpop.f32.mrf.mxu0
        %v1031 = vadd.f32 %v395, %v1030
        %1032 = vmatmul.bf16.gmra.mxu0 %v786
        %v1033 = vpop.f32.mrf.mxu0
        %v1034 = vadd.f32 %v395, %v1033
        %v1035 = vpop.f32.mrf.mxu0
        %v1036 = vadd.f32 %v395, %v1035
        %1037 = vmatmul.bf16.gmra.mxu0 %v789
        %v1038 = vpop.f32.mrf.mxu0
        %v1039 = vadd.f32 %v395, %v1038
        %v1040 = vpop.f32.mrf.mxu0
        %v1041 = vadd.f32 %v395, %v1040
        %1042 = vmatmul.bf16.gmra.mxu0 %v792
        %v1043 = vpop.f32.mrf.mxu0
        %v1044 = vadd.f32 %v395, %v1043
        %v1045 = vpop.f32.mrf.mxu0
        %v1046 = vadd.f32 %v395, %v1045
        %1047 = vmatmul.bf16.gmra.mxu0 %v795
        %v1048 = vpop.f32.mrf.mxu0
        %v1049 = vadd.f32 %v395, %v1048
        %v1050 = vpop.f32.mrf.mxu0
        %v1051 = vadd.f32 %v395, %v1050
        %1052 = vmatmul.bf16.gmra.mxu0 %v798
        %v1053 = vpop.f32.mrf.mxu0
        %v1054 = vadd.f32 %v395, %v1053
        %v1055 = vpop.f32.mrf.mxu0
        %v1056 = vadd.f32 %v395, %v1055
        %1057 = vmatmul.bf16.gmra.mxu0 %v801
        %v1058 = vpop.f32.mrf.mxu0
        %v1059 = vadd.f32 %v395, %v1058
        %v1060 = vpop.f32.mrf.mxu0
        %v1061 = vadd.f32 %v395, %v1060
        %1062 = vmatmul.bf16.gmra.mxu0 %v804
        %v1063 = vpop.f32.mrf.mxu0
        %v1064 = vadd.f32 %v395, %v1063
        %v1065 = vpop.f32.mrf.mxu0
        %v1066 = vadd.f32 %v395, %v1065
        %1067 = vmatmul.bf16.gmra.mxu0 %v807
        %v1068 = vpop.f32.mrf.mxu0
        %v1069 = vadd.f32 %v395, %v1068
        %v1070 = vpop.f32.mrf.mxu0
        %v1071 = vadd.f32 %v395, %v1070
        %1072 = vmatmul.bf16.gmra.mxu0 %v810
        %v1073 = vpop.f32.mrf.mxu0
        %v1074 = vadd.f32 %v395, %v1073
        %v1075 = vpop.f32.mrf.mxu0
        %v1076 = vadd.f32 %v395, %v1075
        %1077 = vmatmul.bf16.gmra.mxu0 %v813
        %v1078 = vpop.f32.mrf.mxu0
        %v1079 = vadd.f32 %v395, %v1078
        %v1080 = vpop.f32.mrf.mxu0
        %v1081 = vadd.f32 %v395, %v1080
        %1082 = vmatmul.bf16.gmra.mxu0 %v816
        %v1083 = vpop.f32.mrf.mxu0
        %v1084 = vadd.f32 %v395, %v1083
        %v1085 = vpop.f32.mrf.mxu0
        %v1086 = vadd.f32 %v395, %v1085
        %1087 = vmatmul.bf16.gmra.mxu0 %v819
        %v1088 = vpop.f32.mrf.mxu0
        %v1089 = vadd.f32 %v395, %v1088
        %v1090 = vpop.f32.mrf.mxu0
        %v1091 = vadd.f32 %v395, %v1090
        %1092 = vmatmul.bf16.gmra.mxu0 %v822
        %v1093 = vpop.f32.mrf.mxu0
        %v1094 = vadd.f32 %v395, %v1093
        %v1095 = vpop.f32.mrf.mxu0
        %v1096 = vadd.f32 %v395, %v1095
        %1097 = vmatmul.bf16.gmra.mxu0 %v825
        %v1098 = vpop.f32.mrf.mxu0
        %v1099 = vadd.f32 %v395, %v1098
        %v1100 = vpop.f32.mrf.mxu0
        %v1101 = vadd.f32 %v395, %v1100
        %1102 = vmatmul.bf16.gmra.mxu0 %v828
        %v1103 = vpop.f32.mrf.mxu0
        %v1104 = vadd.f32 %v395, %v1103
        %v1105 = vpop.f32.mrf.mxu0
        %v1106 = vadd.f32 %v395, %v1105
        %1107 = vmatmul.bf16.gmra.mxu0 %v831
        %v1108 = vpop.f32.mrf.mxu0
        %v1109 = vadd.f32 %v395, %v1108
        %v1110 = vpop.f32.mrf.mxu0
        %v1111 = vadd.f32 %v395, %v1110
        %1112 = vmatmul.bf16.gmra.mxu0 %v834
        %v1113 = vpop.f32.mrf.mxu0
        %v1114 = vadd.f32 %v395, %v1113
        %v1115 = vpop.f32.mrf.mxu0
        %v1116 = vadd.f32 %v395, %v1115
        %1117 = vmatmul.bf16.gmra.mxu0 %v837
        %v1118 = vpop.f32.mrf.mxu0
        %v1119 = vadd.f32 %v395, %v1118
        %v1120 = vpop.f32.mrf.mxu0
        %v1121 = vadd.f32 %v395, %v1120
        %1122 = vmatmul.bf16.gmra.mxu0 %v840
        %v1123 = vpop.f32.mrf.mxu0
        %v1124 = vadd.f32 %v395, %v1123
        %v1125 = vpop.f32.mrf.mxu0
        %v1126 = vadd.f32 %v395, %v1125
        %1127 = vmatmul.bf16.gmra.mxu0 %v843
        %v1128 = vpop.f32.mrf.mxu0
        %v1129 = vadd.f32 %v395, %v1128
        %v1130 = vpop.f32.mrf.mxu0
        %v1131 = vadd.f32 %v395, %v1130
        %1132 = vmatmul.bf16.gmra.mxu0 %v846
        %v1133 = vpop.f32.mrf.mxu0
        %v1134 = vadd.f32 %v395, %v1133
        %v1135 = vpop.f32.mrf.mxu0
        %v1136 = vadd.f32 %v395, %v1135
        %1137 = vmatmul.bf16.gmra.mxu0 %v849
        %v1138 = vpop.f32.mrf.mxu0
        %v1139 = vadd.f32 %v395, %v1138
        %v1140 = vpop.f32.mrf.mxu0
        %v1141 = vadd.f32 %v395, %v1140
        %1142 = vmatmul.bf16.gmra.mxu0 %v852
        %v1143 = vpop.f32.mrf.mxu0
        %v1144 = vadd.f32 %v395, %v1143
        %v1145 = vpop.f32.mrf.mxu0
        %v1146 = vadd.f32 %v395, %v1145
        %1147 = vmatmul.bf16.gmra.mxu0 %v855
        %v1148 = vpop.f32.mrf.mxu0
        %v1149 = vadd.f32 %v395, %v1148
        %v1150 = vpop.f32.mrf.mxu0
        %v1151 = vadd.f32 %v395, %v1150
        %1152 = vdwg.mxu0
        %v1153 = vmax.f32 %v874, 0.0
        %v1154 = vmax.f32 %v876, 0.0
        %v1155 = vmax.f32 %v879, 0.0
        %v1156 = vmax.f32 %v881, 0.0
        %v1157 = vmax.f32 %v884, 0.0
        %v1158 = vmax.f32 %v886, 0.0
        %v1159 = vmax.f32 %v889, 0.0
        %v1160 = vmax.f32 %v891, 0.0
        %v1161 = vmax.f32 %v894, 0.0
        %v1162 = vmax.f32 %v896, 0.0
        %v1163 = vmax.f32 %v899, 0.0
        %v1164 = vmax.f32 %v901, 0.0
        %v1165 = vmax.f32 %v904, 0.0
        %v1166 = vmax.f32 %v906, 0.0
        %v1167 = vmax.f32 %v909, 0.0
        %v1168 = vmax.f32 %v911, 0.0
        %v1169 = vmax.f32 %v914, 0.0
        %v1170 = vmax.f32 %v916, 0.0
        %v1171 = vmax.f32 %v919, 0.0
        %v1172 = vmax.f32 %v921, 0.0
        %v1173 = vmax.f32 %v924, 0.0
        %v1174 = vmax.f32 %v926, 0.0
        %v1175 = vmax.f32 %v929, 0.0
        %v1176 = vmax.f32 %v931, 0.0
        %v1177 = vmax.f32 %v934, 0.0
        %v1178 = vmax.f32 %v936, 0.0
        %v1179 = vmax.f32 %v939, 0.0
        %v1180 = vmax.f32 %v941, 0.0
        %v1181 = vmax.f32 %v944, 0.0
        %v1182 = vmax.f32 %v946, 0.0
        %v1183 = vmax.f32 %v949, 0.0
        %v1184 = vmax.f32 %v951, 0.0
        %v1185 = vmax.f32 %v954, 0.0
        %v1186 = vmax.f32 %v956, 0.0
        %v1187 = vmax.f32 %v959, 0.0
        %v1188 = vmax.f32 %v961, 0.0
        %v1189 = vmax.f32 %v964, 0.0
        %v1190 = vmax.f32 %v966, 0.0
        %v1191 = vmax.f32 %v969, 0.0
        %v1192 = vmax.f32 %v971, 0.0
        %v1193 = vmax.f32 %v974, 0.0
        %v1194 = vmax.f32 %v976, 0.0
        %v1195 = vmax.f32 %v979, 0.0
        %v1196 = vmax.f32 %v981, 0.0
        %v1197 = vmax.f32 %v984, 0.0
        %v1198 = vmax.f32 %v986, 0.0
        %v1199 = vmax.f32 %v989, 0.0
        %v1200 = vmax.f32 %v991, 0.0
        %v1201 = vmax.f32 %v994, 0.0
        %v1202 = vmax.f32 %v996, 0.0
        %v1203 = vmax.f32 %v999, 0.0
        %v1204 = vmax.f32 %v1001, 0.0
        %v1205 = vmax.f32 %v1004, 0.0
        %v1206 = vmax.f32 %v1006, 0.0
        %v1207 = vmax.f32 %v1009, 0.0
        %v1208 = vmax.f32 %v1011, 0.0
        %v1209 = vmax.f32 %v1014, 0.0
        %v1210 = vmax.f32 %v1016, 0.0
        %v1211 = vmax.f32 %v1019, 0.0
        %v1212 = vmax.f32 %v1021, 0.0
        %v1213 = vmax.f32 %v1024, 0.0
        %v1214 = vmax.f32 %v1026, 0.0
        %v1215 = vmax.f32 %v1029, 0.0
        %v1216 = vmax.f32 %v1031, 0.0
        %v1217 = vmax.f32 %v1034, 0.0
        %v1218 = vmax.f32 %v1036, 0.0
        %v1219 = vmax.f32 %v1039, 0.0
        %v1220 = vmax.f32 %v1041, 0.0
        %v1221 = vmax.f32 %v1044, 0.0
        %v1222 = vmax.f32 %v1046, 0.0
        %v1223 = vmax.f32 %v1049, 0.0
        %v1224 = vmax.f32 %v1051, 0.0
        %v1225 = vmax.f32 %v1054, 0.0
        %v1226 = vmax.f32 %v1056, 0.0
        %v1227 = vmax.f32 %v1059, 0.0
        %v1228 = vmax.f32 %v1061, 0.0
        %v1229 = vmax.f32 %v1064, 0.0
        %v1230 = vmax.f32 %v1066, 0.0
        %v1231 = vmax.f32 %v1069, 0.0
        %v1232 = vmax.f32 %v1071, 0.0
        %v1233 = vmax.f32 %v1074, 0.0
        %v1234 = vmax.f32 %v1076, 0.0
        %v1235 = vmax.f32 %v1079, 0.0
        %v1236 = vmax.f32 %v1081, 0.0
        %v1237 = vmax.f32 %v1084, 0.0
        %v1238 = vmax.f32 %v1086, 0.0
        %v1239 = vmax.f32 %v1089, 0.0
        %v1240 = vmax.f32 %v1091, 0.0
        %v1241 = vmax.f32 %v1094, 0.0
        %v1242 = vmax.f32 %v1096, 0.0
        %v1243 = vmax.f32 %v1099, 0.0
        %v1244 = vmax.f32 %v1101, 0.0
        %v1245 = vmax.f32 %v1104, 0.0
        %v1246 = vmax.f32 %v1106, 0.0
        %v1247 = vmax.f32 %v1109, 0.0
        %v1248 = vmax.f32 %v1111, 0.0
        %v1249 = vmax.f32 %v1114, 0.0
        %v1250 = vmax.f32 %v1116, 0.0
        %v1251 = vmax.f32 %v1119, 0.0
        %v1252 = vmax.f32 %v1121, 0.0
        %v1253 = vmax.f32 %v1124, 0.0
        %v1254 = vmax.f32 %v1126, 0.0
        %v1255 = vmax.f32 %v1129, 0.0
        %v1256 = vmax.f32 %v1131, 0.0
        %v1257 = vmax.f32 %v1134, 0.0
        %v1258 = vmax.f32 %v1136, 0.0
        %v1259 = vmax.f32 %v1139, 0.0
        %v1260 = vmax.f32 %v1141, 0.0
        %v1261 = vmax.f32 %v1144, 0.0
        %v1262 = vmax.f32 %v1146, 0.0
        %v1263 = vmax.f32 %v1149, 0.0
        %v1264 = vmax.f32 %v1151, 0.0
        %vm1265 = vcmask 130048
        %1266 = vst.msk [vmem:[#allocation2] sm:$0xff] %vm1265, %v1153
        %1267 = vst.msk [vmem:[#allocation2 + $0x8] sm:$0xff] %vm1265, %v1154
        %1268 = vst.msk [vmem:[#allocation2 + $0x10] sm:$0xff] %vm1265, %v1155
        %1269 = vst.msk [vmem:[#allocation2 + $0x18] sm:$0xff] %vm1265, %v1156
        %1270 = vst.msk [vmem:[#allocation2 + $0x20] sm:$0xff] %vm1265, %v1157
        %1271 = vst.msk [vmem:[#allocation2 + $0x28] sm:$0xff] %vm1265, %v1158
        %1272 = vst.msk [vmem:[#allocation2 + $0x30] sm:$0xff] %vm1265, %v1159
        %1273 = vst.msk [vmem:[#allocation2 + $0x38] sm:$0xff] %vm1265, %v1160
        %1274 = vst.msk [vmem:[#allocation2 + $0x40] sm:$0xff] %vm1265, %v1161
        %1275 = vst.msk [vmem:[#allocation2 + $0x48] sm:$0xff] %vm1265, %v1162
        %1276 = vst.msk [vmem:[#allocation2 + $0x50] sm:$0xff] %vm1265, %v1163
        %1277 = vst.msk [vmem:[#allocation2 + $0x58] sm:$0xff] %vm1265, %v1164
        %1278 = vst.msk [vmem:[#allocation2 + $0x60] sm:$0xff] %vm1265, %v1165
        %1279 = vst.msk [vmem:[#allocation2 + $0x68] sm:$0xff] %vm1265, %v1166
        %1280 = vst.msk [vmem:[#allocation2 + $0x70] sm:$0xff] %vm1265, %v1167
        %1281 = vst.msk [vmem:[#allocation2 + $0x78] sm:$0xff] %vm1265, %v1168
        %1282 = vst.msk [vmem:[#allocation2 + $0x80] sm:$0xff] %vm1265, %v1169
        %1283 = vst.msk [vmem:[#allocation2 + $0x88] sm:$0xff] %vm1265, %v1170
        %1284 = vst.msk [vmem:[#allocation2 + $0x90] sm:$0xff] %vm1265, %v1171
        %1285 = vst.msk [vmem:[#allocation2 + $0x98] sm:$0xff] %vm1265, %v1172
        %1286 = vst.msk [vmem:[#allocation2 + $0xa0] sm:$0xff] %vm1265, %v1173
        %1287 = vst.msk [vmem:[#allocation2 + $0xa8] sm:$0xff] %vm1265, %v1174
        %1288 = vst.msk [vmem:[#allocation2 + $0xb0] sm:$0xff] %vm1265, %v1175
        %1289 = vst.msk [vmem:[#allocation2 + $0xb8] sm:$0xff] %vm1265, %v1176
        %1290 = vst.msk [vmem:[#allocation2 + $0xc0] sm:$0xff] %vm1265, %v1177
        %1291 = vst.msk [vmem:[#allocation2 + $0xc8] sm:$0xff] %vm1265, %v1178
        %1292 = vst.msk [vmem:[#allocation2 + $0xd0] sm:$0xff] %vm1265, %v1179
        %1293 = vst.msk [vmem:[#allocation2 + $0xd8] sm:$0xff] %vm1265, %v1180
        %1294 = vst.msk [vmem:[#allocation2 + $0xe0] sm:$0xff] %vm1265, %v1181
        %1295 = vst.msk [vmem:[#allocation2 + $0xe8] sm:$0xff] %vm1265, %v1182
        %1296 = vst.msk [vmem:[#allocation2 + $0xf0] sm:$0xff] %vm1265, %v1183
        %1297 = vst.msk [vmem:[#allocation2 + $0xf8] sm:$0xff] %vm1265, %v1184
        %1298 = vst.msk [vmem:[#allocation2 + $0x100] sm:$0xff] %vm1265, %v1185
        %1299 = vst.msk [vmem:[#allocation2 + $0x108] sm:$0xff] %vm1265, %v1186
        %1300 = vst.msk [vmem:[#allocation2 + $0x110] sm:$0xff] %vm1265, %v1187
        %1301 = vst.msk [vmem:[#allocation2 + $0x118] sm:$0xff] %vm1265, %v1188
        %1302 = vst.msk [vmem:[#allocation2 + $0x120] sm:$0xff] %vm1265, %v1189
        %1303 = vst.msk [vmem:[#allocation2 + $0x128] sm:$0xff] %vm1265, %v1190
        %1304 = vst.msk [vmem:[#allocation2 + $0x130] sm:$0xff] %vm1265, %v1191
        %1305 = vst.msk [vmem:[#allocation2 + $0x138] sm:$0xff] %vm1265, %v1192
        %1306 = vst.msk [vmem:[#allocation2 + $0x140] sm:$0xff] %vm1265, %v1193
        %1307 = vst.msk [vmem:[#allocation2 + $0x148] sm:$0xff] %vm1265, %v1194
        %1308 = vst.msk [vmem:[#allocation2 + $0x150] sm:$0xff] %vm1265, %v1195
        %1309 = vst.msk [vmem:[#allocation2 + $0x158] sm:$0xff] %vm1265, %v1196
        %1310 = vst.msk [vmem:[#allocation2 + $0x160] sm:$0xff] %vm1265, %v1197
        %1311 = vst.msk [vmem:[#allocation2 + $0x168] sm:$0xff] %vm1265, %v1198
        %1312 = vst.msk [vmem:[#allocation2 + $0x170] sm:$0xff] %vm1265, %v1199
        %1313 = vst.msk [vmem:[#allocation2 + $0x178] sm:$0xff] %vm1265, %v1200
        %1314 = vst.msk [vmem:[#allocation2 + $0x180] sm:$0xff] %vm1265, %v1201
        %1315 = vst.msk [vmem:[#allocation2 + $0x188] sm:$0xff] %vm1265, %v1202
        %1316 = vst.msk [vmem:[#allocation2 + $0x190] sm:$0xff] %vm1265, %v1203
        %1317 = vst.msk [vmem:[#allocation2 + $0x198] sm:$0xff] %vm1265, %v1204
        %1318 = vst.msk [vmem:[#allocation2 + $0x1a0] sm:$0xff] %vm1265, %v1205
        %1319 = vst.msk [vmem:[#allocation2 + $0x1a8] sm:$0xff] %vm1265, %v1206
        %1320 = vst.msk [vmem:[#allocation2 + $0x1b0] sm:$0xff] %vm1265, %v1207
        %1321 = vst.msk [vmem:[#allocation2 + $0x1b8] sm:$0xff] %vm1265, %v1208
        %1322 = vst.msk [vmem:[#allocation2 + $0x1c0] sm:$0xff] %vm1265, %v1209
        %1323 = vst.msk [vmem:[#allocation2 + $0x1c8] sm:$0xff] %vm1265, %v1210
        %1324 = vst.msk [vmem:[#allocation2 + $0x1d0] sm:$0xff] %vm1265, %v1211
        %1325 = vst.msk [vmem:[#allocation2 + $0x1d8] sm:$0xff] %vm1265, %v1212
        %1326 = vst.msk [vmem:[#allocation2 + $0x1e0] sm:$0xff] %vm1265, %v1213
        %1327 = vst.msk [vmem:[#allocation2 + $0x1e8] sm:$0xff] %vm1265, %v1214
        %1328 = vst.msk [vmem:[#allocation2 + $0x1f0] sm:$0xff] %vm1265, %v1215
        %1329 = vst.msk [vmem:[#allocation2 + $0x1f8] sm:$0xff] %vm1265, %v1216
        %1330 = vst.msk [vmem:[#allocation2 + $0x200] sm:$0xff] %vm1265, %v1217
        %1331 = vst.msk [vmem:[#allocation2 + $0x208] sm:$0xff] %vm1265, %v1218
        %1332 = vst.msk [vmem:[#allocation2 + $0x210] sm:$0xff] %vm1265, %v1219
        %1333 = vst.msk [vmem:[#allocation2 + $0x218] sm:$0xff] %vm1265, %v1220
        %1334 = vst.msk [vmem:[#allocation2 + $0x220] sm:$0xff] %vm1265, %v1221
        %1335 = vst.msk [vmem:[#allocation2 + $0x228] sm:$0xff] %vm1265, %v1222
        %1336 = vst.msk [vmem:[#allocation2 + $0x230] sm:$0xff] %vm1265, %v1223
        %1337 = vst.msk [vmem:[#allocation2 + $0x238] sm:$0xff] %vm1265, %v1224
        %1338 = vst.msk [vmem:[#allocation2 + $0x240] sm:$0xff] %vm1265, %v1225
        %1339 = vst.msk [vmem:[#allocation2 + $0x248] sm:$0xff] %vm1265, %v1226
        %1340 = vst.msk [vmem:[#allocation2 + $0x250] sm:$0xff] %vm1265, %v1227
        %1341 = vst.msk [vmem:[#allocation2 + $0x258] sm:$0xff] %vm1265, %v1228
        %1342 = vst.msk [vmem:[#allocation2 + $0x260] sm:$0xff] %vm1265, %v1229
        %1343 = vst.msk [vmem:[#allocation2 + $0x268] sm:$0xff] %vm1265, %v1230
        %1344 = vst.msk [vmem:[#allocation2 + $0x270] sm:$0xff] %vm1265, %v1231
        %1345 = vst.msk [vmem:[#allocation2 + $0x278] sm:$0xff] %vm1265, %v1232
        %1346 = vst.msk [vmem:[#allocation2 + $0x280] sm:$0xff] %vm1265, %v1233
        %1347 = vst.msk [vmem:[#allocation2 + $0x288] sm:$0xff] %vm1265, %v1234
        %1348 = vst.msk [vmem:[#allocation2 + $0x290] sm:$0xff] %vm1265, %v1235
        %1349 = vst.msk [vmem:[#allocation2 + $0x298] sm:$0xff] %vm1265, %v1236
        %1350 = vst.msk [vmem:[#allocation2 + $0x2a0] sm:$0xff] %vm1265, %v1237
        %1351 = vst.msk [vmem:[#allocation2 + $0x2a8] sm:$0xff] %vm1265, %v1238
        %1352 = vst.msk [vmem:[#allocation2 + $0x2b0] sm:$0xff] %vm1265, %v1239
        %1353 = vst.msk [vmem:[#allocation2 + $0x2b8] sm:$0xff] %vm1265, %v1240
        %1354 = vst.msk [vmem:[#allocation2 + $0x2c0] sm:$0xff] %vm1265, %v1241
        %1355 = vst.msk [vmem:[#allocation2 + $0x2c8] sm:$0xff] %vm1265, %v1242
        %1356 = vst.msk [vmem:[#allocation2 + $0x2d0] sm:$0xff] %vm1265, %v1243
        %1357 = vst.msk [vmem:[#allocation2 + $0x2d8] sm:$0xff] %vm1265, %v1244
        %1358 = vst.msk [vmem:[#allocation2 + $0x2e0] sm:$0xff] %vm1265, %v1245
        %1359 = vst.msk [vmem:[#allocation2 + $0x2e8] sm:$0xff] %vm1265, %v1246
        %1360 = vst.msk [vmem:[#allocation2 + $0x2f0] sm:$0xff] %vm1265, %v1247
        %1361 = vst.msk [vmem:[#allocation2 + $0x2f8] sm:$0xff] %vm1265, %v1248
        %1362 = vst.msk [vmem:[#allocation2 + $0x300] sm:$0xff] %vm1265, %v1249
        %1363 = vst.msk [vmem:[#allocation2 + $0x308] sm:$0xff] %vm1265, %v1250
        %1364 = vst.msk [vmem:[#allocation2 + $0x310] sm:$0xff] %vm1265, %v1251
        %1365 = vst.msk [vmem:[#allocation2 + $0x318] sm:$0xff] %vm1265, %v1252
        %1366 = vst.msk [vmem:[#allocation2 + $0x320] sm:$0xff] %vm1265, %v1253
        %1367 = vst.msk [vmem:[#allocation2 + $0x328] sm:$0xff] %vm1265, %v1254
        %1368 = vst.msk [vmem:[#allocation2 + $0x330] sm:$0xff] %vm1265, %v1255
        %1369 = vst.msk [vmem:[#allocation2 + $0x338] sm:$0xff] %vm1265, %v1256
        %1370 = vst.msk [vmem:[#allocation2 + $0x340] sm:$0xff] %vm1265, %v1257
        %1371 = vst.msk [vmem:[#allocation2 + $0x348] sm:$0xff] %vm1265, %v1258
        %1372 = vst.msk [vmem:[#allocation2 + $0x350] sm:$0xff] %vm1265, %v1259
        %1373 = vst.msk [vmem:[#allocation2 + $0x358] sm:$0xff] %vm1265, %v1260
        %1374 = vst.msk [vmem:[#allocation2 + $0x360] sm:$0xff] %vm1265, %v1261
        %1375 = vst.msk [vmem:[#allocation2 + $0x368] sm:$0xff] %vm1265, %v1262
        %1376 = vst.msk [vmem:[#allocation2 + $0x370] sm:$0xff] %vm1265, %v1263
        %1377 = vst.msk [vmem:[#allocation2 + $0x378] sm:$0xff] %vm1265, %v1264
        %1378 = vst.msk [vmem:[#allocation3] sm:$0xff] %vm1265, 0.0
        %1379 = vst.msk [vmem:[#allocation3 + $0x8] sm:$0xff] %vm1265, 0.0
        %1380 = vst.msk [vmem:[#allocation3 + $0x10] sm:$0xff] %vm1265, 0.0
        %1381 = vst.msk [vmem:[#allocation3 + $0x18] sm:$0xff] %vm1265, 0.0
        %1382 = vst.msk [vmem:[#allocation3 + $0x20] sm:$0xff] %vm1265, 0.0
        %1383 = vst.msk [vmem:[#allocation3 + $0x28] sm:$0xff] %vm1265, 0.0
        %1384 = vst.msk [vmem:[#allocation3 + $0x30] sm:$0xff] %vm1265, 0.0
        %1385 = vst.msk [vmem:[#allocation3 + $0x38] sm:$0xff] %vm1265, 0.0
        %1386 = vst.msk [vmem:[#allocation3 + $0x40] sm:$0xff] %vm1265, 0.0
        %1387 = vst.msk [vmem:[#allocation3 + $0x48] sm:$0xff] %vm1265, 0.0
        %1388 = vst.msk [vmem:[#allocation3 + $0x50] sm:$0xff] %vm1265, 0.0
        %1389 = vst.msk [vmem:[#allocation3 + $0x58] sm:$0xff] %vm1265, 0.0
        %1390 = vst.msk [vmem:[#allocation3 + $0x60] sm:$0xff] %vm1265, 0.0
        %1391 = vst.msk [vmem:[#allocation3 + $0x68] sm:$0xff] %vm1265, 0.0
        %1392 = vst.msk [vmem:[#allocation3 + $0x70] sm:$0xff] %vm1265, 0.0
        %1393 = vst.msk [vmem:[#allocation3 + $0x78] sm:$0xff] %vm1265, 0.0
        %1394 = vst.msk [vmem:[#allocation3 + $0x80] sm:$0xff] %vm1265, 0.0
        %1395 = vst.msk [vmem:[#allocation3 + $0x88] sm:$0xff] %vm1265, 0.0
        %1396 = vst.msk [vmem:[#allocation3 + $0x90] sm:$0xff] %vm1265, 0.0
        %1397 = vst.msk [vmem:[#allocation3 + $0x98] sm:$0xff] %vm1265, 0.0
        %1398 = vst.msk [vmem:[#allocation3 + $0xa0] sm:$0xff] %vm1265, 0.0
        %1399 = vst.msk [vmem:[#allocation3 + $0xa8] sm:$0xff] %vm1265, 0.0
        %1400 = vst.msk [vmem:[#allocation3 + $0xb0] sm:$0xff] %vm1265, 0.0
        %1401 = vst.msk [vmem:[#allocation3 + $0xb8] sm:$0xff] %vm1265, 0.0
        %1402 = vst.msk [vmem:[#allocation3 + $0xc0] sm:$0xff] %vm1265, 0.0
        %1403 = vst.msk [vmem:[#allocation3 + $0xc8] sm:$0xff] %vm1265, 0.0
        %1404 = vst.msk [vmem:[#allocation3 + $0xd0] sm:$0xff] %vm1265, 0.0
        %1405 = vst.msk [vmem:[#allocation3 + $0xd8] sm:$0xff] %vm1265, 0.0
        %1406 = vst.msk [vmem:[#allocation3 + $0xe0] sm:$0xff] %vm1265, 0.0
        %1407 = vst.msk [vmem:[#allocation3 + $0xe8] sm:$0xff] %vm1265, 0.0
        %1408 = vst.msk [vmem:[#allocation3 + $0xf0] sm:$0xff] %vm1265, 0.0
        %1409 = vst.msk [vmem:[#allocation3 + $0xf8] sm:$0xff] %vm1265, 0.0
        %1410 = vst.msk [vmem:[#allocation3 + $0x100] sm:$0xff] %vm1265, 0.0
        %1411 = vst.msk [vmem:[#allocation3 + $0x108] sm:$0xff] %vm1265, 0.0
        %1412 = vst.msk [vmem:[#allocation3 + $0x110] sm:$0xff] %vm1265, 0.0
        %1413 = vst.msk [vmem:[#allocation3 + $0x118] sm:$0xff] %vm1265, 0.0
        %1414 = vst.msk [vmem:[#allocation3 + $0x120] sm:$0xff] %vm1265, 0.0
        %1415 = vst.msk [vmem:[#allocation3 + $0x128] sm:$0xff] %vm1265, 0.0
        %1416 = vst.msk [vmem:[#allocation3 + $0x130] sm:$0xff] %vm1265, 0.0
        %1417 = vst.msk [vmem:[#allocation3 + $0x138] sm:$0xff] %vm1265, 0.0
        %1418 = vst.msk [vmem:[#allocation3 + $0x140] sm:$0xff] %vm1265, 0.0
        %1419 = vst.msk [vmem:[#allocation3 + $0x148] sm:$0xff] %vm1265, 0.0
        %1420 = vst.msk [vmem:[#allocation3 + $0x150] sm:$0xff] %vm1265, 0.0
        %1421 = vst.msk [vmem:[#allocation3 + $0x158] sm:$0xff] %vm1265, 0.0
        %1422 = vst.msk [vmem:[#allocation3 + $0x160] sm:$0xff] %vm1265, 0.0
        %1423 = vst.msk [vmem:[#allocation3 + $0x168] sm:$0xff] %vm1265, 0.0
        %v1424 = vld [vmem:[#allocation2] ss:$2 sm:$0xff]
        %s1425 = scalar_lea.vmem [#allocation2], 16
        %v1426 = vld [vmem:[%s1425] ss:$2 sm:$0x3f]
        %s1427 = scalar_lea.vmem [#allocation2], 1
        %v1428 = vld [vmem:[%s1427] ss:$2 sm:$0xff]
        %s1429 = scalar_lea.vmem [#allocation2], 17
        %v1430 = vld [vmem:[%s1429] ss:$2 sm:$0x3f]
        %s1431 = scalar_lea.vmem [#allocation2], 32
        %v1432 = vld [vmem:[%s1431] ss:$2 sm:$0xff]
        %s1433 = scalar_lea.vmem [#allocation2], 48
        %v1434 = vld [vmem:[%s1433] ss:$2 sm:$0x3f]
        %s1435 = scalar_lea.vmem [#allocation2], 33
        %v1436 = vld [vmem:[%s1435] ss:$2 sm:$0xff]
        %s1437 = scalar_lea.vmem [#allocation2], 49
        %v1438 = vld [vmem:[%s1437] ss:$2 sm:$0x3f]
        %v1439 = vmax.f32 %v1424, %v1428
        %v1440 = vmax.f32 %v1426, %v1430
        %v1441 = vmax.f32 %v1432, %v1436
        %v1442 = vmax.f32 %v1434, %v1438
        %v1443 = vmax.f32 %v1439, %v1441
        %v1444 = vmax.f32 %v1440, %v1442
        %1445 = vst.msk [vmem:[#allocation3 + $0x2a] sm:$0xff] %vm1265, %v1443
        %vm1446 = vcmask 128000
        %1447 = vst.msk [vmem:[#allocation3 + $0x32] sm:$0x3f] %vm1446, %v1444
        %s1448 = scalar_lea.vmem [#allocation2], 64
        %v1449 = vld [vmem:[%s1448] ss:$2 sm:$0xff]
        %s1450 = scalar_lea.vmem [#allocation2], 80
        %v1451 = vld [vmem:[%s1450] ss:$2 sm:$0x3f]
        %s1452 = scalar_lea.vmem [#allocation2], 65
        %v1453 = vld [vmem:[%s1452] ss:$2 sm:$0xff]
        %s1454 = scalar_lea.vmem [#allocation2], 81
        %v1455 = vld [vmem:[%s1454] ss:$2 sm:$0x3f]
        %s1456 = scalar_lea.vmem [#allocation2], 96
        %v1457 = vld [vmem:[%s1456] ss:$2 sm:$0xff]
        %s1458 = scalar_lea.vmem [#allocation2], 112
        %v1459 = vld [vmem:[%s1458] ss:$2 sm:$0x3f]
        %s1460 = scalar_lea.vmem [#allocation2], 97
        %v1461 = vld [vmem:[%s1460] ss:$2 sm:$0xff]
        %s1462 = scalar_lea.vmem [#allocation2], 113
        %v1463 = vld [vmem:[%s1462] ss:$2 sm:$0x3f]
        %v1464 = vmax.f32 %v1449, %v1453
        %v1465 = vmax.f32 %v1451, %v1455
        %v1466 = vmax.f32 %v1457, %v1461
        %v1467 = vmax.f32 %v1459, %v1463
        %v1468 = vmax.f32 %v1464, %v1466
        %v1469 = vmax.f32 %v1465, %v1467
        %1470 = vst.msk [vmem:[#allocation3 + $0x3e] sm:$0xff] %vm1265, %v1468
        %1471 = vst.msk [vmem:[#allocation3 + $0x46] sm:$0x3f] %vm1446, %v1469
        %s1472 = scalar_lea.vmem [#allocation2], 128
        %v1473 = vld [vmem:[%s1472] ss:$2 sm:$0xff]
        %s1474 = scalar_lea.vmem [#allocation2], 144
        %v1475 = vld [vmem:[%s1474] ss:$2 sm:$0x3f]
        %s1476 = scalar_lea.vmem [#allocation2], 129
        %v1477 = vld [vmem:[%s1476] ss:$2 sm:$0xff]
        %s1478 = scalar_lea.vmem [#allocation2], 145
        %v1479 = vld [vmem:[%s1478] ss:$2 sm:$0x3f]
        %s1480 = scalar_lea.vmem [#allocation2], 160
        %v1481 = vld [vmem:[%s1480] ss:$2 sm:$0xff]
        %s1482 = scalar_lea.vmem [#allocation2], 176
        %v1483 = vld [vmem:[%s1482] ss:$2 sm:$0x3f]
        %s1484 = scalar_lea.vmem [#allocation2], 161
        %v1485 = vld [vmem:[%s1484] ss:$2 sm:$0xff]
        %s1486 = scalar_lea.vmem [#allocation2], 177
        %v1487 = vld [vmem:[%s1486] ss:$2 sm:$0x3f]
        %v1488 = vmax.f32 %v1473, %v1477
        %v1489 = vmax.f32 %v1475, %v1479
        %v1490 = vmax.f32 %v1481, %v1485
        %v1491 = vmax.f32 %v1483, %v1487
        %v1492 = vmax.f32 %v1488, %v1490
        %v1493 = vmax.f32 %v1489, %v1491
        %1494 = vst.msk [vmem:[#allocation3 + $0x52] sm:$0xff] %vm1265, %v1492
        %1495 = vst.msk [vmem:[#allocation3 + $0x5a] sm:$0x3f] %vm1446, %v1493
        %s1496 = scalar_lea.vmem [#allocation2], 192
        %v1497 = vld [vmem:[%s1496] ss:$2 sm:$0xff]
        %s1498 = scalar_lea.vmem [#allocation2], 208
        %v1499 = vld [vmem:[%s1498] ss:$2 sm:$0x3f]
        %s1500 = scalar_lea.vmem [#allocation2], 193
        %v1501 = vld [vmem:[%s1500] ss:$2 sm:$0xff]
        %s1502 = scalar_lea.vmem [#allocation2], 209
        %v1503 = vld [vmem:[%s1502] ss:$2 sm:$0x3f]
        %s1504 = scalar_lea.vmem [#allocation2], 224
        %v1505 = vld [vmem:[%s1504] ss:$2 sm:$0xff]
        %s1506 = scalar_lea.vmem [#allocation2], 240
        %v1507 = vld [vmem:[%s1506] ss:$2 sm:$0x3f]
        %s1508 = scalar_lea.vmem [#allocation2], 225
        %v1509 = vld [vmem:[%s1508] ss:$2 sm:$0xff]
        %s1510 = scalar_lea.vmem [#allocation2], 241
        %v1511 = vld [vmem:[%s1510] ss:$2 sm:$0x3f]
        %v1512 = vmax.f32 %v1497, %v1501
        %v1513 = vmax.f32 %v1499, %v1503
        %v1514 = vmax.f32 %v1505, %v1509
        %v1515 = vmax.f32 %v1507, %v1511
        %v1516 = vmax.f32 %v1512, %v1514
        %v1517 = vmax.f32 %v1513, %v1515
        %1518 = vst.msk [vmem:[#allocation3 + $0x66] sm:$0xff] %vm1265, %v1516
        %1519 = vst.msk [vmem:[#allocation3 + $0x6e] sm:$0x3f] %vm1446, %v1517
        %s1520 = scalar_lea.vmem [#allocation2], 256
        %v1521 = vld [vmem:[%s1520] ss:$2 sm:$0xff]
        %s1522 = scalar_lea.vmem [#allocation2], 272
        %v1523 = vld [vmem:[%s1522] ss:$2 sm:$0x3f]
        %s1524 = scalar_lea.vmem [#allocation2], 257
        %v1525 = vld [vmem:[%s1524] ss:$2 sm:$0xff]
        %s1526 = scalar_lea.vmem [#allocation2], 273
        %v1527 = vld [vmem:[%s1526] ss:$2 sm:$0x3f]
        %s1528 = scalar_lea.vmem [#allocation2], 288
        %v1529 = vld [vmem:[%s1528] ss:$2 sm:$0xff]
        %s1530 = scalar_lea.vmem [#allocation2], 304
        %v1531 = vld [vmem:[%s1530] ss:$2 sm:$0x3f]
        %s1532 = scalar_lea.vmem [#allocation2], 289
        %v1533 = vld [vmem:[%s1532] ss:$2 sm:$0xff]
        %s1534 = scalar_lea.vmem [#allocation2], 305
        %v1535 = vld [vmem:[%s1534] ss:$2 sm:$0x3f]
        %v1536 = vmax.f32 %v1521, %v1525
        %v1537 = vmax.f32 %v1523, %v1527
        %v1538 = vmax.f32 %v1529, %v1533
        %v1539 = vmax.f32 %v1531, %v1535
        %v1540 = vmax.f32 %v1536, %v1538
        %v1541 = vmax.f32 %v1537, %v1539
        %1542 = vst.msk [vmem:[#allocation3 + $0x7a] sm:$0xff] %vm1265, %v1540
        %1543 = vst.msk [vmem:[#allocation3 + $0x82] sm:$0x3f] %vm1446, %v1541
        %s1544 = scalar_lea.vmem [#allocation2], 320
        %v1545 = vld [vmem:[%s1544] ss:$2 sm:$0xff]
        %s1546 = scalar_lea.vmem [#allocation2], 336
        %v1547 = vld [vmem:[%s1546] ss:$2 sm:$0x3f]
        %s1548 = scalar_lea.vmem [#allocation2], 321
        %v1549 = vld [vmem:[%s1548] ss:$2 sm:$0xff]
        %s1550 = scalar_lea.vmem [#allocation2], 337
        %v1551 = vld [vmem:[%s1550] ss:$2 sm:$0x3f]
        %s1552 = scalar_lea.vmem [#allocation2], 352
        %v1553 = vld [vmem:[%s1552] ss:$2 sm:$0xff]
        %s1554 = scalar_lea.vmem [#allocation2], 368
        %v1555 = vld [vmem:[%s1554] ss:$2 sm:$0x3f]
        %s1556 = scalar_lea.vmem [#allocation2], 353
        %v1557 = vld [vmem:[%s1556] ss:$2 sm:$0xff]
        %s1558 = scalar_lea.vmem [#allocation2], 369
        %v1559 = vld [vmem:[%s1558] ss:$2 sm:$0x3f]
        %v1560 = vmax.f32 %v1545, %v1549
        %v1561 = vmax.f32 %v1547, %v1551
        %v1562 = vmax.f32 %v1553, %v1557
        %v1563 = vmax.f32 %v1555, %v1559
        %v1564 = vmax.f32 %v1560, %v1562
        %v1565 = vmax.f32 %v1561, %v1563
        %1566 = vst.msk [vmem:[#allocation3 + $0x8e] sm:$0xff] %vm1265, %v1564
        %1567 = vst.msk [vmem:[#allocation3 + $0x96] sm:$0x3f] %vm1446, %v1565
        %s1568 = scalar_lea.vmem [#allocation2], 384
        %v1569 = vld [vmem:[%s1568] ss:$2 sm:$0xff]
        %s1570 = scalar_lea.vmem [#allocation2], 400
        %v1571 = vld [vmem:[%s1570] ss:$2 sm:$0x3f]
        %s1572 = scalar_lea.vmem [#allocation2], 385
        %v1573 = vld [vmem:[%s1572] ss:$2 sm:$0xff]
        %s1574 = scalar_lea.vmem [#allocation2], 401
        %v1575 = vld [vmem:[%s1574] ss:$2 sm:$0x3f]
        %s1576 = scalar_lea.vmem [#allocation2], 416
        %v1577 = vld [vmem:[%s1576] ss:$2 sm:$0xff]
        %s1578 = scalar_lea.vmem [#allocation2], 432
        %v1579 = vld [vmem:[%s1578] ss:$2 sm:$0x3f]
        %s1580 = scalar_lea.vmem [#allocation2], 417
        %v1581 = vld [vmem:[%s1580] ss:$2 sm:$0xff]
        %s1582 = scalar_lea.vmem [#allocation2], 433
        %v1583 = vld [vmem:[%s1582] ss:$2 sm:$0x3f]
        %v1584 = vmax.f32 %v1569, %v1573
        %v1585 = vmax.f32 %v1571, %v1575
        %v1586 = vmax.f32 %v1577, %v1581
        %v1587 = vmax.f32 %v1579, %v1583
        %v1588 = vmax.f32 %v1584, %v1586
        %v1589 = vmax.f32 %v1585, %v1587
        %1590 = vst.msk [vmem:[#allocation3 + $0xa2] sm:$0xff] %vm1265, %v1588
        %1591 = vst.msk [vmem:[#allocation3 + $0xaa] sm:$0x3f] %vm1446, %v1589
        %s1592 = scalar_lea.vmem [#allocation2], 448
        %v1593 = vld [vmem:[%s1592] ss:$2 sm:$0xff]
        %s1594 = scalar_lea.vmem [#allocation2], 464
        %v1595 = vld [vmem:[%s1594] ss:$2 sm:$0x3f]
        %s1596 = scalar_lea.vmem [#allocation2], 449
        %v1597 = vld [vmem:[%s1596] ss:$2 sm:$0xff]
        %s1598 = scalar_lea.vmem [#allocation2], 465
        %v1599 = vld [vmem:[%s1598] ss:$2 sm:$0x3f]
        %s1600 = scalar_lea.vmem [#allocation2], 480
        %v1601 = vld [vmem:[%s1600] ss:$2 sm:$0xff]
        %s1602 = scalar_lea.vmem [#allocation2], 496
        %v1603 = vld [vmem:[%s1602] ss:$2 sm:$0x3f]
        %s1604 = scalar_lea.vmem [#allocation2], 481
        %v1605 = vld [vmem:[%s1604] ss:$2 sm:$0xff]
        %s1606 = scalar_lea.vmem [#allocation2], 497
        %v1607 = vld [vmem:[%s1606] ss:$2 sm:$0x3f]
        %v1608 = vmax.f32 %v1593, %v1597
        %v1609 = vmax.f32 %v1595, %v1599
        %v1610 = vmax.f32 %v1601, %v1605
        %v1611 = vmax.f32 %v1603, %v1607
        %v1612 = vmax.f32 %v1608, %v1610
        %v1613 = vmax.f32 %v1609, %v1611
        %1614 = vst.msk [vmem:[#allocation3 + $0xb6] sm:$0xff] %vm1265, %v1612
        %1615 = vst.msk [vmem:[#allocation3 + $0xbe] sm:$0x3f] %vm1446, %v1613
        %s1616 = scalar_lea.vmem [#allocation2], 512
        %v1617 = vld [vmem:[%s1616] ss:$2 sm:$0xff]
        %s1618 = scalar_lea.vmem [#allocation2], 528
        %v1619 = vld [vmem:[%s1618] ss:$2 sm:$0x3f]
        %s1620 = scalar_lea.vmem [#allocation2], 513
        %v1621 = vld [vmem:[%s1620] ss:$2 sm:$0xff]
        %s1622 = scalar_lea.vmem [#allocation2], 529
        %v1623 = vld [vmem:[%s1622] ss:$2 sm:$0x3f]
        %s1624 = scalar_lea.vmem [#allocation2], 544
        %v1625 = vld [vmem:[%s1624] ss:$2 sm:$0xff]
        %s1626 = scalar_lea.vmem [#allocation2], 560
        %v1627 = vld [vmem:[%s1626] ss:$2 sm:$0x3f]
        %s1628 = scalar_lea.vmem [#allocation2], 545
        %v1629 = vld [vmem:[%s1628] ss:$2 sm:$0xff]
        %s1630 = scalar_lea.vmem [#allocation2], 561
        %v1631 = vld [vmem:[%s1630] ss:$2 sm:$0x3f]
        %v1632 = vmax.f32 %v1617, %v1621
        %v1633 = vmax.f32 %v1619, %v1623
        %v1634 = vmax.f32 %v1625, %v1629
        %v1635 = vmax.f32 %v1627, %v1631
        %v1636 = vmax.f32 %v1632, %v1634
        %v1637 = vmax.f32 %v1633, %v1635
        %1638 = vst.msk [vmem:[#allocation3 + $0xca] sm:$0xff] %vm1265, %v1636
        %1639 = vst.msk [vmem:[#allocation3 + $0xd2] sm:$0x3f] %vm1446, %v1637
        %s1640 = scalar_lea.vmem [#allocation2], 576
        %v1641 = vld [vmem:[%s1640] ss:$2 sm:$0xff]
        %s1642 = scalar_lea.vmem [#allocation2], 592
        %v1643 = vld [vmem:[%s1642] ss:$2 sm:$0x3f]
        %s1644 = scalar_lea.vmem [#allocation2], 577
        %v1645 = vld [vmem:[%s1644] ss:$2 sm:$0xff]
        %s1646 = scalar_lea.vmem [#allocation2], 593
        %v1647 = vld [vmem:[%s1646] ss:$2 sm:$0x3f]
        %s1648 = scalar_lea.vmem [#allocation2], 608
        %v1649 = vld [vmem:[%s1648] ss:$2 sm:$0xff]
        %s1650 = scalar_lea.vmem [#allocation2], 624
        %v1651 = vld [vmem:[%s1650] ss:$2 sm:$0x3f]
        %s1652 = scalar_lea.vmem [#allocation2], 609
        %v1653 = vld [vmem:[%s1652] ss:$2 sm:$0xff]
        %s1654 = scalar_lea.vmem [#allocation2], 625
        %v1655 = vld [vmem:[%s1654] ss:$2 sm:$0x3f]
        %v1656 = vmax.f32 %v1641, %v1645
        %v1657 = vmax.f32 %v1643, %v1647
        %v1658 = vmax.f32 %v1649, %v1653
        %v1659 = vmax.f32 %v1651, %v1655
        %v1660 = vmax.f32 %v1656, %v1658
        %v1661 = vmax.f32 %v1657, %v1659
        %1662 = vst.msk [vmem:[#allocation3 + $0xde] sm:$0xff] %vm1265, %v1660
        %1663 = vst.msk [vmem:[#allocation3 + $0xe6] sm:$0x3f] %vm1446, %v1661
        %s1664 = scalar_lea.vmem [#allocation2], 640
        %v1665 = vld [vmem:[%s1664] ss:$2 sm:$0xff]
        %s1666 = scalar_lea.vmem [#allocation2], 656
        %v1667 = vld [vmem:[%s1666] ss:$2 sm:$0x3f]
        %s1668 = scalar_lea.vmem [#allocation2], 641
        %v1669 = vld [vmem:[%s1668] ss:$2 sm:$0xff]
        %s1670 = scalar_lea.vmem [#allocation2], 657
        %v1671 = vld [vmem:[%s1670] ss:$2 sm:$0x3f]
        %s1672 = scalar_lea.vmem [#allocation2], 672
        %v1673 = vld [vmem:[%s1672] ss:$2 sm:$0xff]
        %s1674 = scalar_lea.vmem [#allocation2], 688
        %v1675 = vld [vmem:[%s1674] ss:$2 sm:$0x3f]
        %s1676 = scalar_lea.vmem [#allocation2], 673
        %v1677 = vld [vmem:[%s1676] ss:$2 sm:$0xff]
        %s1678 = scalar_lea.vmem [#allocation2], 689
        %v1679 = vld [vmem:[%s1678] ss:$2 sm:$0x3f]
        %v1680 = vmax.f32 %v1665, %v1669
        %v1681 = vmax.f32 %v1667, %v1671
        %v1682 = vmax.f32 %v1673, %v1677
        %v1683 = vmax.f32 %v1675, %v1679
        %v1684 = vmax.f32 %v1680, %v1682
        %v1685 = vmax.f32 %v1681, %v1683
        %1686 = vst.msk [vmem:[#allocation3 + $0xf2] sm:$0xff] %vm1265, %v1684
        %1687 = vst.msk [vmem:[#allocation3 + $0xfa] sm:$0x3f] %vm1446, %v1685
        %s1688 = scalar_lea.vmem [#allocation2], 704
        %v1689 = vld [vmem:[%s1688] ss:$2 sm:$0xff]
        %s1690 = scalar_lea.vmem [#allocation2], 720
        %v1691 = vld [vmem:[%s1690] ss:$2 sm:$0x3f]
        %s1692 = scalar_lea.vmem [#allocation2], 705
        %v1693 = vld [vmem:[%s1692] ss:$2 sm:$0xff]
        %s1694 = scalar_lea.vmem [#allocation2], 721
        %v1695 = vld [vmem:[%s1694] ss:$2 sm:$0x3f]
        %s1696 = scalar_lea.vmem [#allocation2], 736
        %v1697 = vld [vmem:[%s1696] ss:$2 sm:$0xff]
        %s1698 = scalar_lea.vmem [#allocation2], 752
        %v1699 = vld [vmem:[%s1698] ss:$2 sm:$0x3f]
        %s1700 = scalar_lea.vmem [#allocation2], 737
        %v1701 = vld [vmem:[%s1700] ss:$2 sm:$0xff]
        %s1702 = scalar_lea.vmem [#allocation2], 753
        %v1703 = vld [vmem:[%s1702] ss:$2 sm:$0x3f]
        %v1704 = vmax.f32 %v1689, %v1693
        %v1705 = vmax.f32 %v1691, %v1695
        %v1706 = vmax.f32 %v1697, %v1701
        %v1707 = vmax.f32 %v1699, %v1703
        %v1708 = vmax.f32 %v1704, %v1706
        %v1709 = vmax.f32 %v1705, %v1707
        %1710 = vst.msk [vmem:[#allocation3 + $0x106] sm:$0xff] %vm1265, %v1708
        %1711 = vst.msk [vmem:[#allocation3 + $0x10e] sm:$0x3f] %vm1446, %v1709
        %s1712 = scalar_lea.vmem [#allocation2], 768
        %v1713 = vld [vmem:[%s1712] ss:$2 sm:$0xff]
        %s1714 = scalar_lea.vmem [#allocation2], 784
        %v1715 = vld [vmem:[%s1714] ss:$2 sm:$0x3f]
        %s1716 = scalar_lea.vmem [#allocation2], 769
        %v1717 = vld [vmem:[%s1716] ss:$2 sm:$0xff]
        %s1718 = scalar_lea.vmem [#allocation2], 785
        %v1719 = vld [vmem:[%s1718] ss:$2 sm:$0x3f]
        %s1720 = scalar_lea.vmem [#allocation2], 800
        %v1721 = vld [vmem:[%s1720] ss:$2 sm:$0xff]
        %s1722 = scalar_lea.vmem [#allocation2], 816
        %v1723 = vld [vmem:[%s1722] ss:$2 sm:$0x3f]
        %s1724 = scalar_lea.vmem [#allocation2], 801
        %v1725 = vld [vmem:[%s1724] ss:$2 sm:$0xff]
        %s1726 = scalar_lea.vmem [#allocation2], 817
        %v1727 = vld [vmem:[%s1726] ss:$2 sm:$0x3f]
        %v1728 = vmax.f32 %v1713, %v1717
        %v1729 = vmax.f32 %v1715, %v1719
        %v1730 = vmax.f32 %v1721, %v1725
        %v1731 = vmax.f32 %v1723, %v1727
        %v1732 = vmax.f32 %v1728, %v1730
        %v1733 = vmax.f32 %v1729, %v1731
        %1734 = vst.msk [vmem:[#allocation3 + $0x11a] sm:$0xff] %vm1265, %v1732
        %1735 = vst.msk [vmem:[#allocation3 + $0x122] sm:$0x3f] %vm1446, %v1733
        %s1736 = scalar_lea.vmem [#allocation2], 832
        %v1737 = vld [vmem:[%s1736] ss:$2 sm:$0xff]
        %s1738 = scalar_lea.vmem [#allocation2], 848
        %v1739 = vld [vmem:[%s1738] ss:$2 sm:$0x3f]
        %s1740 = scalar_lea.vmem [#allocation2], 833
        %v1741 = vld [vmem:[%s1740] ss:$2 sm:$0xff]
        %s1742 = scalar_lea.vmem [#allocation2], 849
        %v1743 = vld [vmem:[%s1742] ss:$2 sm:$0x3f]
        %s1744 = scalar_lea.vmem [#allocation2], 864
        %v1745 = vld [vmem:[%s1744] ss:$2 sm:$0xff]
        %s1746 = scalar_lea.vmem [#allocation2], 880
        %v1747 = vld [vmem:[%s1746] ss:$2 sm:$0x3f]
        %s1748 = scalar_lea.vmem [#allocation2], 865
        %v1749 = vld [vmem:[%s1748] ss:$2 sm:$0xff]
        %s1750 = scalar_lea.vmem [#allocation2], 881
        %v1751 = vld [vmem:[%s1750] ss:$2 sm:$0x3f]
        %v1752 = vmax.f32 %v1737, %v1741
        %v1753 = vmax.f32 %v1739, %v1743
        %v1754 = vmax.f32 %v1745, %v1749
        %v1755 = vmax.f32 %v1747, %v1751
        %v1756 = vmax.f32 %v1752, %v1754
        %v1757 = vmax.f32 %v1753, %v1755
        %1758 = vst.msk [vmem:[#allocation3 + $0x12e] sm:$0xff] %vm1265, %v1756
        %1759 = vst.msk [vmem:[#allocation3 + $0x136] sm:$0x3f] %vm1446, %v1757
        %v1760 = vld [vmem:[#allocation3] sm:$0xff]
        %v1761 = vld [vmem:[#allocation3 + $0x8] sm:$0xff]
        %v1762 = vld [vmem:[#allocation3 + $0x10] sm:$0xff]
        %v1763 = vld [vmem:[#allocation3 + $0x18] sm:$0xff]
        %v1764 = vld [vmem:[#allocation3 + $0x20] sm:$0xff]
        %v1765 = vld [vmem:[#allocation3 + $0x28] sm:$0xff]
        %v1766 = vld [vmem:[#allocation3 + $0x30] sm:$0xff]
        %v1767 = vld [vmem:[#allocation3 + $0x38] sm:$0xff]
        %v1768 = vld [vmem:[#allocation3 + $0x40] sm:$0xff]
        %v1769 = vld [vmem:[#allocation3 + $0x48] sm:$0xff]
        %v1770 = vld [vmem:[#allocation3 + $0x50] sm:$0xff]
        %v1771 = vld [vmem:[#allocation3 + $0x58] sm:$0xff]
        %v1772 = vld [vmem:[#allocation3 + $0x60] sm:$0xff]
        %v1773 = vld [vmem:[#allocation3 + $0x68] sm:$0xff]
        %v1774 = vld [vmem:[#allocation3 + $0x70] sm:$0xff]
        %v1775 = vld [vmem:[#allocation3 + $0x78] sm:$0xff]
        %v1776 = vld [vmem:[#allocation3 + $0x80] sm:$0xff]
        %v1777 = vld [vmem:[#allocation3 + $0x88] sm:$0xff]
        %v1778 = vld [vmem:[#allocation3 + $0x90] sm:$0xff]
        %v1779 = vld [vmem:[#allocation3 + $0x98] sm:$0xff]
        %v1780 = vld [vmem:[#allocation3 + $0xa0] sm:$0xff]
        %v1781 = vld [vmem:[#allocation3 + $0xa8] sm:$0xff]
        %v1782 = vld [vmem:[#allocation3 + $0xb0] sm:$0xff]
        %v1783 = vld [vmem:[#allocation3 + $0xb8] sm:$0xff]
        %v1784 = vld [vmem:[#allocation3 + $0xc0] sm:$0xff]
        %v1785 = vld [vmem:[#allocation3 + $0xc8] sm:$0xff]
        %v1786 = vld [vmem:[#allocation3 + $0xd0] sm:$0xff]
        %v1787 = vld [vmem:[#allocation3 + $0xd8] sm:$0xff]
        %v1788 = vld [vmem:[#allocation3 + $0xe0] sm:$0xff]
        %v1789 = vld [vmem:[#allocation3 + $0xe8] sm:$0xff]
        %v1790 = vld [vmem:[#allocation3 + $0xf0] sm:$0xff]
        %v1791 = vld [vmem:[#allocation3 + $0xf8] sm:$0xff]
        %v1792 = vld [vmem:[#allocation3 + $0x100] sm:$0xff]
        %v1793 = vld [vmem:[#allocation3 + $0x108] sm:$0xff]
        %v1794 = vld [vmem:[#allocation3 + $0x110] sm:$0xff]
        %v1795 = vld [vmem:[#allocation3 + $0x1] sm:$0xff]
        %v1796 = vld [vmem:[#allocation3 + $0x9] sm:$0xff]
        %v1797 = vld [vmem:[#allocation3 + $0x11] sm:$0xff]
        %v1798 = vld [vmem:[#allocation3 + $0x19] sm:$0xff]
        %v1799 = vld [vmem:[#allocation3 + $0x21] sm:$0xff]
        %v1800 = vld [vmem:[#allocation3 + $0x29] sm:$0xff]
        %v1801 = vld [vmem:[#allocation3 + $0x31] sm:$0xff]
        %v1802 = vld [vmem:[#allocation3 + $0x39] sm:$0xff]
        %v1803 = vld [vmem:[#allocation3 + $0x41] sm:$0xff]
        %v1804 = vld [vmem:[#allocation3 + $0x49] sm:$0xff]
        %v1805 = vld [vmem:[#allocation3 + $0x51] sm:$0xff]
        %v1806 = vld [vmem:[#allocation3 + $0x59] sm:$0xff]
        %v1807 = vld [vmem:[#allocation3 + $0x61] sm:$0xff]
        %v1808 = vld [vmem:[#allocation3 + $0x69] sm:$0xff]
        %v1809 = vld [vmem:[#allocation3 + $0x71] sm:$0xff]
        %v1810 = vld [vmem:[#allocation3 + $0x79] sm:$0xff]
        %v1811 = vld [vmem:[#allocation3 + $0x81] sm:$0xff]
        %v1812 = vld [vmem:[#allocation3 + $0x89] sm:$0xff]
        %v1813 = vld [vmem:[#allocation3 + $0x91] sm:$0xff]
        %v1814 = vld [vmem:[#allocation3 + $0x99] sm:$0xff]
        %v1815 = vld [vmem:[#allocation3 + $0xa1] sm:$0xff]
        %v1816 = vld [vmem:[#allocation3 + $0xa9] sm:$0xff]
        %v1817 = vld [vmem:[#allocation3 + $0xb1] sm:$0xff]
        %v1818 = vld [vmem:[#allocation3 + $0xb9] sm:$0xff]
        %v1819 = vld [vmem:[#allocation3 + $0xc1] sm:$0xff]
        %v1820 = vld [vmem:[#allocation3 + $0xc9] sm:$0xff]
        %v1821 = vld [vmem:[#allocation3 + $0xd1] sm:$0xff]
        %v1822 = vld [vmem:[#allocation3 + $0xd9] sm:$0xff]
        %v1823 = vld [vmem:[#allocation3 + $0xe1] sm:$0xff]
        %v1824 = vld [vmem:[#allocation3 + $0xe9] sm:$0xff]
        %v1825 = vld [vmem:[#allocation3 + $0xf1] sm:$0xff]
        %v1826 = vld [vmem:[#allocation3 + $0xf9] sm:$0xff]
        %v1827 = vld [vmem:[#allocation3 + $0x101] sm:$0xff]
        %v1828 = vld [vmem:[#allocation3 + $0x109] sm:$0xff]
        %v1829 = vld [vmem:[#allocation3 + $0x111] sm:$0xff]
        %v1830 = vld [vmem:[#allocation3 + $0x2] sm:$0xff]
        %v1831 = vld [vmem:[#allocation3 + $0xa] sm:$0xff]
        %v1832 = vld [vmem:[#allocation3 + $0x12] sm:$0xff]
        %v1833 = vld [vmem:[#allocation3 + $0x1a] sm:$0xff]
        %v1834 = vld [vmem:[#allocation3 + $0x22] sm:$0xff]
        %v1835 = vld [vmem:[#allocation3 + $0x2a] sm:$0xff]
        %v1836 = vld [vmem:[#allocation3 + $0x32] sm:$0xff]
        %v1837 = vld [vmem:[#allocation3 + $0x3a] sm:$0xff]
        %v1838 = vld [vmem:[#allocation3 + $0x42] sm:$0xff]
        %v1839 = vld [vmem:[#allocation3 + $0x4a] sm:$0xff]
        %v1840 = vld [vmem:[#allocation3 + $0x52] sm:$0xff]
        %v1841 = vld [vmem:[#allocation3 + $0x5a] sm:$0xff]
        %v1842 = vld [vmem:[#allocation3 + $0x62] sm:$0xff]
        %v1843 = vld [vmem:[#allocation3 + $0x6a] sm:$0xff]
        %v1844 = vld [vmem:[#allocation3 + $0x72] sm:$0xff]
        %v1845 = vld [vmem:[#allocation3 + $0x7a] sm:$0xff]
        %v1846 = vld [vmem:[#allocation3 + $0x82] sm:$0xff]
        %v1847 = vld [vmem:[#allocation3 + $0x8a] sm:$0xff]
        %v1848 = vld [vmem:[#allocation3 + $0x92] sm:$0xff]
        %v1849 = vld [vmem:[#allocation3 + $0x9a] sm:$0xff]
        %v1850 = vld [vmem:[#allocation3 + $0xa2] sm:$0xff]
        %v1851 = vld [vmem:[#allocation3 + $0xaa] sm:$0xff]
        %v1852 = vld [vmem:[#allocation3 + $0xb2] sm:$0xff]
        %v1853 = vld [vmem:[#allocation3 + $0xba] sm:$0xff]
        %v1854 = vld [vmem:[#allocation3 + $0xc2] sm:$0xff]
        %v1855 = vld [vmem:[#allocation3 + $0xca] sm:$0xff]
        %v1856 = vld [vmem:[#allocation3 + $0xd2] sm:$0xff]
        %v1857 = vld [vmem:[#allocation3 + $0xda] sm:$0xff]
        %v1858 = vld [vmem:[#allocation3 + $0xe2] sm:$0xff]
        %v1859 = vld [vmem:[#allocation3 + $0xea] sm:$0xff]
        %v1860 = vld [vmem:[#allocation3 + $0xf2] sm:$0xff]
        %v1861 = vld [vmem:[#allocation3 + $0xfa] sm:$0xff]
        %v1862 = vld [vmem:[#allocation3 + $0x102] sm:$0xff]
        %v1863 = vld [vmem:[#allocation3 + $0x10a] sm:$0xff]
        %v1864 = vld [vmem:[#allocation3 + $0x112] sm:$0xff]
        %v1865 = vld [vmem:[#allocation3 + $0x3] sm:$0xff]
        %v1866 = vld [vmem:[#allocation3 + $0xb] sm:$0xff]
        %v1867 = vld [vmem:[#allocation3 + $0x13] sm:$0xff]
        %v1868 = vld [vmem:[#allocation3 + $0x1b] sm:$0xff]
        %v1869 = vld [vmem:[#allocation3 + $0x23] sm:$0xff]
        %v1870 = vld [vmem:[#allocation3 + $0x2b] sm:$0xff]
        %v1871 = vld [vmem:[#allocation3 + $0x33] sm:$0xff]
        %v1872 = vld [vmem:[#allocation3 + $0x3b] sm:$0xff]
        %v1873 = vld [vmem:[#allocation3 + $0x43] sm:$0xff]
        %v1874 = vld [vmem:[#allocation3 + $0x4b] sm:$0xff]
        %v1875 = vld [vmem:[#allocation3 + $0x53] sm:$0xff]
        %v1876 = vld [vmem:[#allocation3 + $0x5b] sm:$0xff]
        %v1877 = vld [vmem:[#allocation3 + $0x63] sm:$0xff]
        %v1878 = vld [vmem:[#allocation3 + $0x6b] sm:$0xff]
        %v1879 = vld [vmem:[#allocation3 + $0x73] sm:$0xff]
        %v1880 = vld [vmem:[#allocation3 + $0x7b] sm:$0xff]
        %v1881 = vld [vmem:[#allocation3 + $0x83] sm:$0xff]
        %v1882 = vld [vmem:[#allocation3 + $0x8b] sm:$0xff]
        %v1883 = vld [vmem:[#allocation3 + $0x93] sm:$0xff]
        %v1884 = vld [vmem:[#allocation3 + $0x9b] sm:$0xff]
        %v1885 = vld [vmem:[#allocation3 + $0xa3] sm:$0xff]
        %v1886 = vld [vmem:[#allocation3 + $0xab] sm:$0xff]
        %v1887 = vld [vmem:[#allocation3 + $0xb3] sm:$0xff]
        %v1888 = vld [vmem:[#allocation3 + $0xbb] sm:$0xff]
        %v1889 = vld [vmem:[#allocation3 + $0xc3] sm:$0xff]
        %v1890 = vld [vmem:[#allocation3 + $0xcb] sm:$0xff]
        %v1891 = vld [vmem:[#allocation3 + $0xd3] sm:$0xff]
        %v1892 = vld [vmem:[#allocation3 + $0xdb] sm:$0xff]
        %v1893 = vld [vmem:[#allocation3 + $0xe3] sm:$0xff]
        %v1894 = vld [vmem:[#allocation3 + $0xeb] sm:$0xff]
        %v1895 = vld [vmem:[#allocation3 + $0xf3] sm:$0xff]
        %v1896 = vld [vmem:[#allocation3 + $0xfb] sm:$0xff]
        %v1897 = vld [vmem:[#allocation3 + $0x103] sm:$0xff]
        %v1898 = vld [vmem:[#allocation3 + $0x10b] sm:$0xff]
        %v1899 = vld [vmem:[#allocation3 + $0x113] sm:$0xff]
        %v1900 = vld [vmem:[#allocation3 + $0x4] sm:$0xff]
        %v1901 = vld [vmem:[#allocation3 + $0xc] sm:$0xff]
        %v1902 = vld [vmem:[#allocation3 + $0x14] sm:$0xff]
        %v1903 = vld [vmem:[#allocation3 + $0x1c] sm:$0xff]
        %v1904 = vld [vmem:[#allocation3 + $0x24] sm:$0xff]
        %v1905 = vld [vmem:[#allocation3 + $0x2c] sm:$0xff]
        %v1906 = vld [vmem:[#allocation3 + $0x34] sm:$0xff]
        %v1907 = vld [vmem:[#allocation3 + $0x3c] sm:$0xff]
        %v1908 = vld [vmem:[#allocation3 + $0x44] sm:$0xff]
        %v1909 = vld [vmem:[#allocation3 + $0x4c] sm:$0xff]
        %v1910 = vld [vmem:[#allocation3 + $0x54] sm:$0xff]
        %v1911 = vld [vmem:[#allocation3 + $0x5c] sm:$0xff]
        %v1912 = vld [vmem:[#allocation3 + $0x64] sm:$0xff]
        %v1913 = vld [vmem:[#allocation3 + $0x6c] sm:$0xff]
        %v1914 = vld [vmem:[#allocation3 + $0x74] sm:$0xff]
        %v1915 = vld [vmem:[#allocation3 + $0x7c] sm:$0xff]
        %v1916 = vld [vmem:[#allocation3 + $0x84] sm:$0xff]
        %v1917 = vld [vmem:[#allocation3 + $0x8c] sm:$0xff]
        %v1918 = vld [vmem:[#allocation3 + $0x94] sm:$0xff]
        %v1919 = vld [vmem:[#allocation3 + $0x9c] sm:$0xff]
        %v1920 = vld [vmem:[#allocation3 + $0xa4] sm:$0xff]
        %v1921 = vld [vmem:[#allocation3 + $0xac] sm:$0xff]
        %v1922 = vld [vmem:[#allocation3 + $0xb4] sm:$0xff]
        %v1923 = vld [vmem:[#allocation3 + $0xbc] sm:$0xff]
        %v1924 = vld [vmem:[#allocation3 + $0xc4] sm:$0xff]
        %v1925 = vld [vmem:[#allocation3 + $0xcc] sm:$0xff]
        %v1926 = vld [vmem:[#allocation3 + $0xd4] sm:$0xff]
        %v1927 = vld [vmem:[#allocation3 + $0xdc] sm:$0xff]
        %v1928 = vld [vmem:[#allocation3 + $0xe4] sm:$0xff]
        %v1929 = vld [vmem:[#allocation3 + $0xec] sm:$0xff]
        %v1930 = vld [vmem:[#allocation3 + $0xf4] sm:$0xff]
        %v1931 = vld [vmem:[#allocation3 + $0xfc] sm:$0xff]
        %v1932 = vld [vmem:[#allocation3 + $0x104] sm:$0xff]
        %v1933 = vld [vmem:[#allocation3 + $0x10c] sm:$0xff]
        %v1934 = vld [vmem:[#allocation3 + $0x114] sm:$0xff]
        %1970 = vrot.lane.b32.xlu0 %v1795, 16
        %v1971 = vpop.permute.xlu0 %1970
        %1972 = vrot.lane.b32.xlu0 %v1796, 16
        %v1973 = vpop.permute.xlu0 %1972
        %1974 = vrot.lane.b32.xlu0 %v1797, 16
        %v1975 = vpop.permute.xlu0 %1974
        %1976 = vrot.lane.b32.xlu0 %v1798, 16
        %v1977 = vpop.permute.xlu0 %1976
        %1978 = vrot.lane.b32.xlu0 %v1799, 16
        %v1979 = vpop.permute.xlu0 %1978
        %1980 = vrot.lane.b32.xlu0 %v1800, 16
        %v1981 = vpop.permute.xlu0 %1980
        %1982 = vrot.lane.b32.xlu0 %v1801, 16
        %v1983 = vpop.permute.xlu0 %1982
        %1984 = vrot.lane.b32.xlu0 %v1802, 16
        %v1985 = vpop.permute.xlu0 %1984
        %1986 = vrot.lane.b32.xlu0 %v1803, 16
        %v1987 = vpop.permute.xlu0 %1986
        %1988 = vrot.lane.b32.xlu0 %v1804, 16
        %v1989 = vpop.permute.xlu0 %1988
        %1990 = vrot.lane.b32.xlu0 %v1805, 16
        %v1991 = vpop.permute.xlu0 %1990
        %1992 = vrot.lane.b32.xlu0 %v1806, 16
        %v1993 = vpop.permute.xlu0 %1992
        %1994 = vrot.lane.b32.xlu0 %v1807, 16
        %v1995 = vpop.permute.xlu0 %1994
        %1996 = vrot.lane.b32.xlu0 %v1808, 16
        %v1997 = vpop.permute.xlu0 %1996
        %1998 = vrot.lane.b32.xlu0 %v1809, 16
        %v1999 = vpop.permute.xlu0 %1998
        %2000 = vrot.lane.b32.xlu0 %v1810, 16
        %v2001 = vpop.permute.xlu0 %2000
        %2002 = vrot.lane.b32.xlu0 %v1811, 16
        %v2003 = vpop.permute.xlu0 %2002
        %2004 = vrot.lane.b32.xlu0 %v1812, 16
        %v2005 = vpop.permute.xlu0 %2004
        %2006 = vrot.lane.b32.xlu0 %v1813, 16
        %v2007 = vpop.permute.xlu0 %2006
        %2008 = vrot.lane.b32.xlu0 %v1814, 16
        %v2009 = vpop.permute.xlu0 %2008
        %2010 = vrot.lane.b32.xlu0 %v1815, 16
        %v2011 = vpop.permute.xlu0 %2010
        %2012 = vrot.lane.b32.xlu0 %v1816, 16
        %v2013 = vpop.permute.xlu0 %2012
        %2014 = vrot.lane.b32.xlu0 %v1817, 16
        %v2015 = vpop.permute.xlu0 %2014
        %2016 = vrot.lane.b32.xlu0 %v1818, 16
        %v2017 = vpop.permute.xlu0 %2016
        %2018 = vrot.lane.b32.xlu0 %v1819, 16
        %v2019 = vpop.permute.xlu0 %2018
        %2020 = vrot.lane.b32.xlu0 %v1820, 16
        %v2021 = vpop.permute.xlu0 %2020
        %2022 = vrot.lane.b32.xlu0 %v1821, 16
        %v2023 = vpop.permute.xlu0 %2022
        %2024 = vrot.lane.b32.xlu0 %v1822, 16
        %v2025 = vpop.permute.xlu0 %2024
        %2026 = vrot.lane.b32.xlu0 %v1823, 16
        %v2027 = vpop.permute.xlu0 %2026
        %2028 = vrot.lane.b32.xlu0 %v1824, 16
        %v2029 = vpop.permute.xlu0 %2028
        %2030 = vrot.lane.b32.xlu0 %v1825, 16
        %v2031 = vpop.permute.xlu0 %2030
        %2032 = vrot.lane.b32.xlu0 %v1826, 16
        %v2033 = vpop.permute.xlu0 %2032
        %2034 = vrot.lane.b32.xlu0 %v1827, 16
        %v2035 = vpop.permute.xlu0 %2034
        %2036 = vrot.lane.b32.xlu0 %v1828, 16
        %v2037 = vpop.permute.xlu0 %2036
        %2038 = vrot.lane.b32.xlu0 %v1829, 16
        %v2039 = vpop.permute.xlu0 %2038
        %2110 = vrot.lane.b32.xlu0 %v1830, 32
        %v2111 = vpop.permute.xlu0 %2110
        %2112 = vrot.lane.b32.xlu0 %v1831, 32
        %v2113 = vpop.permute.xlu0 %2112
        %2114 = vrot.lane.b32.xlu0 %v1832, 32
        %v2115 = vpop.permute.xlu0 %2114
        %2116 = vrot.lane.b32.xlu0 %v1833, 32
        %v2117 = vpop.permute.xlu0 %2116
        %2118 = vrot.lane.b32.xlu0 %v1834, 32
        %v2119 = vpop.permute.xlu0 %2118
        %2120 = vrot.lane.b32.xlu0 %v1835, 32
        %v2121 = vpop.permute.xlu0 %2120
        %2122 = vrot.lane.b32.xlu0 %v1836, 32
        %v2123 = vpop.permute.xlu0 %2122
        %2124 = vrot.lane.b32.xlu0 %v1837, 32
        %v2125 = vpop.permute.xlu0 %2124
        %2126 = vrot.lane.b32.xlu0 %v1838, 32
        %v2127 = vpop.permute.xlu0 %2126
        %2128 = vrot.lane.b32.xlu0 %v1839, 32
        %v2129 = vpop.permute.xlu0 %2128
        %2130 = vrot.lane.b32.xlu0 %v1840, 32
        %v2131 = vpop.permute.xlu0 %2130
        %2132 = vrot.lane.b32.xlu0 %v1841, 32
        %v2133 = vpop.permute.xlu0 %2132
        %2134 = vrot.lane.b32.xlu0 %v1842, 32
        %v2135 = vpop.permute.xlu0 %2134
        %2136 = vrot.lane.b32.xlu0 %v1843, 32
        %v2137 = vpop.permute.xlu0 %2136
        %2138 = vrot.lane.b32.xlu0 %v1844, 32
        %v2139 = vpop.permute.xlu0 %2138
        %2140 = vrot.lane.b32.xlu0 %v1845, 32
        %v2141 = vpop.permute.xlu0 %2140
        %2142 = vrot.lane.b32.xlu0 %v1846, 32
        %v2143 = vpop.permute.xlu0 %2142
        %2144 = vrot.lane.b32.xlu0 %v1847, 32
        %v2145 = vpop.permute.xlu0 %2144
        %2146 = vrot.lane.b32.xlu0 %v1848, 32
        %v2147 = vpop.permute.xlu0 %2146
        %2148 = vrot.lane.b32.xlu0 %v1849, 32
        %v2149 = vpop.permute.xlu0 %2148
        %2150 = vrot.lane.b32.xlu0 %v1850, 32
        %v2151 = vpop.permute.xlu0 %2150
        %2152 = vrot.lane.b32.xlu0 %v1851, 32
        %v2153 = vpop.permute.xlu0 %2152
        %2154 = vrot.lane.b32.xlu0 %v1852, 32
        %v2155 = vpop.permute.xlu0 %2154
        %2156 = vrot.lane.b32.xlu0 %v1853, 32
        %v2157 = vpop.permute.xlu0 %2156
        %2158 = vrot.lane.b32.xlu0 %v1854, 32
        %v2159 = vpop.permute.xlu0 %2158
        %2160 = vrot.lane.b32.xlu0 %v1855, 32
        %v2161 = vpop.permute.xlu0 %2160
        %2162 = vrot.lane.b32.xlu0 %v1856, 32
        %v2163 = vpop.permute.xlu0 %2162
        %2164 = vrot.lane.b32.xlu0 %v1857, 32
        %v2165 = vpop.permute.xlu0 %2164
        %2166 = vrot.lane.b32.xlu0 %v1858, 32
        %v2167 = vpop.permute.xlu0 %2166
        %2168 = vrot.lane.b32.xlu0 %v1859, 32
        %v2169 = vpop.permute.xlu0 %2168
        %2170 = vrot.lane.b32.xlu0 %v1860, 32
        %v2171 = vpop.permute.xlu0 %2170
        %2172 = vrot.lane.b32.xlu0 %v1861, 32
        %v2173 = vpop.permute.xlu0 %2172
        %2174 = vrot.lane.b32.xlu0 %v1862, 32
        %v2175 = vpop.permute.xlu0 %2174
        %2176 = vrot.lane.b32.xlu0 %v1863, 32
        %v2177 = vpop.permute.xlu0 %2176
        %2178 = vrot.lane.b32.xlu0 %v1864, 32
        %v2179 = vpop.permute.xlu0 %2178
        %2250 = vrot.lane.b32.xlu0 %v1865, 48
        %v2251 = vpop.permute.xlu0 %2250
        %2252 = vrot.lane.b32.xlu0 %v1866, 48
        %v2253 = vpop.permute.xlu0 %2252
        %2254 = vrot.lane.b32.xlu0 %v1867, 48
        %v2255 = vpop.permute.xlu0 %2254
        %2256 = vrot.lane.b32.xlu0 %v1868, 48
        %v2257 = vpop.permute.xlu0 %2256
        %2258 = vrot.lane.b32.xlu0 %v1869, 48
        %v2259 = vpop.permute.xlu0 %2258
        %2260 = vrot.lane.b32.xlu0 %v1870, 48
        %v2261 = vpop.permute.xlu0 %2260
        %2262 = vrot.lane.b32.xlu0 %v1871, 48
        %v2263 = vpop.permute.xlu0 %2262
        %2264 = vrot.lane.b32.xlu0 %v1872, 48
        %v2265 = vpop.permute.xlu0 %2264
        %2266 = vrot.lane.b32.xlu0 %v1873, 48
        %v2267 = vpop.permute.xlu0 %2266
        %2268 = vrot.lane.b32.xlu0 %v1874, 48
        %v2269 = vpop.permute.xlu0 %2268
        %2270 = vrot.lane.b32.xlu0 %v1875, 48
        %v2271 = vpop.permute.xlu0 %2270
        %2272 = vrot.lane.b32.xlu0 %v1876, 48
        %v2273 = vpop.permute.xlu0 %2272
        %2274 = vrot.lane.b32.xlu0 %v1877, 48
        %v2275 = vpop.permute.xlu0 %2274
        %2276 = vrot.lane.b32.xlu0 %v1878, 48
        %v2277 = vpop.permute.xlu0 %2276
        %2278 = vrot.lane.b32.xlu0 %v1879, 48
        %v2279 = vpop.permute.xlu0 %2278
        %2280 = vrot.lane.b32.xlu0 %v1880, 48
        %v2281 = vpop.permute.xlu0 %2280
        %2282 = vrot.lane.b32.xlu0 %v1881, 48
        %v2283 = vpop.permute.xlu0 %2282
        %2284 = vrot.lane.b32.xlu0 %v1882, 48
        %v2285 = vpop.permute.xlu0 %2284
        %2286 = vrot.lane.b32.xlu0 %v1883, 48
        %v2287 = vpop.permute.xlu0 %2286
        %2288 = vrot.lane.b32.xlu0 %v1884, 48
        %v2289 = vpop.permute.xlu0 %2288
        %2290 = vrot.lane.b32.xlu0 %v1885, 48
        %v2291 = vpop.permute.xlu0 %2290
        %2292 = vrot.lane.b32.xlu0 %v1886, 48
        %v2293 = vpop.permute.xlu0 %2292
        %2294 = vrot.lane.b32.xlu0 %v1887, 48
        %v2295 = vpop.permute.xlu0 %2294
        %2296 = vrot.lane.b32.xlu0 %v1888, 48
        %v2297 = vpop.permute.xlu0 %2296
        %2298 = vrot.lane.b32.xlu0 %v1889, 48
        %v2299 = vpop.permute.xlu0 %2298
        %2300 = vrot.lane.b32.xlu0 %v1890, 48
        %v2301 = vpop.permute.xlu0 %2300
        %2302 = vrot.lane.b32.xlu0 %v1891, 48
        %v2303 = vpop.permute.xlu0 %2302
        %2304 = vrot.lane.b32.xlu0 %v1892, 48
        %v2305 = vpop.permute.xlu0 %2304
        %2306 = vrot.lane.b32.xlu0 %v1893, 48
        %v2307 = vpop.permute.xlu0 %2306
        %2308 = vrot.lane.b32.xlu0 %v1894, 48
        %v2309 = vpop.permute.xlu0 %2308
        %2310 = vrot.lane.b32.xlu0 %v1895, 48
        %v2311 = vpop.permute.xlu0 %2310
        %2312 = vrot.lane.b32.xlu0 %v1896, 48
        %v2313 = vpop.permute.xlu0 %2312
        %2314 = vrot.lane.b32.xlu0 %v1897, 48
        %v2315 = vpop.permute.xlu0 %2314
        %2316 = vrot.lane.b32.xlu0 %v1898, 48
        %v2317 = vpop.permute.xlu0 %2316
        %2318 = vrot.lane.b32.xlu0 %v1899, 48
        %v2319 = vpop.permute.xlu0 %2318
        %2390 = vrot.lane.b32.xlu0 %v1900, 64
        %v2391 = vpop.permute.xlu0 %2390
        %2392 = vrot.lane.b32.xlu0 %v1901, 64
        %v2393 = vpop.permute.xlu0 %2392
        %2394 = vrot.lane.b32.xlu0 %v1902, 64
        %v2395 = vpop.permute.xlu0 %2394
        %2396 = vrot.lane.b32.xlu0 %v1903, 64
        %v2397 = vpop.permute.xlu0 %2396
        %2398 = vrot.lane.b32.xlu0 %v1904, 64
        %v2399 = vpop.permute.xlu0 %2398
        %2400 = vrot.lane.b32.xlu0 %v1905, 64
        %v2401 = vpop.permute.xlu0 %2400
        %2402 = vrot.lane.b32.xlu0 %v1906, 64
        %v2403 = vpop.permute.xlu0 %2402
        %2404 = vrot.lane.b32.xlu0 %v1907, 64
        %v2405 = vpop.permute.xlu0 %2404
        %2406 = vrot.lane.b32.xlu0 %v1908, 64
        %v2407 = vpop.permute.xlu0 %2406
        %2408 = vrot.lane.b32.xlu0 %v1909, 64
        %v2409 = vpop.permute.xlu0 %2408
        %2410 = vrot.lane.b32.xlu0 %v1910, 64
        %v2411 = vpop.permute.xlu0 %2410
        %2412 = vrot.lane.b32.xlu0 %v1911, 64
        %v2413 = vpop.permute.xlu0 %2412
        %2414 = vrot.lane.b32.xlu0 %v1912, 64
        %v2415 = vpop.permute.xlu0 %2414
        %2416 = vrot.lane.b32.xlu0 %v1913, 64
        %v2417 = vpop.permute.xlu0 %2416
        %2418 = vrot.lane.b32.xlu0 %v1914, 64
        %v2419 = vpop.permute.xlu0 %2418
        %2420 = vrot.lane.b32.xlu0 %v1915, 64
        %v2421 = vpop.permute.xlu0 %2420
        %2422 = vrot.lane.b32.xlu0 %v1916, 64
        %v2423 = vpop.permute.xlu0 %2422
        %2424 = vrot.lane.b32.xlu0 %v1917, 64
        %v2425 = vpop.permute.xlu0 %2424
        %2426 = vrot.lane.b32.xlu0 %v1918, 64
        %v2427 = vpop.permute.xlu0 %2426
        %2428 = vrot.lane.b32.xlu0 %v1919, 64
        %v2429 = vpop.permute.xlu0 %2428
        %2430 = vrot.lane.b32.xlu0 %v1920, 64
        %v2431 = vpop.permute.xlu0 %2430
        %2432 = vrot.lane.b32.xlu0 %v1921, 64
        %v2433 = vpop.permute.xlu0 %2432
        %2434 = vrot.lane.b32.xlu0 %v1922, 64
        %v2435 = vpop.permute.xlu0 %2434
        %2436 = vrot.lane.b32.xlu0 %v1923, 64
        %v2437 = vpop.permute.xlu0 %2436
        %2438 = vrot.lane.b32.xlu0 %v1924, 64
        %v2439 = vpop.permute.xlu0 %2438
        %2440 = vrot.lane.b32.xlu0 %v1925, 64
        %v2441 = vpop.permute.xlu0 %2440
        %2442 = vrot.lane.b32.xlu0 %v1926, 64
        %v2443 = vpop.permute.xlu0 %2442
        %2444 = vrot.lane.b32.xlu0 %v1927, 64
        %v2445 = vpop.permute.xlu0 %2444
        %2446 = vrot.lane.b32.xlu0 %v1928, 64
        %v2447 = vpop.permute.xlu0 %2446
        %2448 = vrot.lane.b32.xlu0 %v1929, 64
        %v2449 = vpop.permute.xlu0 %2448
        %2450 = vrot.lane.b32.xlu0 %v1930, 64
        %v2451 = vpop.permute.xlu0 %2450
        %2452 = vrot.lane.b32.xlu0 %v1931, 64
        %v2453 = vpop.permute.xlu0 %2452
        %2454 = vrot.lane.b32.xlu0 %v1932, 64
        %v2455 = vpop.permute.xlu0 %2454
        %2456 = vrot.lane.b32.xlu0 %v1933, 64
        %v2457 = vpop.permute.xlu0 %2456
        %2458 = vrot.lane.b32.xlu0 %v1934, 64
        %v2459 = vpop.permute.xlu0 %2458
        %v2495 = vsel %vm1265, %v1760, %v1971
        %v2496 = vsel %vm1265, %v1761, %v1973
        %v2497 = vsel %vm1265, %v1762, %v1975
        %v2498 = vsel %vm1265, %v1763, %v1977
        %v2499 = vsel %vm1265, %v1764, %v1979
        %v2500 = vsel %vm1265, %v1765, %v1981
        %v2501 = vsel %vm1265, %v1766, %v1983
        %v2502 = vsel %vm1265, %v1767, %v1985
        %v2503 = vsel %vm1265, %v1768, %v1987
        %v2504 = vsel %vm1265, %v1769, %v1989
        %v2505 = vsel %vm1265, %v1770, %v1991
        %v2506 = vsel %vm1265, %v1771, %v1993
        %v2507 = vsel %vm1265, %v1772, %v1995
        %v2508 = vsel %vm1265, %v1773, %v1997
        %v2509 = vsel %vm1265, %v1774, %v1999
        %v2510 = vsel %vm1265, %v1775, %v2001
        %v2511 = vsel %vm1265, %v1776, %v2003
        %v2512 = vsel %vm1265, %v1777, %v2005
        %v2513 = vsel %vm1265, %v1778, %v2007
        %v2514 = vsel %vm1265, %v1779, %v2009
        %v2515 = vsel %vm1265, %v1780, %v2011
        %v2516 = vsel %vm1265, %v1781, %v2013
        %v2517 = vsel %vm1265, %v1782, %v2015
        %v2518 = vsel %vm1265, %v1783, %v2017
        %v2519 = vsel %vm1265, %v1784, %v2019
        %v2520 = vsel %vm1265, %v1785, %v2021
        %v2521 = vsel %vm1265, %v1786, %v2023
        %v2522 = vsel %vm1265, %v1787, %v2025
        %v2523 = vsel %vm1265, %v1788, %v2027
        %v2524 = vsel %vm1265, %v1789, %v2029
        %v2525 = vsel %vm1265, %v1790, %v2031
        %v2526 = vsel %vm1265, %v1791, %v2033
        %v2527 = vsel %vm1265, %v1792, %v2035
        %v2528 = vsel %vm1265, %v1793, %v2037
        %v2529 = vsel %vm1265, %v1794, %v2039
        %vm2530 = vcmask 261120
        %v2531 = vsel %vm2530, %v2495, %v2111
        %v2532 = vsel %vm2530, %v2496, %v2113
        %v2533 = vsel %vm2530, %v2497, %v2115
        %v2534 = vsel %vm2530, %v2498, %v2117
        %v2535 = vsel %vm2530, %v2499, %v2119
        %v2536 = vsel %vm2530, %v2500, %v2121
        %v2537 = vsel %vm2530, %v2501, %v2123
        %v2538 = vsel %vm2530, %v2502, %v2125
        %v2539 = vsel %vm2530, %v2503, %v2127
        %v2540 = vsel %vm2530, %v2504, %v2129
        %v2541 = vsel %vm2530, %v2505, %v2131
        %v2542 = vsel %vm2530, %v2506, %v2133
        %v2543 = vsel %vm2530, %v2507, %v2135
        %v2544 = vsel %vm2530, %v2508, %v2137
        %v2545 = vsel %vm2530, %v2509, %v2139
        %v2546 = vsel %vm2530, %v2510, %v2141
        %v2547 = vsel %vm2530, %v2511, %v2143
        %v2548 = vsel %vm2530, %v2512, %v2145
        %v2549 = vsel %vm2530, %v2513, %v2147
        %v2550 = vsel %vm2530, %v2514, %v2149
        %v2551 = vsel %vm2530, %v2515, %v2151
        %v2552 = vsel %vm2530, %v2516, %v2153
        %v2553 = vsel %vm2530, %v2517, %v2155
        %v2554 = vsel %vm2530, %v2518, %v2157
        %v2555 = vsel %vm2530, %v2519, %v2159
        %v2556 = vsel %vm2530, %v2520, %v2161
        %v2557 = vsel %vm2530, %v2521, %v2163
        %v2558 = vsel %vm2530, %v2522, %v2165
        %v2559 = vsel %vm2530, %v2523, %v2167
        %v2560 = vsel %vm2530, %v2524, %v2169
        %v2561 = vsel %vm2530, %v2525, %v2171
        %v2562 = vsel %vm2530, %v2526, %v2173
        %v2563 = vsel %vm2530, %v2527, %v2175
        %v2564 = vsel %vm2530, %v2528, %v2177
        %v2565 = vsel %vm2530, %v2529, %v2179
        %vm2566 = vcmask 392192
        %v2567 = vsel %vm2566, %v2531, %v2251
        %v2568 = vsel %vm2566, %v2532, %v2253
        %v2569 = vsel %vm2566, %v2533, %v2255
        %v2570 = vsel %vm2566, %v2534, %v2257
        %v2571 = vsel %vm2566, %v2535, %v2259
        %v2572 = vsel %vm2566, %v2536, %v2261
        %v2573 = vsel %vm2566, %v2537, %v2263
        %v2574 = vsel %vm2566, %v2538, %v2265
        %v2575 = vsel %vm2566, %v2539, %v2267
        %v2576 = vsel %vm2566, %v2540, %v2269
        %v2577 = vsel %vm2566, %v2541, %v2271
        %v2578 = vsel %vm2566, %v2542, %v2273
        %v2579 = vsel %vm2566, %v2543, %v2275
        %v2580 = vsel %vm2566, %v2544, %v2277
        %v2581 = vsel %vm2566, %v2545, %v2279
        %v2582 = vsel %vm2566, %v2546, %v2281
        %v2583 = vsel %vm2566, %v2547, %v2283
        %v2584 = vsel %vm2566, %v2548, %v2285
        %v2585 = vsel %vm2566, %v2549, %v2287
        %v2586 = vsel %vm2566, %v2550, %v2289
        %v2587 = vsel %vm2566, %v2551, %v2291
        %v2588 = vsel %vm2566, %v2552, %v2293
        %v2589 = vsel %vm2566, %v2553, %v2295
        %v2590 = vsel %vm2566, %v2554, %v2297
        %v2591 = vsel %vm2566, %v2555, %v2299
        %v2592 = vsel %vm2566, %v2556, %v2301
        %v2593 = vsel %vm2566, %v2557, %v2303
        %v2594 = vsel %vm2566, %v2558, %v2305
        %v2595 = vsel %vm2566, %v2559, %v2307
        %v2596 = vsel %vm2566, %v2560, %v2309
        %v2597 = vsel %vm2566, %v2561, %v2311
        %v2598 = vsel %vm2566, %v2562, %v2313
        %v2599 = vsel %vm2566, %v2563, %v2315
        %v2600 = vsel %vm2566, %v2564, %v2317
        %v2601 = vsel %vm2566, %v2565, %v2319
        %vm2602 = vcmask 523264
        %v2603 = vsel %vm2602, %v2567, %v2391
        %v2604 = vsel %vm2602, %v2568, %v2393
        %v2605 = vsel %vm2602, %v2569, %v2395
        %v2606 = vsel %vm2602, %v2570, %v2397
        %v2607 = vsel %vm2602, %v2571, %v2399
        %v2608 = vsel %vm2602, %v2572, %v2401
        %v2609 = vsel %vm2602, %v2573, %v2403
        %v2610 = vsel %vm2602, %v2574, %v2405
        %v2611 = vsel %vm2602, %v2575, %v2407
        %v2612 = vsel %vm2602, %v2576, %v2409
        %v2613 = vsel %vm2602, %v2577, %v2411
        %v2614 = vsel %vm2602, %v2578, %v2413
        %v2615 = vsel %vm2602, %v2579, %v2415
        %v2616 = vsel %vm2602, %v2580, %v2417
        %v2617 = vsel %vm2602, %v2581, %v2419
        %v2618 = vsel %vm2602, %v2582, %v2421
        %v2619 = vsel %vm2602, %v2583, %v2423
        %v2620 = vsel %vm2602, %v2584, %v2425
        %v2621 = vsel %vm2602, %v2585, %v2427
        %v2622 = vsel %vm2602, %v2586, %v2429
        %v2623 = vsel %vm2602, %v2587, %v2431
        %v2624 = vsel %vm2602, %v2588, %v2433
        %v2625 = vsel %vm2602, %v2589, %v2435
        %v2626 = vsel %vm2602, %v2590, %v2437
        %v2627 = vsel %vm2602, %v2591, %v2439
        %v2628 = vsel %vm2602, %v2592, %v2441
        %v2629 = vsel %vm2602, %v2593, %v2443
        %v2630 = vsel %vm2602, %v2594, %v2445
        %v2631 = vsel %vm2602, %v2595, %v2447
        %v2632 = vsel %vm2602, %v2596, %v2449
        %v2633 = vsel %vm2602, %v2597, %v2451
        %v2634 = vsel %vm2602, %v2598, %v2453
        %v2635 = vsel %vm2602, %v2599, %v2455
        %v2636 = vsel %vm2602, %v2600, %v2457
        %v2637 = vsel %vm2602, %v2601, %v2459
        %v2638 = vpack.c.bf16 %v2604, %v2603
        %v2639 = vpack.c.bf16 %v2606, %v2605
        %v2640 = vpack.c.bf16 %v2608, %v2607
        %v2641 = vpack.c.bf16 %v2610, %v2609
        %v2642 = vpack.c.bf16 %v2612, %v2611
        %v2643 = vpack.c.bf16 %v2614, %v2613
        %v2644 = vpack.c.bf16 %v2616, %v2615
        %v2645 = vpack.c.bf16 %v2618, %v2617
        %v2646 = vpack.c.bf16 %v2620, %v2619
        %v2647 = vpack.c.bf16 %v2622, %v2621
        %v2648 = vpack.c.bf16 %v2624, %v2623
        %v2649 = vpack.c.bf16 %v2626, %v2625
        %v2650 = vpack.c.bf16 %v2628, %v2627
        %v2651 = vpack.c.bf16 %v2630, %v2629
        %v2652 = vpack.c.bf16 %v2632, %v2631
        %v2653 = vpack.c.bf16 %v2634, %v2633
        %v2654 = vpack.c.bf16 %v2636, %v2635
        %v2655 = vpack.c.bf16 %v2637, %v2637
        %v2656 = vld [vmem:[%s3] sm:$0xf]
        %v2657 = vld [vmem:[%s3 + $0x4] sm:$0xf]
        %v2658 = vld [vmem:[%s3 + $0x8] sm:$0xf]
        %v2659 = vld [vmem:[%s3 + $0xc] sm:$0xf]
        %v2660 = vld [vmem:[%s3 + $0x10] sm:$0xf]
        %v2661 = vld [vmem:[%s3 + $0x14] sm:$0xf]
        %v2662 = vld [vmem:[%s3 + $0x18] sm:$0xf]
        %v2663 = vld [vmem:[%s3 + $0x1c] sm:$0xf]
        %v2664 = vld [vmem:[%s3 + $0x20] sm:$0xf]
        %v2665 = vld [vmem:[%s3 + $0x24] sm:$0xf]
        %v2676 = vunpack.c.l.b16 %v2656
        %v2677 = vunpack.c.l.b16 %v2657
        %v2678 = vunpack.c.l.b16 %v2658
        %v2679 = vunpack.c.l.b16 %v2659
        %v2680 = vunpack.c.l.b16 %v2660
        %v2681 = vunpack.c.l.b16 %v2661
        %v2682 = vunpack.c.l.b16 %v2662
        %v2683 = vunpack.c.l.b16 %v2663
        %v2684 = vunpack.c.l.b16 %v2664
        %v2685 = vunpack.c.l.b16 %v2665
        %v2686 = vpack.c.b16 %v2677, %v2676
        %v2687 = vpack.c.b16 %v2679, %v2678
        %v2688 = vpack.c.b16 %v2681, %v2680
        %v2689 = vpack.c.b16 %v2683, %v2682
        %v2690 = vpack.c.b16 %v2685, %v2684
        %vm2696 = vcmask 654336
        %v2698 = vsel %vm2696, %v2638, 0
        %v2701 = vsel %vm2696, %v2639, 0
        %v2704 = vsel %vm2696, %v2640, 0
        %v2707 = vsel %vm2696, %v2641, 0
        %v2710 = vsel %vm2696, %v2642, 0
        %v2713 = vsel %vm2696, %v2643, 0
        %v2716 = vsel %vm2696, %v2644, 0
        %v2719 = vsel %vm2696, %v2645, 0
        %v2722 = vsel %vm2696, %v2646, 0
        %v2725 = vsel %vm2696, %v2647, 0
        %v2728 = vsel %vm2696, %v2648, 0
        %v2731 = vsel %vm2696, %v2649, 0
        %v2734 = vsel %vm2696, %v2650, 0
        %v2737 = vsel %vm2696, %v2651, 0
        %v2740 = vsel %vm2696, %v2652, 0
        %v2743 = vsel %vm2696, %v2653, 0
        %v2746 = vsel %vm2696, %v2654, 0
        %v2749 = vsel %vm2696, %v2655, 0
        %2751 = vmatpush.bf16.msra.mxu0 0
        %2752 = vmatpush.bf16.msra.mxu0 0
        %2753 = vmatpush.bf16.msra.mxu0 0
        %2754 = vmatpush.bf16.msra.mxu0 %v2690
        %2755 = vmatpush.bf16.msra.mxu0 %v2689
        %2756 = vmatpush.bf16.msra.mxu0 %v2688
        %2757 = vmatpush.bf16.msra.mxu0 %v2687
        %2758 = vmatpush.bf16.msra.mxu0 %v2686
        %2759 = vmatmul.bf16.gmra.mxu0 %v2698
        %v2760 = vpop.f32.mrf.mxu0
        %v2761 = vadd.f32 0.0, %v2760
        %v2762 = vpop.f32.mrf.mxu0
        %v2763 = vadd.f32 0.0, %v2762
        %2764 = vmatmul.bf16.gmra.mxu0 %v2701
        %v2765 = vpop.f32.mrf.mxu0
        %v2766 = vadd.f32 0.0, %v2765
        %v2767 = vpop.f32.mrf.mxu0
        %v2768 = vadd.f32 0.0, %v2767
        %2769 = vmatmul.bf16.gmra.mxu0 %v2704
        %v2770 = vpop.f32.mrf.mxu0
        %v2771 = vadd.f32 0.0, %v2770
        %v2772 = vpop.f32.mrf.mxu0
        %v2773 = vadd.f32 0.0, %v2772
        %2774 = vmatmul.bf16.gmra.mxu0 %v2707
        %v2775 = vpop.f32.mrf.mxu0
        %v2776 = vadd.f32 0.0, %v2775
        %v2777 = vpop.f32.mrf.mxu0
        %v2778 = vadd.f32 0.0, %v2777
        %2779 = vmatmul.bf16.gmra.mxu0 %v2710
        %v2780 = vpop.f32.mrf.mxu0
        %v2781 = vadd.f32 0.0, %v2780
        %v2782 = vpop.f32.mrf.mxu0
        %v2783 = vadd.f32 0.0, %v2782
        %2784 = vmatmul.bf16.gmra.mxu0 %v2713
        %v2785 = vpop.f32.mrf.mxu0
        %v2786 = vadd.f32 0.0, %v2785
        %v2787 = vpop.f32.mrf.mxu0
        %v2788 = vadd.f32 0.0, %v2787
        %2789 = vmatmul.bf16.gmra.mxu0 %v2716
        %v2790 = vpop.f32.mrf.mxu0
        %v2791 = vadd.f32 0.0, %v2790
        %v2792 = vpop.f32.mrf.mxu0
        %v2793 = vadd.f32 0.0, %v2792
        %2794 = vmatmul.bf16.gmra.mxu0 %v2719
        %v2795 = vpop.f32.mrf.mxu0
        %v2796 = vadd.f32 0.0, %v2795
        %v2797 = vpop.f32.mrf.mxu0
        %v2798 = vadd.f32 0.0, %v2797
        %2799 = vmatmul.bf16.gmra.mxu0 %v2722
        %v2800 = vpop.f32.mrf.mxu0
        %v2801 = vadd.f32 0.0, %v2800
        %v2802 = vpop.f32.mrf.mxu0
        %v2803 = vadd.f32 0.0, %v2802
        %2804 = vmatmul.bf16.gmra.mxu0 %v2725
        %v2805 = vpop.f32.mrf.mxu0
        %v2806 = vadd.f32 0.0, %v2805
        %v2807 = vpop.f32.mrf.mxu0
        %v2808 = vadd.f32 0.0, %v2807
        %2809 = vmatmul.bf16.gmra.mxu0 %v2728
        %v2810 = vpop.f32.mrf.mxu0
        %v2811 = vadd.f32 0.0, %v2810
        %v2812 = vpop.f32.mrf.mxu0
        %v2813 = vadd.f32 0.0, %v2812
        %2814 = vmatmul.bf16.gmra.mxu0 %v2731
        %v2815 = vpop.f32.mrf.mxu0
        %v2816 = vadd.f32 0.0, %v2815
        %v2817 = vpop.f32.mrf.mxu0
        %v2818 = vadd.f32 0.0, %v2817
        %2819 = vmatmul.bf16.gmra.mxu0 %v2734
        %v2820 = vpop.f32.mrf.mxu0
        %v2821 = vadd.f32 0.0, %v2820
        %v2822 = vpop.f32.mrf.mxu0
        %v2823 = vadd.f32 0.0, %v2822
        %2824 = vmatmul.bf16.gmra.mxu0 %v2737
        %v2825 = vpop.f32.mrf.mxu0
        %v2826 = vadd.f32 0.0, %v2825
        %v2827 = vpop.f32.mrf.mxu0
        %v2828 = vadd.f32 0.0, %v2827
        %2829 = vmatmul.bf16.gmra.mxu0 %v2740
        %v2830 = vpop.f32.mrf.mxu0
        %v2831 = vadd.f32 0.0, %v2830
        %v2832 = vpop.f32.mrf.mxu0
        %v2833 = vadd.f32 0.0, %v2832
        %2834 = vmatmul.bf16.gmra.mxu0 %v2743
        %v2835 = vpop.f32.mrf.mxu0
        %v2836 = vadd.f32 0.0, %v2835
        %v2837 = vpop.f32.mrf.mxu0
        %v2838 = vadd.f32 0.0, %v2837
        %2839 = vmatmul.bf16.gmra.mxu0 %v2746
        %v2840 = vpop.f32.mrf.mxu0
        %v2841 = vadd.f32 0.0, %v2840
        %v2842 = vpop.f32.mrf.mxu0
        %v2843 = vadd.f32 0.0, %v2842
        %2844 = vmatmul.bf16.gmra.mxu0 %v2749
        %v2845 = vpop.f32.mrf.mxu0
        %v2846 = vadd.f32 0.0, %v2845
        %v2847 = vpop.f32.mrf.mxu0
        %2848 = vdwg.mxu0
        %2849 = vst.msk [vmem:[#allocation4] sm:$0xff] %vm2530, %v2761
        %2850 = vst.msk [vmem:[#allocation4 + $0x8] sm:$0xff] %vm2530, %v2763
        %2851 = vst.msk [vmem:[#allocation4 + $0x10] sm:$0xff] %vm2530, %v2766
        %2852 = vst.msk [vmem:[#allocation4 + $0x18] sm:$0xff] %vm2530, %v2768
        %2853 = vst.msk [vmem:[#allocation4 + $0x20] sm:$0xff] %vm2530, %v2771
        %2854 = vst.msk [vmem:[#allocation4 + $0x28] sm:$0xff] %vm2530, %v2773
        %2855 = vst.msk [vmem:[#allocation4 + $0x30] sm:$0xff] %vm2530, %v2776
        %2856 = vst.msk [vmem:[#allocation4 + $0x38] sm:$0xff] %vm2530, %v2778
        %2857 = vst.msk [vmem:[#allocation4 + $0x40] sm:$0xff] %vm2530, %v2781
        %2858 = vst.msk [vmem:[#allocation4 + $0x48] sm:$0xff] %vm2530, %v2783
        %2859 = vst.msk [vmem:[#allocation4 + $0x50] sm:$0xff] %vm2530, %v2786
        %2860 = vst.msk [vmem:[#allocation4 + $0x58] sm:$0xff] %vm2530, %v2788
        %2861 = vst.msk [vmem:[#allocation4 + $0x60] sm:$0xff] %vm2530, %v2791
        %2862 = vst.msk [vmem:[#allocation4 + $0x68] sm:$0xff] %vm2530, %v2793
        %2863 = vst.msk [vmem:[#allocation4 + $0x70] sm:$0xff] %vm2530, %v2796
        %2864 = vst.msk [vmem:[#allocation4 + $0x78] sm:$0xff] %vm2530, %v2798
        %2865 = vst.msk [vmem:[#allocation4 + $0x80] sm:$0xff] %vm2530, %v2801
        %2866 = vst.msk [vmem:[#allocation4 + $0x88] sm:$0xff] %vm2530, %v2803
        %2867 = vst.msk [vmem:[#allocation4 + $0x90] sm:$0xff] %vm2530, %v2806
        %2868 = vst.msk [vmem:[#allocation4 + $0x98] sm:$0xff] %vm2530, %v2808
        %2869 = vst.msk [vmem:[#allocation4 + $0xa0] sm:$0xff] %vm2530, %v2811
        %2870 = vst.msk [vmem:[#allocation4 + $0xa8] sm:$0xff] %vm2530, %v2813
        %2871 = vst.msk [vmem:[#allocation4 + $0xb0] sm:$0xff] %vm2530, %v2816
        %2872 = vst.msk [vmem:[#allocation4 + $0xb8] sm:$0xff] %vm2530, %v2818
        %2873 = vst.msk [vmem:[#allocation4 + $0xc0] sm:$0xff] %vm2530, %v2821
        %2874 = vst.msk [vmem:[#allocation4 + $0xc8] sm:$0xff] %vm2530, %v2823
        %2875 = vst.msk [vmem:[#allocation4 + $0xd0] sm:$0xff] %vm2530, %v2826
        %2876 = vst.msk [vmem:[#allocation4 + $0xd8] sm:$0xff] %vm2530, %v2828
        %2877 = vst.msk [vmem:[#allocation4 + $0xe0] sm:$0xff] %vm2530, %v2831
        %2878 = vst.msk [vmem:[#allocation4 + $0xe8] sm:$0xff] %vm2530, %v2833
        %2879 = vst.msk [vmem:[#allocation4 + $0xf0] sm:$0xff] %vm2530, %v2836
        %2880 = vst.msk [vmem:[#allocation4 + $0xf8] sm:$0xff] %vm2530, %v2838
        %2881 = vst.msk [vmem:[#allocation4 + $0x100] sm:$0xff] %vm2530, %v2841
        %2882 = vst.msk [vmem:[#allocation4 + $0x108] sm:$0xff] %vm2530, %v2843
        %2883 = vst.msk [vmem:[#allocation4 + $0x110] sm:$0xff] %vm2530, %v2846
        %v2884 = vld [vmem:[#allocation3 + $0x14] sm:$0xff]
        %v2885 = vld [vmem:[#allocation3 + $0x1c] sm:$0xff]
        %v2886 = vld [vmem:[#allocation3 + $0x24] sm:$0xff]
        %v2887 = vld [vmem:[#allocation3 + $0x2c] sm:$0xff]
        %v2888 = vld [vmem:[#allocation3 + $0x34] sm:$0xff]
        %v2889 = vld [vmem:[#allocation3 + $0x3c] sm:$0xff]
        %v2890 = vld [vmem:[#allocation3 + $0x44] sm:$0xff]
        %v2891 = vld [vmem:[#allocation3 + $0x4c] sm:$0xff]
        %v2892 = vld [vmem:[#allocation3 + $0x54] sm:$0xff]
        %v2893 = vld [vmem:[#allocation3 + $0x5c] sm:$0xff]
        %v2894 = vld [vmem:[#allocation3 + $0x64] sm:$0xff]
        %v2895 = vld [vmem:[#allocation3 + $0x6c] sm:$0xff]
        %v2896 = vld [vmem:[#allocation3 + $0x74] sm:$0xff]
        %v2897 = vld [vmem:[#allocation3 + $0x7c] sm:$0xff]
        %v2898 = vld [vmem:[#allocation3 + $0x84] sm:$0xff]
        %v2899 = vld [vmem:[#allocation3 + $0x8c] sm:$0xff]
        %v2900 = vld [vmem:[#allocation3 + $0x94] sm:$0xff]
        %v2901 = vld [vmem:[#allocation3 + $0x9c] sm:$0xff]
        %v2902 = vld [vmem:[#allocation3 + $0xa4] sm:$0xff]
        %v2903 = vld [vmem:[#allocation3 + $0xac] sm:$0xff]
        %v2904 = vld [vmem:[#allocation3 + $0xb4] sm:$0xff]
        %v2905 = vld [vmem:[#allocation3 + $0xbc] sm:$0xff]
        %v2906 = vld [vmem:[#allocation3 + $0xc4] sm:$0xff]
        %v2907 = vld [vmem:[#allocation3 + $0xcc] sm:$0xff]
        %v2908 = vld [vmem:[#allocation3 + $0xd4] sm:$0xff]
        %v2909 = vld [vmem:[#allocation3 + $0xdc] sm:$0xff]
        %v2910 = vld [vmem:[#allocation3 + $0xe4] sm:$0xff]
        %v2911 = vld [vmem:[#allocation3 + $0xec] sm:$0xff]
        %v2912 = vld [vmem:[#allocation3 + $0xf4] sm:$0xff]
        %v2913 = vld [vmem:[#allocation3 + $0xfc] sm:$0xff]
        %v2914 = vld [vmem:[#allocation3 + $0x104] sm:$0xff]
        %v2915 = vld [vmem:[#allocation3 + $0x10c] sm:$0xff]
        %v2916 = vld [vmem:[#allocation3 + $0x114] sm:$0xff]
        %v2917 = vld [vmem:[#allocation3 + $0x11c] sm:$0xff]
        %v2918 = vld [vmem:[#allocation3 + $0x124] sm:$0xff]
        %v2919 = vld [vmem:[#allocation3 + $0x15] sm:$0xff]
        %v2920 = vld [vmem:[#allocation3 + $0x1d] sm:$0xff]
        %v2921 = vld [vmem:[#allocation3 + $0x25] sm:$0xff]
        %v2922 = vld [vmem:[#allocation3 + $0x2d] sm:$0xff]
        %v2923 = vld [vmem:[#allocation3 + $0x35] sm:$0xff]
        %v2924 = vld [vmem:[#allocation3 + $0x3d] sm:$0xff]
        %v2925 = vld [vmem:[#allocation3 + $0x45] sm:$0xff]
        %v2926 = vld [vmem:[#allocation3 + $0x4d] sm:$0xff]
        %v2927 = vld [vmem:[#allocation3 + $0x55] sm:$0xff]
        %v2928 = vld [vmem:[#allocation3 + $0x5d] sm:$0xff]
        %v2929 = vld [vmem:[#allocation3 + $0x65] sm:$0xff]
        %v2930 = vld [vmem:[#allocation3 + $0x6d] sm:$0xff]
        %v2931 = vld [vmem:[#allocation3 + $0x75] sm:$0xff]
        %v2932 = vld [vmem:[#allocation3 + $0x7d] sm:$0xff]
        %v2933 = vld [vmem:[#allocation3 + $0x85] sm:$0xff]
        %v2934 = vld [vmem:[#allocation3 + $0x8d] sm:$0xff]
        %v2935 = vld [vmem:[#allocation3 + $0x95] sm:$0xff]
        %v2936 = vld [vmem:[#allocation3 + $0x9d] sm:$0xff]
        %v2937 = vld [vmem:[#allocation3 + $0xa5] sm:$0xff]
        %v2938 = vld [vmem:[#allocation3 + $0xad] sm:$0xff]
        %v2939 = vld [vmem:[#allocation3 + $0xb5] sm:$0xff]
        %v2940 = vld [vmem:[#allocation3 + $0xbd] sm:$0xff]
        %v2941 = vld [vmem:[#allocation3 + $0xc5] sm:$0xff]
        %v2942 = vld [vmem:[#allocation3 + $0xcd] sm:$0xff]
        %v2943 = vld [vmem:[#allocation3 + $0xd5] sm:$0xff]
        %v2944 = vld [vmem:[#allocation3 + $0xdd] sm:$0xff]
        %v2945 = vld [vmem:[#allocation3 + $0xe5] sm:$0xff]
        %v2946 = vld [vmem:[#allocation3 + $0xed] sm:$0xff]
        %v2947 = vld [vmem:[#allocation3 + $0xf5] sm:$0xff]
        %v2948 = vld [vmem:[#allocation3 + $0xfd] sm:$0xff]
        %v2949 = vld [vmem:[#allocation3 + $0x105] sm:$0xff]
        %v2950 = vld [vmem:[#allocation3 + $0x10d] sm:$0xff]
        %v2951 = vld [vmem:[#allocation3 + $0x115] sm:$0xff]
        %v2952 = vld [vmem:[#allocation3 + $0x11d] sm:$0xff]
        %v2953 = vld [vmem:[#allocation3 + $0x125] sm:$0xff]
        %v2954 = vld [vmem:[#allocation3 + $0x16] sm:$0xff]
        %v2955 = vld [vmem:[#allocation3 + $0x1e] sm:$0xff]
        %v2956 = vld [vmem:[#allocation3 + $0x26] sm:$0xff]
        %v2957 = vld [vmem:[#allocation3 + $0x2e] sm:$0xff]
        %v2958 = vld [vmem:[#allocation3 + $0x36] sm:$0xff]
        %v2959 = vld [vmem:[#allocation3 + $0x3e] sm:$0xff]
        %v2960 = vld [vmem:[#allocation3 + $0x46] sm:$0xff]
        %v2961 = vld [vmem:[#allocation3 + $0x4e] sm:$0xff]
        %v2962 = vld [vmem:[#allocation3 + $0x56] sm:$0xff]
        %v2963 = vld [vmem:[#allocation3 + $0x5e] sm:$0xff]
        %v2964 = vld [vmem:[#allocation3 + $0x66] sm:$0xff]
        %v2965 = vld [vmem:[#allocation3 + $0x6e] sm:$0xff]
        %v2966 = vld [vmem:[#allocation3 + $0x76] sm:$0xff]
        %v2967 = vld [vmem:[#allocation3 + $0x7e] sm:$0xff]
        %v2968 = vld [vmem:[#allocation3 + $0x86] sm:$0xff]
        %v2969 = vld [vmem:[#allocation3 + $0x8e] sm:$0xff]
        %v2970 = vld [vmem:[#allocation3 + $0x96] sm:$0xff]
        %v2971 = vld [vmem:[#allocation3 + $0x9e] sm:$0xff]
        %v2972 = vld [vmem:[#allocation3 + $0xa6] sm:$0xff]
        %v2973 = vld [vmem:[#allocation3 + $0xae] sm:$0xff]
        %v2974 = vld [vmem:[#allocation3 + $0xb6] sm:$0xff]
        %v2975 = vld [vmem:[#allocation3 + $0xbe] sm:$0xff]
        %v2976 = vld [vmem:[#allocation3 + $0xc6] sm:$0xff]
        %v2977 = vld [vmem:[#allocation3 + $0xce] sm:$0xff]
        %v2978 = vld [vmem:[#allocation3 + $0xd6] sm:$0xff]
        %v2979 = vld [vmem:[#allocation3 + $0xde] sm:$0xff]
        %v2980 = vld [vmem:[#allocation3 + $0xe6] sm:$0xff]
        %v2981 = vld [vmem:[#allocation3 + $0xee] sm:$0xff]
        %v2982 = vld [vmem:[#allocation3 + $0xf6] sm:$0xff]
        %v2983 = vld [vmem:[#allocation3 + $0xfe] sm:$0xff]
        %v2984 = vld [vmem:[#allocation3 + $0x106] sm:$0xff]
        %v2985 = vld [vmem:[#allocation3 + $0x10e] sm:$0xff]
        %v2986 = vld [vmem:[#allocation3 + $0x116] sm:$0xff]
        %v2987 = vld [vmem:[#allocation3 + $0x11e] sm:$0xff]
        %v2988 = vld [vmem:[#allocation3 + $0x126] sm:$0xff]
        %v2989 = vld [vmem:[#allocation3 + $0x17] sm:$0xff]
        %v2990 = vld [vmem:[#allocation3 + $0x1f] sm:$0xff]
        %v2991 = vld [vmem:[#allocation3 + $0x27] sm:$0xff]
        %v2992 = vld [vmem:[#allocation3 + $0x2f] sm:$0xff]
        %v2993 = vld [vmem:[#allocation3 + $0x37] sm:$0xff]
        %v2994 = vld [vmem:[#allocation3 + $0x3f] sm:$0xff]
        %v2995 = vld [vmem:[#allocation3 + $0x47] sm:$0xff]
        %v2996 = vld [vmem:[#allocation3 + $0x4f] sm:$0xff]
        %v2997 = vld [vmem:[#allocation3 + $0x57] sm:$0xff]
        %v2998 = vld [vmem:[#allocation3 + $0x5f] sm:$0xff]
        %v2999 = vld [vmem:[#allocation3 + $0x67] sm:$0xff]
        %v3000 = vld [vmem:[#allocation3 + $0x6f] sm:$0xff]
        %v3001 = vld [vmem:[#allocation3 + $0x77] sm:$0xff]
        %v3002 = vld [vmem:[#allocation3 + $0x7f] sm:$0xff]
        %v3003 = vld [vmem:[#allocation3 + $0x87] sm:$0xff]
        %v3004 = vld [vmem:[#allocation3 + $0x8f] sm:$0xff]
        %v3005 = vld [vmem:[#allocation3 + $0x97] sm:$0xff]
        %v3006 = vld [vmem:[#allocation3 + $0x9f] sm:$0xff]
        %v3007 = vld [vmem:[#allocation3 + $0xa7] sm:$0xff]
        %v3008 = vld [vmem:[#allocation3 + $0xaf] sm:$0xff]
        %v3009 = vld [vmem:[#allocation3 + $0xb7] sm:$0xff]
        %v3010 = vld [vmem:[#allocation3 + $0xbf] sm:$0xff]
        %v3011 = vld [vmem:[#allocation3 + $0xc7] sm:$0xff]
        %v3012 = vld [vmem:[#allocation3 + $0xcf] sm:$0xff]
        %v3013 = vld [vmem:[#allocation3 + $0xd7] sm:$0xff]
        %v3014 = vld [vmem:[#allocation3 + $0xdf] sm:$0xff]
        %v3015 = vld [vmem:[#allocation3 + $0xe7] sm:$0xff]
        %v3016 = vld [vmem:[#allocation3 + $0xef] sm:$0xff]
        %v3017 = vld [vmem:[#allocation3 + $0xf7] sm:$0xff]
        %v3018 = vld [vmem:[#allocation3 + $0xff] sm:$0xff]
        %v3019 = vld [vmem:[#allocation3 + $0x107] sm:$0xff]
        %v3020 = vld [vmem:[#allocation3 + $0x10f] sm:$0xff]
        %v3021 = vld [vmem:[#allocation3 + $0x117] sm:$0xff]
        %v3022 = vld [vmem:[#allocation3 + $0x11f] sm:$0xff]
        %v3023 = vld [vmem:[#allocation3 + $0x127] sm:$0xff]
        %v3024 = vld [vmem:[#allocation3 + $0x18] sm:$0xff]
        %v3025 = vld [vmem:[#allocation3 + $0x20] sm:$0xff]
        %v3026 = vld [vmem:[#allocation3 + $0x28] sm:$0xff]
        %v3027 = vld [vmem:[#allocation3 + $0x30] sm:$0xff]
        %v3028 = vld [vmem:[#allocation3 + $0x38] sm:$0xff]
        %v3029 = vld [vmem:[#allocation3 + $0x40] sm:$0xff]
        %v3030 = vld [vmem:[#allocation3 + $0x48] sm:$0xff]
        %v3031 = vld [vmem:[#allocation3 + $0x50] sm:$0xff]
        %v3032 = vld [vmem:[#allocation3 + $0x58] sm:$0xff]
        %v3033 = vld [vmem:[#allocation3 + $0x60] sm:$0xff]
        %v3034 = vld [vmem:[#allocation3 + $0x68] sm:$0xff]
        %v3035 = vld [vmem:[#allocation3 + $0x70] sm:$0xff]
        %v3036 = vld [vmem:[#allocation3 + $0x78] sm:$0xff]
        %v3037 = vld [vmem:[#allocation3 + $0x80] sm:$0xff]
        %v3038 = vld [vmem:[#allocation3 + $0x88] sm:$0xff]
        %v3039 = vld [vmem:[#allocation3 + $0x90] sm:$0xff]
        %v3040 = vld [vmem:[#allocation3 + $0x98] sm:$0xff]
        %v3041 = vld [vmem:[#allocation3 + $0xa0] sm:$0xff]
        %v3042 = vld [vmem:[#allocation3 + $0xa8] sm:$0xff]
        %v3043 = vld [vmem:[#allocation3 + $0xb0] sm:$0xff]
        %v3044 = vld [vmem:[#allocation3 + $0xb8] sm:$0xff]
        %v3045 = vld [vmem:[#allocation3 + $0xc0] sm:$0xff]
        %v3046 = vld [vmem:[#allocation3 + $0xc8] sm:$0xff]
        %v3047 = vld [vmem:[#allocation3 + $0xd0] sm:$0xff]
        %v3048 = vld [vmem:[#allocation3 + $0xd8] sm:$0xff]
        %v3049 = vld [vmem:[#allocation3 + $0xe0] sm:$0xff]
        %v3050 = vld [vmem:[#allocation3 + $0xe8] sm:$0xff]
        %v3051 = vld [vmem:[#allocation3 + $0xf0] sm:$0xff]
        %v3052 = vld [vmem:[#allocation3 + $0xf8] sm:$0xff]
        %v3053 = vld [vmem:[#allocation3 + $0x100] sm:$0xff]
        %v3054 = vld [vmem:[#allocation3 + $0x108] sm:$0xff]
        %v3055 = vld [vmem:[#allocation3 + $0x110] sm:$0xff]
        %v3056 = vld [vmem:[#allocation3 + $0x118] sm:$0xff]
        %v3057 = vld [vmem:[#allocation3 + $0x120] sm:$0xff]
        %v3058 = vld [vmem:[#allocation3 + $0x128] sm:$0xff]
        %3094 = vrot.lane.b32.xlu0 %v2919, 16
        %v3095 = vpop.permute.xlu0 %3094
        %3096 = vrot.lane.b32.xlu0 %v2920, 16
        %v3097 = vpop.permute.xlu0 %3096
        %3098 = vrot.lane.b32.xlu0 %v2921, 16
        %v3099 = vpop.permute.xlu0 %3098
        %3100 = vrot.lane.b32.xlu0 %v2922, 16
        %v3101 = vpop.permute.xlu0 %3100
        %3102 = vrot.lane.b32.xlu0 %v2923, 16
        %v3103 = vpop.permute.xlu0 %3102
        %3104 = vrot.lane.b32.xlu0 %v2924, 16
        %v3105 = vpop.permute.xlu0 %3104
        %3106 = vrot.lane.b32.xlu0 %v2925, 16
        %v3107 = vpop.permute.xlu0 %3106
        %3108 = vrot.lane.b32.xlu0 %v2926, 16
        %v3109 = vpop.permute.xlu0 %3108
        %3110 = vrot.lane.b32.xlu0 %v2927, 16
        %v3111 = vpop.permute.xlu0 %3110
        %3112 = vrot.lane.b32.xlu0 %v2928, 16
        %v3113 = vpop.permute.xlu0 %3112
        %3114 = vrot.lane.b32.xlu0 %v2929, 16
        %v3115 = vpop.permute.xlu0 %3114
        %3116 = vrot.lane.b32.xlu0 %v2930, 16
        %v3117 = vpop.permute.xlu0 %3116
        %3118 = vrot.lane.b32.xlu0 %v2931, 16
        %v3119 = vpop.permute.xlu0 %3118
        %3120 = vrot.lane.b32.xlu0 %v2932, 16
        %v3121 = vpop.permute.xlu0 %3120
        %3122 = vrot.lane.b32.xlu0 %v2933, 16
        %v3123 = vpop.permute.xlu0 %3122
        %3124 = vrot.lane.b32.xlu0 %v2934, 16
        %v3125 = vpop.permute.xlu0 %3124
        %3126 = vrot.lane.b32.xlu0 %v2935, 16
        %v3127 = vpop.permute.xlu0 %3126
        %3128 = vrot.lane.b32.xlu0 %v2936, 16
        %v3129 = vpop.permute.xlu0 %3128
        %3130 = vrot.lane.b32.xlu0 %v2937, 16
        %v3131 = vpop.permute.xlu0 %3130
        %3132 = vrot.lane.b32.xlu0 %v2938, 16
        %v3133 = vpop.permute.xlu0 %3132
        %3134 = vrot.lane.b32.xlu0 %v2939, 16
        %v3135 = vpop.permute.xlu0 %3134
        %3136 = vrot.lane.b32.xlu0 %v2940, 16
        %v3137 = vpop.permute.xlu0 %3136
        %3138 = vrot.lane.b32.xlu0 %v2941, 16
        %v3139 = vpop.permute.xlu0 %3138
        %3140 = vrot.lane.b32.xlu0 %v2942, 16
        %v3141 = vpop.permute.xlu0 %3140
        %3142 = vrot.lane.b32.xlu0 %v2943, 16
        %v3143 = vpop.permute.xlu0 %3142
        %3144 = vrot.lane.b32.xlu0 %v2944, 16
        %v3145 = vpop.permute.xlu0 %3144
        %3146 = vrot.lane.b32.xlu0 %v2945, 16
        %v3147 = vpop.permute.xlu0 %3146
        %3148 = vrot.lane.b32.xlu0 %v2946, 16
        %v3149 = vpop.permute.xlu0 %3148
        %3150 = vrot.lane.b32.xlu0 %v2947, 16
        %v3151 = vpop.permute.xlu0 %3150
        %3152 = vrot.lane.b32.xlu0 %v2948, 16
        %v3153 = vpop.permute.xlu0 %3152
        %3154 = vrot.lane.b32.xlu0 %v2949, 16
        %v3155 = vpop.permute.xlu0 %3154
        %3156 = vrot.lane.b32.xlu0 %v2950, 16
        %v3157 = vpop.permute.xlu0 %3156
        %3158 = vrot.lane.b32.xlu0 %v2951, 16
        %v3159 = vpop.permute.xlu0 %3158
        %3160 = vrot.lane.b32.xlu0 %v2952, 16
        %v3161 = vpop.permute.xlu0 %3160
        %3162 = vrot.lane.b32.xlu0 %v2953, 16
        %v3163 = vpop.permute.xlu0 %3162
        %3234 = vrot.lane.b32.xlu0 %v2954, 32
        %v3235 = vpop.permute.xlu0 %3234
        %3236 = vrot.lane.b32.xlu0 %v2955, 32
        %v3237 = vpop.permute.xlu0 %3236
        %3238 = vrot.lane.b32.xlu0 %v2956, 32
        %v3239 = vpop.permute.xlu0 %3238
        %3240 = vrot.lane.b32.xlu0 %v2957, 32
        %v3241 = vpop.permute.xlu0 %3240
        %3242 = vrot.lane.b32.xlu0 %v2958, 32
        %v3243 = vpop.permute.xlu0 %3242
        %3244 = vrot.lane.b32.xlu0 %v2959, 32
        %v3245 = vpop.permute.xlu0 %3244
        %3246 = vrot.lane.b32.xlu0 %v2960, 32
        %v3247 = vpop.permute.xlu0 %3246
        %3248 = vrot.lane.b32.xlu0 %v2961, 32
        %v3249 = vpop.permute.xlu0 %3248
        %3250 = vrot.lane.b32.xlu0 %v2962, 32
        %v3251 = vpop.permute.xlu0 %3250
        %3252 = vrot.lane.b32.xlu0 %v2963, 32
        %v3253 = vpop.permute.xlu0 %3252
        %3254 = vrot.lane.b32.xlu0 %v2964, 32
        %v3255 = vpop.permute.xlu0 %3254
        %3256 = vrot.lane.b32.xlu0 %v2965, 32
        %v3257 = vpop.permute.xlu0 %3256
        %3258 = vrot.lane.b32.xlu0 %v2966, 32
        %v3259 = vpop.permute.xlu0 %3258
        %3260 = vrot.lane.b32.xlu0 %v2967, 32
        %v3261 = vpop.permute.xlu0 %3260
        %3262 = vrot.lane.b32.xlu0 %v2968, 32
        %v3263 = vpop.permute.xlu0 %3262
        %3264 = vrot.lane.b32.xlu0 %v2969, 32
        %v3265 = vpop.permute.xlu0 %3264
        %3266 = vrot.lane.b32.xlu0 %v2970, 32
        %v3267 = vpop.permute.xlu0 %3266
        %3268 = vrot.lane.b32.xlu0 %v2971, 32
        %v3269 = vpop.permute.xlu0 %3268
        %3270 = vrot.lane.b32.xlu0 %v2972, 32
        %v3271 = vpop.permute.xlu0 %3270
        %3272 = vrot.lane.b32.xlu0 %v2973, 32
        %v3273 = vpop.permute.xlu0 %3272
        %3274 = vrot.lane.b32.xlu0 %v2974, 32
        %v3275 = vpop.permute.xlu0 %3274
        %3276 = vrot.lane.b32.xlu0 %v2975, 32
        %v3277 = vpop.permute.xlu0 %3276
        %3278 = vrot.lane.b32.xlu0 %v2976, 32
        %v3279 = vpop.permute.xlu0 %3278
        %3280 = vrot.lane.b32.xlu0 %v2977, 32
        %v3281 = vpop.permute.xlu0 %3280
        %3282 = vrot.lane.b32.xlu0 %v2978, 32
        %v3283 = vpop.permute.xlu0 %3282
        %3284 = vrot.lane.b32.xlu0 %v2979, 32
        %v3285 = vpop.permute.xlu0 %3284
        %3286 = vrot.lane.b32.xlu0 %v2980, 32
        %v3287 = vpop.permute.xlu0 %3286
        %3288 = vrot.lane.b32.xlu0 %v2981, 32
        %v3289 = vpop.permute.xlu0 %3288
        %3290 = vrot.lane.b32.xlu0 %v2982, 32
        %v3291 = vpop.permute.xlu0 %3290
        %3292 = vrot.lane.b32.xlu0 %v2983, 32
        %v3293 = vpop.permute.xlu0 %3292
        %3294 = vrot.lane.b32.xlu0 %v2984, 32
        %v3295 = vpop.permute.xlu0 %3294
        %3296 = vrot.lane.b32.xlu0 %v2985, 32
        %v3297 = vpop.permute.xlu0 %3296
        %3298 = vrot.lane.b32.xlu0 %v2986, 32
        %v3299 = vpop.permute.xlu0 %3298
        %3300 = vrot.lane.b32.xlu0 %v2987, 32
        %v3301 = vpop.permute.xlu0 %3300
        %3302 = vrot.lane.b32.xlu0 %v2988, 32
        %v3303 = vpop.permute.xlu0 %3302
        %3374 = vrot.lane.b32.xlu0 %v2989, 48
        %v3375 = vpop.permute.xlu0 %3374
        %3376 = vrot.lane.b32.xlu0 %v2990, 48
        %v3377 = vpop.permute.xlu0 %3376
        %3378 = vrot.lane.b32.xlu0 %v2991, 48
        %v3379 = vpop.permute.xlu0 %3378
        %3380 = vrot.lane.b32.xlu0 %v2992, 48
        %v3381 = vpop.permute.xlu0 %3380
        %3382 = vrot.lane.b32.xlu0 %v2993, 48
        %v3383 = vpop.permute.xlu0 %3382
        %3384 = vrot.lane.b32.xlu0 %v2994, 48
        %v3385 = vpop.permute.xlu0 %3384
        %3386 = vrot.lane.b32.xlu0 %v2995, 48
        %v3387 = vpop.permute.xlu0 %3386
        %3388 = vrot.lane.b32.xlu0 %v2996, 48
        %v3389 = vpop.permute.xlu0 %3388
        %3390 = vrot.lane.b32.xlu0 %v2997, 48
        %v3391 = vpop.permute.xlu0 %3390
        %3392 = vrot.lane.b32.xlu0 %v2998, 48
        %v3393 = vpop.permute.xlu0 %3392
        %3394 = vrot.lane.b32.xlu0 %v2999, 48
        %v3395 = vpop.permute.xlu0 %3394
        %3396 = vrot.lane.b32.xlu0 %v3000, 48
        %v3397 = vpop.permute.xlu0 %3396
        %3398 = vrot.lane.b32.xlu0 %v3001, 48
        %v3399 = vpop.permute.xlu0 %3398
        %3400 = vrot.lane.b32.xlu0 %v3002, 48
        %v3401 = vpop.permute.xlu0 %3400
        %3402 = vrot.lane.b32.xlu0 %v3003, 48
        %v3403 = vpop.permute.xlu0 %3402
        %3404 = vrot.lane.b32.xlu0 %v3004, 48
        %v3405 = vpop.permute.xlu0 %3404
        %3406 = vrot.lane.b32.xlu0 %v3005, 48
        %v3407 = vpop.permute.xlu0 %3406
        %3408 = vrot.lane.b32.xlu0 %v3006, 48
        %v3409 = vpop.permute.xlu0 %3408
        %3410 = vrot.lane.b32.xlu0 %v3007, 48
        %v3411 = vpop.permute.xlu0 %3410
        %3412 = vrot.lane.b32.xlu0 %v3008, 48
        %v3413 = vpop.permute.xlu0 %3412
        %3414 = vrot.lane.b32.xlu0 %v3009, 48
        %v3415 = vpop.permute.xlu0 %3414
        %3416 = vrot.lane.b32.xlu0 %v3010, 48
        %v3417 = vpop.permute.xlu0 %3416
        %3418 = vrot.lane.b32.xlu0 %v3011, 48
        %v3419 = vpop.permute.xlu0 %3418
        %3420 = vrot.lane.b32.xlu0 %v3012, 48
        %v3421 = vpop.permute.xlu0 %3420
        %3422 = vrot.lane.b32.xlu0 %v3013, 48
        %v3423 = vpop.permute.xlu0 %3422
        %3424 = vrot.lane.b32.xlu0 %v3014, 48
        %v3425 = vpop.permute.xlu0 %3424
        %3426 = vrot.lane.b32.xlu0 %v3015, 48
        %v3427 = vpop.permute.xlu0 %3426
        %3428 = vrot.lane.b32.xlu0 %v3016, 48
        %v3429 = vpop.permute.xlu0 %3428
        %3430 = vrot.lane.b32.xlu0 %v3017, 48
        %v3431 = vpop.permute.xlu0 %3430
        %3432 = vrot.lane.b32.xlu0 %v3018, 48
        %v3433 = vpop.permute.xlu0 %3432
        %3434 = vrot.lane.b32.xlu0 %v3019, 48
        %v3435 = vpop.permute.xlu0 %3434
        %3436 = vrot.lane.b32.xlu0 %v3020, 48
        %v3437 = vpop.permute.xlu0 %3436
        %3438 = vrot.lane.b32.xlu0 %v3021, 48
        %v3439 = vpop.permute.xlu0 %3438
        %3440 = vrot.lane.b32.xlu0 %v3022, 48
        %v3441 = vpop.permute.xlu0 %3440
        %3442 = vrot.lane.b32.xlu0 %v3023, 48
        %v3443 = vpop.permute.xlu0 %3442
        %3514 = vrot.lane.b32.xlu0 %v3024, 64
        %v3515 = vpop.permute.xlu0 %3514
        %3516 = vrot.lane.b32.xlu0 %v3025, 64
        %v3517 = vpop.permute.xlu0 %3516
        %3518 = vrot.lane.b32.xlu0 %v3026, 64
        %v3519 = vpop.permute.xlu0 %3518
        %3520 = vrot.lane.b32.xlu0 %v3027, 64
        %v3521 = vpop.permute.xlu0 %3520
        %3522 = vrot.lane.b32.xlu0 %v3028, 64
        %v3523 = vpop.permute.xlu0 %3522
        %3524 = vrot.lane.b32.xlu0 %v3029, 64
        %v3525 = vpop.permute.xlu0 %3524
        %3526 = vrot.lane.b32.xlu0 %v3030, 64
        %v3527 = vpop.permute.xlu0 %3526
        %3528 = vrot.lane.b32.xlu0 %v3031, 64
        %v3529 = vpop.permute.xlu0 %3528
        %3530 = vrot.lane.b32.xlu0 %v3032, 64
        %v3531 = vpop.permute.xlu0 %3530
        %3532 = vrot.lane.b32.xlu0 %v3033, 64
        %v3533 = vpop.permute.xlu0 %3532
        %3534 = vrot.lane.b32.xlu0 %v3034, 64
        %v3535 = vpop.permute.xlu0 %3534
        %3536 = vrot.lane.b32.xlu0 %v3035, 64
        %v3537 = vpop.permute.xlu0 %3536
        %3538 = vrot.lane.b32.xlu0 %v3036, 64
        %v3539 = vpop.permute.xlu0 %3538
        %3540 = vrot.lane.b32.xlu0 %v3037, 64
        %v3541 = vpop.permute.xlu0 %3540
        %3542 = vrot.lane.b32.xlu0 %v3038, 64
        %v3543 = vpop.permute.xlu0 %3542
        %3544 = vrot.lane.b32.xlu0 %v3039, 64
        %v3545 = vpop.permute.xlu0 %3544
        %3546 = vrot.lane.b32.xlu0 %v3040, 64
        %v3547 = vpop.permute.xlu0 %3546
        %3548 = vrot.lane.b32.xlu0 %v3041, 64
        %v3549 = vpop.permute.xlu0 %3548
        %3550 = vrot.lane.b32.xlu0 %v3042, 64
        %v3551 = vpop.permute.xlu0 %3550
        %3552 = vrot.lane.b32.xlu0 %v3043, 64
        %v3553 = vpop.permute.xlu0 %3552
        %3554 = vrot.lane.b32.xlu0 %v3044, 64
        %v3555 = vpop.permute.xlu0 %3554
        %3556 = vrot.lane.b32.xlu0 %v3045, 64
        %v3557 = vpop.permute.xlu0 %3556
        %3558 = vrot.lane.b32.xlu0 %v3046, 64
        %v3559 = vpop.permute.xlu0 %3558
        %3560 = vrot.lane.b32.xlu0 %v3047, 64
        %v3561 = vpop.permute.xlu0 %3560
        %3562 = vrot.lane.b32.xlu0 %v3048, 64
        %v3563 = vpop.permute.xlu0 %3562
        %3564 = vrot.lane.b32.xlu0 %v3049, 64
        %v3565 = vpop.permute.xlu0 %3564
        %3566 = vrot.lane.b32.xlu0 %v3050, 64
        %v3567 = vpop.permute.xlu0 %3566
        %3568 = vrot.lane.b32.xlu0 %v3051, 64
        %v3569 = vpop.permute.xlu0 %3568
        %3570 = vrot.lane.b32.xlu0 %v3052, 64
        %v3571 = vpop.permute.xlu0 %3570
        %3572 = vrot.lane.b32.xlu0 %v3053, 64
        %v3573 = vpop.permute.xlu0 %3572
        %3574 = vrot.lane.b32.xlu0 %v3054, 64
        %v3575 = vpop.permute.xlu0 %3574
        %3576 = vrot.lane.b32.xlu0 %v3055, 64
        %v3577 = vpop.permute.xlu0 %3576
        %3578 = vrot.lane.b32.xlu0 %v3056, 64
        %v3579 = vpop.permute.xlu0 %3578
        %3580 = vrot.lane.b32.xlu0 %v3057, 64
        %v3581 = vpop.permute.xlu0 %3580
        %3582 = vrot.lane.b32.xlu0 %v3058, 64
        %v3583 = vpop.permute.xlu0 %3582
        %v3619 = vsel %vm1265, %v2884, %v3095
        %v3620 = vsel %vm1265, %v2885, %v3097
        %v3621 = vsel %vm1265, %v2886, %v3099
        %v3622 = vsel %vm1265, %v2887, %v3101
        %v3623 = vsel %vm1265, %v2888, %v3103
        %v3624 = vsel %vm1265, %v2889, %v3105
        %v3625 = vsel %vm1265, %v2890, %v3107
        %v3626 = vsel %vm1265, %v2891, %v3109
        %v3627 = vsel %vm1265, %v2892, %v3111
        %v3628 = vsel %vm1265, %v2893, %v3113
        %v3629 = vsel %vm1265, %v2894, %v3115
        %v3630 = vsel %vm1265, %v2895, %v3117
        %v3631 = vsel %vm1265, %v2896, %v3119
        %v3632 = vsel %vm1265, %v2897, %v3121
        %v3633 = vsel %vm1265, %v2898, %v3123
        %v3634 = vsel %vm1265, %v2899, %v3125
        %v3635 = vsel %vm1265, %v2900, %v3127
        %v3636 = vsel %vm1265, %v2901, %v3129
        %v3637 = vsel %vm1265, %v2902, %v3131
        %v3638 = vsel %vm1265, %v2903, %v3133
        %v3639 = vsel %vm1265, %v2904, %v3135
        %v3640 = vsel %vm1265, %v2905, %v3137
        %v3641 = vsel %vm1265, %v2906, %v3139
        %v3642 = vsel %vm1265, %v2907, %v3141
        %v3643 = vsel %vm1265, %v2908, %v3143
        %v3644 = vsel %vm1265, %v2909, %v3145
        %v3645 = vsel %vm1265, %v2910, %v3147
        %v3646 = vsel %vm1265, %v2911, %v3149
        %v3647 = vsel %vm1265, %v2912, %v3151
        %v3648 = vsel %vm1265, %v2913, %v3153
        %v3649 = vsel %vm1265, %v2914, %v3155
        %v3650 = vsel %vm1265, %v2915, %v3157
        %v3651 = vsel %vm1265, %v2916, %v3159
        %v3652 = vsel %vm1265, %v2917, %v3161
        %v3653 = vsel %vm1265, %v2918, %v3163
        %v3654 = vsel %vm2530, %v3619, %v3235
        %v3655 = vsel %vm2530, %v3620, %v3237
        %v3656 = vsel %vm2530, %v3621, %v3239
        %v3657 = vsel %vm2530, %v3622, %v3241
        %v3658 = vsel %vm2530, %v3623, %v3243
        %v3659 = vsel %vm2530, %v3624, %v3245
        %v3660 = vsel %vm2530, %v3625, %v3247
        %v3661 = vsel %vm2530, %v3626, %v3249
        %v3662 = vsel %vm2530, %v3627, %v3251
        %v3663 = vsel %vm2530, %v3628, %v3253
        %v3664 = vsel %vm2530, %v3629, %v3255
        %v3665 = vsel %vm2530, %v3630, %v3257
        %v3666 = vsel %vm2530, %v3631, %v3259
        %v3667 = vsel %vm2530, %v3632, %v3261
        %v3668 = vsel %vm2530, %v3633, %v3263
        %v3669 = vsel %vm2530, %v3634, %v3265
        %v3670 = vsel %vm2530, %v3635, %v3267
        %v3671 = vsel %vm2530, %v3636, %v3269
        %v3672 = vsel %vm2530, %v3637, %v3271
        %v3673 = vsel %vm2530, %v3638, %v3273
        %v3674 = vsel %vm2530, %v3639, %v3275
        %v3675 = vsel %vm2530, %v3640, %v3277
        %v3676 = vsel %vm2530, %v3641, %v3279
        %v3677 = vsel %vm2530, %v3642, %v3281
        %v3678 = vsel %vm2530, %v3643, %v3283
        %v3679 = vsel %vm2530, %v3644, %v3285
        %v3680 = vsel %vm2530, %v3645, %v3287
        %v3681 = vsel %vm2530, %v3646, %v3289
        %v3682 = vsel %vm2530, %v3647, %v3291
        %v3683 = vsel %vm2530, %v3648, %v3293
        %v3684 = vsel %vm2530, %v3649, %v3295
        %v3685 = vsel %vm2530, %v3650, %v3297
        %v3686 = vsel %vm2530, %v3651, %v3299
        %v3687 = vsel %vm2530, %v3652, %v3301
        %v3688 = vsel %vm2530, %v3653, %v3303
        %v3689 = vsel %vm2566, %v3654, %v3375
        %v3690 = vsel %vm2566, %v3655, %v3377
        %v3691 = vsel %vm2566, %v3656, %v3379
        %v3692 = vsel %vm2566, %v3657, %v3381
        %v3693 = vsel %vm2566, %v3658, %v3383
        %v3694 = vsel %vm2566, %v3659, %v3385
        %v3695 = vsel %vm2566, %v3660, %v3387
        %v3696 = vsel %vm2566, %v3661, %v3389
        %v3697 = vsel %vm2566, %v3662, %v3391
        %v3698 = vsel %vm2566, %v3663, %v3393
        %v3699 = vsel %vm2566, %v3664, %v3395
        %v3700 = vsel %vm2566, %v3665, %v3397
        %v3701 = vsel %vm2566, %v3666, %v3399
        %v3702 = vsel %vm2566, %v3667, %v3401
        %v3703 = vsel %vm2566, %v3668, %v3403
        %v3704 = vsel %vm2566, %v3669, %v3405
        %v3705 = vsel %vm2566, %v3670, %v3407
        %v3706 = vsel %vm2566, %v3671, %v3409
        %v3707 = vsel %vm2566, %v3672, %v3411
        %v3708 = vsel %vm2566, %v3673, %v3413
        %v3709 = vsel %vm2566, %v3674, %v3415
        %v3710 = vsel %vm2566, %v3675, %v3417
        %v3711 = vsel %vm2566, %v3676, %v3419
        %v3712 = vsel %vm2566, %v3677, %v3421
        %v3713 = vsel %vm2566, %v3678, %v3423
        %v3714 = vsel %vm2566, %v3679, %v3425
        %v3715 = vsel %vm2566, %v3680, %v3427
        %v3716 = vsel %vm2566, %v3681, %v3429
        %v3717 = vsel %vm2566, %v3682, %v3431
        %v3718 = vsel %vm2566, %v3683, %v3433
        %v3719 = vsel %vm2566, %v3684, %v3435
        %v3720 = vsel %vm2566, %v3685, %v3437
        %v3721 = vsel %vm2566, %v3686, %v3439
        %v3722 = vsel %vm2566, %v3687, %v3441
        %v3723 = vsel %vm2566, %v3688, %v3443
        %v3724 = vsel %vm2602, %v3689, %v3515
        %v3725 = vsel %vm2602, %v3690, %v3517
        %v3726 = vsel %vm2602, %v3691, %v3519
        %v3727 = vsel %vm2602, %v3692, %v3521
        %v3728 = vsel %vm2602, %v3693, %v3523
        %v3729 = vsel %vm2602, %v3694, %v3525
        %v3730 = vsel %vm2602, %v3695, %v3527
        %v3731 = vsel %vm2602, %v3696, %v3529
        %v3732 = vsel %vm2602, %v3697, %v3531
        %v3733 = vsel %vm2602, %v3698, %v3533
        %v3734 = vsel %vm2602, %v3699, %v3535
        %v3735 = vsel %vm2602, %v3700, %v3537
        %v3736 = vsel %vm2602, %v3701, %v3539
        %v3737 = vsel %vm2602, %v3702, %v3541
        %v3738 = vsel %vm2602, %v3703, %v3543
        %v3739 = vsel %vm2602, %v3704, %v3545
        %v3740 = vsel %vm2602, %v3705, %v3547
        %v3741 = vsel %vm2602, %v3706, %v3549
        %v3742 = vsel %vm2602, %v3707, %v3551
        %v3743 = vsel %vm2602, %v3708, %v3553
        %v3744 = vsel %vm2602, %v3709, %v3555
        %v3745 = vsel %vm2602, %v3710, %v3557
        %v3746 = vsel %vm2602, %v3711, %v3559
        %v3747 = vsel %vm2602, %v3712, %v3561
        %v3748 = vsel %vm2602, %v3713, %v3563
        %v3749 = vsel %vm2602, %v3714, %v3565
        %v3750 = vsel %vm2602, %v3715, %v3567
        %v3751 = vsel %vm2602, %v3716, %v3569
        %v3752 = vsel %vm2602, %v3717, %v3571
        %v3753 = vsel %vm2602, %v3718, %v3573
        %v3754 = vsel %vm2602, %v3719, %v3575
        %v3755 = vsel %vm2602, %v3720, %v3577
        %v3756 = vsel %vm2602, %v3721, %v3579
        %v3757 = vsel %vm2602, %v3722, %v3581
        %v3758 = vsel %vm2602, %v3723, %v3583
        %v3759 = vpack.c.bf16 %v3725, %v3724
        %v3760 = vpack.c.bf16 %v3727, %v3726
        %v3761 = vpack.c.bf16 %v3729, %v3728
        %v3762 = vpack.c.bf16 %v3731, %v3730
        %v3763 = vpack.c.bf16 %v3733, %v3732
        %v3764 = vpack.c.bf16 %v3735, %v3734
        %v3765 = vpack.c.bf16 %v3737, %v3736
        %v3766 = vpack.c.bf16 %v3739, %v3738
        %v3767 = vpack.c.bf16 %v3741, %v3740
        %v3768 = vpack.c.bf16 %v3743, %v3742
        %v3769 = vpack.c.bf16 %v3745, %v3744
        %v3770 = vpack.c.bf16 %v3747, %v3746
        %v3771 = vpack.c.bf16 %v3749, %v3748
        %v3772 = vpack.c.bf16 %v3751, %v3750
        %v3773 = vpack.c.bf16 %v3753, %v3752
        %v3774 = vpack.c.bf16 %v3755, %v3754
        %v3775 = vpack.c.bf16 %v3757, %v3756
        %v3776 = vpack.c.bf16 %v3758, %v3758
        %v3777 = vld [vmem:[%s3 + $0x28] sm:$0xf]
        %v3778 = vld [vmem:[%s3 + $0x2c] sm:$0xf]
        %v3779 = vld [vmem:[%s3 + $0x30] sm:$0xf]
        %v3780 = vld [vmem:[%s3 + $0x34] sm:$0xf]
        %v3781 = vld [vmem:[%s3 + $0x38] sm:$0xf]
        %v3782 = vld [vmem:[%s3 + $0x3c] sm:$0xf]
        %v3783 = vld [vmem:[%s3 + $0x40] sm:$0xf]
        %v3784 = vld [vmem:[%s3 + $0x44] sm:$0xf]
        %v3785 = vld [vmem:[%s3 + $0x48] sm:$0xf]
        %v3786 = vld [vmem:[%s3 + $0x4c] sm:$0xf]
        %v3797 = vunpack.c.l.b16 %v3777
        %v3798 = vunpack.c.l.b16 %v3778
        %v3799 = vunpack.c.l.b16 %v3779
        %v3800 = vunpack.c.l.b16 %v3780
        %v3801 = vunpack.c.l.b16 %v3781
        %v3802 = vunpack.c.l.b16 %v3782
        %v3803 = vunpack.c.l.b16 %v3783
        %v3804 = vunpack.c.l.b16 %v3784
        %v3805 = vunpack.c.l.b16 %v3785
        %v3806 = vunpack.c.l.b16 %v3786
        %v3807 = vpack.c.b16 %v3798, %v3797
        %v3808 = vpack.c.b16 %v3800, %v3799
        %v3809 = vpack.c.b16 %v3802, %v3801
        %v3810 = vpack.c.b16 %v3804, %v3803
        %v3811 = vpack.c.b16 %v3806, %v3805
        %v3818 = vsel %vm2696, %v3759, 0
        %v3821 = vsel %vm2696, %v3760, 0
        %v3824 = vsel %vm2696, %v3761, 0
        %v3827 = vsel %vm2696, %v3762, 0
        %v3830 = vsel %vm2696, %v3763, 0
        %v3833 = vsel %vm2696, %v3764, 0
        %v3836 = vsel %vm2696, %v3765, 0
        %v3839 = vsel %vm2696, %v3766, 0
        %v3842 = vsel %vm2696, %v3767, 0
        %v3845 = vsel %vm2696, %v3768, 0
        %v3848 = vsel %vm2696, %v3769, 0
        %v3851 = vsel %vm2696, %v3770, 0
        %v3854 = vsel %vm2696, %v3771, 0
        %v3857 = vsel %vm2696, %v3772, 0
        %v3860 = vsel %vm2696, %v3773, 0
        %v3863 = vsel %vm2696, %v3774, 0
        %v3866 = vsel %vm2696, %v3775, 0
        %v3869 = vsel %vm2696, %v3776, 0
        %3871 = vmatpush.bf16.msra.mxu0 0
        %3872 = vmatpush.bf16.msra.mxu0 0
        %3873 = vmatpush.bf16.msra.mxu0 0
        %3874 = vmatpush.bf16.msra.mxu0 %v3811
        %3875 = vmatpush.bf16.msra.mxu0 %v3810
        %3876 = vmatpush.bf16.msra.mxu0 %v3809
        %3877 = vmatpush.bf16.msra.mxu0 %v3808
        %3878 = vmatpush.bf16.msra.mxu0 %v3807
        %3879 = vmatmul.bf16.gmra.mxu0 %v3818
        %v3880 = vpop.f32.mrf.mxu0
        %v3881 = vadd.f32 0.0, %v3880
        %v3882 = vpop.f32.mrf.mxu0
        %v3883 = vadd.f32 0.0, %v3882
        %3884 = vmatmul.bf16.gmra.mxu0 %v3821
        %v3885 = vpop.f32.mrf.mxu0
        %v3886 = vadd.f32 0.0, %v3885
        %v3887 = vpop.f32.mrf.mxu0
        %v3888 = vadd.f32 0.0, %v3887
        %3889 = vmatmul.bf16.gmra.mxu0 %v3824
        %v3890 = vpop.f32.mrf.mxu0
        %v3891 = vadd.f32 0.0, %v3890
        %v3892 = vpop.f32.mrf.mxu0
        %v3893 = vadd.f32 0.0, %v3892
        %3894 = vmatmul.bf16.gmra.mxu0 %v3827
        %v3895 = vpop.f32.mrf.mxu0
        %v3896 = vadd.f32 0.0, %v3895
        %v3897 = vpop.f32.mrf.mxu0
        %v3898 = vadd.f32 0.0, %v3897
        %3899 = vmatmul.bf16.gmra.mxu0 %v3830
        %v3900 = vpop.f32.mrf.mxu0
        %v3901 = vadd.f32 0.0, %v3900
        %v3902 = vpop.f32.mrf.mxu0
        %v3903 = vadd.f32 0.0, %v3902
        %3904 = vmatmul.bf16.gmra.mxu0 %v3833
        %v3905 = vpop.f32.mrf.mxu0
        %v3906 = vadd.f32 0.0, %v3905
        %v3907 = vpop.f32.mrf.mxu0
        %v3908 = vadd.f32 0.0, %v3907
        %3909 = vmatmul.bf16.gmra.mxu0 %v3836
        %v3910 = vpop.f32.mrf.mxu0
        %v3911 = vadd.f32 0.0, %v3910
        %v3912 = vpop.f32.mrf.mxu0
        %v3913 = vadd.f32 0.0, %v3912
        %3914 = vmatmul.bf16.gmra.mxu0 %v3839
        %v3915 = vpop.f32.mrf.mxu0
        %v3916 = vadd.f32 0.0, %v3915
        %v3917 = vpop.f32.mrf.mxu0
        %v3918 = vadd.f32 0.0, %v3917
        %3919 = vmatmul.bf16.gmra.mxu0 %v3842
        %v3920 = vpop.f32.mrf.mxu0
        %v3921 = vadd.f32 0.0, %v3920
        %v3922 = vpop.f32.mrf.mxu0
        %v3923 = vadd.f32 0.0, %v3922
        %3924 = vmatmul.bf16.gmra.mxu0 %v3845
        %v3925 = vpop.f32.mrf.mxu0
        %v3926 = vadd.f32 0.0, %v3925
        %v3927 = vpop.f32.mrf.mxu0
        %v3928 = vadd.f32 0.0, %v3927
        %3929 = vmatmul.bf16.gmra.mxu0 %v3848
        %v3930 = vpop.f32.mrf.mxu0
        %v3931 = vadd.f32 0.0, %v3930
        %v3932 = vpop.f32.mrf.mxu0
        %v3933 = vadd.f32 0.0, %v3932
        %3934 = vmatmul.bf16.gmra.mxu0 %v3851
        %v3935 = vpop.f32.mrf.mxu0
        %v3936 = vadd.f32 0.0, %v3935
        %v3937 = vpop.f32.mrf.mxu0
        %v3938 = vadd.f32 0.0, %v3937
        %3939 = vmatmul.bf16.gmra.mxu0 %v3854
        %v3940 = vpop.f32.mrf.mxu0
        %v3941 = vadd.f32 0.0, %v3940
        %v3942 = vpop.f32.mrf.mxu0
        %v3943 = vadd.f32 0.0, %v3942
        %3944 = vmatmul.bf16.gmra.mxu0 %v3857
        %v3945 = vpop.f32.mrf.mxu0
        %v3946 = vadd.f32 0.0, %v3945
        %v3947 = vpop.f32.mrf.mxu0
        %v3948 = vadd.f32 0.0, %v3947
        %3949 = vmatmul.bf16.gmra.mxu0 %v3860
        %v3950 = vpop.f32.mrf.mxu0
        %v3951 = vadd.f32 0.0, %v3950
        %v3952 = vpop.f32.mrf.mxu0
        %v3953 = vadd.f32 0.0, %v3952
        %3954 = vmatmul.bf16.gmra.mxu0 %v3863
        %v3955 = vpop.f32.mrf.mxu0
        %v3956 = vadd.f32 0.0, %v3955
        %v3957 = vpop.f32.mrf.mxu0
        %v3958 = vadd.f32 0.0, %v3957
        %3959 = vmatmul.bf16.gmra.mxu0 %v3866
        %v3960 = vpop.f32.mrf.mxu0
        %v3961 = vadd.f32 0.0, %v3960
        %v3962 = vpop.f32.mrf.mxu0
        %v3963 = vadd.f32 0.0, %v3962
        %3964 = vmatmul.bf16.gmra.mxu0 %v3869
        %v3965 = vpop.f32.mrf.mxu0
        %v3966 = vadd.f32 0.0, %v3965
        %v3967 = vpop.f32.mrf.mxu0
        %3968 = vdwg.mxu0
        %v3969 = vld [vmem:[#allocation4] sm:$0xff]
        %v3970 = vld [vmem:[#allocation4 + $0x8] sm:$0xff]
        %v3971 = vld [vmem:[#allocation4 + $0x10] sm:$0xff]
        %v3972 = vld [vmem:[#allocation4 + $0x18] sm:$0xff]
        %v3973 = vld [vmem:[#allocation4 + $0x20] sm:$0xff]
        %v3974 = vld [vmem:[#allocation4 + $0x28] sm:$0xff]
        %v3975 = vld [vmem:[#allocation4 + $0x30] sm:$0xff]
        %v3976 = vld [vmem:[#allocation4 + $0x38] sm:$0xff]
        %v3977 = vld [vmem:[#allocation4 + $0x40] sm:$0xff]
        %v3978 = vld [vmem:[#allocation4 + $0x48] sm:$0xff]
        %v3979 = vld [vmem:[#allocation4 + $0x50] sm:$0xff]
        %v3980 = vld [vmem:[#allocation4 + $0x58] sm:$0xff]
        %v3981 = vld [vmem:[#allocation4 + $0x60] sm:$0xff]
        %v3982 = vld [vmem:[#allocation4 + $0x68] sm:$0xff]
        %v3983 = vld [vmem:[#allocation4 + $0x70] sm:$0xff]
        %v3984 = vld [vmem:[#allocation4 + $0x78] sm:$0xff]
        %v3985 = vld [vmem:[#allocation4 + $0x80] sm:$0xff]
        %v3986 = vld [vmem:[#allocation4 + $0x88] sm:$0xff]
        %v3987 = vld [vmem:[#allocation4 + $0x90] sm:$0xff]
        %v3988 = vld [vmem:[#allocation4 + $0x98] sm:$0xff]
        %v3989 = vld [vmem:[#allocation4 + $0xa0] sm:$0xff]
        %v3990 = vld [vmem:[#allocation4 + $0xa8] sm:$0xff]
        %v3991 = vld [vmem:[#allocation4 + $0xb0] sm:$0xff]
        %v3992 = vld [vmem:[#allocation4 + $0xb8] sm:$0xff]
        %v3993 = vld [vmem:[#allocation4 + $0xc0] sm:$0xff]
        %v3994 = vld [vmem:[#allocation4 + $0xc8] sm:$0xff]
        %v3995 = vld [vmem:[#allocation4 + $0xd0] sm:$0xff]
        %v3996 = vld [vmem:[#allocation4 + $0xd8] sm:$0xff]
        %v3997 = vld [vmem:[#allocation4 + $0xe0] sm:$0xff]
        %v3998 = vld [vmem:[#allocation4 + $0xe8] sm:$0xff]
        %v3999 = vld [vmem:[#allocation4 + $0xf0] sm:$0xff]
        %v4000 = vld [vmem:[#allocation4 + $0xf8] sm:$0xff]
        %v4001 = vld [vmem:[#allocation4 + $0x100] sm:$0xff]
        %v4002 = vld [vmem:[#allocation4 + $0x108] sm:$0xff]
        %v4003 = vld [vmem:[#allocation4 + $0x110] sm:$0xff]
        %v4004 = vadd.f32 %v3969, %v3881
        %v4005 = vadd.f32 %v3970, %v3883
        %v4006 = vadd.f32 %v3971, %v3886
        %v4007 = vadd.f32 %v3972, %v3888
        %v4008 = vadd.f32 %v3973, %v3891
        %v4009 = vadd.f32 %v3974, %v3893
        %v4010 = vadd.f32 %v3975, %v3896
        %v4011 = vadd.f32 %v3976, %v3898
        %v4012 = vadd.f32 %v3977, %v3901
        %v4013 = vadd.f32 %v3978, %v3903
        %v4014 = vadd.f32 %v3979, %v3906
        %v4015 = vadd.f32 %v3980, %v3908
        %v4016 = vadd.f32 %v3981, %v3911
        %v4017 = vadd.f32 %v3982, %v3913
        %v4018 = vadd.f32 %v3983, %v3916
        %v4019 = vadd.f32 %v3984, %v3918
        %v4020 = vadd.f32 %v3985, %v3921
        %v4021 = vadd.f32 %v3986, %v3923
        %v4022 = vadd.f32 %v3987, %v3926
        %v4023 = vadd.f32 %v3988, %v3928
        %v4024 = vadd.f32 %v3989, %v3931
        %v4025 = vadd.f32 %v3990, %v3933
        %v4026 = vadd.f32 %v3991, %v3936
        %v4027 = vadd.f32 %v3992, %v3938
        %v4028 = vadd.f32 %v3993, %v3941
        %v4029 = vadd.f32 %v3994, %v3943
        %v4030 = vadd.f32 %v3995, %v3946
        %v4031 = vadd.f32 %v3996, %v3948
        %v4032 = vadd.f32 %v3997, %v3951
        %v4033 = vadd.f32 %v3998, %v3953
        %v4034 = vadd.f32 %v3999, %v3956
        %v4035 = vadd.f32 %v4000, %v3958
        %v4036 = vadd.f32 %v4001, %v3961
        %v4037 = vadd.f32 %v4002, %v3963
        %v4038 = vadd.f32 %v4003, %v3966
        %4039 = vst.msk [vmem:[#allocation4] sm:$0xff] %vm2530, %v4004
        %4040 = vst.msk [vmem:[#allocation4 + $0x8] sm:$0xff] %vm2530, %v4005
        %4041 = vst.msk [vmem:[#allocation4 + $0x10] sm:$0xff] %vm2530, %v4006
        %4042 = vst.msk [vmem:[#allocation4 + $0x18] sm:$0xff] %vm2530, %v4007
        %4043 = vst.msk [vmem:[#allocation4 + $0x20] sm:$0xff] %vm2530, %v4008
        %4044 = vst.msk [vmem:[#allocation4 + $0x28] sm:$0xff] %vm2530, %v4009
        %4045 = vst.msk [vmem:[#allocation4 + $0x30] sm:$0xff] %vm2530, %v4010
        %4046 = vst.msk [vmem:[#allocation4 + $0x38] sm:$0xff] %vm2530, %v4011
        %4047 = vst.msk [vmem:[#allocation4 + $0x40] sm:$0xff] %vm2530, %v4012
        %4048 = vst.msk [vmem:[#allocation4 + $0x48] sm:$0xff] %vm2530, %v4013
        %4049 = vst.msk [vmem:[#allocation4 + $0x50] sm:$0xff] %vm2530, %v4014
        %4050 = vst.msk [vmem:[#allocation4 + $0x58] sm:$0xff] %vm2530, %v4015
        %4051 = vst.msk [vmem:[#allocation4 + $0x60] sm:$0xff] %vm2530, %v4016
        %4052 = vst.msk [vmem:[#allocation4 + $0x68] sm:$0xff] %vm2530, %v4017
        %4053 = vst.msk [vmem:[#allocation4 + $0x70] sm:$0xff] %vm2530, %v4018
        %4054 = vst.msk [vmem:[#allocation4 + $0x78] sm:$0xff] %vm2530, %v4019
        %4055 = vst.msk [vmem:[#allocation4 + $0x80] sm:$0xff] %vm2530, %v4020
        %4056 = vst.msk [vmem:[#allocation4 + $0x88] sm:$0xff] %vm2530, %v4021
        %4057 = vst.msk [vmem:[#allocation4 + $0x90] sm:$0xff] %vm2530, %v4022
        %4058 = vst.msk [vmem:[#allocation4 + $0x98] sm:$0xff] %vm2530, %v4023
        %4059 = vst.msk [vmem:[#allocation4 + $0xa0] sm:$0xff] %vm2530, %v4024
        %4060 = vst.msk [vmem:[#allocation4 + $0xa8] sm:$0xff] %vm2530, %v4025
        %4061 = vst.msk [vmem:[#allocation4 + $0xb0] sm:$0xff] %vm2530, %v4026
        %4062 = vst.msk [vmem:[#allocation4 + $0xb8] sm:$0xff] %vm2530, %v4027
        %4063 = vst.msk [vmem:[#allocation4 + $0xc0] sm:$0xff] %vm2530, %v4028
        %4064 = vst.msk [vmem:[#allocation4 + $0xc8] sm:$0xff] %vm2530, %v4029
        %4065 = vst.msk [vmem:[#allocation4 + $0xd0] sm:$0xff] %vm2530, %v4030
        %4066 = vst.msk [vmem:[#allocation4 + $0xd8] sm:$0xff] %vm2530, %v4031
        %4067 = vst.msk [vmem:[#allocation4 + $0xe0] sm:$0xff] %vm2530, %v4032
        %4068 = vst.msk [vmem:[#allocation4 + $0xe8] sm:$0xff] %vm2530, %v4033
        %4069 = vst.msk [vmem:[#allocation4 + $0xf0] sm:$0xff] %vm2530, %v4034
        %4070 = vst.msk [vmem:[#allocation4 + $0xf8] sm:$0xff] %vm2530, %v4035
        %4071 = vst.msk [vmem:[#allocation4 + $0x100] sm:$0xff] %vm2530, %v4036
        %4072 = vst.msk [vmem:[#allocation4 + $0x108] sm:$0xff] %vm2530, %v4037
        %4073 = vst.msk [vmem:[#allocation4 + $0x110] sm:$0xff] %vm2530, %v4038
        %v4074 = vld [vmem:[#allocation3 + $0x28] sm:$0xff]
        %v4075 = vld [vmem:[#allocation3 + $0x30] sm:$0xff]
        %v4076 = vld [vmem:[#allocation3 + $0x38] sm:$0xff]
        %v4077 = vld [vmem:[#allocation3 + $0x40] sm:$0xff]
        %v4078 = vld [vmem:[#allocation3 + $0x48] sm:$0xff]
        %v4079 = vld [vmem:[#allocation3 + $0x50] sm:$0xff]
        %v4080 = vld [vmem:[#allocation3 + $0x58] sm:$0xff]
        %v4081 = vld [vmem:[#allocation3 + $0x60] sm:$0xff]
        %v4082 = vld [vmem:[#allocation3 + $0x68] sm:$0xff]
        %v4083 = vld [vmem:[#allocation3 + $0x70] sm:$0xff]
        %v4084 = vld [vmem:[#allocation3 + $0x78] sm:$0xff]
        %v4085 = vld [vmem:[#allocation3 + $0x80] sm:$0xff]
        %v4086 = vld [vmem:[#allocation3 + $0x88] sm:$0xff]
        %v4087 = vld [vmem:[#allocation3 + $0x90] sm:$0xff]
        %v4088 = vld [vmem:[#allocation3 + $0x98] sm:$0xff]
        %v4089 = vld [vmem:[#allocation3 + $0xa0] sm:$0xff]
        %v4090 = vld [vmem:[#allocation3 + $0xa8] sm:$0xff]
        %v4091 = vld [vmem:[#allocation3 + $0xb0] sm:$0xff]
        %v4092 = vld [vmem:[#allocation3 + $0xb8] sm:$0xff]
        %v4093 = vld [vmem:[#allocation3 + $0xc0] sm:$0xff]
        %v4094 = vld [vmem:[#allocation3 + $0xc8] sm:$0xff]
        %v4095 = vld [vmem:[#allocation3 + $0xd0] sm:$0xff]
        %v4096 = vld [vmem:[#allocation3 + $0xd8] sm:$0xff]
        %v4097 = vld [vmem:[#allocation3 + $0xe0] sm:$0xff]
        %v4098 = vld [vmem:[#allocation3 + $0xe8] sm:$0xff]
        %v4099 = vld [vmem:[#allocation3 + $0xf0] sm:$0xff]
        %v4100 = vld [vmem:[#allocation3 + $0xf8] sm:$0xff]
        %v4101 = vld [vmem:[#allocation3 + $0x100] sm:$0xff]
        %v4102 = vld [vmem:[#allocation3 + $0x108] sm:$0xff]
        %v4103 = vld [vmem:[#allocation3 + $0x110] sm:$0xff]
        %v4104 = vld [vmem:[#allocation3 + $0x118] sm:$0xff]
        %v4105 = vld [vmem:[#allocation3 + $0x120] sm:$0xff]
        %v4106 = vld [vmem:[#allocation3 + $0x128] sm:$0xff]
        %v4107 = vld [vmem:[#allocation3 + $0x130] sm:$0xff]
        %v4108 = vld [vmem:[#allocation3 + $0x138] sm:$0xff]
        %v4109 = vld [vmem:[#allocation3 + $0x29] sm:$0xff]
        %v4110 = vld [vmem:[#allocation3 + $0x31] sm:$0xff]
        %v4111 = vld [vmem:[#allocation3 + $0x39] sm:$0xff]
        %v4112 = vld [vmem:[#allocation3 + $0x41] sm:$0xff]
        %v4113 = vld [vmem:[#allocation3 + $0x49] sm:$0xff]
        %v4114 = vld [vmem:[#allocation3 + $0x51] sm:$0xff]
        %v4115 = vld [vmem:[#allocation3 + $0x59] sm:$0xff]
        %v4116 = vld [vmem:[#allocation3 + $0x61] sm:$0xff]
        %v4117 = vld [vmem:[#allocation3 + $0x69] sm:$0xff]
        %v4118 = vld [vmem:[#allocation3 + $0x71] sm:$0xff]
        %v4119 = vld [vmem:[#allocation3 + $0x79] sm:$0xff]
        %v4120 = vld [vmem:[#allocation3 + $0x81] sm:$0xff]
        %v4121 = vld [vmem:[#allocation3 + $0x89] sm:$0xff]
        %v4122 = vld [vmem:[#allocation3 + $0x91] sm:$0xff]
        %v4123 = vld [vmem:[#allocation3 + $0x99] sm:$0xff]
        %v4124 = vld [vmem:[#allocation3 + $0xa1] sm:$0xff]
        %v4125 = vld [vmem:[#allocation3 + $0xa9] sm:$0xff]
        %v4126 = vld [vmem:[#allocation3 + $0xb1] sm:$0xff]
        %v4127 = vld [vmem:[#allocation3 + $0xb9] sm:$0xff]
        %v4128 = vld [vmem:[#allocation3 + $0xc1] sm:$0xff]
        %v4129 = vld [vmem:[#allocation3 + $0xc9] sm:$0xff]
        %v4130 = vld [vmem:[#allocation3 + $0xd1] sm:$0xff]
        %v4131 = vld [vmem:[#allocation3 + $0xd9] sm:$0xff]
        %v4132 = vld [vmem:[#allocation3 + $0xe1] sm:$0xff]
        %v4133 = vld [vmem:[#allocation3 + $0xe9] sm:$0xff]
        %v4134 = vld [vmem:[#allocation3 + $0xf1] sm:$0xff]
        %v4135 = vld [vmem:[#allocation3 + $0xf9] sm:$0xff]
        %v4136 = vld [vmem:[#allocation3 + $0x101] sm:$0xff]
        %v4137 = vld [vmem:[#allocation3 + $0x109] sm:$0xff]
        %v4138 = vld [vmem:[#allocation3 + $0x111] sm:$0xff]
        %v4139 = vld [vmem:[#allocation3 + $0x119] sm:$0xff]
        %v4140 = vld [vmem:[#allocation3 + $0x121] sm:$0xff]
        %v4141 = vld [vmem:[#allocation3 + $0x129] sm:$0xff]
        %v4142 = vld [vmem:[#allocation3 + $0x131] sm:$0xff]
        %v4143 = vld [vmem:[#allocation3 + $0x139] sm:$0xff]
        %v4144 = vld [vmem:[#allocation3 + $0x2a] sm:$0xff]
        %v4145 = vld [vmem:[#allocation3 + $0x32] sm:$0xff]
        %v4146 = vld [vmem:[#allocation3 + $0x3a] sm:$0xff]
        %v4147 = vld [vmem:[#allocation3 + $0x42] sm:$0xff]
        %v4148 = vld [vmem:[#allocation3 + $0x4a] sm:$0xff]
        %v4149 = vld [vmem:[#allocation3 + $0x52] sm:$0xff]
        %v4150 = vld [vmem:[#allocation3 + $0x5a] sm:$0xff]
        %v4151 = vld [vmem:[#allocation3 + $0x62] sm:$0xff]
        %v4152 = vld [vmem:[#allocation3 + $0x6a] sm:$0xff]
        %v4153 = vld [vmem:[#allocation3 + $0x72] sm:$0xff]
        %v4154 = vld [vmem:[#allocation3 + $0x7a] sm:$0xff]
        %v4155 = vld [vmem:[#allocation3 + $0x82] sm:$0xff]
        %v4156 = vld [vmem:[#allocation3 + $0x8a] sm:$0xff]
        %v4157 = vld [vmem:[#allocation3 + $0x92] sm:$0xff]
        %v4158 = vld [vmem:[#allocation3 + $0x9a] sm:$0xff]
        %v4159 = vld [vmem:[#allocation3 + $0xa2] sm:$0xff]
        %v4160 = vld [vmem:[#allocation3 + $0xaa] sm:$0xff]
        %v4161 = vld [vmem:[#allocation3 + $0xb2] sm:$0xff]
        %v4162 = vld [vmem:[#allocation3 + $0xba] sm:$0xff]
        %v4163 = vld [vmem:[#allocation3 + $0xc2] sm:$0xff]
        %v4164 = vld [vmem:[#allocation3 + $0xca] sm:$0xff]
        %v4165 = vld [vmem:[#allocation3 + $0xd2] sm:$0xff]
        %v4166 = vld [vmem:[#allocation3 + $0xda] sm:$0xff]
        %v4167 = vld [vmem:[#allocation3 + $0xe2] sm:$0xff]
        %v4168 = vld [vmem:[#allocation3 + $0xea] sm:$0xff]
        %v4169 = vld [vmem:[#allocation3 + $0xf2] sm:$0xff]
        %v4170 = vld [vmem:[#allocation3 + $0xfa] sm:$0xff]
        %v4171 = vld [vmem:[#allocation3 + $0x102] sm:$0xff]
        %v4172 = vld [vmem:[#allocation3 + $0x10a] sm:$0xff]
        %v4173 = vld [vmem:[#allocation3 + $0x112] sm:$0xff]
        %v4174 = vld [vmem:[#allocation3 + $0x11a] sm:$0xff]
        %v4175 = vld [vmem:[#allocation3 + $0x122] sm:$0xff]
        %v4176 = vld [vmem:[#allocation3 + $0x12a] sm:$0xff]
        %v4177 = vld [vmem:[#allocation3 + $0x132] sm:$0xff]
        %v4178 = vld [vmem:[#allocation3 + $0x13a] sm:$0xff]
        %v4179 = vld [vmem:[#allocation3 + $0x2b] sm:$0xff]
        %v4180 = vld [vmem:[#allocation3 + $0x33] sm:$0xff]
        %v4181 = vld [vmem:[#allocation3 + $0x3b] sm:$0xff]
        %v4182 = vld [vmem:[#allocation3 + $0x43] sm:$0xff]
        %v4183 = vld [vmem:[#allocation3 + $0x4b] sm:$0xff]
        %v4184 = vld [vmem:[#allocation3 + $0x53] sm:$0xff]
        %v4185 = vld [vmem:[#allocation3 + $0x5b] sm:$0xff]
        %v4186 = vld [vmem:[#allocation3 + $0x63] sm:$0xff]
        %v4187 = vld [vmem:[#allocation3 + $0x6b] sm:$0xff]
        %v4188 = vld [vmem:[#allocation3 + $0x73] sm:$0xff]
        %v4189 = vld [vmem:[#allocation3 + $0x7b] sm:$0xff]
        %v4190 = vld [vmem:[#allocation3 + $0x83] sm:$0xff]
        %v4191 = vld [vmem:[#allocation3 + $0x8b] sm:$0xff]
        %v4192 = vld [vmem:[#allocation3 + $0x93] sm:$0xff]
        %v4193 = vld [vmem:[#allocation3 + $0x9b] sm:$0xff]
        %v4194 = vld [vmem:[#allocation3 + $0xa3] sm:$0xff]
        %v4195 = vld [vmem:[#allocation3 + $0xab] sm:$0xff]
        %v4196 = vld [vmem:[#allocation3 + $0xb3] sm:$0xff]
        %v4197 = vld [vmem:[#allocation3 + $0xbb] sm:$0xff]
        %v4198 = vld [vmem:[#allocation3 + $0xc3] sm:$0xff]
        %v4199 = vld [vmem:[#allocation3 + $0xcb] sm:$0xff]
        %v4200 = vld [vmem:[#allocation3 + $0xd3] sm:$0xff]
        %v4201 = vld [vmem:[#allocation3 + $0xdb] sm:$0xff]
        %v4202 = vld [vmem:[#allocation3 + $0xe3] sm:$0xff]
        %v4203 = vld [vmem:[#allocation3 + $0xeb] sm:$0xff]
        %v4204 = vld [vmem:[#allocation3 + $0xf3] sm:$0xff]
        %v4205 = vld [vmem:[#allocation3 + $0xfb] sm:$0xff]
        %v4206 = vld [vmem:[#allocation3 + $0x103] sm:$0xff]
        %v4207 = vld [vmem:[#allocation3 + $0x10b] sm:$0xff]
        %v4208 = vld [vmem:[#allocation3 + $0x113] sm:$0xff]
        %v4209 = vld [vmem:[#allocation3 + $0x11b] sm:$0xff]
        %v4210 = vld [vmem:[#allocation3 + $0x123] sm:$0xff]
        %v4211 = vld [vmem:[#allocation3 + $0x12b] sm:$0xff]
        %v4212 = vld [vmem:[#allocation3 + $0x133] sm:$0xff]
        %v4213 = vld [vmem:[#allocation3 + $0x13b] sm:$0xff]
        %v4214 = vld [vmem:[#allocation3 + $0x2c] sm:$0xff]
        %v4215 = vld [vmem:[#allocation3 + $0x34] sm:$0xff]
        %v4216 = vld [vmem:[#allocation3 + $0x3c] sm:$0xff]
        %v4217 = vld [vmem:[#allocation3 + $0x44] sm:$0xff]
        %v4218 = vld [vmem:[#allocation3 + $0x4c] sm:$0xff]
        %v4219 = vld [vmem:[#allocation3 + $0x54] sm:$0xff]
        %v4220 = vld [vmem:[#allocation3 + $0x5c] sm:$0xff]
        %v4221 = vld [vmem:[#allocation3 + $0x64] sm:$0xff]
        %v4222 = vld [vmem:[#allocation3 + $0x6c] sm:$0xff]
        %v4223 = vld [vmem:[#allocation3 + $0x74] sm:$0xff]
        %v4224 = vld [vmem:[#allocation3 + $0x7c] sm:$0xff]
        %v4225 = vld [vmem:[#allocation3 + $0x84] sm:$0xff]
        %v4226 = vld [vmem:[#allocation3 + $0x8c] sm:$0xff]
        %v4227 = vld [vmem:[#allocation3 + $0x94] sm:$0xff]
        %v4228 = vld [vmem:[#allocation3 + $0x9c] sm:$0xff]
        %v4229 = vld [vmem:[#allocation3 + $0xa4] sm:$0xff]
        %v4230 = vld [vmem:[#allocation3 + $0xac] sm:$0xff]
        %v4231 = vld [vmem:[#allocation3 + $0xb4] sm:$0xff]
        %v4232 = vld [vmem:[#allocation3 + $0xbc] sm:$0xff]
        %v4233 = vld [vmem:[#allocation3 + $0xc4] sm:$0xff]
        %v4234 = vld [vmem:[#allocation3 + $0xcc] sm:$0xff]
        %v4235 = vld [vmem:[#allocation3 + $0xd4] sm:$0xff]
        %v4236 = vld [vmem:[#allocation3 + $0xdc] sm:$0xff]
        %v4237 = vld [vmem:[#allocation3 + $0xe4] sm:$0xff]
        %v4238 = vld [vmem:[#allocation3 + $0xec] sm:$0xff]
        %v4239 = vld [vmem:[#allocation3 + $0xf4] sm:$0xff]
        %v4240 = vld [vmem:[#allocation3 + $0xfc] sm:$0xff]
        %v4241 = vld [vmem:[#allocation3 + $0x104] sm:$0xff]
        %v4242 = vld [vmem:[#allocation3 + $0x10c] sm:$0xff]
        %v4243 = vld [vmem:[#allocation3 + $0x114] sm:$0xff]
        %v4244 = vld [vmem:[#allocation3 + $0x11c] sm:$0xff]
        %v4245 = vld [vmem:[#allocation3 + $0x124] sm:$0xff]
        %v4246 = vld [vmem:[#allocation3 + $0x12c] sm:$0xff]
        %v4247 = vld [vmem:[#allocation3 + $0x134] sm:$0xff]
        %v4248 = vld [vmem:[#allocation3 + $0x13c] sm:$0xff]
        %4284 = vrot.lane.b32.xlu0 %v4109, 16
        %v4285 = vpop.permute.xlu0 %4284
        %4286 = vrot.lane.b32.xlu0 %v4110, 16
        %v4287 = vpop.permute.xlu0 %4286
        %4288 = vrot.lane.b32.xlu0 %v4111, 16
        %v4289 = vpop.permute.xlu0 %4288
        %4290 = vrot.lane.b32.xlu0 %v4112, 16
        %v4291 = vpop.permute.xlu0 %4290
        %4292 = vrot.lane.b32.xlu0 %v4113, 16
        %v4293 = vpop.permute.xlu0 %4292
        %4294 = vrot.lane.b32.xlu0 %v4114, 16
        %v4295 = vpop.permute.xlu0 %4294
        %4296 = vrot.lane.b32.xlu0 %v4115, 16
        %v4297 = vpop.permute.xlu0 %4296
        %4298 = vrot.lane.b32.xlu0 %v4116, 16
        %v4299 = vpop.permute.xlu0 %4298
        %4300 = vrot.lane.b32.xlu0 %v4117, 16
        %v4301 = vpop.permute.xlu0 %4300
        %4302 = vrot.lane.b32.xlu0 %v4118, 16
        %v4303 = vpop.permute.xlu0 %4302
        %4304 = vrot.lane.b32.xlu0 %v4119, 16
        %v4305 = vpop.permute.xlu0 %4304
        %4306 = vrot.lane.b32.xlu0 %v4120, 16
        %v4307 = vpop.permute.xlu0 %4306
        %4308 = vrot.lane.b32.xlu0 %v4121, 16
        %v4309 = vpop.permute.xlu0 %4308
        %4310 = vrot.lane.b32.xlu0 %v4122, 16
        %v4311 = vpop.permute.xlu0 %4310
        %4312 = vrot.lane.b32.xlu0 %v4123, 16
        %v4313 = vpop.permute.xlu0 %4312
        %4314 = vrot.lane.b32.xlu0 %v4124, 16
        %v4315 = vpop.permute.xlu0 %4314
        %4316 = vrot.lane.b32.xlu0 %v4125, 16
        %v4317 = vpop.permute.xlu0 %4316
        %4318 = vrot.lane.b32.xlu0 %v4126, 16
        %v4319 = vpop.permute.xlu0 %4318
        %4320 = vrot.lane.b32.xlu0 %v4127, 16
        %v4321 = vpop.permute.xlu0 %4320
        %4322 = vrot.lane.b32.xlu0 %v4128, 16
        %v4323 = vpop.permute.xlu0 %4322
        %4324 = vrot.lane.b32.xlu0 %v4129, 16
        %v4325 = vpop.permute.xlu0 %4324
        %4326 = vrot.lane.b32.xlu0 %v4130, 16
        %v4327 = vpop.permute.xlu0 %4326
        %4328 = vrot.lane.b32.xlu0 %v4131, 16
        %v4329 = vpop.permute.xlu0 %4328
        %4330 = vrot.lane.b32.xlu0 %v4132, 16
        %v4331 = vpop.permute.xlu0 %4330
        %4332 = vrot.lane.b32.xlu0 %v4133, 16
        %v4333 = vpop.permute.xlu0 %4332
        %4334 = vrot.lane.b32.xlu0 %v4134, 16
        %v4335 = vpop.permute.xlu0 %4334
        %4336 = vrot.lane.b32.xlu0 %v4135, 16
        %v4337 = vpop.permute.xlu0 %4336
        %4338 = vrot.lane.b32.xlu0 %v4136, 16
        %v4339 = vpop.permute.xlu0 %4338
        %4340 = vrot.lane.b32.xlu0 %v4137, 16
        %v4341 = vpop.permute.xlu0 %4340
        %4342 = vrot.lane.b32.xlu0 %v4138, 16
        %v4343 = vpop.permute.xlu0 %4342
        %4344 = vrot.lane.b32.xlu0 %v4139, 16
        %v4345 = vpop.permute.xlu0 %4344
        %4346 = vrot.lane.b32.xlu0 %v4140, 16
        %v4347 = vpop.permute.xlu0 %4346
        %4348 = vrot.lane.b32.xlu0 %v4141, 16
        %v4349 = vpop.permute.xlu0 %4348
        %4350 = vrot.lane.b32.xlu0 %v4142, 16
        %v4351 = vpop.permute.xlu0 %4350
        %4352 = vrot.lane.b32.xlu0 %v4143, 16
        %v4353 = vpop.permute.xlu0 %4352
        %4424 = vrot.lane.b32.xlu0 %v4144, 32
        %v4425 = vpop.permute.xlu0 %4424
        %4426 = vrot.lane.b32.xlu0 %v4145, 32
        %v4427 = vpop.permute.xlu0 %4426
        %4428 = vrot.lane.b32.xlu0 %v4146, 32
        %v4429 = vpop.permute.xlu0 %4428
        %4430 = vrot.lane.b32.xlu0 %v4147, 32
        %v4431 = vpop.permute.xlu0 %4430
        %4432 = vrot.lane.b32.xlu0 %v4148, 32
        %v4433 = vpop.permute.xlu0 %4432
        %4434 = vrot.lane.b32.xlu0 %v4149, 32
        %v4435 = vpop.permute.xlu0 %4434
        %4436 = vrot.lane.b32.xlu0 %v4150, 32
        %v4437 = vpop.permute.xlu0 %4436
        %4438 = vrot.lane.b32.xlu0 %v4151, 32
        %v4439 = vpop.permute.xlu0 %4438
        %4440 = vrot.lane.b32.xlu0 %v4152, 32
        %v4441 = vpop.permute.xlu0 %4440
        %4442 = vrot.lane.b32.xlu0 %v4153, 32
        %v4443 = vpop.permute.xlu0 %4442
        %4444 = vrot.lane.b32.xlu0 %v4154, 32
        %v4445 = vpop.permute.xlu0 %4444
        %4446 = vrot.lane.b32.xlu0 %v4155, 32
        %v4447 = vpop.permute.xlu0 %4446
        %4448 = vrot.lane.b32.xlu0 %v4156, 32
        %v4449 = vpop.permute.xlu0 %4448
        %4450 = vrot.lane.b32.xlu0 %v4157, 32
        %v4451 = vpop.permute.xlu0 %4450
        %4452 = vrot.lane.b32.xlu0 %v4158, 32
        %v4453 = vpop.permute.xlu0 %4452
        %4454 = vrot.lane.b32.xlu0 %v4159, 32
        %v4455 = vpop.permute.xlu0 %4454
        %4456 = vrot.lane.b32.xlu0 %v4160, 32
        %v4457 = vpop.permute.xlu0 %4456
        %4458 = vrot.lane.b32.xlu0 %v4161, 32
        %v4459 = vpop.permute.xlu0 %4458
        %4460 = vrot.lane.b32.xlu0 %v4162, 32
        %v4461 = vpop.permute.xlu0 %4460
        %4462 = vrot.lane.b32.xlu0 %v4163, 32
        %v4463 = vpop.permute.xlu0 %4462
        %4464 = vrot.lane.b32.xlu0 %v4164, 32
        %v4465 = vpop.permute.xlu0 %4464
        %4466 = vrot.lane.b32.xlu0 %v4165, 32
        %v4467 = vpop.permute.xlu0 %4466
        %4468 = vrot.lane.b32.xlu0 %v4166, 32
        %v4469 = vpop.permute.xlu0 %4468
        %4470 = vrot.lane.b32.xlu0 %v4167, 32
        %v4471 = vpop.permute.xlu0 %4470
        %4472 = vrot.lane.b32.xlu0 %v4168, 32
        %v4473 = vpop.permute.xlu0 %4472
        %4474 = vrot.lane.b32.xlu0 %v4169, 32
        %v4475 = vpop.permute.xlu0 %4474
        %4476 = vrot.lane.b32.xlu0 %v4170, 32
        %v4477 = vpop.permute.xlu0 %4476
        %4478 = vrot.lane.b32.xlu0 %v4171, 32
        %v4479 = vpop.permute.xlu0 %4478
        %4480 = vrot.lane.b32.xlu0 %v4172, 32
        %v4481 = vpop.permute.xlu0 %4480
        %4482 = vrot.lane.b32.xlu0 %v4173, 32
        %v4483 = vpop.permute.xlu0 %4482
        %4484 = vrot.lane.b32.xlu0 %v4174, 32
        %v4485 = vpop.permute.xlu0 %4484
        %4486 = vrot.lane.b32.xlu0 %v4175, 32
        %v4487 = vpop.permute.xlu0 %4486
        %4488 = vrot.lane.b32.xlu0 %v4176, 32
        %v4489 = vpop.permute.xlu0 %4488
        %4490 = vrot.lane.b32.xlu0 %v4177, 32
        %v4491 = vpop.permute.xlu0 %4490
        %4492 = vrot.lane.b32.xlu0 %v4178, 32
        %v4493 = vpop.permute.xlu0 %4492
        %4564 = vrot.lane.b32.xlu0 %v4179, 48
        %v4565 = vpop.permute.xlu0 %4564
        %4566 = vrot.lane.b32.xlu0 %v4180, 48
        %v4567 = vpop.permute.xlu0 %4566
        %4568 = vrot.lane.b32.xlu0 %v4181, 48
        %v4569 = vpop.permute.xlu0 %4568
        %4570 = vrot.lane.b32.xlu0 %v4182, 48
        %v4571 = vpop.permute.xlu0 %4570
        %4572 = vrot.lane.b32.xlu0 %v4183, 48
        %v4573 = vpop.permute.xlu0 %4572
        %4574 = vrot.lane.b32.xlu0 %v4184, 48
        %v4575 = vpop.permute.xlu0 %4574
        %4576 = vrot.lane.b32.xlu0 %v4185, 48
        %v4577 = vpop.permute.xlu0 %4576
        %4578 = vrot.lane.b32.xlu0 %v4186, 48
        %v4579 = vpop.permute.xlu0 %4578
        %4580 = vrot.lane.b32.xlu0 %v4187, 48
        %v4581 = vpop.permute.xlu0 %4580
        %4582 = vrot.lane.b32.xlu0 %v4188, 48
        %v4583 = vpop.permute.xlu0 %4582
        %4584 = vrot.lane.b32.xlu0 %v4189, 48
        %v4585 = vpop.permute.xlu0 %4584
        %4586 = vrot.lane.b32.xlu0 %v4190, 48
        %v4587 = vpop.permute.xlu0 %4586
        %4588 = vrot.lane.b32.xlu0 %v4191, 48
        %v4589 = vpop.permute.xlu0 %4588
        %4590 = vrot.lane.b32.xlu0 %v4192, 48
        %v4591 = vpop.permute.xlu0 %4590
        %4592 = vrot.lane.b32.xlu0 %v4193, 48
        %v4593 = vpop.permute.xlu0 %4592
        %4594 = vrot.lane.b32.xlu0 %v4194, 48
        %v4595 = vpop.permute.xlu0 %4594
        %4596 = vrot.lane.b32.xlu0 %v4195, 48
        %v4597 = vpop.permute.xlu0 %4596
        %4598 = vrot.lane.b32.xlu0 %v4196, 48
        %v4599 = vpop.permute.xlu0 %4598
        %4600 = vrot.lane.b32.xlu0 %v4197, 48
        %v4601 = vpop.permute.xlu0 %4600
        %4602 = vrot.lane.b32.xlu0 %v4198, 48
        %v4603 = vpop.permute.xlu0 %4602
        %4604 = vrot.lane.b32.xlu0 %v4199, 48
        %v4605 = vpop.permute.xlu0 %4604
        %4606 = vrot.lane.b32.xlu0 %v4200, 48
        %v4607 = vpop.permute.xlu0 %4606
        %4608 = vrot.lane.b32.xlu0 %v4201, 48
        %v4609 = vpop.permute.xlu0 %4608
        %4610 = vrot.lane.b32.xlu0 %v4202, 48
        %v4611 = vpop.permute.xlu0 %4610
        %4612 = vrot.lane.b32.xlu0 %v4203, 48
        %v4613 = vpop.permute.xlu0 %4612
        %4614 = vrot.lane.b32.xlu0 %v4204, 48
        %v4615 = vpop.permute.xlu0 %4614
        %4616 = vrot.lane.b32.xlu0 %v4205, 48
        %v4617 = vpop.permute.xlu0 %4616
        %4618 = vrot.lane.b32.xlu0 %v4206, 48
        %v4619 = vpop.permute.xlu0 %4618
        %4620 = vrot.lane.b32.xlu0 %v4207, 48
        %v4621 = vpop.permute.xlu0 %4620
        %4622 = vrot.lane.b32.xlu0 %v4208, 48
        %v4623 = vpop.permute.xlu0 %4622
        %4624 = vrot.lane.b32.xlu0 %v4209, 48
        %v4625 = vpop.permute.xlu0 %4624
        %4626 = vrot.lane.b32.xlu0 %v4210, 48
        %v4627 = vpop.permute.xlu0 %4626
        %4628 = vrot.lane.b32.xlu0 %v4211, 48
        %v4629 = vpop.permute.xlu0 %4628
        %4630 = vrot.lane.b32.xlu0 %v4212, 48
        %v4631 = vpop.permute.xlu0 %4630
        %4632 = vrot.lane.b32.xlu0 %v4213, 48
        %v4633 = vpop.permute.xlu0 %4632
        %4704 = vrot.lane.b32.xlu0 %v4214, 64
        %v4705 = vpop.permute.xlu0 %4704
        %4706 = vrot.lane.b32.xlu0 %v4215, 64
        %v4707 = vpop.permute.xlu0 %4706
        %4708 = vrot.lane.b32.xlu0 %v4216, 64
        %v4709 = vpop.permute.xlu0 %4708
        %4710 = vrot.lane.b32.xlu0 %v4217, 64
        %v4711 = vpop.permute.xlu0 %4710
        %4712 = vrot.lane.b32.xlu0 %v4218, 64
        %v4713 = vpop.permute.xlu0 %4712
        %4714 = vrot.lane.b32.xlu0 %v4219, 64
        %v4715 = vpop.permute.xlu0 %4714
        %4716 = vrot.lane.b32.xlu0 %v4220, 64
        %v4717 = vpop.permute.xlu0 %4716
        %4718 = vrot.lane.b32.xlu0 %v4221, 64
        %v4719 = vpop.permute.xlu0 %4718
        %4720 = vrot.lane.b32.xlu0 %v4222, 64
        %v4721 = vpop.permute.xlu0 %4720
        %4722 = vrot.lane.b32.xlu0 %v4223, 64
        %v4723 = vpop.permute.xlu0 %4722
        %4724 = vrot.lane.b32.xlu0 %v4224, 64
        %v4725 = vpop.permute.xlu0 %4724
        %4726 = vrot.lane.b32.xlu0 %v4225, 64
        %v4727 = vpop.permute.xlu0 %4726
        %4728 = vrot.lane.b32.xlu0 %v4226, 64
        %v4729 = vpop.permute.xlu0 %4728
        %4730 = vrot.lane.b32.xlu0 %v4227, 64
        %v4731 = vpop.permute.xlu0 %4730
        %4732 = vrot.lane.b32.xlu0 %v4228, 64
        %v4733 = vpop.permute.xlu0 %4732
        %4734 = vrot.lane.b32.xlu0 %v4229, 64
        %v4735 = vpop.permute.xlu0 %4734
        %4736 = vrot.lane.b32.xlu0 %v4230, 64
        %v4737 = vpop.permute.xlu0 %4736
        %4738 = vrot.lane.b32.xlu0 %v4231, 64
        %v4739 = vpop.permute.xlu0 %4738
        %4740 = vrot.lane.b32.xlu0 %v4232, 64
        %v4741 = vpop.permute.xlu0 %4740
        %4742 = vrot.lane.b32.xlu0 %v4233, 64
        %v4743 = vpop.permute.xlu0 %4742
        %4744 = vrot.lane.b32.xlu0 %v4234, 64
        %v4745 = vpop.permute.xlu0 %4744
        %4746 = vrot.lane.b32.xlu0 %v4235, 64
        %v4747 = vpop.permute.xlu0 %4746
        %4748 = vrot.lane.b32.xlu0 %v4236, 64
        %v4749 = vpop.permute.xlu0 %4748
        %4750 = vrot.lane.b32.xlu0 %v4237, 64
        %v4751 = vpop.permute.xlu0 %4750
        %4752 = vrot.lane.b32.xlu0 %v4238, 64
        %v4753 = vpop.permute.xlu0 %4752
        %4754 = vrot.lane.b32.xlu0 %v4239, 64
        %v4755 = vpop.permute.xlu0 %4754
        %4756 = vrot.lane.b32.xlu0 %v4240, 64
        %v4757 = vpop.permute.xlu0 %4756
        %4758 = vrot.lane.b32.xlu0 %v4241, 64
        %v4759 = vpop.permute.xlu0 %4758
        %4760 = vrot.lane.b32.xlu0 %v4242, 64
        %v4761 = vpop.permute.xlu0 %4760
        %4762 = vrot.lane.b32.xlu0 %v4243, 64
        %v4763 = vpop.permute.xlu0 %4762
        %4764 = vrot.lane.b32.xlu0 %v4244, 64
        %v4765 = vpop.permute.xlu0 %4764
        %4766 = vrot.lane.b32.xlu0 %v4245, 64
        %v4767 = vpop.permute.xlu0 %4766
        %4768 = vrot.lane.b32.xlu0 %v4246, 64
        %v4769 = vpop.permute.xlu0 %4768
        %4770 = vrot.lane.b32.xlu0 %v4247, 64
        %v4771 = vpop.permute.xlu0 %4770
        %4772 = vrot.lane.b32.xlu0 %v4248, 64
        %v4773 = vpop.permute.xlu0 %4772
        %v4809 = vsel %vm1265, %v4074, %v4285
        %v4810 = vsel %vm1265, %v4075, %v4287
        %v4811 = vsel %vm1265, %v4076, %v4289
        %v4812 = vsel %vm1265, %v4077, %v4291
        %v4813 = vsel %vm1265, %v4078, %v4293
        %v4814 = vsel %vm1265, %v4079, %v4295
        %v4815 = vsel %vm1265, %v4080, %v4297
        %v4816 = vsel %vm1265, %v4081, %v4299
        %v4817 = vsel %vm1265, %v4082, %v4301
        %v4818 = vsel %vm1265, %v4083, %v4303
        %v4819 = vsel %vm1265, %v4084, %v4305
        %v4820 = vsel %vm1265, %v4085, %v4307
        %v4821 = vsel %vm1265, %v4086, %v4309
        %v4822 = vsel %vm1265, %v4087, %v4311
        %v4823 = vsel %vm1265, %v4088, %v4313
        %v4824 = vsel %vm1265, %v4089, %v4315
        %v4825 = vsel %vm1265, %v4090, %v4317
        %v4826 = vsel %vm1265, %v4091, %v4319
        %v4827 = vsel %vm1265, %v4092, %v4321
        %v4828 = vsel %vm1265, %v4093, %v4323
        %v4829 = vsel %vm1265, %v4094, %v4325
        %v4830 = vsel %vm1265, %v4095, %v4327
        %v4831 = vsel %vm1265, %v4096, %v4329
        %v4832 = vsel %vm1265, %v4097, %v4331
        %v4833 = vsel %vm1265, %v4098, %v4333
        %v4834 = vsel %vm1265, %v4099, %v4335
        %v4835 = vsel %vm1265, %v4100, %v4337
        %v4836 = vsel %vm1265, %v4101, %v4339
        %v4837 = vsel %vm1265, %v4102, %v4341
        %v4838 = vsel %vm1265, %v4103, %v4343
        %v4839 = vsel %vm1265, %v4104, %v4345
        %v4840 = vsel %vm1265, %v4105, %v4347
        %v4841 = vsel %vm1265, %v4106, %v4349
        %v4842 = vsel %vm1265, %v4107, %v4351
        %v4843 = vsel %vm1265, %v4108, %v4353
        %v4844 = vsel %vm2530, %v4809, %v4425
        %v4845 = vsel %vm2530, %v4810, %v4427
        %v4846 = vsel %vm2530, %v4811, %v4429
        %v4847 = vsel %vm2530, %v4812, %v4431
        %v4848 = vsel %vm2530, %v4813, %v4433
        %v4849 = vsel %vm2530, %v4814, %v4435
        %v4850 = vsel %vm2530, %v4815, %v4437
        %v4851 = vsel %vm2530, %v4816, %v4439
        %v4852 = vsel %vm2530, %v4817, %v4441
        %v4853 = vsel %vm2530, %v4818, %v4443
        %v4854 = vsel %vm2530, %v4819, %v4445
        %v4855 = vsel %vm2530, %v4820, %v4447
        %v4856 = vsel %vm2530, %v4821, %v4449
        %v4857 = vsel %vm2530, %v4822, %v4451
        %v4858 = vsel %vm2530, %v4823, %v4453
        %v4859 = vsel %vm2530, %v4824, %v4455
        %v4860 = vsel %vm2530, %v4825, %v4457
        %v4861 = vsel %vm2530, %v4826, %v4459
        %v4862 = vsel %vm2530, %v4827, %v4461
        %v4863 = vsel %vm2530, %v4828, %v4463
        %v4864 = vsel %vm2530, %v4829, %v4465
        %v4865 = vsel %vm2530, %v4830, %v4467
        %v4866 = vsel %vm2530, %v4831, %v4469
        %v4867 = vsel %vm2530, %v4832, %v4471
        %v4868 = vsel %vm2530, %v4833, %v4473
        %v4869 = vsel %vm2530, %v4834, %v4475
        %v4870 = vsel %vm2530, %v4835, %v4477
        %v4871 = vsel %vm2530, %v4836, %v4479
        %v4872 = vsel %vm2530, %v4837, %v4481
        %v4873 = vsel %vm2530, %v4838, %v4483
        %v4874 = vsel %vm2530, %v4839, %v4485
        %v4875 = vsel %vm2530, %v4840, %v4487
        %v4876 = vsel %vm2530, %v4841, %v4489
        %v4877 = vsel %vm2530, %v4842, %v4491
        %v4878 = vsel %vm2530, %v4843, %v4493
        %v4879 = vsel %vm2566, %v4844, %v4565
        %v4880 = vsel %vm2566, %v4845, %v4567
        %v4881 = vsel %vm2566, %v4846, %v4569
        %v4882 = vsel %vm2566, %v4847, %v4571
        %v4883 = vsel %vm2566, %v4848, %v4573
        %v4884 = vsel %vm2566, %v4849, %v4575
        %v4885 = vsel %vm2566, %v4850, %v4577
        %v4886 = vsel %vm2566, %v4851, %v4579
        %v4887 = vsel %vm2566, %v4852, %v4581
        %v4888 = vsel %vm2566, %v4853, %v4583
        %v4889 = vsel %vm2566, %v4854, %v4585
        %v4890 = vsel %vm2566, %v4855, %v4587
        %v4891 = vsel %vm2566, %v4856, %v4589
        %v4892 = vsel %vm2566, %v4857, %v4591
        %v4893 = vsel %vm2566, %v4858, %v4593
        %v4894 = vsel %vm2566, %v4859, %v4595
        %v4895 = vsel %vm2566, %v4860, %v4597
        %v4896 = vsel %vm2566, %v4861, %v4599
        %v4897 = vsel %vm2566, %v4862, %v4601
        %v4898 = vsel %vm2566, %v4863, %v4603
        %v4899 = vsel %vm2566, %v4864, %v4605
        %v4900 = vsel %vm2566, %v4865, %v4607
        %v4901 = vsel %vm2566, %v4866, %v4609
        %v4902 = vsel %vm2566, %v4867, %v4611
        %v4903 = vsel %vm2566, %v4868, %v4613
        %v4904 = vsel %vm2566, %v4869, %v4615
        %v4905 = vsel %vm2566, %v4870, %v4617
        %v4906 = vsel %vm2566, %v4871, %v4619
        %v4907 = vsel %vm2566, %v4872, %v4621
        %v4908 = vsel %vm2566, %v4873, %v4623
        %v4909 = vsel %vm2566, %v4874, %v4625
        %v4910 = vsel %vm2566, %v4875, %v4627
        %v4911 = vsel %vm2566, %v4876, %v4629
        %v4912 = vsel %vm2566, %v4877, %v4631
        %v4913 = vsel %vm2566, %v4878, %v4633
        %v4914 = vsel %vm2602, %v4879, %v4705
        %v4915 = vsel %vm2602, %v4880, %v4707
        %v4916 = vsel %vm2602, %v4881, %v4709
        %v4917 = vsel %vm2602, %v4882, %v4711
        %v4918 = vsel %vm2602, %v4883, %v4713
        %v4919 = vsel %vm2602, %v4884, %v4715
        %v4920 = vsel %vm2602, %v4885, %v4717
        %v4921 = vsel %vm2602, %v4886, %v4719
        %v4922 = vsel %vm2602, %v4887, %v4721
        %v4923 = vsel %vm2602, %v4888, %v4723
        %v4924 = vsel %vm2602, %v4889, %v4725
        %v4925 = vsel %vm2602, %v4890, %v4727
        %v4926 = vsel %vm2602, %v4891, %v4729
        %v4927 = vsel %vm2602, %v4892, %v4731
        %v4928 = vsel %vm2602, %v4893, %v4733
        %v4929 = vsel %vm2602, %v4894, %v4735
        %v4930 = vsel %vm2602, %v4895, %v4737
        %v4931 = vsel %vm2602, %v4896, %v4739
        %v4932 = vsel %vm2602, %v4897, %v4741
        %v4933 = vsel %vm2602, %v4898, %v4743
        %v4934 = vsel %vm2602, %v4899, %v4745
        %v4935 = vsel %vm2602, %v4900, %v4747
        %v4936 = vsel %vm2602, %v4901, %v4749
        %v4937 = vsel %vm2602, %v4902, %v4751
        %v4938 = vsel %vm2602, %v4903, %v4753
        %v4939 = vsel %vm2602, %v4904, %v4755
        %v4940 = vsel %vm2602, %v4905, %v4757
        %v4941 = vsel %vm2602, %v4906, %v4759
        %v4942 = vsel %vm2602, %v4907, %v4761
        %v4943 = vsel %vm2602, %v4908, %v4763
        %v4944 = vsel %vm2602, %v4909, %v4765
        %v4945 = vsel %vm2602, %v4910, %v4767
        %v4946 = vsel %vm2602, %v4911, %v4769
        %v4947 = vsel %vm2602, %v4912, %v4771
        %v4948 = vsel %vm2602, %v4913, %v4773
        %v4949 = vpack.c.bf16 %v4915, %v4914
        %v4950 = vpack.c.bf16 %v4917, %v4916
        %v4951 = vpack.c.bf16 %v4919, %v4918
        %v4952 = vpack.c.bf16 %v4921, %v4920
        %v4953 = vpack.c.bf16 %v4923, %v4922
        %v4954 = vpack.c.bf16 %v4925, %v4924
        %v4955 = vpack.c.bf16 %v4927, %v4926
        %v4956 = vpack.c.bf16 %v4929, %v4928
        %v4957 = vpack.c.bf16 %v4931, %v4930
        %v4958 = vpack.c.bf16 %v4933, %v4932
        %v4959 = vpack.c.bf16 %v4935, %v4934
        %v4960 = vpack.c.bf16 %v4937, %v4936
        %v4961 = vpack.c.bf16 %v4939, %v4938
        %v4962 = vpack.c.bf16 %v4941, %v4940
        %v4963 = vpack.c.bf16 %v4943, %v4942
        %v4964 = vpack.c.bf16 %v4945, %v4944
        %v4965 = vpack.c.bf16 %v4947, %v4946
        %v4966 = vpack.c.bf16 %v4948, %v4948
        %v4967 = vld [vmem:[%s3 + $0x50] sm:$0xf]
        %v4968 = vld [vmem:[%s3 + $0x54] sm:$0xf]
        %v4969 = vld [vmem:[%s3 + $0x58] sm:$0xf]
        %v4970 = vld [vmem:[%s3 + $0x5c] sm:$0xf]
        %v4971 = vld [vmem:[%s3 + $0x60] sm:$0xf]
        %v4972 = vld [vmem:[%s3 + $0x64] sm:$0xf]
        %v4973 = vld [vmem:[%s3 + $0x68] sm:$0xf]
        %v4974 = vld [vmem:[%s3 + $0x6c] sm:$0xf]
        %v4975 = vld [vmem:[%s3 + $0x70] sm:$0xf]
        %v4976 = vld [vmem:[%s3 + $0x74] sm:$0xf]
        %v4987 = vunpack.c.l.b16 %v4967
        %v4988 = vunpack.c.l.b16 %v4968
        %v4989 = vunpack.c.l.b16 %v4969
        %v4990 = vunpack.c.l.b16 %v4970
        %v4991 = vunpack.c.l.b16 %v4971
        %v4992 = vunpack.c.l.b16 %v4972
        %v4993 = vunpack.c.l.b16 %v4973
        %v4994 = vunpack.c.l.b16 %v4974
        %v4995 = vunpack.c.l.b16 %v4975
        %v4996 = vunpack.c.l.b16 %v4976
        %v4997 = vpack.c.b16 %v4988, %v4987
        %v4998 = vpack.c.b16 %v4990, %v4989
        %v4999 = vpack.c.b16 %v4992, %v4991
        %v5000 = vpack.c.b16 %v4994, %v4993
        %v5001 = vpack.c.b16 %v4996, %v4995
        %v5008 = vsel %vm2696, %v4949, 0
        %v5011 = vsel %vm2696, %v4950, 0
        %v5014 = vsel %vm2696, %v4951, 0
        %v5017 = vsel %vm2696, %v4952, 0
        %v5020 = vsel %vm2696, %v4953, 0
        %v5023 = vsel %vm2696, %v4954, 0
        %v5026 = vsel %vm2696, %v4955, 0
        %v5029 = vsel %vm2696, %v4956, 0
        %v5032 = vsel %vm2696, %v4957, 0
        %v5035 = vsel %vm2696, %v4958, 0
        %v5038 = vsel %vm2696, %v4959, 0
        %v5041 = vsel %vm2696, %v4960, 0
        %v5044 = vsel %vm2696, %v4961, 0
        %v5047 = vsel %vm2696, %v4962, 0
        %v5050 = vsel %vm2696, %v4963, 0
        %v5053 = vsel %vm2696, %v4964, 0
        %v5056 = vsel %vm2696, %v4965, 0
        %v5059 = vsel %vm2696, %v4966, 0
        %5061 = vmatpush.bf16.msra.mxu0 0
        %5062 = vmatpush.bf16.msra.mxu0 0
        %5063 = vmatpush.bf16.msra.mxu0 0
        %5064 = vmatpush.bf16.msra.mxu0 %v5001
        %5065 = vmatpush.bf16.msra.mxu0 %v5000
        %5066 = vmatpush.bf16.msra.mxu0 %v4999
        %5067 = vmatpush.bf16.msra.mxu0 %v4998
        %5068 = vmatpush.bf16.msra.mxu0 %v4997
        %5069 = vmatmul.bf16.gmra.mxu0 %v5008
        %v5070 = vpop.f32.mrf.mxu0
        %v5071 = vadd.f32 0.0, %v5070
        %v5072 = vpop.f32.mrf.mxu0
        %v5073 = vadd.f32 0.0, %v5072
        %5074 = vmatmul.bf16.gmra.mxu0 %v5011
        %v5075 = vpop.f32.mrf.mxu0
        %v5076 = vadd.f32 0.0, %v5075
        %v5077 = vpop.f32.mrf.mxu0
        %v5078 = vadd.f32 0.0, %v5077
        %5079 = vmatmul.bf16.gmra.mxu0 %v5014
        %v5080 = vpop.f32.mrf.mxu0
        %v5081 = vadd.f32 0.0, %v5080
        %v5082 = vpop.f32.mrf.mxu0
        %v5083 = vadd.f32 0.0, %v5082
        %5084 = vmatmul.bf16.gmra.mxu0 %v5017
        %v5085 = vpop.f32.mrf.mxu0
        %v5086 = vadd.f32 0.0, %v5085
        %v5087 = vpop.f32.mrf.mxu0
        %v5088 = vadd.f32 0.0, %v5087
        %5089 = vmatmul.bf16.gmra.mxu0 %v5020
        %v5090 = vpop.f32.mrf.mxu0
        %v5091 = vadd.f32 0.0, %v5090
        %v5092 = vpop.f32.mrf.mxu0
        %v5093 = vadd.f32 0.0, %v5092
        %5094 = vmatmul.bf16.gmra.mxu0 %v5023
        %v5095 = vpop.f32.mrf.mxu0
        %v5096 = vadd.f32 0.0, %v5095
        %v5097 = vpop.f32.mrf.mxu0
        %v5098 = vadd.f32 0.0, %v5097
        %5099 = vmatmul.bf16.gmra.mxu0 %v5026
        %v5100 = vpop.f32.mrf.mxu0
        %v5101 = vadd.f32 0.0, %v5100
        %v5102 = vpop.f32.mrf.mxu0
        %v5103 = vadd.f32 0.0, %v5102
        %5104 = vmatmul.bf16.gmra.mxu0 %v5029
        %v5105 = vpop.f32.mrf.mxu0
        %v5106 = vadd.f32 0.0, %v5105
        %v5107 = vpop.f32.mrf.mxu0
        %v5108 = vadd.f32 0.0, %v5107
        %5109 = vmatmul.bf16.gmra.mxu0 %v5032
        %v5110 = vpop.f32.mrf.mxu0
        %v5111 = vadd.f32 0.0, %v5110
        %v5112 = vpop.f32.mrf.mxu0
        %v5113 = vadd.f32 0.0, %v5112
        %5114 = vmatmul.bf16.gmra.mxu0 %v5035
        %v5115 = vpop.f32.mrf.mxu0
        %v5116 = vadd.f32 0.0, %v5115
        %v5117 = vpop.f32.mrf.mxu0
        %v5118 = vadd.f32 0.0, %v5117
        %5119 = vmatmul.bf16.gmra.mxu0 %v5038
        %v5120 = vpop.f32.mrf.mxu0
        %v5121 = vadd.f32 0.0, %v5120
        %v5122 = vpop.f32.mrf.mxu0
        %v5123 = vadd.f32 0.0, %v5122
        %5124 = vmatmul.bf16.gmra.mxu0 %v5041
        %v5125 = vpop.f32.mrf.mxu0
        %v5126 = vadd.f32 0.0, %v5125
        %v5127 = vpop.f32.mrf.mxu0
        %v5128 = vadd.f32 0.0, %v5127
        %5129 = vmatmul.bf16.gmra.mxu0 %v5044
        %v5130 = vpop.f32.mrf.mxu0
        %v5131 = vadd.f32 0.0, %v5130
        %v5132 = vpop.f32.mrf.mxu0
        %v5133 = vadd.f32 0.0, %v5132
        %5134 = vmatmul.bf16.gmra.mxu0 %v5047
        %v5135 = vpop.f32.mrf.mxu0
        %v5136 = vadd.f32 0.0, %v5135
        %v5137 = vpop.f32.mrf.mxu0
        %v5138 = vadd.f32 0.0, %v5137
        %5139 = vmatmul.bf16.gmra.mxu0 %v5050
        %v5140 = vpop.f32.mrf.mxu0
        %v5141 = vadd.f32 0.0, %v5140
        %v5142 = vpop.f32.mrf.mxu0
        %v5143 = vadd.f32 0.0, %v5142
        %5144 = vmatmul.bf16.gmra.mxu0 %v5053
        %v5145 = vpop.f32.mrf.mxu0
        %v5146 = vadd.f32 0.0, %v5145
        %v5147 = vpop.f32.mrf.mxu0
        %v5148 = vadd.f32 0.0, %v5147
        %5149 = vmatmul.bf16.gmra.mxu0 %v5056
        %v5150 = vpop.f32.mrf.mxu0
        %v5151 = vadd.f32 0.0, %v5150
        %v5152 = vpop.f32.mrf.mxu0
        %v5153 = vadd.f32 0.0, %v5152
        %5154 = vmatmul.bf16.gmra.mxu0 %v5059
        %v5155 = vpop.f32.mrf.mxu0
        %v5156 = vadd.f32 0.0, %v5155
        %v5157 = vpop.f32.mrf.mxu0
        %5158 = vdwg.mxu0
        %v5159 = vld [vmem:[#allocation4] sm:$0xff]
        %v5160 = vld [vmem:[#allocation4 + $0x8] sm:$0xff]
        %v5161 = vld [vmem:[#allocation4 + $0x10] sm:$0xff]
        %v5162 = vld [vmem:[#allocation4 + $0x18] sm:$0xff]
        %v5163 = vld [vmem:[#allocation4 + $0x20] sm:$0xff]
        %v5164 = vld [vmem:[#allocation4 + $0x28] sm:$0xff]
        %v5165 = vld [vmem:[#allocation4 + $0x30] sm:$0xff]
        %v5166 = vld [vmem:[#allocation4 + $0x38] sm:$0xff]
        %v5167 = vld [vmem:[#allocation4 + $0x40] sm:$0xff]
        %v5168 = vld [vmem:[#allocation4 + $0x48] sm:$0xff]
        %v5169 = vld [vmem:[#allocation4 + $0x50] sm:$0xff]
        %v5170 = vld [vmem:[#allocation4 + $0x58] sm:$0xff]
        %v5171 = vld [vmem:[#allocation4 + $0x60] sm:$0xff]
        %v5172 = vld [vmem:[#allocation4 + $0x68] sm:$0xff]
        %v5173 = vld [vmem:[#allocation4 + $0x70] sm:$0xff]
        %v5174 = vld [vmem:[#allocation4 + $0x78] sm:$0xff]
        %v5175 = vld [vmem:[#allocation4 + $0x80] sm:$0xff]
        %v5176 = vld [vmem:[#allocation4 + $0x88] sm:$0xff]
        %v5177 = vld [vmem:[#allocation4 + $0x90] sm:$0xff]
        %v5178 = vld [vmem:[#allocation4 + $0x98] sm:$0xff]
        %v5179 = vld [vmem:[#allocation4 + $0xa0] sm:$0xff]
        %v5180 = vld [vmem:[#allocation4 + $0xa8] sm:$0xff]
        %v5181 = vld [vmem:[#allocation4 + $0xb0] sm:$0xff]
        %v5182 = vld [vmem:[#allocation4 + $0xb8] sm:$0xff]
        %v5183 = vld [vmem:[#allocation4 + $0xc0] sm:$0xff]
        %v5184 = vld [vmem:[#allocation4 + $0xc8] sm:$0xff]
        %v5185 = vld [vmem:[#allocation4 + $0xd0] sm:$0xff]
        %v5186 = vld [vmem:[#allocation4 + $0xd8] sm:$0xff]
        %v5187 = vld [vmem:[#allocation4 + $0xe0] sm:$0xff]
        %v5188 = vld [vmem:[#allocation4 + $0xe8] sm:$0xff]
        %v5189 = vld [vmem:[#allocation4 + $0xf0] sm:$0xff]
        %v5190 = vld [vmem:[#allocation4 + $0xf8] sm:$0xff]
        %v5191 = vld [vmem:[#allocation4 + $0x100] sm:$0xff]
        %v5192 = vld [vmem:[#allocation4 + $0x108] sm:$0xff]
        %v5193 = vld [vmem:[#allocation4 + $0x110] sm:$0xff]
        %v5194 = vadd.f32 %v5159, %v5071
        %v5195 = vadd.f32 %v5160, %v5073
        %v5196 = vadd.f32 %v5161, %v5076
        %v5197 = vadd.f32 %v5162, %v5078
        %v5198 = vadd.f32 %v5163, %v5081
        %v5199 = vadd.f32 %v5164, %v5083
        %v5200 = vadd.f32 %v5165, %v5086
        %v5201 = vadd.f32 %v5166, %v5088
        %v5202 = vadd.f32 %v5167, %v5091
        %v5203 = vadd.f32 %v5168, %v5093
        %v5204 = vadd.f32 %v5169, %v5096
        %v5205 = vadd.f32 %v5170, %v5098
        %v5206 = vadd.f32 %v5171, %v5101
        %v5207 = vadd.f32 %v5172, %v5103
        %v5208 = vadd.f32 %v5173, %v5106
        %v5209 = vadd.f32 %v5174, %v5108
        %v5210 = vadd.f32 %v5175, %v5111
        %v5211 = vadd.f32 %v5176, %v5113
        %v5212 = vadd.f32 %v5177, %v5116
        %v5213 = vadd.f32 %v5178, %v5118
        %v5214 = vadd.f32 %v5179, %v5121
        %v5215 = vadd.f32 %v5180, %v5123
        %v5216 = vadd.f32 %v5181, %v5126
        %v5217 = vadd.f32 %v5182, %v5128
        %v5218 = vadd.f32 %v5183, %v5131
        %v5219 = vadd.f32 %v5184, %v5133
        %v5220 = vadd.f32 %v5185, %v5136
        %v5221 = vadd.f32 %v5186, %v5138
        %v5222 = vadd.f32 %v5187, %v5141
        %v5223 = vadd.f32 %v5188, %v5143
        %v5224 = vadd.f32 %v5189, %v5146
        %v5225 = vadd.f32 %v5190, %v5148
        %v5226 = vadd.f32 %v5191, %v5151
        %v5227 = vadd.f32 %v5192, %v5153
        %v5228 = vadd.f32 %v5193, %v5156
        %5229 = vst.msk [vmem:[#allocation4] sm:$0xff] %vm2530, %v5194
        %5230 = vst.msk [vmem:[#allocation4 + $0x8] sm:$0xff] %vm2530, %v5195
        %5231 = vst.msk [vmem:[#allocation4 + $0x10] sm:$0xff] %vm2530, %v5196
        %5232 = vst.msk [vmem:[#allocation4 + $0x18] sm:$0xff] %vm2530, %v5197
        %5233 = vst.msk [vmem:[#allocation4 + $0x20] sm:$0xff] %vm2530, %v5198
        %5234 = vst.msk [vmem:[#allocation4 + $0x28] sm:$0xff] %vm2530, %v5199
        %5235 = vst.msk [vmem:[#allocation4 + $0x30] sm:$0xff] %vm2530, %v5200
        %5236 = vst.msk [vmem:[#allocation4 + $0x38] sm:$0xff] %vm2530, %v5201
        %5237 = vst.msk [vmem:[#allocation4 + $0x40] sm:$0xff] %vm2530, %v5202
        %5238 = vst.msk [vmem:[#allocation4 + $0x48] sm:$0xff] %vm2530, %v5203
        %5239 = vst.msk [vmem:[#allocation4 + $0x50] sm:$0xff] %vm2530, %v5204
        %5240 = vst.msk [vmem:[#allocation4 + $0x58] sm:$0xff] %vm2530, %v5205
        %5241 = vst.msk [vmem:[#allocation4 + $0x60] sm:$0xff] %vm2530, %v5206
        %5242 = vst.msk [vmem:[#allocation4 + $0x68] sm:$0xff] %vm2530, %v5207
        %5243 = vst.msk [vmem:[#allocation4 + $0x70] sm:$0xff] %vm2530, %v5208
        %5244 = vst.msk [vmem:[#allocation4 + $0x78] sm:$0xff] %vm2530, %v5209
        %5245 = vst.msk [vmem:[#allocation4 + $0x80] sm:$0xff] %vm2530, %v5210
        %5246 = vst.msk [vmem:[#allocation4 + $0x88] sm:$0xff] %vm2530, %v5211
        %5247 = vst.msk [vmem:[#allocation4 + $0x90] sm:$0xff] %vm2530, %v5212
        %5248 = vst.msk [vmem:[#allocation4 + $0x98] sm:$0xff] %vm2530, %v5213
        %5249 = vst.msk [vmem:[#allocation4 + $0xa0] sm:$0xff] %vm2530, %v5214
        %5250 = vst.msk [vmem:[#allocation4 + $0xa8] sm:$0xff] %vm2530, %v5215
        %5251 = vst.msk [vmem:[#allocation4 + $0xb0] sm:$0xff] %vm2530, %v5216
        %5252 = vst.msk [vmem:[#allocation4 + $0xb8] sm:$0xff] %vm2530, %v5217
        %5253 = vst.msk [vmem:[#allocation4 + $0xc0] sm:$0xff] %vm2530, %v5218
        %5254 = vst.msk [vmem:[#allocation4 + $0xc8] sm:$0xff] %vm2530, %v5219
        %5255 = vst.msk [vmem:[#allocation4 + $0xd0] sm:$0xff] %vm2530, %v5220
        %5256 = vst.msk [vmem:[#allocation4 + $0xd8] sm:$0xff] %vm2530, %v5221
        %5257 = vst.msk [vmem:[#allocation4 + $0xe0] sm:$0xff] %vm2530, %v5222
        %5258 = vst.msk [vmem:[#allocation4 + $0xe8] sm:$0xff] %vm2530, %v5223
        %5259 = vst.msk [vmem:[#allocation4 + $0xf0] sm:$0xff] %vm2530, %v5224
        %5260 = vst.msk [vmem:[#allocation4 + $0xf8] sm:$0xff] %vm2530, %v5225
        %5261 = vst.msk [vmem:[#allocation4 + $0x100] sm:$0xff] %vm2530, %v5226
        %5262 = vst.msk [vmem:[#allocation4 + $0x108] sm:$0xff] %vm2530, %v5227
        %5263 = vst.msk [vmem:[#allocation4 + $0x110] sm:$0xff] %vm2530, %v5228
        %v5264 = vld [vmem:[#allocation3 + $0x3c] sm:$0xff]
        %v5265 = vld [vmem:[#allocation3 + $0x44] sm:$0xff]
        %v5266 = vld [vmem:[#allocation3 + $0x4c] sm:$0xff]
        %v5267 = vld [vmem:[#allocation3 + $0x54] sm:$0xff]
        %v5268 = vld [vmem:[#allocation3 + $0x5c] sm:$0xff]
        %v5269 = vld [vmem:[#allocation3 + $0x64] sm:$0xff]
        %v5270 = vld [vmem:[#allocation3 + $0x6c] sm:$0xff]
        %v5271 = vld [vmem:[#allocation3 + $0x74] sm:$0xff]
        %v5272 = vld [vmem:[#allocation3 + $0x7c] sm:$0xff]
        %v5273 = vld [vmem:[#allocation3 + $0x84] sm:$0xff]
        %v5274 = vld [vmem:[#allocation3 + $0x8c] sm:$0xff]
        %v5275 = vld [vmem:[#allocation3 + $0x94] sm:$0xff]
        %v5276 = vld [vmem:[#allocation3 + $0x9c] sm:$0xff]
        %v5277 = vld [vmem:[#allocation3 + $0xa4] sm:$0xff]
        %v5278 = vld [vmem:[#allocation3 + $0xac] sm:$0xff]
        %v5279 = vld [vmem:[#allocation3 + $0xb4] sm:$0xff]
        %v5280 = vld [vmem:[#allocation3 + $0xbc] sm:$0xff]
        %v5281 = vld [vmem:[#allocation3 + $0xc4] sm:$0xff]
        %v5282 = vld [vmem:[#allocation3 + $0xcc] sm:$0xff]
        %v5283 = vld [vmem:[#allocation3 + $0xd4] sm:$0xff]
        %v5284 = vld [vmem:[#allocation3 + $0xdc] sm:$0xff]
        %v5285 = vld [vmem:[#allocation3 + $0xe4] sm:$0xff]
        %v5286 = vld [vmem:[#allocation3 + $0xec] sm:$0xff]
        %v5287 = vld [vmem:[#allocation3 + $0xf4] sm:$0xff]
        %v5288 = vld [vmem:[#allocation3 + $0xfc] sm:$0xff]
        %v5289 = vld [vmem:[#allocation3 + $0x104] sm:$0xff]
        %v5290 = vld [vmem:[#allocation3 + $0x10c] sm:$0xff]
        %v5291 = vld [vmem:[#allocation3 + $0x114] sm:$0xff]
        %v5292 = vld [vmem:[#allocation3 + $0x11c] sm:$0xff]
        %v5293 = vld [vmem:[#allocation3 + $0x124] sm:$0xff]
        %v5294 = vld [vmem:[#allocation3 + $0x12c] sm:$0xff]
        %v5295 = vld [vmem:[#allocation3 + $0x134] sm:$0xff]
        %v5296 = vld [vmem:[#allocation3 + $0x13c] sm:$0xff]
        %v5297 = vld [vmem:[#allocation3 + $0x144] sm:$0xff]
        %v5298 = vld [vmem:[#allocation3 + $0x14c] sm:$0xff]
        %v5299 = vld [vmem:[#allocation3 + $0x3d] sm:$0xff]
        %v5300 = vld [vmem:[#allocation3 + $0x45] sm:$0xff]
        %v5301 = vld [vmem:[#allocation3 + $0x4d] sm:$0xff]
        %v5302 = vld [vmem:[#allocation3 + $0x55] sm:$0xff]
        %v5303 = vld [vmem:[#allocation3 + $0x5d] sm:$0xff]
        %v5304 = vld [vmem:[#allocation3 + $0x65] sm:$0xff]
        %v5305 = vld [vmem:[#allocation3 + $0x6d] sm:$0xff]
        %v5306 = vld [vmem:[#allocation3 + $0x75] sm:$0xff]
        %v5307 = vld [vmem:[#allocation3 + $0x7d] sm:$0xff]
        %v5308 = vld [vmem:[#allocation3 + $0x85] sm:$0xff]
        %v5309 = vld [vmem:[#allocation3 + $0x8d] sm:$0xff]
        %v5310 = vld [vmem:[#allocation3 + $0x95] sm:$0xff]
        %v5311 = vld [vmem:[#allocation3 + $0x9d] sm:$0xff]
        %v5312 = vld [vmem:[#allocation3 + $0xa5] sm:$0xff]
        %v5313 = vld [vmem:[#allocation3 + $0xad] sm:$0xff]
        %v5314 = vld [vmem:[#allocation3 + $0xb5] sm:$0xff]
        %v5315 = vld [vmem:[#allocation3 + $0xbd] sm:$0xff]
        %v5316 = vld [vmem:[#allocation3 + $0xc5] sm:$0xff]
        %v5317 = vld [vmem:[#allocation3 + $0xcd] sm:$0xff]
        %v5318 = vld [vmem:[#allocation3 + $0xd5] sm:$0xff]
        %v5319 = vld [vmem:[#allocation3 + $0xdd] sm:$0xff]
        %v5320 = vld [vmem:[#allocation3 + $0xe5] sm:$0xff]
        %v5321 = vld [vmem:[#allocation3 + $0xed] sm:$0xff]
        %v5322 = vld [vmem:[#allocation3 + $0xf5] sm:$0xff]
        %v5323 = vld [vmem:[#allocation3 + $0xfd] sm:$0xff]
        %v5324 = vld [vmem:[#allocation3 + $0x105] sm:$0xff]
        %v5325 = vld [vmem:[#allocation3 + $0x10d] sm:$0xff]
        %v5326 = vld [vmem:[#allocation3 + $0x115] sm:$0xff]
        %v5327 = vld [vmem:[#allocation3 + $0x11d] sm:$0xff]
        %v5328 = vld [vmem:[#allocation3 + $0x125] sm:$0xff]
        %v5329 = vld [vmem:[#allocation3 + $0x12d] sm:$0xff]
        %v5330 = vld [vmem:[#allocation3 + $0x135] sm:$0xff]
        %v5331 = vld [vmem:[#allocation3 + $0x13d] sm:$0xff]
        %v5332 = vld [vmem:[#allocation3 + $0x145] sm:$0xff]
        %v5333 = vld [vmem:[#allocation3 + $0x14d] sm:$0xff]
        %v5334 = vld [vmem:[#allocation3 + $0x3e] sm:$0xff]
        %v5335 = vld [vmem:[#allocation3 + $0x46] sm:$0xff]
        %v5336 = vld [vmem:[#allocation3 + $0x4e] sm:$0xff]
        %v5337 = vld [vmem:[#allocation3 + $0x56] sm:$0xff]
        %v5338 = vld [vmem:[#allocation3 + $0x5e] sm:$0xff]
        %v5339 = vld [vmem:[#allocation3 + $0x66] sm:$0xff]
        %v5340 = vld [vmem:[#allocation3 + $0x6e] sm:$0xff]
        %v5341 = vld [vmem:[#allocation3 + $0x76] sm:$0xff]
        %v5342 = vld [vmem:[#allocation3 + $0x7e] sm:$0xff]
        %v5343 = vld [vmem:[#allocation3 + $0x86] sm:$0xff]
        %v5344 = vld [vmem:[#allocation3 + $0x8e] sm:$0xff]
        %v5345 = vld [vmem:[#allocation3 + $0x96] sm:$0xff]
        %v5346 = vld [vmem:[#allocation3 + $0x9e] sm:$0xff]
        %v5347 = vld [vmem:[#allocation3 + $0xa6] sm:$0xff]
        %v5348 = vld [vmem:[#allocation3 + $0xae] sm:$0xff]
        %v5349 = vld [vmem:[#allocation3 + $0xb6] sm:$0xff]
        %v5350 = vld [vmem:[#allocation3 + $0xbe] sm:$0xff]
        %v5351 = vld [vmem:[#allocation3 + $0xc6] sm:$0xff]
        %v5352 = vld [vmem:[#allocation3 + $0xce] sm:$0xff]
        %v5353 = vld [vmem:[#allocation3 + $0xd6] sm:$0xff]
        %v5354 = vld [vmem:[#allocation3 + $0xde] sm:$0xff]
        %v5355 = vld [vmem:[#allocation3 + $0xe6] sm:$0xff]
        %v5356 = vld [vmem:[#allocation3 + $0xee] sm:$0xff]
        %v5357 = vld [vmem:[#allocation3 + $0xf6] sm:$0xff]
        %v5358 = vld [vmem:[#allocation3 + $0xfe] sm:$0xff]
        %v5359 = vld [vmem:[#allocation3 + $0x106] sm:$0xff]
        %v5360 = vld [vmem:[#allocation3 + $0x10e] sm:$0xff]
        %v5361 = vld [vmem:[#allocation3 + $0x116] sm:$0xff]
        %v5362 = vld [vmem:[#allocation3 + $0x11e] sm:$0xff]
        %v5363 = vld [vmem:[#allocation3 + $0x126] sm:$0xff]
        %v5364 = vld [vmem:[#allocation3 + $0x12e] sm:$0xff]
        %v5365 = vld [vmem:[#allocation3 + $0x136] sm:$0xff]
        %v5366 = vld [vmem:[#allocation3 + $0x13e] sm:$0xff]
        %v5367 = vld [vmem:[#allocation3 + $0x146] sm:$0xff]
        %v5368 = vld [vmem:[#allocation3 + $0x14e] sm:$0xff]
        %v5369 = vld [vmem:[#allocation3 + $0x3f] sm:$0xff]
        %v5370 = vld [vmem:[#allocation3 + $0x47] sm:$0xff]
        %v5371 = vld [vmem:[#allocation3 + $0x4f] sm:$0xff]
        %v5372 = vld [vmem:[#allocation3 + $0x57] sm:$0xff]
        %v5373 = vld [vmem:[#allocation3 + $0x5f] sm:$0xff]
        %v5374 = vld [vmem:[#allocation3 + $0x67] sm:$0xff]
        %v5375 = vld [vmem:[#allocation3 + $0x6f] sm:$0xff]
        %v5376 = vld [vmem:[#allocation3 + $0x77] sm:$0xff]
        %v5377 = vld [vmem:[#allocation3 + $0x7f] sm:$0xff]
        %v5378 = vld [vmem:[#allocation3 + $0x87] sm:$0xff]
        %v5379 = vld [vmem:[#allocation3 + $0x8f] sm:$0xff]
        %v5380 = vld [vmem:[#allocation3 + $0x97] sm:$0xff]
        %v5381 = vld [vmem:[#allocation3 + $0x9f] sm:$0xff]
        %v5382 = vld [vmem:[#allocation3 + $0xa7] sm:$0xff]
        %v5383 = vld [vmem:[#allocation3 + $0xaf] sm:$0xff]
        %v5384 = vld [vmem:[#allocation3 + $0xb7] sm:$0xff]
        %v5385 = vld [vmem:[#allocation3 + $0xbf] sm:$0xff]
        %v5386 = vld [vmem:[#allocation3 + $0xc7] sm:$0xff]
        %v5387 = vld [vmem:[#allocation3 + $0xcf] sm:$0xff]
        %v5388 = vld [vmem:[#allocation3 + $0xd7] sm:$0xff]
        %v5389 = vld [vmem:[#allocation3 + $0xdf] sm:$0xff]
        %v5390 = vld [vmem:[#allocation3 + $0xe7] sm:$0xff]
        %v5391 = vld [vmem:[#allocation3 + $0xef] sm:$0xff]
        %v5392 = vld [vmem:[#allocation3 + $0xf7] sm:$0xff]
        %v5393 = vld [vmem:[#allocation3 + $0xff] sm:$0xff]
        %v5394 = vld [vmem:[#allocation3 + $0x107] sm:$0xff]
        %v5395 = vld [vmem:[#allocation3 + $0x10f] sm:$0xff]
        %v5396 = vld [vmem:[#allocation3 + $0x117] sm:$0xff]
        %v5397 = vld [vmem:[#allocation3 + $0x11f] sm:$0xff]
        %v5398 = vld [vmem:[#allocation3 + $0x127] sm:$0xff]
        %v5399 = vld [vmem:[#allocation3 + $0x12f] sm:$0xff]
        %v5400 = vld [vmem:[#allocation3 + $0x137] sm:$0xff]
        %v5401 = vld [vmem:[#allocation3 + $0x13f] sm:$0xff]
        %v5402 = vld [vmem:[#allocation3 + $0x147] sm:$0xff]
        %v5403 = vld [vmem:[#allocation3 + $0x14f] sm:$0xff]
        %v5404 = vld [vmem:[#allocation3 + $0x40] sm:$0xff]
        %v5405 = vld [vmem:[#allocation3 + $0x48] sm:$0xff]
        %v5406 = vld [vmem:[#allocation3 + $0x50] sm:$0xff]
        %v5407 = vld [vmem:[#allocation3 + $0x58] sm:$0xff]
        %v5408 = vld [vmem:[#allocation3 + $0x60] sm:$0xff]
        %v5409 = vld [vmem:[#allocation3 + $0x68] sm:$0xff]
        %v5410 = vld [vmem:[#allocation3 + $0x70] sm:$0xff]
        %v5411 = vld [vmem:[#allocation3 + $0x78] sm:$0xff]
        %v5412 = vld [vmem:[#allocation3 + $0x80] sm:$0xff]
        %v5413 = vld [vmem:[#allocation3 + $0x88] sm:$0xff]
        %v5414 = vld [vmem:[#allocation3 + $0x90] sm:$0xff]
        %v5415 = vld [vmem:[#allocation3 + $0x98] sm:$0xff]
        %v5416 = vld [vmem:[#allocation3 + $0xa0] sm:$0xff]
        %v5417 = vld [vmem:[#allocation3 + $0xa8] sm:$0xff]
        %v5418 = vld [vmem:[#allocation3 + $0xb0] sm:$0xff]
        %v5419 = vld [vmem:[#allocation3 + $0xb8] sm:$0xff]
        %v5420 = vld [vmem:[#allocation3 + $0xc0] sm:$0xff]
        %v5421 = vld [vmem:[#allocation3 + $0xc8] sm:$0xff]
        %v5422 = vld [vmem:[#allocation3 + $0xd0] sm:$0xff]
        %v5423 = vld [vmem:[#allocation3 + $0xd8] sm:$0xff]
        %v5424 = vld [vmem:[#allocation3 + $0xe0] sm:$0xff]
        %v5425 = vld [vmem:[#allocation3 + $0xe8] sm:$0xff]
        %v5426 = vld [vmem:[#allocation3 + $0xf0] sm:$0xff]
        %v5427 = vld [vmem:[#allocation3 + $0xf8] sm:$0xff]
        %v5428 = vld [vmem:[#allocation3 + $0x100] sm:$0xff]
        %v5429 = vld [vmem:[#allocation3 + $0x108] sm:$0xff]
        %v5430 = vld [vmem:[#allocation3 + $0x110] sm:$0xff]
        %v5431 = vld [vmem:[#allocation3 + $0x118] sm:$0xff]
        %v5432 = vld [vmem:[#allocation3 + $0x120] sm:$0xff]
        %v5433 = vld [vmem:[#allocation3 + $0x128] sm:$0xff]
        %v5434 = vld [vmem:[#allocation3 + $0x130] sm:$0xff]
        %v5435 = vld [vmem:[#allocation3 + $0x138] sm:$0xff]
        %v5436 = vld [vmem:[#allocation3 + $0x140] sm:$0xff]
        %v5437 = vld [vmem:[#allocation3 + $0x148] sm:$0xff]
        %v5438 = vld [vmem:[#allocation3 + $0x150] sm:$0xff]
        %5474 = vrot.lane.b32.xlu0 %v5299, 16
        %v5475 = vpop.permute.xlu0 %5474
        %5476 = vrot.lane.b32.xlu0 %v5300, 16
        %v5477 = vpop.permute.xlu0 %5476
        %5478 = vrot.lane.b32.xlu0 %v5301, 16
        %v5479 = vpop.permute.xlu0 %5478
        %5480 = vrot.lane.b32.xlu0 %v5302, 16
        %v5481 = vpop.permute.xlu0 %5480
        %5482 = vrot.lane.b32.xlu0 %v5303, 16
        %v5483 = vpop.permute.xlu0 %5482
        %5484 = vrot.lane.b32.xlu0 %v5304, 16
        %v5485 = vpop.permute.xlu0 %5484
        %5486 = vrot.lane.b32.xlu0 %v5305, 16
        %v5487 = vpop.permute.xlu0 %5486
        %5488 = vrot.lane.b32.xlu0 %v5306, 16
        %v5489 = vpop.permute.xlu0 %5488
        %5490 = vrot.lane.b32.xlu0 %v5307, 16
        %v5491 = vpop.permute.xlu0 %5490
        %5492 = vrot.lane.b32.xlu0 %v5308, 16
        %v5493 = vpop.permute.xlu0 %5492
        %5494 = vrot.lane.b32.xlu0 %v5309, 16
        %v5495 = vpop.permute.xlu0 %5494
        %5496 = vrot.lane.b32.xlu0 %v5310, 16
        %v5497 = vpop.permute.xlu0 %5496
        %5498 = vrot.lane.b32.xlu0 %v5311, 16
        %v5499 = vpop.permute.xlu0 %5498
        %5500 = vrot.lane.b32.xlu0 %v5312, 16
        %v5501 = vpop.permute.xlu0 %5500
        %5502 = vrot.lane.b32.xlu0 %v5313, 16
        %v5503 = vpop.permute.xlu0 %5502
        %5504 = vrot.lane.b32.xlu0 %v5314, 16
        %v5505 = vpop.permute.xlu0 %5504
        %5506 = vrot.lane.b32.xlu0 %v5315, 16
        %v5507 = vpop.permute.xlu0 %5506
        %5508 = vrot.lane.b32.xlu0 %v5316, 16
        %v5509 = vpop.permute.xlu0 %5508
        %5510 = vrot.lane.b32.xlu0 %v5317, 16
        %v5511 = vpop.permute.xlu0 %5510
        %5512 = vrot.lane.b32.xlu0 %v5318, 16
        %v5513 = vpop.permute.xlu0 %5512
        %5514 = vrot.lane.b32.xlu0 %v5319, 16
        %v5515 = vpop.permute.xlu0 %5514
        %5516 = vrot.lane.b32.xlu0 %v5320, 16
        %v5517 = vpop.permute.xlu0 %5516
        %5518 = vrot.lane.b32.xlu0 %v5321, 16
        %v5519 = vpop.permute.xlu0 %5518
        %5520 = vrot.lane.b32.xlu0 %v5322, 16
        %v5521 = vpop.permute.xlu0 %5520
        %5522 = vrot.lane.b32.xlu0 %v5323, 16
        %v5523 = vpop.permute.xlu0 %5522
        %5524 = vrot.lane.b32.xlu0 %v5324, 16
        %v5525 = vpop.permute.xlu0 %5524
        %5526 = vrot.lane.b32.xlu0 %v5325, 16
        %v5527 = vpop.permute.xlu0 %5526
        %5528 = vrot.lane.b32.xlu0 %v5326, 16
        %v5529 = vpop.permute.xlu0 %5528
        %5530 = vrot.lane.b32.xlu0 %v5327, 16
        %v5531 = vpop.permute.xlu0 %5530
        %5532 = vrot.lane.b32.xlu0 %v5328, 16
        %v5533 = vpop.permute.xlu0 %5532
        %5534 = vrot.lane.b32.xlu0 %v5329, 16
        %v5535 = vpop.permute.xlu0 %5534
        %5536 = vrot.lane.b32.xlu0 %v5330, 16
        %v5537 = vpop.permute.xlu0 %5536
        %5538 = vrot.lane.b32.xlu0 %v5331, 16
        %v5539 = vpop.permute.xlu0 %5538
        %5540 = vrot.lane.b32.xlu0 %v5332, 16
        %v5541 = vpop.permute.xlu0 %5540
        %5542 = vrot.lane.b32.xlu0 %v5333, 16
        %v5543 = vpop.permute.xlu0 %5542
        %5614 = vrot.lane.b32.xlu0 %v5334, 32
        %v5615 = vpop.permute.xlu0 %5614
        %5616 = vrot.lane.b32.xlu0 %v5335, 32
        %v5617 = vpop.permute.xlu0 %5616
        %5618 = vrot.lane.b32.xlu0 %v5336, 32
        %v5619 = vpop.permute.xlu0 %5618
        %5620 = vrot.lane.b32.xlu0 %v5337, 32
        %v5621 = vpop.permute.xlu0 %5620
        %5622 = vrot.lane.b32.xlu0 %v5338, 32
        %v5623 = vpop.permute.xlu0 %5622
        %5624 = vrot.lane.b32.xlu0 %v5339, 32
        %v5625 = vpop.permute.xlu0 %5624
        %5626 = vrot.lane.b32.xlu0 %v5340, 32
        %v5627 = vpop.permute.xlu0 %5626
        %5628 = vrot.lane.b32.xlu0 %v5341, 32
        %v5629 = vpop.permute.xlu0 %5628
        %5630 = vrot.lane.b32.xlu0 %v5342, 32
        %v5631 = vpop.permute.xlu0 %5630
        %5632 = vrot.lane.b32.xlu0 %v5343, 32
        %v5633 = vpop.permute.xlu0 %5632
        %5634 = vrot.lane.b32.xlu0 %v5344, 32
        %v5635 = vpop.permute.xlu0 %5634
        %5636 = vrot.lane.b32.xlu0 %v5345, 32
        %v5637 = vpop.permute.xlu0 %5636
        %5638 = vrot.lane.b32.xlu0 %v5346, 32
        %v5639 = vpop.permute.xlu0 %5638
        %5640 = vrot.lane.b32.xlu0 %v5347, 32
        %v5641 = vpop.permute.xlu0 %5640
        %5642 = vrot.lane.b32.xlu0 %v5348, 32
        %v5643 = vpop.permute.xlu0 %5642
        %5644 = vrot.lane.b32.xlu0 %v5349, 32
        %v5645 = vpop.permute.xlu0 %5644
        %5646 = vrot.lane.b32.xlu0 %v5350, 32
        %v5647 = vpop.permute.xlu0 %5646
        %5648 = vrot.lane.b32.xlu0 %v5351, 32
        %v5649 = vpop.permute.xlu0 %5648
        %5650 = vrot.lane.b32.xlu0 %v5352, 32
        %v5651 = vpop.permute.xlu0 %5650
        %5652 = vrot.lane.b32.xlu0 %v5353, 32
        %v5653 = vpop.permute.xlu0 %5652
        %5654 = vrot.lane.b32.xlu0 %v5354, 32
        %v5655 = vpop.permute.xlu0 %5654
        %5656 = vrot.lane.b32.xlu0 %v5355, 32
        %v5657 = vpop.permute.xlu0 %5656
        %5658 = vrot.lane.b32.xlu0 %v5356, 32
        %v5659 = vpop.permute.xlu0 %5658
        %5660 = vrot.lane.b32.xlu0 %v5357, 32
        %v5661 = vpop.permute.xlu0 %5660
        %5662 = vrot.lane.b32.xlu0 %v5358, 32
        %v5663 = vpop.permute.xlu0 %5662
        %5664 = vrot.lane.b32.xlu0 %v5359, 32
        %v5665 = vpop.permute.xlu0 %5664
        %5666 = vrot.lane.b32.xlu0 %v5360, 32
        %v5667 = vpop.permute.xlu0 %5666
        %5668 = vrot.lane.b32.xlu0 %v5361, 32
        %v5669 = vpop.permute.xlu0 %5668
        %5670 = vrot.lane.b32.xlu0 %v5362, 32
        %v5671 = vpop.permute.xlu0 %5670
        %5672 = vrot.lane.b32.xlu0 %v5363, 32
        %v5673 = vpop.permute.xlu0 %5672
        %5674 = vrot.lane.b32.xlu0 %v5364, 32
        %v5675 = vpop.permute.xlu0 %5674
        %5676 = vrot.lane.b32.xlu0 %v5365, 32
        %v5677 = vpop.permute.xlu0 %5676
        %5678 = vrot.lane.b32.xlu0 %v5366, 32
        %v5679 = vpop.permute.xlu0 %5678
        %5680 = vrot.lane.b32.xlu0 %v5367, 32
        %v5681 = vpop.permute.xlu0 %5680
        %5682 = vrot.lane.b32.xlu0 %v5368, 32
        %v5683 = vpop.permute.xlu0 %5682
        %5754 = vrot.lane.b32.xlu0 %v5369, 48
        %v5755 = vpop.permute.xlu0 %5754
        %5756 = vrot.lane.b32.xlu0 %v5370, 48
        %v5757 = vpop.permute.xlu0 %5756
        %5758 = vrot.lane.b32.xlu0 %v5371, 48
        %v5759 = vpop.permute.xlu0 %5758
        %5760 = vrot.lane.b32.xlu0 %v5372, 48
        %v5761 = vpop.permute.xlu0 %5760
        %5762 = vrot.lane.b32.xlu0 %v5373, 48
        %v5763 = vpop.permute.xlu0 %5762
        %5764 = vrot.lane.b32.xlu0 %v5374, 48
        %v5765 = vpop.permute.xlu0 %5764
        %5766 = vrot.lane.b32.xlu0 %v5375, 48
        %v5767 = vpop.permute.xlu0 %5766
        %5768 = vrot.lane.b32.xlu0 %v5376, 48
        %v5769 = vpop.permute.xlu0 %5768
        %5770 = vrot.lane.b32.xlu0 %v5377, 48
        %v5771 = vpop.permute.xlu0 %5770
        %5772 = vrot.lane.b32.xlu0 %v5378, 48
        %v5773 = vpop.permute.xlu0 %5772
        %5774 = vrot.lane.b32.xlu0 %v5379, 48
        %v5775 = vpop.permute.xlu0 %5774
        %5776 = vrot.lane.b32.xlu0 %v5380, 48
        %v5777 = vpop.permute.xlu0 %5776
        %5778 = vrot.lane.b32.xlu0 %v5381, 48
        %v5779 = vpop.permute.xlu0 %5778
        %5780 = vrot.lane.b32.xlu0 %v5382, 48
        %v5781 = vpop.permute.xlu0 %5780
        %5782 = vrot.lane.b32.xlu0 %v5383, 48
        %v5783 = vpop.permute.xlu0 %5782
        %5784 = vrot.lane.b32.xlu0 %v5384, 48
        %v5785 = vpop.permute.xlu0 %5784
        %5786 = vrot.lane.b32.xlu0 %v5385, 48
        %v5787 = vpop.permute.xlu0 %5786
        %5788 = vrot.lane.b32.xlu0 %v5386, 48
        %v5789 = vpop.permute.xlu0 %5788
        %5790 = vrot.lane.b32.xlu0 %v5387, 48
        %v5791 = vpop.permute.xlu0 %5790
        %5792 = vrot.lane.b32.xlu0 %v5388, 48
        %v5793 = vpop.permute.xlu0 %5792
        %5794 = vrot.lane.b32.xlu0 %v5389, 48
        %v5795 = vpop.permute.xlu0 %5794
        %5796 = vrot.lane.b32.xlu0 %v5390, 48
        %v5797 = vpop.permute.xlu0 %5796
        %5798 = vrot.lane.b32.xlu0 %v5391, 48
        %v5799 = vpop.permute.xlu0 %5798
        %5800 = vrot.lane.b32.xlu0 %v5392, 48
        %v5801 = vpop.permute.xlu0 %5800
        %5802 = vrot.lane.b32.xlu0 %v5393, 48
        %v5803 = vpop.permute.xlu0 %5802
        %5804 = vrot.lane.b32.xlu0 %v5394, 48
        %v5805 = vpop.permute.xlu0 %5804
        %5806 = vrot.lane.b32.xlu0 %v5395, 48
        %v5807 = vpop.permute.xlu0 %5806
        %5808 = vrot.lane.b32.xlu0 %v5396, 48
        %v5809 = vpop.permute.xlu0 %5808
        %5810 = vrot.lane.b32.xlu0 %v5397, 48
        %v5811 = vpop.permute.xlu0 %5810
        %5812 = vrot.lane.b32.xlu0 %v5398, 48
        %v5813 = vpop.permute.xlu0 %5812
        %5814 = vrot.lane.b32.xlu0 %v5399, 48
        %v5815 = vpop.permute.xlu0 %5814
        %5816 = vrot.lane.b32.xlu0 %v5400, 48
        %v5817 = vpop.permute.xlu0 %5816
        %5818 = vrot.lane.b32.xlu0 %v5401, 48
        %v5819 = vpop.permute.xlu0 %5818
        %5820 = vrot.lane.b32.xlu0 %v5402, 48
        %v5821 = vpop.permute.xlu0 %5820
        %5822 = vrot.lane.b32.xlu0 %v5403, 48
        %v5823 = vpop.permute.xlu0 %5822
        %5894 = vrot.lane.b32.xlu0 %v5404, 64
        %v5895 = vpop.permute.xlu0 %5894
        %5896 = vrot.lane.b32.xlu0 %v5405, 64
        %v5897 = vpop.permute.xlu0 %5896
        %5898 = vrot.lane.b32.xlu0 %v5406, 64
        %v5899 = vpop.permute.xlu0 %5898
        %5900 = vrot.lane.b32.xlu0 %v5407, 64
        %v5901 = vpop.permute.xlu0 %5900
        %5902 = vrot.lane.b32.xlu0 %v5408, 64
        %v5903 = vpop.permute.xlu0 %5902
        %5904 = vrot.lane.b32.xlu0 %v5409, 64
        %v5905 = vpop.permute.xlu0 %5904
        %5906 = vrot.lane.b32.xlu0 %v5410, 64
        %v5907 = vpop.permute.xlu0 %5906
        %5908 = vrot.lane.b32.xlu0 %v5411, 64
        %v5909 = vpop.permute.xlu0 %5908
        %5910 = vrot.lane.b32.xlu0 %v5412, 64
        %v5911 = vpop.permute.xlu0 %5910
        %5912 = vrot.lane.b32.xlu0 %v5413, 64
        %v5913 = vpop.permute.xlu0 %5912
        %5914 = vrot.lane.b32.xlu0 %v5414, 64
        %v5915 = vpop.permute.xlu0 %5914
        %5916 = vrot.lane.b32.xlu0 %v5415, 64
        %v5917 = vpop.permute.xlu0 %5916
        %5918 = vrot.lane.b32.xlu0 %v5416, 64
        %v5919 = vpop.permute.xlu0 %5918
        %5920 = vrot.lane.b32.xlu0 %v5417, 64
        %v5921 = vpop.permute.xlu0 %5920
        %5922 = vrot.lane.b32.xlu0 %v5418, 64
        %v5923 = vpop.permute.xlu0 %5922
        %5924 = vrot.lane.b32.xlu0 %v5419, 64
        %v5925 = vpop.permute.xlu0 %5924
        %5926 = vrot.lane.b32.xlu0 %v5420, 64
        %v5927 = vpop.permute.xlu0 %5926
        %5928 = vrot.lane.b32.xlu0 %v5421, 64
        %v5929 = vpop.permute.xlu0 %5928
        %5930 = vrot.lane.b32.xlu0 %v5422, 64
        %v5931 = vpop.permute.xlu0 %5930
        %5932 = vrot.lane.b32.xlu0 %v5423, 64
        %v5933 = vpop.permute.xlu0 %5932
        %5934 = vrot.lane.b32.xlu0 %v5424, 64
        %v5935 = vpop.permute.xlu0 %5934
        %5936 = vrot.lane.b32.xlu0 %v5425, 64
        %v5937 = vpop.permute.xlu0 %5936
        %5938 = vrot.lane.b32.xlu0 %v5426, 64
        %v5939 = vpop.permute.xlu0 %5938
        %5940 = vrot.lane.b32.xlu0 %v5427, 64
        %v5941 = vpop.permute.xlu0 %5940
        %5942 = vrot.lane.b32.xlu0 %v5428, 64
        %v5943 = vpop.permute.xlu0 %5942
        %5944 = vrot.lane.b32.xlu0 %v5429, 64
        %v5945 = vpop.permute.xlu0 %5944
        %5946 = vrot.lane.b32.xlu0 %v5430, 64
        %v5947 = vpop.permute.xlu0 %5946
        %5948 = vrot.lane.b32.xlu0 %v5431, 64
        %v5949 = vpop.permute.xlu0 %5948
        %5950 = vrot.lane.b32.xlu0 %v5432, 64
        %v5951 = vpop.permute.xlu0 %5950
        %5952 = vrot.lane.b32.xlu0 %v5433, 64
        %v5953 = vpop.permute.xlu0 %5952
        %5954 = vrot.lane.b32.xlu0 %v5434, 64
        %v5955 = vpop.permute.xlu0 %5954
        %5956 = vrot.lane.b32.xlu0 %v5435, 64
        %v5957 = vpop.permute.xlu0 %5956
        %5958 = vrot.lane.b32.xlu0 %v5436, 64
        %v5959 = vpop.permute.xlu0 %5958
        %5960 = vrot.lane.b32.xlu0 %v5437, 64
        %v5961 = vpop.permute.xlu0 %5960
        %5962 = vrot.lane.b32.xlu0 %v5438, 64
        %v5963 = vpop.permute.xlu0 %5962
        %v5999 = vsel %vm1265, %v5264, %v5475
        %v6000 = vsel %vm1265, %v5265, %v5477
        %v6001 = vsel %vm1265, %v5266, %v5479
        %v6002 = vsel %vm1265, %v5267, %v5481
        %v6003 = vsel %vm1265, %v5268, %v5483
        %v6004 = vsel %vm1265, %v5269, %v5485
        %v6005 = vsel %vm1265, %v5270, %v5487
        %v6006 = vsel %vm1265, %v5271, %v5489
        %v6007 = vsel %vm1265, %v5272, %v5491
        %v6008 = vsel %vm1265, %v5273, %v5493
        %v6009 = vsel %vm1265, %v5274, %v5495
        %v6010 = vsel %vm1265, %v5275, %v5497
        %v6011 = vsel %vm1265, %v5276, %v5499
        %v6012 = vsel %vm1265, %v5277, %v5501
        %v6013 = vsel %vm1265, %v5278, %v5503
        %v6014 = vsel %vm1265, %v5279, %v5505
        %v6015 = vsel %vm1265, %v5280, %v5507
        %v6016 = vsel %vm1265, %v5281, %v5509
        %v6017 = vsel %vm1265, %v5282, %v5511
        %v6018 = vsel %vm1265, %v5283, %v5513
        %v6019 = vsel %vm1265, %v5284, %v5515
        %v6020 = vsel %vm1265, %v5285, %v5517
        %v6021 = vsel %vm1265, %v5286, %v5519
        %v6022 = vsel %vm1265, %v5287, %v5521
        %v6023 = vsel %vm1265, %v5288, %v5523
        %v6024 = vsel %vm1265, %v5289, %v5525
        %v6025 = vsel %vm1265, %v5290, %v5527
        %v6026 = vsel %vm1265, %v5291, %v5529
        %v6027 = vsel %vm1265, %v5292, %v5531
        %v6028 = vsel %vm1265, %v5293, %v5533
        %v6029 = vsel %vm1265, %v5294, %v5535
        %v6030 = vsel %vm1265, %v5295, %v5537
        %v6031 = vsel %vm1265, %v5296, %v5539
        %v6032 = vsel %vm1265, %v5297, %v5541
        %v6033 = vsel %vm1265, %v5298, %v5543
        %v6034 = vsel %vm2530, %v5999, %v5615
        %v6035 = vsel %vm2530, %v6000, %v5617
        %v6036 = vsel %vm2530, %v6001, %v5619
        %v6037 = vsel %vm2530, %v6002, %v5621
        %v6038 = vsel %vm2530, %v6003, %v5623
        %v6039 = vsel %vm2530, %v6004, %v5625
        %v6040 = vsel %vm2530, %v6005, %v5627
        %v6041 = vsel %vm2530, %v6006, %v5629
        %v6042 = vsel %vm2530, %v6007, %v5631
        %v6043 = vsel %vm2530, %v6008, %v5633
        %v6044 = vsel %vm2530, %v6009, %v5635
        %v6045 = vsel %vm2530, %v6010, %v5637
        %v6046 = vsel %vm2530, %v6011, %v5639
        %v6047 = vsel %vm2530, %v6012, %v5641
        %v6048 = vsel %vm2530, %v6013, %v5643
        %v6049 = vsel %vm2530, %v6014, %v5645
        %v6050 = vsel %vm2530, %v6015, %v5647
        %v6051 = vsel %vm2530, %v6016, %v5649
        %v6052 = vsel %vm2530, %v6017, %v5651
        %v6053 = vsel %vm2530, %v6018, %v5653
        %v6054 = vsel %vm2530, %v6019, %v5655
        %v6055 = vsel %vm2530, %v6020, %v5657
        %v6056 = vsel %vm2530, %v6021, %v5659
        %v6057 = vsel %vm2530, %v6022, %v5661
        %v6058 = vsel %vm2530, %v6023, %v5663
        %v6059 = vsel %vm2530, %v6024, %v5665
        %v6060 = vsel %vm2530, %v6025, %v5667
        %v6061 = vsel %vm2530, %v6026, %v5669
        %v6062 = vsel %vm2530, %v6027, %v5671
        %v6063 = vsel %vm2530, %v6028, %v5673
        %v6064 = vsel %vm2530, %v6029, %v5675
        %v6065 = vsel %vm2530, %v6030, %v5677
        %v6066 = vsel %vm2530, %v6031, %v5679
        %v6067 = vsel %vm2530, %v6032, %v5681
        %v6068 = vsel %vm2530, %v6033, %v5683
        %v6069 = vsel %vm2566, %v6034, %v5755
        %v6070 = vsel %vm2566, %v6035, %v5757
        %v6071 = vsel %vm2566, %v6036, %v5759
        %v6072 = vsel %vm2566, %v6037, %v5761
        %v6073 = vsel %vm2566, %v6038, %v5763
        %v6074 = vsel %vm2566, %v6039, %v5765
        %v6075 = vsel %vm2566, %v6040, %v5767
        %v6076 = vsel %vm2566, %v6041, %v5769
        %v6077 = vsel %vm2566, %v6042, %v5771
        %v6078 = vsel %vm2566, %v6043, %v5773
        %v6079 = vsel %vm2566, %v6044, %v5775
        %v6080 = vsel %vm2566, %v6045, %v5777
        %v6081 = vsel %vm2566, %v6046, %v5779
        %v6082 = vsel %vm2566, %v6047, %v5781
        %v6083 = vsel %vm2566, %v6048, %v5783
        %v6084 = vsel %vm2566, %v6049, %v5785
        %v6085 = vsel %vm2566, %v6050, %v5787
        %v6086 = vsel %vm2566, %v6051, %v5789
        %v6087 = vsel %vm2566, %v6052, %v5791
        %v6088 = vsel %vm2566, %v6053, %v5793
        %v6089 = vsel %vm2566, %v6054, %v5795
        %v6090 = vsel %vm2566, %v6055, %v5797
        %v6091 = vsel %vm2566, %v6056, %v5799
        %v6092 = vsel %vm2566, %v6057, %v5801
        %v6093 = vsel %vm2566, %v6058, %v5803
        %v6094 = vsel %vm2566, %v6059, %v5805
        %v6095 = vsel %vm2566, %v6060, %v5807
        %v6096 = vsel %vm2566, %v6061, %v5809
        %v6097 = vsel %vm2566, %v6062, %v5811
        %v6098 = vsel %vm2566, %v6063, %v5813
        %v6099 = vsel %vm2566, %v6064, %v5815
        %v6100 = vsel %vm2566, %v6065, %v5817
        %v6101 = vsel %vm2566, %v6066, %v5819
        %v6102 = vsel %vm2566, %v6067, %v5821
        %v6103 = vsel %vm2566, %v6068, %v5823
        %v6104 = vsel %vm2602, %v6069, %v5895
        %v6105 = vsel %vm2602, %v6070, %v5897
        %v6106 = vsel %vm2602, %v6071, %v5899
        %v6107 = vsel %vm2602, %v6072, %v5901
        %v6108 = vsel %vm2602, %v6073, %v5903
        %v6109 = vsel %vm2602, %v6074, %v5905
        %v6110 = vsel %vm2602, %v6075, %v5907
        %v6111 = vsel %vm2602, %v6076, %v5909
        %v6112 = vsel %vm2602, %v6077, %v5911
        %v6113 = vsel %vm2602, %v6078, %v5913
        %v6114 = vsel %vm2602, %v6079, %v5915
        %v6115 = vsel %vm2602, %v6080, %v5917
        %v6116 = vsel %vm2602, %v6081, %v5919
        %v6117 = vsel %vm2602, %v6082, %v5921
        %v6118 = vsel %vm2602, %v6083, %v5923
        %v6119 = vsel %vm2602, %v6084, %v5925
        %v6120 = vsel %vm2602, %v6085, %v5927
        %v6121 = vsel %vm2602, %v6086, %v5929
        %v6122 = vsel %vm2602, %v6087, %v5931
        %v6123 = vsel %vm2602, %v6088, %v5933
        %v6124 = vsel %vm2602, %v6089, %v5935
        %v6125 = vsel %vm2602, %v6090, %v5937
        %v6126 = vsel %vm2602, %v6091, %v5939
        %v6127 = vsel %vm2602, %v6092, %v5941
        %v6128 = vsel %vm2602, %v6093, %v5943
        %v6129 = vsel %vm2602, %v6094, %v5945
        %v6130 = vsel %vm2602, %v6095, %v5947
        %v6131 = vsel %vm2602, %v6096, %v5949
        %v6132 = vsel %vm2602, %v6097, %v5951
        %v6133 = vsel %vm2602, %v6098, %v5953
        %v6134 = vsel %vm2602, %v6099, %v5955
        %v6135 = vsel %vm2602, %v6100, %v5957
        %v6136 = vsel %vm2602, %v6101, %v5959
        %v6137 = vsel %vm2602, %v6102, %v5961
        %v6138 = vsel %vm2602, %v6103, %v5963
        %v6139 = vpack.c.bf16 %v6105, %v6104
        %v6140 = vpack.c.bf16 %v6107, %v6106
        %v6141 = vpack.c.bf16 %v6109, %v6108
        %v6142 = vpack.c.bf16 %v6111, %v6110
        %v6143 = vpack.c.bf16 %v6113, %v6112
        %v6144 = vpack.c.bf16 %v6115, %v6114
        %v6145 = vpack.c.bf16 %v6117, %v6116
        %v6146 = vpack.c.bf16 %v6119, %v6118
        %v6147 = vpack.c.bf16 %v6121, %v6120
        %v6148 = vpack.c.bf16 %v6123, %v6122
        %v6149 = vpack.c.bf16 %v6125, %v6124
        %v6150 = vpack.c.bf16 %v6127, %v6126
        %v6151 = vpack.c.bf16 %v6129, %v6128
        %v6152 = vpack.c.bf16 %v6131, %v6130
        %v6153 = vpack.c.bf16 %v6133, %v6132
        %v6154 = vpack.c.bf16 %v6135, %v6134
        %v6155 = vpack.c.bf16 %v6137, %v6136
        %v6156 = vpack.c.bf16 %v6138, %v6138
        %v6157 = vld [vmem:[%s3 + $0x78] sm:$0xf]
        %v6158 = vld [vmem:[%s3 + $0x7c] sm:$0xf]
        %v6159 = vld [vmem:[%s3 + $0x80] sm:$0xf]
        %v6160 = vld [vmem:[%s3 + $0x84] sm:$0xf]
        %v6161 = vld [vmem:[%s3 + $0x88] sm:$0xf]
        %v6162 = vld [vmem:[%s3 + $0x8c] sm:$0xf]
        %v6163 = vld [vmem:[%s3 + $0x90] sm:$0xf]
        %v6164 = vld [vmem:[%s3 + $0x94] sm:$0xf]
        %v6165 = vld [vmem:[%s3 + $0x98] sm:$0xf]
        %v6166 = vld [vmem:[%s3 + $0x9c] sm:$0xf]
        %v6177 = vunpack.c.l.b16 %v6157
        %v6178 = vunpack.c.l.b16 %v6158
        %v6179 = vunpack.c.l.b16 %v6159
        %v6180 = vunpack.c.l.b16 %v6160
        %v6181 = vunpack.c.l.b16 %v6161
        %v6182 = vunpack.c.l.b16 %v6162
        %v6183 = vunpack.c.l.b16 %v6163
        %v6184 = vunpack.c.l.b16 %v6164
        %v6185 = vunpack.c.l.b16 %v6165
        %v6186 = vunpack.c.l.b16 %v6166
        %v6187 = vpack.c.b16 %v6178, %v6177
        %v6188 = vpack.c.b16 %v6180, %v6179
        %v6189 = vpack.c.b16 %v6182, %v6181
        %v6190 = vpack.c.b16 %v6184, %v6183
        %v6191 = vpack.c.b16 %v6186, %v6185
        %v6198 = vsel %vm2696, %v6139, 0
        %v6201 = vsel %vm2696, %v6140, 0
        %v6204 = vsel %vm2696, %v6141, 0
        %v6207 = vsel %vm2696, %v6142, 0
        %v6210 = vsel %vm2696, %v6143, 0
        %v6213 = vsel %vm2696, %v6144, 0
        %v6216 = vsel %vm2696, %v6145, 0
        %v6219 = vsel %vm2696, %v6146, 0
        %v6222 = vsel %vm2696, %v6147, 0
        %v6225 = vsel %vm2696, %v6148, 0
        %v6228 = vsel %vm2696, %v6149, 0
        %v6231 = vsel %vm2696, %v6150, 0
        %v6234 = vsel %vm2696, %v6151, 0
        %v6237 = vsel %vm2696, %v6152, 0
        %v6240 = vsel %vm2696, %v6153, 0
        %v6243 = vsel %vm2696, %v6154, 0
        %v6246 = vsel %vm2696, %v6155, 0
        %v6249 = vsel %vm2696, %v6156, 0
        %6251 = vmatpush.bf16.msra.mxu0 0
        %6252 = vmatpush.bf16.msra.mxu0 0
        %6253 = vmatpush.bf16.msra.mxu0 0
        %6254 = vmatpush.bf16.msra.mxu0 %v6191
        %6255 = vmatpush.bf16.msra.mxu0 %v6190
        %6256 = vmatpush.bf16.msra.mxu0 %v6189
        %6257 = vmatpush.bf16.msra.mxu0 %v6188
        %6258 = vmatpush.bf16.msra.mxu0 %v6187
        %6259 = vmatmul.bf16.gmra.mxu0 %v6198
        %v6260 = vpop.f32.mrf.mxu0
        %v6261 = vadd.f32 0.0, %v6260
        %v6262 = vpop.f32.mrf.mxu0
        %v6263 = vadd.f32 0.0, %v6262
        %6264 = vmatmul.bf16.gmra.mxu0 %v6201
        %v6265 = vpop.f32.mrf.mxu0
        %v6266 = vadd.f32 0.0, %v6265
        %v6267 = vpop.f32.mrf.mxu0
        %v6268 = vadd.f32 0.0, %v6267
        %6269 = vmatmul.bf16.gmra.mxu0 %v6204
        %v6270 = vpop.f32.mrf.mxu0
        %v6271 = vadd.f32 0.0, %v6270
        %v6272 = vpop.f32.mrf.mxu0
        %v6273 = vadd.f32 0.0, %v6272
        %6274 = vmatmul.bf16.gmra.mxu0 %v6207
        %v6275 = vpop.f32.mrf.mxu0
        %v6276 = vadd.f32 0.0, %v6275
        %v6277 = vpop.f32.mrf.mxu0
        %v6278 = vadd.f32 0.0, %v6277
        %6279 = vmatmul.bf16.gmra.mxu0 %v6210
        %v6280 = vpop.f32.mrf.mxu0
        %v6281 = vadd.f32 0.0, %v6280
        %v6282 = vpop.f32.mrf.mxu0
        %v6283 = vadd.f32 0.0, %v6282
        %6284 = vmatmul.bf16.gmra.mxu0 %v6213
        %v6285 = vpop.f32.mrf.mxu0
        %v6286 = vadd.f32 0.0, %v6285
        %v6287 = vpop.f32.mrf.mxu0
        %v6288 = vadd.f32 0.0, %v6287
        %6289 = vmatmul.bf16.gmra.mxu0 %v6216
        %v6290 = vpop.f32.mrf.mxu0
        %v6291 = vadd.f32 0.0, %v6290
        %v6292 = vpop.f32.mrf.mxu0
        %v6293 = vadd.f32 0.0, %v6292
        %6294 = vmatmul.bf16.gmra.mxu0 %v6219
        %v6295 = vpop.f32.mrf.mxu0
        %v6296 = vadd.f32 0.0, %v6295
        %v6297 = vpop.f32.mrf.mxu0
        %v6298 = vadd.f32 0.0, %v6297
        %6299 = vmatmul.bf16.gmra.mxu0 %v6222
        %v6300 = vpop.f32.mrf.mxu0
        %v6301 = vadd.f32 0.0, %v6300
        %v6302 = vpop.f32.mrf.mxu0
        %v6303 = vadd.f32 0.0, %v6302
        %6304 = vmatmul.bf16.gmra.mxu0 %v6225
        %v6305 = vpop.f32.mrf.mxu0
        %v6306 = vadd.f32 0.0, %v6305
        %v6307 = vpop.f32.mrf.mxu0
        %v6308 = vadd.f32 0.0, %v6307
        %6309 = vmatmul.bf16.gmra.mxu0 %v6228
        %v6310 = vpop.f32.mrf.mxu0
        %v6311 = vadd.f32 0.0, %v6310
        %v6312 = vpop.f32.mrf.mxu0
        %v6313 = vadd.f32 0.0, %v6312
        %6314 = vmatmul.bf16.gmra.mxu0 %v6231
        %v6315 = vpop.f32.mrf.mxu0
        %v6316 = vadd.f32 0.0, %v6315
        %v6317 = vpop.f32.mrf.mxu0
        %v6318 = vadd.f32 0.0, %v6317
        %6319 = vmatmul.bf16.gmra.mxu0 %v6234
        %v6320 = vpop.f32.mrf.mxu0
        %v6321 = vadd.f32 0.0, %v6320
        %v6322 = vpop.f32.mrf.mxu0
        %v6323 = vadd.f32 0.0, %v6322
        %6324 = vmatmul.bf16.gmra.mxu0 %v6237
        %v6325 = vpop.f32.mrf.mxu0
        %v6326 = vadd.f32 0.0, %v6325
        %v6327 = vpop.f32.mrf.mxu0
        %v6328 = vadd.f32 0.0, %v6327
        %6329 = vmatmul.bf16.gmra.mxu0 %v6240
        %v6330 = vpop.f32.mrf.mxu0
        %v6331 = vadd.f32 0.0, %v6330
        %v6332 = vpop.f32.mrf.mxu0
        %v6333 = vadd.f32 0.0, %v6332
        %6334 = vmatmul.bf16.gmra.mxu0 %v6243
        %v6335 = vpop.f32.mrf.mxu0
        %v6336 = vadd.f32 0.0, %v6335
        %v6337 = vpop.f32.mrf.mxu0
        %v6338 = vadd.f32 0.0, %v6337
        %6339 = vmatmul.bf16.gmra.mxu0 %v6246
        %v6340 = vpop.f32.mrf.mxu0
        %v6341 = vadd.f32 0.0, %v6340
        %v6342 = vpop.f32.mrf.mxu0
        %v6343 = vadd.f32 0.0, %v6342
        %6344 = vmatmul.bf16.gmra.mxu0 %v6249
        %v6345 = vpop.f32.mrf.mxu0
        %v6346 = vadd.f32 0.0, %v6345
        %v6347 = vpop.f32.mrf.mxu0
        %6348 = vdwg.mxu0
        %v6349 = vld [vmem:[#allocation4] sm:$0xff]
        %v6350 = vld [vmem:[#allocation4 + $0x8] sm:$0xff]
        %v6351 = vld [vmem:[#allocation4 + $0x10] sm:$0xff]
        %v6352 = vld [vmem:[#allocation4 + $0x18] sm:$0xff]
        %v6353 = vld [vmem:[#allocation4 + $0x20] sm:$0xff]
        %v6354 = vld [vmem:[#allocation4 + $0x28] sm:$0xff]
        %v6355 = vld [vmem:[#allocation4 + $0x30] sm:$0xff]
        %v6356 = vld [vmem:[#allocation4 + $0x38] sm:$0xff]
        %v6357 = vld [vmem:[#allocation4 + $0x40] sm:$0xff]
        %v6358 = vld [vmem:[#allocation4 + $0x48] sm:$0xff]
        %v6359 = vld [vmem:[#allocation4 + $0x50] sm:$0xff]
        %v6360 = vld [vmem:[#allocation4 + $0x58] sm:$0xff]
        %v6361 = vld [vmem:[#allocation4 + $0x60] sm:$0xff]
        %v6362 = vld [vmem:[#allocation4 + $0x68] sm:$0xff]
        %v6363 = vld [vmem:[#allocation4 + $0x70] sm:$0xff]
        %v6364 = vld [vmem:[#allocation4 + $0x78] sm:$0xff]
        %v6365 = vld [vmem:[#allocation4 + $0x80] sm:$0xff]
        %v6366 = vld [vmem:[#allocation4 + $0x88] sm:$0xff]
        %v6367 = vld [vmem:[#allocation4 + $0x90] sm:$0xff]
        %v6368 = vld [vmem:[#allocation4 + $0x98] sm:$0xff]
        %v6369 = vld [vmem:[#allocation4 + $0xa0] sm:$0xff]
        %v6370 = vld [vmem:[#allocation4 + $0xa8] sm:$0xff]
        %v6371 = vld [vmem:[#allocation4 + $0xb0] sm:$0xff]
        %v6372 = vld [vmem:[#allocation4 + $0xb8] sm:$0xff]
        %v6373 = vld [vmem:[#allocation4 + $0xc0] sm:$0xff]
        %v6374 = vld [vmem:[#allocation4 + $0xc8] sm:$0xff]
        %v6375 = vld [vmem:[#allocation4 + $0xd0] sm:$0xff]
        %v6376 = vld [vmem:[#allocation4 + $0xd8] sm:$0xff]
        %v6377 = vld [vmem:[#allocation4 + $0xe0] sm:$0xff]
        %v6378 = vld [vmem:[#allocation4 + $0xe8] sm:$0xff]
        %v6379 = vld [vmem:[#allocation4 + $0xf0] sm:$0xff]
        %v6380 = vld [vmem:[#allocation4 + $0xf8] sm:$0xff]
        %v6381 = vld [vmem:[#allocation4 + $0x100] sm:$0xff]
        %v6382 = vld [vmem:[#allocation4 + $0x108] sm:$0xff]
        %v6383 = vld [vmem:[#allocation4 + $0x110] sm:$0xff]
        %v6384 = vadd.f32 %v6349, %v6261
        %v6385 = vadd.f32 %v6350, %v6263
        %v6386 = vadd.f32 %v6351, %v6266
        %v6387 = vadd.f32 %v6352, %v6268
        %v6388 = vadd.f32 %v6353, %v6271
        %v6389 = vadd.f32 %v6354, %v6273
        %v6390 = vadd.f32 %v6355, %v6276
        %v6391 = vadd.f32 %v6356, %v6278
        %v6392 = vadd.f32 %v6357, %v6281
        %v6393 = vadd.f32 %v6358, %v6283
        %v6394 = vadd.f32 %v6359, %v6286
        %v6395 = vadd.f32 %v6360, %v6288
        %v6396 = vadd.f32 %v6361, %v6291
        %v6397 = vadd.f32 %v6362, %v6293
        %v6398 = vadd.f32 %v6363, %v6296
        %v6399 = vadd.f32 %v6364, %v6298
        %v6400 = vadd.f32 %v6365, %v6301
        %v6401 = vadd.f32 %v6366, %v6303
        %v6402 = vadd.f32 %v6367, %v6306
        %v6403 = vadd.f32 %v6368, %v6308
        %v6404 = vadd.f32 %v6369, %v6311
        %v6405 = vadd.f32 %v6370, %v6313
        %v6406 = vadd.f32 %v6371, %v6316
        %v6407 = vadd.f32 %v6372, %v6318
        %v6408 = vadd.f32 %v6373, %v6321
        %v6409 = vadd.f32 %v6374, %v6323
        %v6410 = vadd.f32 %v6375, %v6326
        %v6411 = vadd.f32 %v6376, %v6328
        %v6412 = vadd.f32 %v6377, %v6331
        %v6413 = vadd.f32 %v6378, %v6333
        %v6414 = vadd.f32 %v6379, %v6336
        %v6415 = vadd.f32 %v6380, %v6338
        %v6416 = vadd.f32 %v6381, %v6341
        %v6417 = vadd.f32 %v6382, %v6343
        %v6418 = vadd.f32 %v6383, %v6346
        %6419 = vst.msk [vmem:[#allocation4] sm:$0xff] %vm2530, %v6384
        %6420 = vst.msk [vmem:[#allocation4 + $0x8] sm:$0xff] %vm2530, %v6385
        %6421 = vst.msk [vmem:[#allocation4 + $0x10] sm:$0xff] %vm2530, %v6386
        %6422 = vst.msk [vmem:[#allocation4 + $0x18] sm:$0xff] %vm2530, %v6387
        %6423 = vst.msk [vmem:[#allocation4 + $0x20] sm:$0xff] %vm2530, %v6388
        %6424 = vst.msk [vmem:[#allocation4 + $0x28] sm:$0xff] %vm2530, %v6389
        %6425 = vst.msk [vmem:[#allocation4 + $0x30] sm:$0xff] %vm2530, %v6390
        %6426 = vst.msk [vmem:[#allocation4 + $0x38] sm:$0xff] %vm2530, %v6391
        %6427 = vst.msk [vmem:[#allocation4 + $0x40] sm:$0xff] %vm2530, %v6392
        %6428 = vst.msk [vmem:[#allocation4 + $0x48] sm:$0xff] %vm2530, %v6393
        %6429 = vst.msk [vmem:[#allocation4 + $0x50] sm:$0xff] %vm2530, %v6394
        %6430 = vst.msk [vmem:[#allocation4 + $0x58] sm:$0xff] %vm2530, %v6395
        %6431 = vst.msk [vmem:[#allocation4 + $0x60] sm:$0xff] %vm2530, %v6396
        %6432 = vst.msk [vmem:[#allocation4 + $0x68] sm:$0xff] %vm2530, %v6397
        %6433 = vst.msk [vmem:[#allocation4 + $0x70] sm:$0xff] %vm2530, %v6398
        %6434 = vst.msk [vmem:[#allocation4 + $0x78] sm:$0xff] %vm2530, %v6399
        %6435 = vst.msk [vmem:[#allocation4 + $0x80] sm:$0xff] %vm2530, %v6400
        %6436 = vst.msk [vmem:[#allocation4 + $0x88] sm:$0xff] %vm2530, %v6401
        %6437 = vst.msk [vmem:[#allocation4 + $0x90] sm:$0xff] %vm2530, %v6402
        %6438 = vst.msk [vmem:[#allocation4 + $0x98] sm:$0xff] %vm2530, %v6403
        %6439 = vst.msk [vmem:[#allocation4 + $0xa0] sm:$0xff] %vm2530, %v6404
        %6440 = vst.msk [vmem:[#allocation4 + $0xa8] sm:$0xff] %vm2530, %v6405
        %6441 = vst.msk [vmem:[#allocation4 + $0xb0] sm:$0xff] %vm2530, %v6406
        %6442 = vst.msk [vmem:[#allocation4 + $0xb8] sm:$0xff] %vm2530, %v6407
        %6443 = vst.msk [vmem:[#allocation4 + $0xc0] sm:$0xff] %vm2530, %v6408
        %6444 = vst.msk [vmem:[#allocation4 + $0xc8] sm:$0xff] %vm2530, %v6409
        %6445 = vst.msk [vmem:[#allocation4 + $0xd0] sm:$0xff] %vm2530, %v6410
        %6446 = vst.msk [vmem:[#allocation4 + $0xd8] sm:$0xff] %vm2530, %v6411
        %6447 = vst.msk [vmem:[#allocation4 + $0xe0] sm:$0xff] %vm2530, %v6412
        %6448 = vst.msk [vmem:[#allocation4 + $0xe8] sm:$0xff] %vm2530, %v6413
        %6449 = vst.msk [vmem:[#allocation4 + $0xf0] sm:$0xff] %vm2530, %v6414
        %6450 = vst.msk [vmem:[#allocation4 + $0xf8] sm:$0xff] %vm2530, %v6415
        %6451 = vst.msk [vmem:[#allocation4 + $0x100] sm:$0xff] %vm2530, %v6416
        %6452 = vst.msk [vmem:[#allocation4 + $0x108] sm:$0xff] %vm2530, %v6417
        %6453 = vst.msk [vmem:[#allocation4 + $0x110] sm:$0xff] %vm2530, %v6418
        %v6454 = vld [vmem:[#allocation3 + $0x50] sm:$0xff]
        %v6455 = vld [vmem:[#allocation3 + $0x58] sm:$0xff]
        %v6456 = vld [vmem:[#allocation3 + $0x60] sm:$0xff]
        %v6457 = vld [vmem:[#allocation3 + $0x68] sm:$0xff]
        %v6458 = vld [vmem:[#allocation3 + $0x70] sm:$0xff]
        %v6459 = vld [vmem:[#allocation3 + $0x78] sm:$0xff]
        %v6460 = vld [vmem:[#allocation3 + $0x80] sm:$0xff]
        %v6461 = vld [vmem:[#allocation3 + $0x88] sm:$0xff]
        %v6462 = vld [vmem:[#allocation3 + $0x90] sm:$0xff]
        %v6463 = vld [vmem:[#allocation3 + $0x98] sm:$0xff]
        %v6464 = vld [vmem:[#allocation3 + $0xa0] sm:$0xff]
        %v6465 = vld [vmem:[#allocation3 + $0xa8] sm:$0xff]
        %v6466 = vld [vmem:[#allocation3 + $0xb0] sm:$0xff]
        %v6467 = vld [vmem:[#allocation3 + $0xb8] sm:$0xff]
        %v6468 = vld [vmem:[#allocation3 + $0xc0] sm:$0xff]
        %v6469 = vld [vmem:[#allocation3 + $0xc8] sm:$0xff]
        %v6470 = vld [vmem:[#allocation3 + $0xd0] sm:$0xff]
        %v6471 = vld [vmem:[#allocation3 + $0xd8] sm:$0xff]
        %v6472 = vld [vmem:[#allocation3 + $0xe0] sm:$0xff]
        %v6473 = vld [vmem:[#allocation3 + $0xe8] sm:$0xff]
        %v6474 = vld [vmem:[#allocation3 + $0xf0] sm:$0xff]
        %v6475 = vld [vmem:[#allocation3 + $0xf8] sm:$0xff]
        %v6476 = vld [vmem:[#allocation3 + $0x100] sm:$0xff]
        %v6477 = vld [vmem:[#allocation3 + $0x108] sm:$0xff]
        %v6478 = vld [vmem:[#allocation3 + $0x110] sm:$0xff]
        %v6479 = vld [vmem:[#allocation3 + $0x118] sm:$0xff]
        %v6480 = vld [vmem:[#allocation3 + $0x120] sm:$0xff]
        %v6481 = vld [vmem:[#allocation3 + $0x128] sm:$0xff]
        %v6482 = vld [vmem:[#allocation3 + $0x130] sm:$0xff]
        %v6483 = vld [vmem:[#allocation3 + $0x138] sm:$0xff]
        %v6484 = vld [vmem:[#allocation3 + $0x140] sm:$0xff]
        %v6485 = vld [vmem:[#allocation3 + $0x148] sm:$0xff]
        %v6486 = vld [vmem:[#allocation3 + $0x150] sm:$0xff]
        %v6487 = vld [vmem:[#allocation3 + $0x158] sm:$0xff]
        %v6488 = vld [vmem:[#allocation3 + $0x160] sm:$0xff]
        %v6489 = vld [vmem:[#allocation3 + $0x51] sm:$0xff]
        %v6490 = vld [vmem:[#allocation3 + $0x59] sm:$0xff]
        %v6491 = vld [vmem:[#allocation3 + $0x61] sm:$0xff]
        %v6492 = vld [vmem:[#allocation3 + $0x69] sm:$0xff]
        %v6493 = vld [vmem:[#allocation3 + $0x71] sm:$0xff]
        %v6494 = vld [vmem:[#allocation3 + $0x79] sm:$0xff]
        %v6495 = vld [vmem:[#allocation3 + $0x81] sm:$0xff]
        %v6496 = vld [vmem:[#allocation3 + $0x89] sm:$0xff]
        %v6497 = vld [vmem:[#allocation3 + $0x91] sm:$0xff]
        %v6498 = vld [vmem:[#allocation3 + $0x99] sm:$0xff]
        %v6499 = vld [vmem:[#allocation3 + $0xa1] sm:$0xff]
        %v6500 = vld [vmem:[#allocation3 + $0xa9] sm:$0xff]
        %v6501 = vld [vmem:[#allocation3 + $0xb1] sm:$0xff]
        %v6502 = vld [vmem:[#allocation3 + $0xb9] sm:$0xff]
        %v6503 = vld [vmem:[#allocation3 + $0xc1] sm:$0xff]
        %v6504 = vld [vmem:[#allocation3 + $0xc9] sm:$0xff]
        %v6505 = vld [vmem:[#allocation3 + $0xd1] sm:$0xff]
        %v6506 = vld [vmem:[#allocation3 + $0xd9] sm:$0xff]
        %v6507 = vld [vmem:[#allocation3 + $0xe1] sm:$0xff]
        %v6508 = vld [vmem:[#allocation3 + $0xe9] sm:$0xff]
        %v6509 = vld [vmem:[#allocation3 + $0xf1] sm:$0xff]
        %v6510 = vld [vmem:[#allocation3 + $0xf9] sm:$0xff]
        %v6511 = vld [vmem:[#allocation3 + $0x101] sm:$0xff]
        %v6512 = vld [vmem:[#allocation3 + $0x109] sm:$0xff]
        %v6513 = vld [vmem:[#allocation3 + $0x111] sm:$0xff]
        %v6514 = vld [vmem:[#allocation3 + $0x119] sm:$0xff]
        %v6515 = vld [vmem:[#allocation3 + $0x121] sm:$0xff]
        %v6516 = vld [vmem:[#allocation3 + $0x129] sm:$0xff]
        %v6517 = vld [vmem:[#allocation3 + $0x131] sm:$0xff]
        %v6518 = vld [vmem:[#allocation3 + $0x139] sm:$0xff]
        %v6519 = vld [vmem:[#allocation3 + $0x141] sm:$0xff]
        %v6520 = vld [vmem:[#allocation3 + $0x149] sm:$0xff]
        %v6521 = vld [vmem:[#allocation3 + $0x151] sm:$0xff]
        %v6522 = vld [vmem:[#allocation3 + $0x159] sm:$0xff]
        %v6523 = vld [vmem:[#allocation3 + $0x161] sm:$0xff]
        %v6524 = vld [vmem:[#allocation3 + $0x52] sm:$0xff]
        %v6525 = vld [vmem:[#allocation3 + $0x5a] sm:$0xff]
        %v6526 = vld [vmem:[#allocation3 + $0x62] sm:$0xff]
        %v6527 = vld [vmem:[#allocation3 + $0x6a] sm:$0xff]
        %v6528 = vld [vmem:[#allocation3 + $0x72] sm:$0xff]
        %v6529 = vld [vmem:[#allocation3 + $0x7a] sm:$0xff]
        %v6530 = vld [vmem:[#allocation3 + $0x82] sm:$0xff]
        %v6531 = vld [vmem:[#allocation3 + $0x8a] sm:$0xff]
        %v6532 = vld [vmem:[#allocation3 + $0x92] sm:$0xff]
        %v6533 = vld [vmem:[#allocation3 + $0x9a] sm:$0xff]
        %v6534 = vld [vmem:[#allocation3 + $0xa2] sm:$0xff]
        %v6535 = vld [vmem:[#allocation3 + $0xaa] sm:$0xff]
        %v6536 = vld [vmem:[#allocation3 + $0xb2] sm:$0xff]
        %v6537 = vld [vmem:[#allocation3 + $0xba] sm:$0xff]
        %v6538 = vld [vmem:[#allocation3 + $0xc2] sm:$0xff]
        %v6539 = vld [vmem:[#allocation3 + $0xca] sm:$0xff]
        %v6540 = vld [vmem:[#allocation3 + $0xd2] sm:$0xff]
        %v6541 = vld [vmem:[#allocation3 + $0xda] sm:$0xff]
        %v6542 = vld [vmem:[#allocation3 + $0xe2] sm:$0xff]
        %v6543 = vld [vmem:[#allocation3 + $0xea] sm:$0xff]
        %v6544 = vld [vmem:[#allocation3 + $0xf2] sm:$0xff]
        %v6545 = vld [vmem:[#allocation3 + $0xfa] sm:$0xff]
        %v6546 = vld [vmem:[#allocation3 + $0x102] sm:$0xff]
        %v6547 = vld [vmem:[#allocation3 + $0x10a] sm:$0xff]
        %v6548 = vld [vmem:[#allocation3 + $0x112] sm:$0xff]
        %v6549 = vld [vmem:[#allocation3 + $0x11a] sm:$0xff]
        %v6550 = vld [vmem:[#allocation3 + $0x122] sm:$0xff]
        %v6551 = vld [vmem:[#allocation3 + $0x12a] sm:$0xff]
        %v6552 = vld [vmem:[#allocation3 + $0x132] sm:$0xff]
        %v6553 = vld [vmem:[#allocation3 + $0x13a] sm:$0xff]
        %v6554 = vld [vmem:[#allocation3 + $0x142] sm:$0xff]
        %v6555 = vld [vmem:[#allocation3 + $0x14a] sm:$0xff]
        %v6556 = vld [vmem:[#allocation3 + $0x152] sm:$0xff]
        %v6557 = vld [vmem:[#allocation3 + $0x15a] sm:$0xff]
        %v6558 = vld [vmem:[#allocation3 + $0x162] sm:$0xff]
        %v6559 = vld [vmem:[#allocation3 + $0x53] sm:$0xff]
        %v6560 = vld [vmem:[#allocation3 + $0x5b] sm:$0xff]
        %v6561 = vld [vmem:[#allocation3 + $0x63] sm:$0xff]
        %v6562 = vld [vmem:[#allocation3 + $0x6b] sm:$0xff]
        %v6563 = vld [vmem:[#allocation3 + $0x73] sm:$0xff]
        %v6564 = vld [vmem:[#allocation3 + $0x7b] sm:$0xff]
        %v6565 = vld [vmem:[#allocation3 + $0x83] sm:$0xff]
        %v6566 = vld [vmem:[#allocation3 + $0x8b] sm:$0xff]
        %v6567 = vld [vmem:[#allocation3 + $0x93] sm:$0xff]
        %v6568 = vld [vmem:[#allocation3 + $0x9b] sm:$0xff]
        %v6569 = vld [vmem:[#allocation3 + $0xa3] sm:$0xff]
        %v6570 = vld [vmem:[#allocation3 + $0xab] sm:$0xff]
        %v6571 = vld [vmem:[#allocation3 + $0xb3] sm:$0xff]
        %v6572 = vld [vmem:[#allocation3 + $0xbb] sm:$0xff]
        %v6573 = vld [vmem:[#allocation3 + $0xc3] sm:$0xff]
        %v6574 = vld [vmem:[#allocation3 + $0xcb] sm:$0xff]
        %v6575 = vld [vmem:[#allocation3 + $0xd3] sm:$0xff]
        %v6576 = vld [vmem:[#allocation3 + $0xdb] sm:$0xff]
        %v6577 = vld [vmem:[#allocation3 + $0xe3] sm:$0xff]
        %v6578 = vld [vmem:[#allocation3 + $0xeb] sm:$0xff]
        %v6579 = vld [vmem:[#allocation3 + $0xf3] sm:$0xff]
        %v6580 = vld [vmem:[#allocation3 + $0xfb] sm:$0xff]
        %v6581 = vld [vmem:[#allocation3 + $0x103] sm:$0xff]
        %v6582 = vld [vmem:[#allocation3 + $0x10b] sm:$0xff]
        %v6583 = vld [vmem:[#allocation3 + $0x113] sm:$0xff]
        %v6584 = vld [vmem:[#allocation3 + $0x11b] sm:$0xff]
        %v6585 = vld [vmem:[#allocation3 + $0x123] sm:$0xff]
        %v6586 = vld [vmem:[#allocation3 + $0x12b] sm:$0xff]
        %v6587 = vld [vmem:[#allocation3 + $0x133] sm:$0xff]
        %v6588 = vld [vmem:[#allocation3 + $0x13b] sm:$0xff]
        %v6589 = vld [vmem:[#allocation3 + $0x143] sm:$0xff]
        %v6590 = vld [vmem:[#allocation3 + $0x14b] sm:$0xff]
        %v6591 = vld [vmem:[#allocation3 + $0x153] sm:$0xff]
        %v6592 = vld [vmem:[#allocation3 + $0x15b] sm:$0xff]
        %v6593 = vld [vmem:[#allocation3 + $0x163] sm:$0xff]
        %v6594 = vld [vmem:[#allocation3 + $0x54] sm:$0xff]
        %v6595 = vld [vmem:[#allocation3 + $0x5c] sm:$0xff]
        %v6596 = vld [vmem:[#allocation3 + $0x64] sm:$0xff]
        %v6597 = vld [vmem:[#allocation3 + $0x6c] sm:$0xff]
        %v6598 = vld [vmem:[#allocation3 + $0x74] sm:$0xff]
        %v6599 = vld [vmem:[#allocation3 + $0x7c] sm:$0xff]
        %v6600 = vld [vmem:[#allocation3 + $0x84] sm:$0xff]
        %v6601 = vld [vmem:[#allocation3 + $0x8c] sm:$0xff]
        %v6602 = vld [vmem:[#allocation3 + $0x94] sm:$0xff]
        %v6603 = vld [vmem:[#allocation3 + $0x9c] sm:$0xff]
        %v6604 = vld [vmem:[#allocation3 + $0xa4] sm:$0xff]
        %v6605 = vld [vmem:[#allocation3 + $0xac] sm:$0xff]
        %v6606 = vld [vmem:[#allocation3 + $0xb4] sm:$0xff]
        %v6607 = vld [vmem:[#allocation3 + $0xbc] sm:$0xff]
        %v6608 = vld [vmem:[#allocation3 + $0xc4] sm:$0xff]
        %v6609 = vld [vmem:[#allocation3 + $0xcc] sm:$0xff]
        %v6610 = vld [vmem:[#allocation3 + $0xd4] sm:$0xff]
        %v6611 = vld [vmem:[#allocation3 + $0xdc] sm:$0xff]
        %v6612 = vld [vmem:[#allocation3 + $0xe4] sm:$0xff]
        %v6613 = vld [vmem:[#allocation3 + $0xec] sm:$0xff]
        %v6614 = vld [vmem:[#allocation3 + $0xf4] sm:$0xff]
        %v6615 = vld [vmem:[#allocation3 + $0xfc] sm:$0xff]
        %v6616 = vld [vmem:[#allocation3 + $0x104] sm:$0xff]
        %v6617 = vld [vmem:[#allocation3 + $0x10c] sm:$0xff]
        %v6618 = vld [vmem:[#allocation3 + $0x114] sm:$0xff]
        %v6619 = vld [vmem:[#allocation3 + $0x11c] sm:$0xff]
        %v6620 = vld [vmem:[#allocation3 + $0x124] sm:$0xff]
        %v6621 = vld [vmem:[#allocation3 + $0x12c] sm:$0xff]
        %v6622 = vld [vmem:[#allocation3 + $0x134] sm:$0xff]
        %v6623 = vld [vmem:[#allocation3 + $0x13c] sm:$0xff]
        %v6624 = vld [vmem:[#allocation3 + $0x144] sm:$0xff]
        %v6625 = vld [vmem:[#allocation3 + $0x14c] sm:$0xff]
        %v6626 = vld [vmem:[#allocation3 + $0x154] sm:$0xff]
        %v6627 = vld [vmem:[#allocation3 + $0x15c] sm:$0xff]
        %v6628 = vld [vmem:[#allocation3 + $0x164] sm:$0xff]
        %6664 = vrot.lane.b32.xlu0 %v6489, 16
        %v6665 = vpop.permute.xlu0 %6664
        %6666 = vrot.lane.b32.xlu0 %v6490, 16
        %v6667 = vpop.permute.xlu0 %6666
        %6668 = vrot.lane.b32.xlu0 %v6491, 16
        %v6669 = vpop.permute.xlu0 %6668
        %6670 = vrot.lane.b32.xlu0 %v6492, 16
        %v6671 = vpop.permute.xlu0 %6670
        %6672 = vrot.lane.b32.xlu0 %v6493, 16
        %v6673 = vpop.permute.xlu0 %6672
        %6674 = vrot.lane.b32.xlu0 %v6494, 16
        %v6675 = vpop.permute.xlu0 %6674
        %6676 = vrot.lane.b32.xlu0 %v6495, 16
        %v6677 = vpop.permute.xlu0 %6676
        %6678 = vrot.lane.b32.xlu0 %v6496, 16
        %v6679 = vpop.permute.xlu0 %6678
        %6680 = vrot.lane.b32.xlu0 %v6497, 16
        %v6681 = vpop.permute.xlu0 %6680
        %6682 = vrot.lane.b32.xlu0 %v6498, 16
        %v6683 = vpop.permute.xlu0 %6682
        %6684 = vrot.lane.b32.xlu0 %v6499, 16
        %v6685 = vpop.permute.xlu0 %6684
        %6686 = vrot.lane.b32.xlu0 %v6500, 16
        %v6687 = vpop.permute.xlu0 %6686
        %6688 = vrot.lane.b32.xlu0 %v6501, 16
        %v6689 = vpop.permute.xlu0 %6688
        %6690 = vrot.lane.b32.xlu0 %v6502, 16
        %v6691 = vpop.permute.xlu0 %6690
        %6692 = vrot.lane.b32.xlu0 %v6503, 16
        %v6693 = vpop.permute.xlu0 %6692
        %6694 = vrot.lane.b32.xlu0 %v6504, 16
        %v6695 = vpop.permute.xlu0 %6694
        %6696 = vrot.lane.b32.xlu0 %v6505, 16
        %v6697 = vpop.permute.xlu0 %6696
        %6698 = vrot.lane.b32.xlu0 %v6506, 16
        %v6699 = vpop.permute.xlu0 %6698
        %6700 = vrot.lane.b32.xlu0 %v6507, 16
        %v6701 = vpop.permute.xlu0 %6700
        %6702 = vrot.lane.b32.xlu0 %v6508, 16
        %v6703 = vpop.permute.xlu0 %6702
        %6704 = vrot.lane.b32.xlu0 %v6509, 16
        %v6705 = vpop.permute.xlu0 %6704
        %6706 = vrot.lane.b32.xlu0 %v6510, 16
        %v6707 = vpop.permute.xlu0 %6706
        %6708 = vrot.lane.b32.xlu0 %v6511, 16
        %v6709 = vpop.permute.xlu0 %6708
        %6710 = vrot.lane.b32.xlu0 %v6512, 16
        %v6711 = vpop.permute.xlu0 %6710
        %6712 = vrot.lane.b32.xlu0 %v6513, 16
        %v6713 = vpop.permute.xlu0 %6712
        %6714 = vrot.lane.b32.xlu0 %v6514, 16
        %v6715 = vpop.permute.xlu0 %6714
        %6716 = vrot.lane.b32.xlu0 %v6515, 16
        %v6717 = vpop.permute.xlu0 %6716
        %6718 = vrot.lane.b32.xlu0 %v6516, 16
        %v6719 = vpop.permute.xlu0 %6718
        %6720 = vrot.lane.b32.xlu0 %v6517, 16
        %v6721 = vpop.permute.xlu0 %6720
        %6722 = vrot.lane.b32.xlu0 %v6518, 16
        %v6723 = vpop.permute.xlu0 %6722
        %6724 = vrot.lane.b32.xlu0 %v6519, 16
        %v6725 = vpop.permute.xlu0 %6724
        %6726 = vrot.lane.b32.xlu0 %v6520, 16
        %v6727 = vpop.permute.xlu0 %6726
        %6728 = vrot.lane.b32.xlu0 %v6521, 16
        %v6729 = vpop.permute.xlu0 %6728
        %6730 = vrot.lane.b32.xlu0 %v6522, 16
        %v6731 = vpop.permute.xlu0 %6730
        %6732 = vrot.lane.b32.xlu0 %v6523, 16
        %v6733 = vpop.permute.xlu0 %6732
        %6804 = vrot.lane.b32.xlu0 %v6524, 32
        %v6805 = vpop.permute.xlu0 %6804
        %6806 = vrot.lane.b32.xlu0 %v6525, 32
        %v6807 = vpop.permute.xlu0 %6806
        %6808 = vrot.lane.b32.xlu0 %v6526, 32
        %v6809 = vpop.permute.xlu0 %6808
        %6810 = vrot.lane.b32.xlu0 %v6527, 32
        %v6811 = vpop.permute.xlu0 %6810
        %6812 = vrot.lane.b32.xlu0 %v6528, 32
        %v6813 = vpop.permute.xlu0 %6812
        %6814 = vrot.lane.b32.xlu0 %v6529, 32
        %v6815 = vpop.permute.xlu0 %6814
        %6816 = vrot.lane.b32.xlu0 %v6530, 32
        %v6817 = vpop.permute.xlu0 %6816
        %6818 = vrot.lane.b32.xlu0 %v6531, 32
        %v6819 = vpop.permute.xlu0 %6818
        %6820 = vrot.lane.b32.xlu0 %v6532, 32
        %v6821 = vpop.permute.xlu0 %6820
        %6822 = vrot.lane.b32.xlu0 %v6533, 32
        %v6823 = vpop.permute.xlu0 %6822
        %6824 = vrot.lane.b32.xlu0 %v6534, 32
        %v6825 = vpop.permute.xlu0 %6824
        %6826 = vrot.lane.b32.xlu0 %v6535, 32
        %v6827 = vpop.permute.xlu0 %6826
        %6828 = vrot.lane.b32.xlu0 %v6536, 32
        %v6829 = vpop.permute.xlu0 %6828
        %6830 = vrot.lane.b32.xlu0 %v6537, 32
        %v6831 = vpop.permute.xlu0 %6830
        %6832 = vrot.lane.b32.xlu0 %v6538, 32
        %v6833 = vpop.permute.xlu0 %6832
        %6834 = vrot.lane.b32.xlu0 %v6539, 32
        %v6835 = vpop.permute.xlu0 %6834
        %6836 = vrot.lane.b32.xlu0 %v6540, 32
        %v6837 = vpop.permute.xlu0 %6836
        %6838 = vrot.lane.b32.xlu0 %v6541, 32
        %v6839 = vpop.permute.xlu0 %6838
        %6840 = vrot.lane.b32.xlu0 %v6542, 32
        %v6841 = vpop.permute.xlu0 %6840
        %6842 = vrot.lane.b32.xlu0 %v6543, 32
        %v6843 = vpop.permute.xlu0 %6842
        %6844 = vrot.lane.b32.xlu0 %v6544, 32
        %v6845 = vpop.permute.xlu0 %6844
        %6846 = vrot.lane.b32.xlu0 %v6545, 32
        %v6847 = vpop.permute.xlu0 %6846
        %6848 = vrot.lane.b32.xlu0 %v6546, 32
        %v6849 = vpop.permute.xlu0 %6848
        %6850 = vrot.lane.b32.xlu0 %v6547, 32
        %v6851 = vpop.permute.xlu0 %6850
        %6852 = vrot.lane.b32.xlu0 %v6548, 32
        %v6853 = vpop.permute.xlu0 %6852
        %6854 = vrot.lane.b32.xlu0 %v6549, 32
        %v6855 = vpop.permute.xlu0 %6854
        %6856 = vrot.lane.b32.xlu0 %v6550, 32
        %v6857 = vpop.permute.xlu0 %6856
        %6858 = vrot.lane.b32.xlu0 %v6551, 32
        %v6859 = vpop.permute.xlu0 %6858
        %6860 = vrot.lane.b32.xlu0 %v6552, 32
        %v6861 = vpop.permute.xlu0 %6860
        %6862 = vrot.lane.b32.xlu0 %v6553, 32
        %v6863 = vpop.permute.xlu0 %6862
        %6864 = vrot.lane.b32.xlu0 %v6554, 32
        %v6865 = vpop.permute.xlu0 %6864
        %6866 = vrot.lane.b32.xlu0 %v6555, 32
        %v6867 = vpop.permute.xlu0 %6866
        %6868 = vrot.lane.b32.xlu0 %v6556, 32
        %v6869 = vpop.permute.xlu0 %6868
        %6870 = vrot.lane.b32.xlu0 %v6557, 32
        %v6871 = vpop.permute.xlu0 %6870
        %6872 = vrot.lane.b32.xlu0 %v6558, 32
        %v6873 = vpop.permute.xlu0 %6872
        %6944 = vrot.lane.b32.xlu0 %v6559, 48
        %v6945 = vpop.permute.xlu0 %6944
        %6946 = vrot.lane.b32.xlu0 %v6560, 48
        %v6947 = vpop.permute.xlu0 %6946
        %6948 = vrot.lane.b32.xlu0 %v6561, 48
        %v6949 = vpop.permute.xlu0 %6948
        %6950 = vrot.lane.b32.xlu0 %v6562, 48
        %v6951 = vpop.permute.xlu0 %6950
        %6952 = vrot.lane.b32.xlu0 %v6563, 48
        %v6953 = vpop.permute.xlu0 %6952
        %6954 = vrot.lane.b32.xlu0 %v6564, 48
        %v6955 = vpop.permute.xlu0 %6954
        %6956 = vrot.lane.b32.xlu0 %v6565, 48
        %v6957 = vpop.permute.xlu0 %6956
        %6958 = vrot.lane.b32.xlu0 %v6566, 48
        %v6959 = vpop.permute.xlu0 %6958
        %6960 = vrot.lane.b32.xlu0 %v6567, 48
        %v6961 = vpop.permute.xlu0 %6960
        %6962 = vrot.lane.b32.xlu0 %v6568, 48
        %v6963 = vpop.permute.xlu0 %6962
        %6964 = vrot.lane.b32.xlu0 %v6569, 48
        %v6965 = vpop.permute.xlu0 %6964
        %6966 = vrot.lane.b32.xlu0 %v6570, 48
        %v6967 = vpop.permute.xlu0 %6966
        %6968 = vrot.lane.b32.xlu0 %v6571, 48
        %v6969 = vpop.permute.xlu0 %6968
        %6970 = vrot.lane.b32.xlu0 %v6572, 48
        %v6971 = vpop.permute.xlu0 %6970
        %6972 = vrot.lane.b32.xlu0 %v6573, 48
        %v6973 = vpop.permute.xlu0 %6972
        %6974 = vrot.lane.b32.xlu0 %v6574, 48
        %v6975 = vpop.permute.xlu0 %6974
        %6976 = vrot.lane.b32.xlu0 %v6575, 48
        %v6977 = vpop.permute.xlu0 %6976
        %6978 = vrot.lane.b32.xlu0 %v6576, 48
        %v6979 = vpop.permute.xlu0 %6978
        %6980 = vrot.lane.b32.xlu0 %v6577, 48
        %v6981 = vpop.permute.xlu0 %6980
        %6982 = vrot.lane.b32.xlu0 %v6578, 48
        %v6983 = vpop.permute.xlu0 %6982
        %6984 = vrot.lane.b32.xlu0 %v6579, 48
        %v6985 = vpop.permute.xlu0 %6984
        %6986 = vrot.lane.b32.xlu0 %v6580, 48
        %v6987 = vpop.permute.xlu0 %6986
        %6988 = vrot.lane.b32.xlu0 %v6581, 48
        %v6989 = vpop.permute.xlu0 %6988
        %6990 = vrot.lane.b32.xlu0 %v6582, 48
        %v6991 = vpop.permute.xlu0 %6990
        %6992 = vrot.lane.b32.xlu0 %v6583, 48
        %v6993 = vpop.permute.xlu0 %6992
        %6994 = vrot.lane.b32.xlu0 %v6584, 48
        %v6995 = vpop.permute.xlu0 %6994
        %6996 = vrot.lane.b32.xlu0 %v6585, 48
        %v6997 = vpop.permute.xlu0 %6996
        %6998 = vrot.lane.b32.xlu0 %v6586, 48
        %v6999 = vpop.permute.xlu0 %6998
        %7000 = vrot.lane.b32.xlu0 %v6587, 48
        %v7001 = vpop.permute.xlu0 %7000
        %7002 = vrot.lane.b32.xlu0 %v6588, 48
        %v7003 = vpop.permute.xlu0 %7002
        %7004 = vrot.lane.b32.xlu0 %v6589, 48
        %v7005 = vpop.permute.xlu0 %7004
        %7006 = vrot.lane.b32.xlu0 %v6590, 48
        %v7007 = vpop.permute.xlu0 %7006
        %7008 = vrot.lane.b32.xlu0 %v6591, 48
        %v7009 = vpop.permute.xlu0 %7008
        %7010 = vrot.lane.b32.xlu0 %v6592, 48
        %v7011 = vpop.permute.xlu0 %7010
        %7012 = vrot.lane.b32.xlu0 %v6593, 48
        %v7013 = vpop.permute.xlu0 %7012
        %7084 = vrot.lane.b32.xlu0 %v6594, 64
        %v7085 = vpop.permute.xlu0 %7084
        %7086 = vrot.lane.b32.xlu0 %v6595, 64
        %v7087 = vpop.permute.xlu0 %7086
        %7088 = vrot.lane.b32.xlu0 %v6596, 64
        %v7089 = vpop.permute.xlu0 %7088
        %7090 = vrot.lane.b32.xlu0 %v6597, 64
        %v7091 = vpop.permute.xlu0 %7090
        %7092 = vrot.lane.b32.xlu0 %v6598, 64
        %v7093 = vpop.permute.xlu0 %7092
        %7094 = vrot.lane.b32.xlu0 %v6599, 64
        %v7095 = vpop.permute.xlu0 %7094
        %7096 = vrot.lane.b32.xlu0 %v6600, 64
        %v7097 = vpop.permute.xlu0 %7096
        %7098 = vrot.lane.b32.xlu0 %v6601, 64
        %v7099 = vpop.permute.xlu0 %7098
        %7100 = vrot.lane.b32.xlu0 %v6602, 64
        %v7101 = vpop.permute.xlu0 %7100
        %7102 = vrot.lane.b32.xlu0 %v6603, 64
        %v7103 = vpop.permute.xlu0 %7102
        %7104 = vrot.lane.b32.xlu0 %v6604, 64
        %v7105 = vpop.permute.xlu0 %7104
        %7106 = vrot.lane.b32.xlu0 %v6605, 64
        %v7107 = vpop.permute.xlu0 %7106
        %7108 = vrot.lane.b32.xlu0 %v6606, 64
        %v7109 = vpop.permute.xlu0 %7108
        %7110 = vrot.lane.b32.xlu0 %v6607, 64
        %v7111 = vpop.permute.xlu0 %7110
        %7112 = vrot.lane.b32.xlu0 %v6608, 64
        %v7113 = vpop.permute.xlu0 %7112
        %7114 = vrot.lane.b32.xlu0 %v6609, 64
        %v7115 = vpop.permute.xlu0 %7114
        %7116 = vrot.lane.b32.xlu0 %v6610, 64
        %v7117 = vpop.permute.xlu0 %7116
        %7118 = vrot.lane.b32.xlu0 %v6611, 64
        %v7119 = vpop.permute.xlu0 %7118
        %7120 = vrot.lane.b32.xlu0 %v6612, 64
        %v7121 = vpop.permute.xlu0 %7120
        %7122 = vrot.lane.b32.xlu0 %v6613, 64
        %v7123 = vpop.permute.xlu0 %7122
        %7124 = vrot.lane.b32.xlu0 %v6614, 64
        %v7125 = vpop.permute.xlu0 %7124
        %7126 = vrot.lane.b32.xlu0 %v6615, 64
        %v7127 = vpop.permute.xlu0 %7126
        %7128 = vrot.lane.b32.xlu0 %v6616, 64
        %v7129 = vpop.permute.xlu0 %7128
        %7130 = vrot.lane.b32.xlu0 %v6617, 64
        %v7131 = vpop.permute.xlu0 %7130
        %7132 = vrot.lane.b32.xlu0 %v6618, 64
        %v7133 = vpop.permute.xlu0 %7132
        %7134 = vrot.lane.b32.xlu0 %v6619, 64
        %v7135 = vpop.permute.xlu0 %7134
        %7136 = vrot.lane.b32.xlu0 %v6620, 64
        %v7137 = vpop.permute.xlu0 %7136
        %7138 = vrot.lane.b32.xlu0 %v6621, 64
        %v7139 = vpop.permute.xlu0 %7138
        %7140 = vrot.lane.b32.xlu0 %v6622, 64
        %v7141 = vpop.permute.xlu0 %7140
        %7142 = vrot.lane.b32.xlu0 %v6623, 64
        %v7143 = vpop.permute.xlu0 %7142
        %7144 = vrot.lane.b32.xlu0 %v6624, 64
        %v7145 = vpop.permute.xlu0 %7144
        %7146 = vrot.lane.b32.xlu0 %v6625, 64
        %v7147 = vpop.permute.xlu0 %7146
        %7148 = vrot.lane.b32.xlu0 %v6626, 64
        %v7149 = vpop.permute.xlu0 %7148
        %7150 = vrot.lane.b32.xlu0 %v6627, 64
        %v7151 = vpop.permute.xlu0 %7150
        %7152 = vrot.lane.b32.xlu0 %v6628, 64
        %v7153 = vpop.permute.xlu0 %7152
        %v7189 = vsel %vm1265, %v6454, %v6665
        %v7190 = vsel %vm1265, %v6455, %v6667
        %v7191 = vsel %vm1265, %v6456, %v6669
        %v7192 = vsel %vm1265, %v6457, %v6671
        %v7193 = vsel %vm1265, %v6458, %v6673
        %v7194 = vsel %vm1265, %v6459, %v6675
        %v7195 = vsel %vm1265, %v6460, %v6677
        %v7196 = vsel %vm1265, %v6461, %v6679
        %v7197 = vsel %vm1265, %v6462, %v6681
        %v7198 = vsel %vm1265, %v6463, %v6683
        %v7199 = vsel %vm1265, %v6464, %v6685
        %v7200 = vsel %vm1265, %v6465, %v6687
        %v7201 = vsel %vm1265, %v6466, %v6689
        %v7202 = vsel %vm1265, %v6467, %v6691
        %v7203 = vsel %vm1265, %v6468, %v6693
        %v7204 = vsel %vm1265, %v6469, %v6695
        %v7205 = vsel %vm1265, %v6470, %v6697
        %v7206 = vsel %vm1265, %v6471, %v6699
        %v7207 = vsel %vm1265, %v6472, %v6701
        %v7208 = vsel %vm1265, %v6473, %v6703
        %v7209 = vsel %vm1265, %v6474, %v6705
        %v7210 = vsel %vm1265, %v6475, %v6707
        %v7211 = vsel %vm1265, %v6476, %v6709
        %v7212 = vsel %vm1265, %v6477, %v6711
        %v7213 = vsel %vm1265, %v6478, %v6713
        %v7214 = vsel %vm1265, %v6479, %v6715
        %v7215 = vsel %vm1265, %v6480, %v6717
        %v7216 = vsel %vm1265, %v6481, %v6719
        %v7217 = vsel %vm1265, %v6482, %v6721
        %v7218 = vsel %vm1265, %v6483, %v6723
        %v7219 = vsel %vm1265, %v6484, %v6725
        %v7220 = vsel %vm1265, %v6485, %v6727
        %v7221 = vsel %vm1265, %v6486, %v6729
        %v7222 = vsel %vm1265, %v6487, %v6731
        %v7223 = vsel %vm1265, %v6488, %v6733
        %v7224 = vsel %vm2530, %v7189, %v6805
        %v7225 = vsel %vm2530, %v7190, %v6807
        %v7226 = vsel %vm2530, %v7191, %v6809
        %v7227 = vsel %vm2530, %v7192, %v6811
        %v7228 = vsel %vm2530, %v7193, %v6813
        %v7229 = vsel %vm2530, %v7194, %v6815
        %v7230 = vsel %vm2530, %v7195, %v6817
        %v7231 = vsel %vm2530, %v7196, %v6819
        %v7232 = vsel %vm2530, %v7197, %v6821
        %v7233 = vsel %vm2530, %v7198, %v6823
        %v7234 = vsel %vm2530, %v7199, %v6825
        %v7235 = vsel %vm2530, %v7200, %v6827
        %v7236 = vsel %vm2530, %v7201, %v6829
        %v7237 = vsel %vm2530, %v7202, %v6831
        %v7238 = vsel %vm2530, %v7203, %v6833
        %v7239 = vsel %vm2530, %v7204, %v6835
        %v7240 = vsel %vm2530, %v7205, %v6837
        %v7241 = vsel %vm2530, %v7206, %v6839
        %v7242 = vsel %vm2530, %v7207, %v6841
        %v7243 = vsel %vm2530, %v7208, %v6843
        %v7244 = vsel %vm2530, %v7209, %v6845
        %v7245 = vsel %vm2530, %v7210, %v6847
        %v7246 = vsel %vm2530, %v7211, %v6849
        %v7247 = vsel %vm2530, %v7212, %v6851
        %v7248 = vsel %vm2530, %v7213, %v6853
        %v7249 = vsel %vm2530, %v7214, %v6855
        %v7250 = vsel %vm2530, %v7215, %v6857
        %v7251 = vsel %vm2530, %v7216, %v6859
        %v7252 = vsel %vm2530, %v7217, %v6861
        %v7253 = vsel %vm2530, %v7218, %v6863
        %v7254 = vsel %vm2530, %v7219, %v6865
        %v7255 = vsel %vm2530, %v7220, %v6867
        %v7256 = vsel %vm2530, %v7221, %v6869
        %v7257 = vsel %vm2530, %v7222, %v6871
        %v7258 = vsel %vm2530, %v7223, %v6873
        %v7259 = vsel %vm2566, %v7224, %v6945
        %v7260 = vsel %vm2566, %v7225, %v6947
        %v7261 = vsel %vm2566, %v7226, %v6949
        %v7262 = vsel %vm2566, %v7227, %v6951
        %v7263 = vsel %vm2566, %v7228, %v6953
        %v7264 = vsel %vm2566, %v7229, %v6955
        %v7265 = vsel %vm2566, %v7230, %v6957
        %v7266 = vsel %vm2566, %v7231, %v6959
        %v7267 = vsel %vm2566, %v7232, %v6961
        %v7268 = vsel %vm2566, %v7233, %v6963
        %v7269 = vsel %vm2566, %v7234, %v6965
        %v7270 = vsel %vm2566, %v7235, %v6967
        %v7271 = vsel %vm2566, %v7236, %v6969
        %v7272 = vsel %vm2566, %v7237, %v6971
        %v7273 = vsel %vm2566, %v7238, %v6973
        %v7274 = vsel %vm2566, %v7239, %v6975
        %v7275 = vsel %vm2566, %v7240, %v6977
        %v7276 = vsel %vm2566, %v7241, %v6979
        %v7277 = vsel %vm2566, %v7242, %v6981
        %v7278 = vsel %vm2566, %v7243, %v6983
        %v7279 = vsel %vm2566, %v7244, %v6985
        %v7280 = vsel %vm2566, %v7245, %v6987
        %v7281 = vsel %vm2566, %v7246, %v6989
        %v7282 = vsel %vm2566, %v7247, %v6991
        %v7283 = vsel %vm2566, %v7248, %v6993
        %v7284 = vsel %vm2566, %v7249, %v6995
        %v7285 = vsel %vm2566, %v7250, %v6997
        %v7286 = vsel %vm2566, %v7251, %v6999
        %v7287 = vsel %vm2566, %v7252, %v7001
        %v7288 = vsel %vm2566, %v7253, %v7003
        %v7289 = vsel %vm2566, %v7254, %v7005
        %v7290 = vsel %vm2566, %v7255, %v7007
        %v7291 = vsel %vm2566, %v7256, %v7009
        %v7292 = vsel %vm2566, %v7257, %v7011
        %v7293 = vsel %vm2566, %v7258, %v7013
        %v7294 = vsel %vm2602, %v7259, %v7085
        %v7295 = vsel %vm2602, %v7260, %v7087
        %v7296 = vsel %vm2602, %v7261, %v7089
        %v7297 = vsel %vm2602, %v7262, %v7091
        %v7298 = vsel %vm2602, %v7263, %v7093
        %v7299 = vsel %vm2602, %v7264, %v7095
        %v7300 = vsel %vm2602, %v7265, %v7097
        %v7301 = vsel %vm2602, %v7266, %v7099
        %v7302 = vsel %vm2602, %v7267, %v7101
        %v7303 = vsel %vm2602, %v7268, %v7103
        %v7304 = vsel %vm2602, %v7269, %v7105
        %v7305 = vsel %vm2602, %v7270, %v7107
        %v7306 = vsel %vm2602, %v7271, %v7109
        %v7307 = vsel %vm2602, %v7272, %v7111
        %v7308 = vsel %vm2602, %v7273, %v7113
        %v7309 = vsel %vm2602, %v7274, %v7115
        %v7310 = vsel %vm2602, %v7275, %v7117
        %v7311 = vsel %vm2602, %v7276, %v7119
        %v7312 = vsel %vm2602, %v7277, %v7121
        %v7313 = vsel %vm2602, %v7278, %v7123
        %v7314 = vsel %vm2602, %v7279, %v7125
        %v7315 = vsel %vm2602, %v7280, %v7127
        %v7316 = vsel %vm2602, %v7281, %v7129
        %v7317 = vsel %vm2602, %v7282, %v7131
        %v7318 = vsel %vm2602, %v7283, %v7133
        %v7319 = vsel %vm2602, %v7284, %v7135
        %v7320 = vsel %vm2602, %v7285, %v7137
        %v7321 = vsel %vm2602, %v7286, %v7139
        %v7322 = vsel %vm2602, %v7287, %v7141
        %v7323 = vsel %vm2602, %v7288, %v7143
        %v7324 = vsel %vm2602, %v7289, %v7145
        %v7325 = vsel %vm2602, %v7290, %v7147
        %v7326 = vsel %vm2602, %v7291, %v7149
        %v7327 = vsel %vm2602, %v7292, %v7151
        %v7328 = vsel %vm2602, %v7293, %v7153
        %v7329 = vpack.c.bf16 %v7295, %v7294
        %v7330 = vpack.c.bf16 %v7297, %v7296
        %v7331 = vpack.c.bf16 %v7299, %v7298
        %v7332 = vpack.c.bf16 %v7301, %v7300
        %v7333 = vpack.c.bf16 %v7303, %v7302
        %v7334 = vpack.c.bf16 %v7305, %v7304
        %v7335 = vpack.c.bf16 %v7307, %v7306
        %v7336 = vpack.c.bf16 %v7309, %v7308
        %v7337 = vpack.c.bf16 %v7311, %v7310
        %v7338 = vpack.c.bf16 %v7313, %v7312
        %v7339 = vpack.c.bf16 %v7315, %v7314
        %v7340 = vpack.c.bf16 %v7317, %v7316
        %v7341 = vpack.c.bf16 %v7319, %v7318
        %v7342 = vpack.c.bf16 %v7321, %v7320
        %v7343 = vpack.c.bf16 %v7323, %v7322
        %v7344 = vpack.c.bf16 %v7325, %v7324
        %v7345 = vpack.c.bf16 %v7327, %v7326
        %v7346 = vpack.c.bf16 %v7328, %v7328
        %v7347 = vld [vmem:[%s3 + $0xa0] sm:$0xf]
        %v7348 = vld [vmem:[%s3 + $0xa4] sm:$0xf]
        %v7349 = vld [vmem:[%s3 + $0xa8] sm:$0xf]
        %v7350 = vld [vmem:[%s3 + $0xac] sm:$0xf]
        %v7351 = vld [vmem:[%s3 + $0xb0] sm:$0xf]
        %v7352 = vld [vmem:[%s3 + $0xb4] sm:$0xf]
        %v7353 = vld [vmem:[%s3 + $0xb8] sm:$0xf]
        %v7354 = vld [vmem:[%s3 + $0xbc] sm:$0xf]
        %v7355 = vld [vmem:[%s3 + $0xc0] sm:$0xf]
        %v7356 = vld [vmem:[%s3 + $0xc4] sm:$0xf]
        %v7367 = vunpack.c.l.b16 %v7347
        %v7368 = vunpack.c.l.b16 %v7348
        %v7369 = vunpack.c.l.b16 %v7349
        %v7370 = vunpack.c.l.b16 %v7350
        %v7371 = vunpack.c.l.b16 %v7351
        %v7372 = vunpack.c.l.b16 %v7352
        %v7373 = vunpack.c.l.b16 %v7353
        %v7374 = vunpack.c.l.b16 %v7354
        %v7375 = vunpack.c.l.b16 %v7355
        %v7376 = vunpack.c.l.b16 %v7356
        %v7377 = vpack.c.b16 %v7368, %v7367
        %v7378 = vpack.c.b16 %v7370, %v7369
        %v7379 = vpack.c.b16 %v7372, %v7371
        %v7380 = vpack.c.b16 %v7374, %v7373
        %v7381 = vpack.c.b16 %v7376, %v7375
        %v7388 = vsel %vm2696, %v7329, 0
        %v7391 = vsel %vm2696, %v7330, 0
        %v7394 = vsel %vm2696, %v7331, 0
        %v7397 = vsel %vm2696, %v7332, 0
        %v7400 = vsel %vm2696, %v7333, 0
        %v7403 = vsel %vm2696, %v7334, 0
        %v7406 = vsel %vm2696, %v7335, 0
        %v7409 = vsel %vm2696, %v7336, 0
        %v7412 = vsel %vm2696, %v7337, 0
        %v7415 = vsel %vm2696, %v7338, 0
        %v7418 = vsel %vm2696, %v7339, 0
        %v7421 = vsel %vm2696, %v7340, 0
        %v7424 = vsel %vm2696, %v7341, 0
        %v7427 = vsel %vm2696, %v7342, 0
        %v7430 = vsel %vm2696, %v7343, 0
        %v7433 = vsel %vm2696, %v7344, 0
        %v7436 = vsel %vm2696, %v7345, 0
        %v7439 = vsel %vm2696, %v7346, 0
        %7441 = vmatpush.bf16.msra.mxu0 0
        %7442 = vmatpush.bf16.msra.mxu0 0
        %7443 = vmatpush.bf16.msra.mxu0 0
        %7444 = vmatpush.bf16.msra.mxu0 %v7381
        %7445 = vmatpush.bf16.msra.mxu0 %v7380
        %7446 = vmatpush.bf16.msra.mxu0 %v7379
        %7447 = vmatpush.bf16.msra.mxu0 %v7378
        %7448 = vmatpush.bf16.msra.mxu0 %v7377
        %7449 = vmatmul.bf16.gmra.mxu0 %v7388
        %v7450 = vpop.f32.mrf.mxu0
        %v7451 = vadd.f32 0.0, %v7450
        %v7452 = vpop.f32.mrf.mxu0
        %v7453 = vadd.f32 0.0, %v7452
        %7454 = vmatmul.bf16.gmra.mxu0 %v7391
        %v7455 = vpop.f32.mrf.mxu0
        %v7456 = vadd.f32 0.0, %v7455
        %v7457 = vpop.f32.mrf.mxu0
        %v7458 = vadd.f32 0.0, %v7457
        %7459 = vmatmul.bf16.gmra.mxu0 %v7394
        %v7460 = vpop.f32.mrf.mxu0
        %v7461 = vadd.f32 0.0, %v7460
        %v7462 = vpop.f32.mrf.mxu0
        %v7463 = vadd.f32 0.0, %v7462
        %7464 = vmatmul.bf16.gmra.mxu0 %v7397
        %v7465 = vpop.f32.mrf.mxu0
        %v7466 = vadd.f32 0.0, %v7465
        %v7467 = vpop.f32.mrf.mxu0
        %v7468 = vadd.f32 0.0, %v7467
        %7469 = vmatmul.bf16.gmra.mxu0 %v7400
        %v7470 = vpop.f32.mrf.mxu0
        %v7471 = vadd.f32 0.0, %v7470
        %v7472 = vpop.f32.mrf.mxu0
        %v7473 = vadd.f32 0.0, %v7472
        %7474 = vmatmul.bf16.gmra.mxu0 %v7403
        %v7475 = vpop.f32.mrf.mxu0
        %v7476 = vadd.f32 0.0, %v7475
        %v7477 = vpop.f32.mrf.mxu0
        %v7478 = vadd.f32 0.0, %v7477
        %7479 = vmatmul.bf16.gmra.mxu0 %v7406
        %v7480 = vpop.f32.mrf.mxu0
        %v7481 = vadd.f32 0.0, %v7480
        %v7482 = vpop.f32.mrf.mxu0
        %v7483 = vadd.f32 0.0, %v7482
        %7484 = vmatmul.bf16.gmra.mxu0 %v7409
        %v7485 = vpop.f32.mrf.mxu0
        %v7486 = vadd.f32 0.0, %v7485
        %v7487 = vpop.f32.mrf.mxu0
        %v7488 = vadd.f32 0.0, %v7487
        %7489 = vmatmul.bf16.gmra.mxu0 %v7412
        %v7490 = vpop.f32.mrf.mxu0
        %v7491 = vadd.f32 0.0, %v7490
        %v7492 = vpop.f32.mrf.mxu0
        %v7493 = vadd.f32 0.0, %v7492
        %7494 = vmatmul.bf16.gmra.mxu0 %v7415
        %v7495 = vpop.f32.mrf.mxu0
        %v7496 = vadd.f32 0.0, %v7495
        %v7497 = vpop.f32.mrf.mxu0
        %v7498 = vadd.f32 0.0, %v7497
        %7499 = vmatmul.bf16.gmra.mxu0 %v7418
        %v7500 = vpop.f32.mrf.mxu0
        %v7501 = vadd.f32 0.0, %v7500
        %v7502 = vpop.f32.mrf.mxu0
        %v7503 = vadd.f32 0.0, %v7502
        %7504 = vmatmul.bf16.gmra.mxu0 %v7421
        %v7505 = vpop.f32.mrf.mxu0
        %v7506 = vadd.f32 0.0, %v7505
        %v7507 = vpop.f32.mrf.mxu0
        %v7508 = vadd.f32 0.0, %v7507
        %7509 = vmatmul.bf16.gmra.mxu0 %v7424
        %v7510 = vpop.f32.mrf.mxu0
        %v7511 = vadd.f32 0.0, %v7510
        %v7512 = vpop.f32.mrf.mxu0
        %v7513 = vadd.f32 0.0, %v7512
        %7514 = vmatmul.bf16.gmra.mxu0 %v7427
        %v7515 = vpop.f32.mrf.mxu0
        %v7516 = vadd.f32 0.0, %v7515
        %v7517 = vpop.f32.mrf.mxu0
        %v7518 = vadd.f32 0.0, %v7517
        %7519 = vmatmul.bf16.gmra.mxu0 %v7430
        %v7520 = vpop.f32.mrf.mxu0
        %v7521 = vadd.f32 0.0, %v7520
        %v7522 = vpop.f32.mrf.mxu0
        %v7523 = vadd.f32 0.0, %v7522
        %7524 = vmatmul.bf16.gmra.mxu0 %v7433
        %v7525 = vpop.f32.mrf.mxu0
        %v7526 = vadd.f32 0.0, %v7525
        %v7527 = vpop.f32.mrf.mxu0
        %v7528 = vadd.f32 0.0, %v7527
        %7529 = vmatmul.bf16.gmra.mxu0 %v7436
        %v7530 = vpop.f32.mrf.mxu0
        %v7531 = vadd.f32 0.0, %v7530
        %v7532 = vpop.f32.mrf.mxu0
        %v7533 = vadd.f32 0.0, %v7532
        %7534 = vmatmul.bf16.gmra.mxu0 %v7439
        %v7535 = vpop.f32.mrf.mxu0
        %v7536 = vadd.f32 0.0, %v7535
        %v7537 = vpop.f32.mrf.mxu0
        %7538 = vdwg.mxu0
        %v7539 = vld [vmem:[#allocation4] sm:$0xff]
        %v7540 = vld [vmem:[#allocation4 + $0x8] sm:$0xff]
        %v7541 = vld [vmem:[#allocation4 + $0x10] sm:$0xff]
        %v7542 = vld [vmem:[#allocation4 + $0x18] sm:$0xff]
        %v7543 = vld [vmem:[#allocation4 + $0x20] sm:$0xff]
        %v7544 = vld [vmem:[#allocation4 + $0x28] sm:$0xff]
        %v7545 = vld [vmem:[#allocation4 + $0x30] sm:$0xff]
        %v7546 = vld [vmem:[#allocation4 + $0x38] sm:$0xff]
        %v7547 = vld [vmem:[#allocation4 + $0x40] sm:$0xff]
        %v7548 = vld [vmem:[#allocation4 + $0x48] sm:$0xff]
        %v7549 = vld [vmem:[#allocation4 + $0x50] sm:$0xff]
        %v7550 = vld [vmem:[#allocation4 + $0x58] sm:$0xff]
        %v7551 = vld [vmem:[#allocation4 + $0x60] sm:$0xff]
        %v7552 = vld [vmem:[#allocation4 + $0x68] sm:$0xff]
        %v7553 = vld [vmem:[#allocation4 + $0x70] sm:$0xff]
        %v7554 = vld [vmem:[#allocation4 + $0x78] sm:$0xff]
        %v7555 = vld [vmem:[#allocation4 + $0x80] sm:$0xff]
        %v7556 = vld [vmem:[#allocation4 + $0x88] sm:$0xff]
        %v7557 = vld [vmem:[#allocation4 + $0x90] sm:$0xff]
        %v7558 = vld [vmem:[#allocation4 + $0x98] sm:$0xff]
        %v7559 = vld [vmem:[#allocation4 + $0xa0] sm:$0xff]
        %v7560 = vld [vmem:[#allocation4 + $0xa8] sm:$0xff]
        %v7561 = vld [vmem:[#allocation4 + $0xb0] sm:$0xff]
        %v7562 = vld [vmem:[#allocation4 + $0xb8] sm:$0xff]
        %v7563 = vld [vmem:[#allocation4 + $0xc0] sm:$0xff]
        %v7564 = vld [vmem:[#allocation4 + $0xc8] sm:$0xff]
        %v7565 = vld [vmem:[#allocation4 + $0xd0] sm:$0xff]
        %v7566 = vld [vmem:[#allocation4 + $0xd8] sm:$0xff]
        %v7567 = vld [vmem:[#allocation4 + $0xe0] sm:$0xff]
        %v7568 = vld [vmem:[#allocation4 + $0xe8] sm:$0xff]
        %v7569 = vld [vmem:[#allocation4 + $0xf0] sm:$0xff]
        %v7570 = vld [vmem:[#allocation4 + $0xf8] sm:$0xff]
        %v7571 = vld [vmem:[#allocation4 + $0x100] sm:$0xff]
        %v7572 = vld [vmem:[#allocation4 + $0x108] sm:$0xff]
        %v7573 = vld [vmem:[#allocation4 + $0x110] sm:$0xff]
        %v7574 = vadd.f32 %v7539, %v7451
        %v7575 = vadd.f32 %v7540, %v7453
        %v7576 = vadd.f32 %v7541, %v7456
        %v7577 = vadd.f32 %v7542, %v7458
        %v7578 = vadd.f32 %v7543, %v7461
        %v7579 = vadd.f32 %v7544, %v7463
        %v7580 = vadd.f32 %v7545, %v7466
        %v7581 = vadd.f32 %v7546, %v7468
        %v7582 = vadd.f32 %v7547, %v7471
        %v7583 = vadd.f32 %v7548, %v7473
        %v7584 = vadd.f32 %v7549, %v7476
        %v7585 = vadd.f32 %v7550, %v7478
        %v7586 = vadd.f32 %v7551, %v7481
        %v7587 = vadd.f32 %v7552, %v7483
        %v7588 = vadd.f32 %v7553, %v7486
        %v7589 = vadd.f32 %v7554, %v7488
        %v7590 = vadd.f32 %v7555, %v7491
        %v7591 = vadd.f32 %v7556, %v7493
        %v7592 = vadd.f32 %v7557, %v7496
        %v7593 = vadd.f32 %v7558, %v7498
        %v7594 = vadd.f32 %v7559, %v7501
        %v7595 = vadd.f32 %v7560, %v7503
        %v7596 = vadd.f32 %v7561, %v7506
        %v7597 = vadd.f32 %v7562, %v7508
        %v7598 = vadd.f32 %v7563, %v7511
        %v7599 = vadd.f32 %v7564, %v7513
        %v7600 = vadd.f32 %v7565, %v7516
        %v7601 = vadd.f32 %v7566, %v7518
        %v7602 = vadd.f32 %v7567, %v7521
        %v7603 = vadd.f32 %v7568, %v7523
        %v7604 = vadd.f32 %v7569, %v7526
        %v7605 = vadd.f32 %v7570, %v7528
        %v7606 = vadd.f32 %v7571, %v7531
        %v7607 = vadd.f32 %v7572, %v7533
        %v7608 = vadd.f32 %v7573, %v7536
        %v7609 = vld [vmem:[%s4] sm:$0x1]
        %v7611 = vperm.slane %v7609, 0
        %v7613 = vadd.f32 %v7574, %v7611
        %v7614 = vadd.f32 %v7575, %v7611
        %v7615 = vadd.f32 %v7576, %v7611
        %v7616 = vadd.f32 %v7577, %v7611
        %v7617 = vadd.f32 %v7578, %v7611
        %v7618 = vadd.f32 %v7579, %v7611
        %v7619 = vadd.f32 %v7580, %v7611
        %v7620 = vadd.f32 %v7581, %v7611
        %v7621 = vadd.f32 %v7582, %v7611
        %v7622 = vadd.f32 %v7583, %v7611
        %v7623 = vadd.f32 %v7584, %v7611
        %v7624 = vadd.f32 %v7585, %v7611
        %v7625 = vadd.f32 %v7586, %v7611
        %v7626 = vadd.f32 %v7587, %v7611
        %v7627 = vadd.f32 %v7588, %v7611
        %v7628 = vadd.f32 %v7589, %v7611
        %v7629 = vadd.f32 %v7590, %v7611
        %v7630 = vadd.f32 %v7591, %v7611
        %v7631 = vadd.f32 %v7592, %v7611
        %v7632 = vadd.f32 %v7593, %v7611
        %v7633 = vadd.f32 %v7594, %v7611
        %v7634 = vadd.f32 %v7595, %v7611
        %v7635 = vadd.f32 %v7596, %v7611
        %v7636 = vadd.f32 %v7597, %v7611
        %v7637 = vadd.f32 %v7598, %v7611
        %v7638 = vadd.f32 %v7599, %v7611
        %v7639 = vadd.f32 %v7600, %v7611
        %v7640 = vadd.f32 %v7601, %v7611
        %v7641 = vadd.f32 %v7602, %v7611
        %v7642 = vadd.f32 %v7603, %v7611
        %v7643 = vadd.f32 %v7604, %v7611
        %v7644 = vadd.f32 %v7605, %v7611
        %v7645 = vadd.f32 %v7606, %v7611
        %v7646 = vadd.f32 %v7607, %v7611
        %v7647 = vadd.f32 %v7608, %v7611
        %v7648 = vmax.f32 %v7613, 0.0
        %v7649 = vmax.f32 %v7614, 0.0
        %v7650 = vmax.f32 %v7615, 0.0
        %v7651 = vmax.f32 %v7616, 0.0
        %v7652 = vmax.f32 %v7617, 0.0
        %v7653 = vmax.f32 %v7618, 0.0
        %v7654 = vmax.f32 %v7619, 0.0
        %v7655 = vmax.f32 %v7620, 0.0
        %v7656 = vmax.f32 %v7621, 0.0
        %v7657 = vmax.f32 %v7622, 0.0
        %v7658 = vmax.f32 %v7623, 0.0
        %v7659 = vmax.f32 %v7624, 0.0
        %v7660 = vmax.f32 %v7625, 0.0
        %v7661 = vmax.f32 %v7626, 0.0
        %v7662 = vmax.f32 %v7627, 0.0
        %v7663 = vmax.f32 %v7628, 0.0
        %v7664 = vmax.f32 %v7629, 0.0
        %v7665 = vmax.f32 %v7630, 0.0
        %v7666 = vmax.f32 %v7631, 0.0
        %v7667 = vmax.f32 %v7632, 0.0
        %v7668 = vmax.f32 %v7633, 0.0
        %v7669 = vmax.f32 %v7634, 0.0
        %v7670 = vmax.f32 %v7635, 0.0
        %v7671 = vmax.f32 %v7636, 0.0
        %v7672 = vmax.f32 %v7637, 0.0
        %v7673 = vmax.f32 %v7638, 0.0
        %v7674 = vmax.f32 %v7639, 0.0
        %v7675 = vmax.f32 %v7640, 0.0
        %v7676 = vmax.f32 %v7641, 0.0
        %v7677 = vmax.f32 %v7642, 0.0
        %v7678 = vmax.f32 %v7643, 0.0
        %v7679 = vmax.f32 %v7644, 0.0
        %v7680 = vmax.f32 %v7645, 0.0
        %v7681 = vmax.f32 %v7646, 0.0
        %v7682 = vmax.f32 %v7647, 0.0
        %7683 = vst.msk [vmem:[#allocation4] sm:$0xff] %vm2530, %v7648
        %7684 = vst.msk [vmem:[#allocation4 + $0x8] sm:$0xff] %vm2530, %v7649
        %7685 = vst.msk [vmem:[#allocation4 + $0x10] sm:$0xff] %vm2530, %v7650
        %7686 = vst.msk [vmem:[#allocation4 + $0x18] sm:$0xff] %vm2530, %v7651
        %7687 = vst.msk [vmem:[#allocation4 + $0x20] sm:$0xff] %vm2530, %v7652
        %7688 = vst.msk [vmem:[#allocation4 + $0x28] sm:$0xff] %vm2530, %v7653
        %7689 = vst.msk [vmem:[#allocation4 + $0x30] sm:$0xff] %vm2530, %v7654
        %7690 = vst.msk [vmem:[#allocation4 + $0x38] sm:$0xff] %vm2530, %v7655
        %7691 = vst.msk [vmem:[#allocation4 + $0x40] sm:$0xff] %vm2530, %v7656
        %7692 = vst.msk [vmem:[#allocation4 + $0x48] sm:$0xff] %vm2530, %v7657
        %7693 = vst.msk [vmem:[#allocation4 + $0x50] sm:$0xff] %vm2530, %v7658
        %7694 = vst.msk [vmem:[#allocation4 + $0x58] sm:$0xff] %vm2530, %v7659
        %7695 = vst.msk [vmem:[#allocation4 + $0x60] sm:$0xff] %vm2530, %v7660
        %7696 = vst.msk [vmem:[#allocation4 + $0x68] sm:$0xff] %vm2530, %v7661
        %7697 = vst.msk [vmem:[#allocation4 + $0x70] sm:$0xff] %vm2530, %v7662
        %7698 = vst.msk [vmem:[#allocation4 + $0x78] sm:$0xff] %vm2530, %v7663
        %7699 = vst.msk [vmem:[#allocation4 + $0x80] sm:$0xff] %vm2530, %v7664
        %7700 = vst.msk [vmem:[#allocation4 + $0x88] sm:$0xff] %vm2530, %v7665
        %7701 = vst.msk [vmem:[#allocation4 + $0x90] sm:$0xff] %vm2530, %v7666
        %7702 = vst.msk [vmem:[#allocation4 + $0x98] sm:$0xff] %vm2530, %v7667
        %7703 = vst.msk [vmem:[#allocation4 + $0xa0] sm:$0xff] %vm2530, %v7668
        %7704 = vst.msk [vmem:[#allocation4 + $0xa8] sm:$0xff] %vm2530, %v7669
        %7705 = vst.msk [vmem:[#allocation4 + $0xb0] sm:$0xff] %vm2530, %v7670
        %7706 = vst.msk [vmem:[#allocation4 + $0xb8] sm:$0xff] %vm2530, %v7671
        %7707 = vst.msk [vmem:[#allocation4 + $0xc0] sm:$0xff] %vm2530, %v7672
        %7708 = vst.msk [vmem:[#allocation4 + $0xc8] sm:$0xff] %vm2530, %v7673
        %7709 = vst.msk [vmem:[#allocation4 + $0xd0] sm:$0xff] %vm2530, %v7674
        %7710 = vst.msk [vmem:[#allocation4 + $0xd8] sm:$0xff] %vm2530, %v7675
        %7711 = vst.msk [vmem:[#allocation4 + $0xe0] sm:$0xff] %vm2530, %v7676
        %7712 = vst.msk [vmem:[#allocation4 + $0xe8] sm:$0xff] %vm2530, %v7677
        %7713 = vst.msk [vmem:[#allocation4 + $0xf0] sm:$0xff] %vm2530, %v7678
        %7714 = vst.msk [vmem:[#allocation4 + $0xf8] sm:$0xff] %vm2530, %v7679
        %7715 = vst.msk [vmem:[#allocation4 + $0x100] sm:$0xff] %vm2530, %v7680
        %7716 = vst.msk [vmem:[#allocation4 + $0x108] sm:$0xff] %vm2530, %v7681
        %7717 = vst.msk [vmem:[#allocation4 + $0x110] sm:$0xff] %vm2530, %v7682
        %v7718 = vld [vmem:[#allocation4] ss:$2 sm:$0x7f]
        %s7719 = scalar_lea.vmem [#allocation4], 1
        %v7720 = vld [vmem:[%s7719] ss:$2 sm:$0x7f]
        %s7721 = scalar_lea.vmem [#allocation4], 20
        %v7722 = vld [vmem:[%s7721] ss:$2 sm:$0x7f]
        %s7723 = scalar_lea.vmem [#allocation4], 21
        %v7724 = vld [vmem:[%s7723] ss:$2 sm:$0x7f]
        %v7725 = vmax.f32 %v7718, %v7720
        %v7726 = vmax.f32 %v7722, %v7724
        %v7727 = vmax.f32 %v7725, %v7726
        %v7728 = vld [vmem:[%s5] sm:$0xff]
        %v7729 = vld [vmem:[%s5 + $0x8] sm:$0xff]
        %v7730 = vld [vmem:[%s5 + $0x10] sm:$0xff]
        %v7731 = vld [vmem:[%s5 + $0x18] sm:$0xff]
        %v7732 = vld [vmem:[%s5 + $0x20] sm:$0xff]
        %v7733 = vld [vmem:[%s5 + $0x28] sm:$0xff]
        %v7734 = vld [vmem:[%s5 + $0x30] sm:$0xff]
        %v7735 = vld [vmem:[%s5 + $0x38] sm:$0xff]
        %v7737 = vrot.slane %v7727, 1
        %v7738 = vsel %vm2530, %v7737, 0
        %7740 = vmatpush.msra.mxu0 0.0
        %7741 = vmatpush.msra.mxu0 0.0
        %7742 = vmatpush.msra.mxu0 0.0
        %7743 = vmatpush.msra.mxu0 0.0
        %7744 = vmatpush.msra.mxu0 0.0
        %7745 = vmatpush.msra.mxu0 0.0
        %7746 = vmatpush.msra.mxu0 0.0
        %7747 = vmatpush.msra.mxu0 0.0
        %7748 = vmatpush.msra.mxu0 0.0
        %7749 = vmatpush.msra.mxu0 0.0
        %7750 = vmatpush.msra.mxu0 0.0
        %7751 = vmatpush.msra.mxu0 0.0
        %7752 = vmatpush.msra.mxu0 %v7735
        %7753 = vmatpush.msra.mxu0 %v7734
        %7754 = vmatpush.msra.mxu0 %v7733
        %7755 = vmatpush.msra.mxu0 %v7732
        %7756 = vmatmul.f32.gmra.mxu0 %v7738
        %v7757 = vpop.f32.mrf.mxu0
        %v7758 = vadd.f32 0.0, %v7757
        %7759 = vdwg.mxu0
        %v7760 = vsel %vm2530, %v7727, 0
        %7762 = vmatpush.msra.mxu0 0.0
        %7763 = vmatpush.msra.mxu0 0.0
        %7764 = vmatpush.msra.mxu0 0.0
        %7765 = vmatpush.msra.mxu0 0.0
        %7766 = vmatpush.msra.mxu0 0.0
        %7767 = vmatpush.msra.mxu0 0.0
        %7768 = vmatpush.msra.mxu0 0.0
        %7769 = vmatpush.msra.mxu0 0.0
        %7770 = vmatpush.msra.mxu0 0.0
        %7771 = vmatpush.msra.mxu0 0.0
        %7772 = vmatpush.msra.mxu0 0.0
        %7773 = vmatpush.msra.mxu0 0.0
        %7774 = vmatpush.msra.mxu0 %v7731
        %7775 = vmatpush.msra.mxu0 %v7730
        %7776 = vmatpush.msra.mxu0 %v7729
        %7777 = vmatpush.msra.mxu0 %v7728
        %7778 = vmatmul.f32.gmra.mxu0 %v7760
        %v7779 = vpop.f32.mrf.mxu0
        %v7780 = vadd.f32 %v7758, %v7779
        %7781 = vdwg.mxu0
        %v7782 = vld [vmem:[%s5 + $0x40] sm:$0xff]
        %v7783 = vld [vmem:[%s5 + $0x48] sm:$0xff]
        %v7784 = vld [vmem:[%s5 + $0x50] sm:$0xff]
        %v7785 = vld [vmem:[%s5 + $0x58] sm:$0xff]
        %v7786 = vrot.slane %v7727, 2
        %v7787 = vsel %vm2530, %v7786, 0
        %7789 = vmatpush.msra.mxu0 0.0
        %7790 = vmatpush.msra.mxu0 0.0
        %7791 = vmatpush.msra.mxu0 0.0
        %7792 = vmatpush.msra.mxu0 0.0
        %7793 = vmatpush.msra.mxu0 0.0
        %7794 = vmatpush.msra.mxu0 0.0
        %7795 = vmatpush.msra.mxu0 0.0
        %7796 = vmatpush.msra.mxu0 0.0
        %7797 = vmatpush.msra.mxu0 0.0
        %7798 = vmatpush.msra.mxu0 0.0
        %7799 = vmatpush.msra.mxu0 0.0
        %7800 = vmatpush.msra.mxu0 0.0
        %7801 = vmatpush.msra.mxu0 %v7785
        %7802 = vmatpush.msra.mxu0 %v7784
        %7803 = vmatpush.msra.mxu0 %v7783
        %7804 = vmatpush.msra.mxu0 %v7782
        %7805 = vmatmul.f32.gmra.mxu0 %v7787
        %v7806 = vpop.f32.mrf.mxu0
        %v7807 = vadd.f32 0.0, %v7806
        %7808 = vdwg.mxu0
        %v7809 = vadd.f32 %v7780, %v7807
        %v7810 = vld [vmem:[%s5 + $0x60] sm:$0xff]
        %v7811 = vld [vmem:[%s5 + $0x68] sm:$0xff]
        %v7812 = vld [vmem:[%s5 + $0x70] sm:$0xff]
        %v7813 = vld [vmem:[%s5 + $0x78] sm:$0xff]
        %v7814 = vrot.slane %v7727, 3
        %v7815 = vsel %vm2530, %v7814, 0
        %7817 = vmatpush.msra.mxu0 0.0
        %7818 = vmatpush.msra.mxu0 0.0
        %7819 = vmatpush.msra.mxu0 0.0
        %7820 = vmatpush.msra.mxu0 0.0
        %7821 = vmatpush.msra.mxu0 0.0
        %7822 = vmatpush.msra.mxu0 0.0
        %7823 = vmatpush.msra.mxu0 0.0
        %7824 = vmatpush.msra.mxu0 0.0
        %7825 = vmatpush.msra.mxu0 0.0
        %7826 = vmatpush.msra.mxu0 0.0
        %7827 = vmatpush.msra.mxu0 0.0
        %7828 = vmatpush.msra.mxu0 0.0
        %7829 = vmatpush.msra.mxu0 %v7813
        %7830 = vmatpush.msra.mxu0 %v7812
        %7831 = vmatpush.msra.mxu0 %v7811
        %7832 = vmatpush.msra.mxu0 %v7810
        %7833 = vmatmul.f32.gmra.mxu0 %v7815
        %v7834 = vpop.f32.mrf.mxu0
        %v7835 = vadd.f32 0.0, %v7834
        %7836 = vdwg.mxu0
        %v7837 = vadd.f32 %v7809, %v7835
        %v7838 = vld [vmem:[%s5 + $0x80] sm:$0xff]
        %v7839 = vld [vmem:[%s5 + $0x88] sm:$0xff]
        %v7840 = vld [vmem:[%s5 + $0x90] sm:$0xff]
        %v7841 = vld [vmem:[%s5 + $0x98] sm:$0xff]
        %v7842 = vrot.slane %v7727, 4
        %v7843 = vsel %vm2530, %v7842, 0
        %7845 = vmatpush.msra.mxu0 0.0
        %7846 = vmatpush.msra.mxu0 0.0
        %7847 = vmatpush.msra.mxu0 0.0
        %7848 = vmatpush.msra.mxu0 0.0
        %7849 = vmatpush.msra.mxu0 0.0
        %7850 = vmatpush.msra.mxu0 0.0
        %7851 = vmatpush.msra.mxu0 0.0
        %7852 = vmatpush.msra.mxu0 0.0
        %7853 = vmatpush.msra.mxu0 0.0
        %7854 = vmatpush.msra.mxu0 0.0
        %7855 = vmatpush.msra.mxu0 0.0
        %7856 = vmatpush.msra.mxu0 0.0
        %7857 = vmatpush.msra.mxu0 %v7841
        %7858 = vmatpush.msra.mxu0 %v7840
        %7859 = vmatpush.msra.mxu0 %v7839
        %7860 = vmatpush.msra.mxu0 %v7838
        %7861 = vmatmul.f32.gmra.mxu0 %v7843
        %v7862 = vpop.f32.mrf.mxu0
        %v7863 = vadd.f32 0.0, %v7862
        %7864 = vdwg.mxu0
        %v7865 = vadd.f32 %v7837, %v7863
        %v7866 = vld [vmem:[%s5 + $0xa0] sm:$0xff]
        %v7867 = vld [vmem:[%s5 + $0xa8] sm:$0xff]
        %v7868 = vld [vmem:[%s5 + $0xb0] sm:$0xff]
        %v7869 = vld [vmem:[%s5 + $0xb8] sm:$0xff]
        %v7870 = vrot.slane %v7727, 5
        %v7871 = vsel %vm2530, %v7870, 0
        %7873 = vmatpush.msra.mxu0 0.0
        %7874 = vmatpush.msra.mxu0 0.0
        %7875 = vmatpush.msra.mxu0 0.0
        %7876 = vmatpush.msra.mxu0 0.0
        %7877 = vmatpush.msra.mxu0 0.0
        %7878 = vmatpush.msra.mxu0 0.0
        %7879 = vmatpush.msra.mxu0 0.0
        %7880 = vmatpush.msra.mxu0 0.0
        %7881 = vmatpush.msra.mxu0 0.0
        %7882 = vmatpush.msra.mxu0 0.0
        %7883 = vmatpush.msra.mxu0 0.0
        %7884 = vmatpush.msra.mxu0 0.0
        %7885 = vmatpush.msra.mxu0 %v7869
        %7886 = vmatpush.msra.mxu0 %v7868
        %7887 = vmatpush.msra.mxu0 %v7867
        %7888 = vmatpush.msra.mxu0 %v7866
        %7889 = vmatmul.f32.gmra.mxu0 %v7871
        %v7890 = vpop.f32.mrf.mxu0
        %v7891 = vadd.f32 0.0, %v7890
        %7892 = vdwg.mxu0
        %v7893 = vadd.f32 %v7865, %v7891
        %v7894 = vld [vmem:[%s5 + $0xc0] sm:$0xff]
        %v7895 = vld [vmem:[%s5 + $0xc8] sm:$0xff]
        %v7896 = vld [vmem:[%s5 + $0xd0] sm:$0xff]
        %v7897 = vld [vmem:[%s5 + $0xd8] sm:$0xff]
        %v7898 = vrot.slane %v7727, 6
        %v7899 = vsel %vm2530, %v7898, 0
        %7901 = vmatpush.msra.mxu0 0.0
        %7902 = vmatpush.msra.mxu0 0.0
        %7903 = vmatpush.msra.mxu0 0.0
        %7904 = vmatpush.msra.mxu0 0.0
        %7905 = vmatpush.msra.mxu0 0.0
        %7906 = vmatpush.msra.mxu0 0.0
        %7907 = vmatpush.msra.mxu0 0.0
        %7908 = vmatpush.msra.mxu0 0.0
        %7909 = vmatpush.msra.mxu0 0.0
        %7910 = vmatpush.msra.mxu0 0.0
        %7911 = vmatpush.msra.mxu0 0.0
        %7912 = vmatpush.msra.mxu0 0.0
        %7913 = vmatpush.msra.mxu0 %v7897
        %7914 = vmatpush.msra.mxu0 %v7896
        %7915 = vmatpush.msra.mxu0 %v7895
        %7916 = vmatpush.msra.mxu0 %v7894
        %7917 = vmatmul.f32.gmra.mxu0 %v7899
        %v7918 = vpop.f32.mrf.mxu0
        %v7919 = vadd.f32 0.0, %v7918
        %7920 = vdwg.mxu0
        %v7921 = vadd.f32 %v7893, %v7919
        %s7922 = scalar_lea.vmem [#allocation4], 40
        %v7923 = vld [vmem:[%s7922] ss:$2 sm:$0x7f]
        %s7924 = scalar_lea.vmem [#allocation4], 41
        %v7925 = vld [vmem:[%s7924] ss:$2 sm:$0x7f]
        %s7926 = scalar_lea.vmem [#allocation4], 60
        %v7927 = vld [vmem:[%s7926] ss:$2 sm:$0x7f]
        %s7928 = scalar_lea.vmem [#allocation4], 61
        %v7929 = vld [vmem:[%s7928] ss:$2 sm:$0x7f]
        %v7930 = vmax.f32 %v7923, %v7925
        %v7931 = vmax.f32 %v7927, %v7929
        %v7932 = vmax.f32 %v7930, %v7931
        %v7933 = vld [vmem:[%s5 + $0xe0] sm:$0xff]
        %v7934 = vld [vmem:[%s5 + $0xe8] sm:$0xff]
        %v7935 = vld [vmem:[%s5 + $0xf0] sm:$0xff]
        %v7936 = vld [vmem:[%s5 + $0xf8] sm:$0xff]
        %v7938 = vsel %vm2530, %v7932, 0
        %7940 = vmatpush.msra.mxu0 0.0
        %7941 = vmatpush.msra.mxu0 0.0
        %7942 = vmatpush.msra.mxu0 0.0
        %7943 = vmatpush.msra.mxu0 0.0
        %7944 = vmatpush.msra.mxu0 0.0
        %7945 = vmatpush.msra.mxu0 0.0
        %7946 = vmatpush.msra.mxu0 0.0
        %7947 = vmatpush.msra.mxu0 0.0
        %7948 = vmatpush.msra.mxu0 0.0
        %7949 = vmatpush.msra.mxu0 0.0
        %7950 = vmatpush.msra.mxu0 0.0
        %7951 = vmatpush.msra.mxu0 0.0
        %7952 = vmatpush.msra.mxu0 %v7936
        %7953 = vmatpush.msra.mxu0 %v7935
        %7954 = vmatpush.msra.mxu0 %v7934
        %7955 = vmatpush.msra.mxu0 %v7933
        %7956 = vmatmul.f32.gmra.mxu0 %v7938
        %v7957 = vpop.f32.mrf.mxu0
        %v7958 = vadd.f32 0.0, %v7957
        %7959 = vdwg.mxu0
        %v7960 = vadd.f32 %v7921, %v7958
        %v7961 = vld [vmem:[%s5 + $0x100] sm:$0xff]
        %v7962 = vld [vmem:[%s5 + $0x108] sm:$0xff]
        %v7963 = vld [vmem:[%s5 + $0x110] sm:$0xff]
        %v7964 = vld [vmem:[%s5 + $0x118] sm:$0xff]
        %v7965 = vrot.slane %v7932, 1
        %v7966 = vsel %vm2530, %v7965, 0
        %7968 = vmatpush.msra.mxu0 0.0
        %7969 = vmatpush.msra.mxu0 0.0
        %7970 = vmatpush.msra.mxu0 0.0
        %7971 = vmatpush.msra.mxu0 0.0
        %7972 = vmatpush.msra.mxu0 0.0
        %7973 = vmatpush.msra.mxu0 0.0
        %7974 = vmatpush.msra.mxu0 0.0
        %7975 = vmatpush.msra.mxu0 0.0
        %7976 = vmatpush.msra.mxu0 0.0
        %7977 = vmatpush.msra.mxu0 0.0
        %7978 = vmatpush.msra.mxu0 0.0
        %7979 = vmatpush.msra.mxu0 0.0
        %7980 = vmatpush.msra.mxu0 %v7964
        %7981 = vmatpush.msra.mxu0 %v7963
        %7982 = vmatpush.msra.mxu0 %v7962
        %7983 = vmatpush.msra.mxu0 %v7961
        %7984 = vmatmul.f32.gmra.mxu0 %v7966
        %v7985 = vpop.f32.mrf.mxu0
        %v7986 = vadd.f32 0.0, %v7985
        %7987 = vdwg.mxu0
        %v7988 = vadd.f32 %v7960, %v7986
        %v7989 = vld [vmem:[%s5 + $0x120] sm:$0xff]
        %v7990 = vld [vmem:[%s5 + $0x128] sm:$0xff]
        %v7991 = vld [vmem:[%s5 + $0x130] sm:$0xff]
        %v7992 = vld [vmem:[%s5 + $0x138] sm:$0xff]
        %v7993 = vrot.slane %v7932, 2
        %v7994 = vsel %vm2530, %v7993, 0
        %7996 = vmatpush.msra.mxu0 0.0
        %7997 = vmatpush.msra.mxu0 0.0
        %7998 = vmatpush.msra.mxu0 0.0
        %7999 = vmatpush.msra.mxu0 0.0
        %8000 = vmatpush.msra.mxu0 0.0
        %8001 = vmatpush.msra.mxu0 0.0
        %8002 = vmatpush.msra.mxu0 0.0
        %8003 = vmatpush.msra.mxu0 0.0
        %8004 = vmatpush.msra.mxu0 0.0
        %8005 = vmatpush.msra.mxu0 0.0
        %8006 = vmatpush.msra.mxu0 0.0
        %8007 = vmatpush.msra.mxu0 0.0
        %8008 = vmatpush.msra.mxu0 %v7992
        %8009 = vmatpush.msra.mxu0 %v7991
        %8010 = vmatpush.msra.mxu0 %v7990
        %8011 = vmatpush.msra.mxu0 %v7989
        %8012 = vmatmul.f32.gmra.mxu0 %v7994
        %v8013 = vpop.f32.mrf.mxu0
        %v8014 = vadd.f32 0.0, %v8013
        %8015 = vdwg.mxu0
        %v8016 = vadd.f32 %v7988, %v8014
        %v8017 = vld [vmem:[%s5 + $0x140] sm:$0xff]
        %v8018 = vld [vmem:[%s5 + $0x148] sm:$0xff]
        %v8019 = vld [vmem:[%s5 + $0x150] sm:$0xff]
        %v8020 = vld [vmem:[%s5 + $0x158] sm:$0xff]
        %v8021 = vrot.slane %v7932, 3
        %v8022 = vsel %vm2530, %v8021, 0
        %8024 = vmatpush.msra.mxu0 0.0
        %8025 = vmatpush.msra.mxu0 0.0
        %8026 = vmatpush.msra.mxu0 0.0
        %8027 = vmatpush.msra.mxu0 0.0
        %8028 = vmatpush.msra.mxu0 0.0
        %8029 = vmatpush.msra.mxu0 0.0
        %8030 = vmatpush.msra.mxu0 0.0
        %8031 = vmatpush.msra.mxu0 0.0
        %8032 = vmatpush.msra.mxu0 0.0
        %8033 = vmatpush.msra.mxu0 0.0
        %8034 = vmatpush.msra.mxu0 0.0
        %8035 = vmatpush.msra.mxu0 0.0
        %8036 = vmatpush.msra.mxu0 %v8020
        %8037 = vmatpush.msra.mxu0 %v8019
        %8038 = vmatpush.msra.mxu0 %v8018
        %8039 = vmatpush.msra.mxu0 %v8017
        %8040 = vmatmul.f32.gmra.mxu0 %v8022
        %v8041 = vpop.f32.mrf.mxu0
        %v8042 = vadd.f32 0.0, %v8041
        %8043 = vdwg.mxu0
        %v8044 = vadd.f32 %v8016, %v8042
        %v8045 = vld [vmem:[%s5 + $0x160] sm:$0xff]
        %v8046 = vld [vmem:[%s5 + $0x168] sm:$0xff]
        %v8047 = vld [vmem:[%s5 + $0x170] sm:$0xff]
        %v8048 = vld [vmem:[%s5 + $0x178] sm:$0xff]
        %v8049 = vrot.slane %v7932, 4
        %v8050 = vsel %vm2530, %v8049, 0
        %8052 = vmatpush.msra.mxu0 0.0
        %8053 = vmatpush.msra.mxu0 0.0
        %8054 = vmatpush.msra.mxu0 0.0
        %8055 = vmatpush.msra.mxu0 0.0
        %8056 = vmatpush.msra.mxu0 0.0
        %8057 = vmatpush.msra.mxu0 0.0
        %8058 = vmatpush.msra.mxu0 0.0
        %8059 = vmatpush.msra.mxu0 0.0
        %8060 = vmatpush.msra.mxu0 0.0
        %8061 = vmatpush.msra.mxu0 0.0
        %8062 = vmatpush.msra.mxu0 0.0
        %8063 = vmatpush.msra.mxu0 0.0
        %8064 = vmatpush.msra.mxu0 %v8048
        %8065 = vmatpush.msra.mxu0 %v8047
        %8066 = vmatpush.msra.mxu0 %v8046
        %8067 = vmatpush.msra.mxu0 %v8045
        %8068 = vmatmul.f32.gmra.mxu0 %v8050
        %v8069 = vpop.f32.mrf.mxu0
        %v8070 = vadd.f32 0.0, %v8069
        %8071 = vdwg.mxu0
        %v8072 = vadd.f32 %v8044, %v8070
        %v8073 = vld [vmem:[%s5 + $0x180] sm:$0xff]
        %v8074 = vld [vmem:[%s5 + $0x188] sm:$0xff]
        %v8075 = vld [vmem:[%s5 + $0x190] sm:$0xff]
        %v8076 = vld [vmem:[%s5 + $0x198] sm:$0xff]
        %v8077 = vrot.slane %v7932, 5
        %v8078 = vsel %vm2530, %v8077, 0
        %8080 = vmatpush.msra.mxu0 0.0
        %8081 = vmatpush.msra.mxu0 0.0
        %8082 = vmatpush.msra.mxu0 0.0
        %8083 = vmatpush.msra.mxu0 0.0
        %8084 = vmatpush.msra.mxu0 0.0
        %8085 = vmatpush.msra.mxu0 0.0
        %8086 = vmatpush.msra.mxu0 0.0
        %8087 = vmatpush.msra.mxu0 0.0
        %8088 = vmatpush.msra.mxu0 0.0
        %8089 = vmatpush.msra.mxu0 0.0
        %8090 = vmatpush.msra.mxu0 0.0
        %8091 = vmatpush.msra.mxu0 0.0
        %8092 = vmatpush.msra.mxu0 %v8076
        %8093 = vmatpush.msra.mxu0 %v8075
        %8094 = vmatpush.msra.mxu0 %v8074
        %8095 = vmatpush.msra.mxu0 %v8073
        %8096 = vmatmul.f32.gmra.mxu0 %v8078
        %v8097 = vpop.f32.mrf.mxu0
        %v8098 = vadd.f32 0.0, %v8097
        %8099 = vdwg.mxu0
        %v8100 = vadd.f32 %v8072, %v8098
        %v8101 = vld [vmem:[%s5 + $0x1a0] sm:$0xff]
        %v8102 = vld [vmem:[%s5 + $0x1a8] sm:$0xff]
        %v8103 = vld [vmem:[%s5 + $0x1b0] sm:$0xff]
        %v8104 = vld [vmem:[%s5 + $0x1b8] sm:$0xff]
        %v8105 = vrot.slane %v7932, 6
        %v8106 = vsel %vm2530, %v8105, 0
        %8108 = vmatpush.msra.mxu0 0.0
        %8109 = vmatpush.msra.mxu0 0.0
        %8110 = vmatpush.msra.mxu0 0.0
        %8111 = vmatpush.msra.mxu0 0.0
        %8112 = vmatpush.msra.mxu0 0.0
        %8113 = vmatpush.msra.mxu0 0.0
        %8114 = vmatpush.msra.mxu0 0.0
        %8115 = vmatpush.msra.mxu0 0.0
        %8116 = vmatpush.msra.mxu0 0.0
        %8117 = vmatpush.msra.mxu0 0.0
        %8118 = vmatpush.msra.mxu0 0.0
        %8119 = vmatpush.msra.mxu0 0.0
        %8120 = vmatpush.msra.mxu0 %v8104
        %8121 = vmatpush.msra.mxu0 %v8103
        %8122 = vmatpush.msra.mxu0 %v8102
        %8123 = vmatpush.msra.mxu0 %v8101
        %8124 = vmatmul.f32.gmra.mxu0 %v8106
        %v8125 = vpop.f32.mrf.mxu0
        %v8126 = vadd.f32 0.0, %v8125
        %8127 = vdwg.mxu0
        %v8128 = vadd.f32 %v8100, %v8126
        %s8129 = scalar_lea.vmem [#allocation4], 80
        %v8130 = vld [vmem:[%s8129] ss:$2 sm:$0x7f]
        %s8131 = scalar_lea.vmem [#allocation4], 81
        %v8132 = vld [vmem:[%s8131] ss:$2 sm:$0x7f]
        %s8133 = scalar_lea.vmem [#allocation4], 100
        %v8134 = vld [vmem:[%s8133] ss:$2 sm:$0x7f]
        %s8135 = scalar_lea.vmem [#allocation4], 101
        %v8136 = vld [vmem:[%s8135] ss:$2 sm:$0x7f]
        %v8137 = vmax.f32 %v8130, %v8132
        %v8138 = vmax.f32 %v8134, %v8136
        %v8139 = vmax.f32 %v8137, %v8138
        %v8140 = vld [vmem:[%s5 + $0x1c0] sm:$0xff]
        %v8141 = vld [vmem:[%s5 + $0x1c8] sm:$0xff]
        %v8142 = vld [vmem:[%s5 + $0x1d0] sm:$0xff]
        %v8143 = vld [vmem:[%s5 + $0x1d8] sm:$0xff]
        %v8145 = vsel %vm2530, %v8139, 0
        %8147 = vmatpush.msra.mxu0 0.0
        %8148 = vmatpush.msra.mxu0 0.0
        %8149 = vmatpush.msra.mxu0 0.0
        %8150 = vmatpush.msra.mxu0 0.0
        %8151 = vmatpush.msra.mxu0 0.0
        %8152 = vmatpush.msra.mxu0 0.0
        %8153 = vmatpush.msra.mxu0 0.0
        %8154 = vmatpush.msra.mxu0 0.0
        %8155 = vmatpush.msra.mxu0 0.0
        %8156 = vmatpush.msra.mxu0 0.0
        %8157 = vmatpush.msra.mxu0 0.0
        %8158 = vmatpush.msra.mxu0 0.0
        %8159 = vmatpush.msra.mxu0 %v8143
        %8160 = vmatpush.msra.mxu0 %v8142
        %8161 = vmatpush.msra.mxu0 %v8141
        %8162 = vmatpush.msra.mxu0 %v8140
        %8163 = vmatmul.f32.gmra.mxu0 %v8145
        %v8164 = vpop.f32.mrf.mxu0
        %v8165 = vadd.f32 0.0, %v8164
        %8166 = vdwg.mxu0
        %v8167 = vadd.f32 %v8128, %v8165
        %v8168 = vld [vmem:[%s5 + $0x1e0] sm:$0xff]
        %v8169 = vld [vmem:[%s5 + $0x1e8] sm:$0xff]
        %v8170 = vld [vmem:[%s5 + $0x1f0] sm:$0xff]
        %v8171 = vld [vmem:[%s5 + $0x1f8] sm:$0xff]
        %v8172 = vrot.slane %v8139, 1
        %v8173 = vsel %vm2530, %v8172, 0
        %8175 = vmatpush.msra.mxu0 0.0
        %8176 = vmatpush.msra.mxu0 0.0
        %8177 = vmatpush.msra.mxu0 0.0
        %8178 = vmatpush.msra.mxu0 0.0
        %8179 = vmatpush.msra.mxu0 0.0
        %8180 = vmatpush.msra.mxu0 0.0
        %8181 = vmatpush.msra.mxu0 0.0
        %8182 = vmatpush.msra.mxu0 0.0
        %8183 = vmatpush.msra.mxu0 0.0
        %8184 = vmatpush.msra.mxu0 0.0
        %8185 = vmatpush.msra.mxu0 0.0
        %8186 = vmatpush.msra.mxu0 0.0
        %8187 = vmatpush.msra.mxu0 %v8171
        %8188 = vmatpush.msra.mxu0 %v8170
        %8189 = vmatpush.msra.mxu0 %v8169
        %8190 = vmatpush.msra.mxu0 %v8168
        %8191 = vmatmul.f32.gmra.mxu0 %v8173
        %v8192 = vpop.f32.mrf.mxu0
        %v8193 = vadd.f32 0.0, %v8192
        %8194 = vdwg.mxu0
        %v8195 = vadd.f32 %v8167, %v8193
        %v8196 = vld [vmem:[%s5 + $0x200] sm:$0xff]
        %v8197 = vld [vmem:[%s5 + $0x208] sm:$0xff]
        %v8198 = vld [vmem:[%s5 + $0x210] sm:$0xff]
        %v8199 = vld [vmem:[%s5 + $0x218] sm:$0xff]
        %v8200 = vrot.slane %v8139, 2
        %v8201 = vsel %vm2530, %v8200, 0
        %8203 = vmatpush.msra.mxu0 0.0
        %8204 = vmatpush.msra.mxu0 0.0
        %8205 = vmatpush.msra.mxu0 0.0
        %8206 = vmatpush.msra.mxu0 0.0
        %8207 = vmatpush.msra.mxu0 0.0
        %8208 = vmatpush.msra.mxu0 0.0
        %8209 = vmatpush.msra.mxu0 0.0
        %8210 = vmatpush.msra.mxu0 0.0
        %8211 = vmatpush.msra.mxu0 0.0
        %8212 = vmatpush.msra.mxu0 0.0
        %8213 = vmatpush.msra.mxu0 0.0
        %8214 = vmatpush.msra.mxu0 0.0
        %8215 = vmatpush.msra.mxu0 %v8199
        %8216 = vmatpush.msra.mxu0 %v8198
        %8217 = vmatpush.msra.mxu0 %v8197
        %8218 = vmatpush.msra.mxu0 %v8196
        %8219 = vmatmul.f32.gmra.mxu0 %v8201
        %v8220 = vpop.f32.mrf.mxu0
        %v8221 = vadd.f32 0.0, %v8220
        %8222 = vdwg.mxu0
        %v8223 = vadd.f32 %v8195, %v8221
        %v8224 = vld [vmem:[%s5 + $0x220] sm:$0xff]
        %v8225 = vld [vmem:[%s5 + $0x228] sm:$0xff]
        %v8226 = vld [vmem:[%s5 + $0x230] sm:$0xff]
        %v8227 = vld [vmem:[%s5 + $0x238] sm:$0xff]
        %v8228 = vrot.slane %v8139, 3
        %v8229 = vsel %vm2530, %v8228, 0
        %8231 = vmatpush.msra.mxu0 0.0
        %8232 = vmatpush.msra.mxu0 0.0
        %8233 = vmatpush.msra.mxu0 0.0
        %8234 = vmatpush.msra.mxu0 0.0
        %8235 = vmatpush.msra.mxu0 0.0
        %8236 = vmatpush.msra.mxu0 0.0
        %8237 = vmatpush.msra.mxu0 0.0
        %8238 = vmatpush.msra.mxu0 0.0
        %8239 = vmatpush.msra.mxu0 0.0
        %8240 = vmatpush.msra.mxu0 0.0
        %8241 = vmatpush.msra.mxu0 0.0
        %8242 = vmatpush.msra.mxu0 0.0
        %8243 = vmatpush.msra.mxu0 %v8227
        %8244 = vmatpush.msra.mxu0 %v8226
        %8245 = vmatpush.msra.mxu0 %v8225
        %8246 = vmatpush.msra.mxu0 %v8224
        %8247 = vmatmul.f32.gmra.mxu0 %v8229
        %v8248 = vpop.f32.mrf.mxu0
        %v8249 = vadd.f32 0.0, %v8248
        %8250 = vdwg.mxu0
        %v8251 = vadd.f32 %v8223, %v8249
        %v8252 = vld [vmem:[%s5 + $0x240] sm:$0xff]
        %v8253 = vld [vmem:[%s5 + $0x248] sm:$0xff]
        %v8254 = vld [vmem:[%s5 + $0x250] sm:$0xff]
        %v8255 = vld [vmem:[%s5 + $0x258] sm:$0xff]
        %v8256 = vrot.slane %v8139, 4
        %v8257 = vsel %vm2530, %v8256, 0
        %8259 = vmatpush.msra.mxu0 0.0
        %8260 = vmatpush.msra.mxu0 0.0
        %8261 = vmatpush.msra.mxu0 0.0
        %8262 = vmatpush.msra.mxu0 0.0
        %8263 = vmatpush.msra.mxu0 0.0
        %8264 = vmatpush.msra.mxu0 0.0
        %8265 = vmatpush.msra.mxu0 0.0
        %8266 = vmatpush.msra.mxu0 0.0
        %8267 = vmatpush.msra.mxu0 0.0
        %8268 = vmatpush.msra.mxu0 0.0
        %8269 = vmatpush.msra.mxu0 0.0
        %8270 = vmatpush.msra.mxu0 0.0
        %8271 = vmatpush.msra.mxu0 %v8255
        %8272 = vmatpush.msra.mxu0 %v8254
        %8273 = vmatpush.msra.mxu0 %v8253
        %8274 = vmatpush.msra.mxu0 %v8252
        %8275 = vmatmul.f32.gmra.mxu0 %v8257
        %v8276 = vpop.f32.mrf.mxu0
        %v8277 = vadd.f32 0.0, %v8276
        %8278 = vdwg.mxu0
        %v8279 = vadd.f32 %v8251, %v8277
        %v8280 = vld [vmem:[%s5 + $0x260] sm:$0xff]
        %v8281 = vld [vmem:[%s5 + $0x268] sm:$0xff]
        %v8282 = vld [vmem:[%s5 + $0x270] sm:$0xff]
        %v8283 = vld [vmem:[%s5 + $0x278] sm:$0xff]
        %v8284 = vrot.slane %v8139, 5
        %v8285 = vsel %vm2530, %v8284, 0
        %8287 = vmatpush.msra.mxu0 0.0
        %8288 = vmatpush.msra.mxu0 0.0
        %8289 = vmatpush.msra.mxu0 0.0
        %8290 = vmatpush.msra.mxu0 0.0
        %8291 = vmatpush.msra.mxu0 0.0
        %8292 = vmatpush.msra.mxu0 0.0
        %8293 = vmatpush.msra.mxu0 0.0
        %8294 = vmatpush.msra.mxu0 0.0
        %8295 = vmatpush.msra.mxu0 0.0
        %8296 = vmatpush.msra.mxu0 0.0
        %8297 = vmatpush.msra.mxu0 0.0
        %8298 = vmatpush.msra.mxu0 0.0
        %8299 = vmatpush.msra.mxu0 %v8283
        %8300 = vmatpush.msra.mxu0 %v8282
        %8301 = vmatpush.msra.mxu0 %v8281
        %8302 = vmatpush.msra.mxu0 %v8280
        %8303 = vmatmul.f32.gmra.mxu0 %v8285
        %v8304 = vpop.f32.mrf.mxu0
        %v8305 = vadd.f32 0.0, %v8304
        %8306 = vdwg.mxu0
        %v8307 = vadd.f32 %v8279, %v8305
        %v8308 = vld [vmem:[%s5 + $0x280] sm:$0xff]
        %v8309 = vld [vmem:[%s5 + $0x288] sm:$0xff]
        %v8310 = vld [vmem:[%s5 + $0x290] sm:$0xff]
        %v8311 = vld [vmem:[%s5 + $0x298] sm:$0xff]
        %v8312 = vrot.slane %v8139, 6
        %v8313 = vsel %vm2530, %v8312, 0
        %8315 = vmatpush.msra.mxu0 0.0
        %8316 = vmatpush.msra.mxu0 0.0
        %8317 = vmatpush.msra.mxu0 0.0
        %8318 = vmatpush.msra.mxu0 0.0
        %8319 = vmatpush.msra.mxu0 0.0
        %8320 = vmatpush.msra.mxu0 0.0
        %8321 = vmatpush.msra.mxu0 0.0
        %8322 = vmatpush.msra.mxu0 0.0
        %8323 = vmatpush.msra.mxu0 0.0
        %8324 = vmatpush.msra.mxu0 0.0
        %8325 = vmatpush.msra.mxu0 0.0
        %8326 = vmatpush.msra.mxu0 0.0
        %8327 = vmatpush.msra.mxu0 %v8311
        %8328 = vmatpush.msra.mxu0 %v8310
        %8329 = vmatpush.msra.mxu0 %v8309
        %8330 = vmatpush.msra.mxu0 %v8308
        %8331 = vmatmul.f32.gmra.mxu0 %v8313
        %v8332 = vpop.f32.mrf.mxu0
        %v8333 = vadd.f32 0.0, %v8332
        %8334 = vdwg.mxu0
        %v8335 = vadd.f32 %v8307, %v8333
        %s8336 = scalar_lea.vmem [#allocation4], 120
        %v8337 = vld [vmem:[%s8336] ss:$2 sm:$0x7f]
        %s8338 = scalar_lea.vmem [#allocation4], 121
        %v8339 = vld [vmem:[%s8338] ss:$2 sm:$0x7f]
        %s8340 = scalar_lea.vmem [#allocation4], 140
        %v8341 = vld [vmem:[%s8340] ss:$2 sm:$0x7f]
        %s8342 = scalar_lea.vmem [#allocation4], 141
        %v8343 = vld [vmem:[%s8342] ss:$2 sm:$0x7f]
        %v8344 = vmax.f32 %v8337, %v8339
        %v8345 = vmax.f32 %v8341, %v8343
        %v8346 = vmax.f32 %v8344, %v8345
        %v8347 = vld [vmem:[%s5 + $0x2a0] sm:$0xff]
        %v8348 = vld [vmem:[%s5 + $0x2a8] sm:$0xff]
        %v8349 = vld [vmem:[%s5 + $0x2b0] sm:$0xff]
        %v8350 = vld [vmem:[%s5 + $0x2b8] sm:$0xff]
        %v8352 = vsel %vm2530, %v8346, 0
        %8354 = vmatpush.msra.mxu0 0.0
        %8355 = vmatpush.msra.mxu0 0.0
        %8356 = vmatpush.msra.mxu0 0.0
        %8357 = vmatpush.msra.mxu0 0.0
        %8358 = vmatpush.msra.mxu0 0.0
        %8359 = vmatpush.msra.mxu0 0.0
        %8360 = vmatpush.msra.mxu0 0.0
        %8361 = vmatpush.msra.mxu0 0.0
        %8362 = vmatpush.msra.mxu0 0.0
        %8363 = vmatpush.msra.mxu0 0.0
        %8364 = vmatpush.msra.mxu0 0.0
        %8365 = vmatpush.msra.mxu0 0.0
        %8366 = vmatpush.msra.mxu0 %v8350
        %8367 = vmatpush.msra.mxu0 %v8349
        %8368 = vmatpush.msra.mxu0 %v8348
        %8369 = vmatpush.msra.mxu0 %v8347
        %8370 = vmatmul.f32.gmra.mxu0 %v8352
        %v8371 = vpop.f32.mrf.mxu0
        %v8372 = vadd.f32 0.0, %v8371
        %8373 = vdwg.mxu0
        %v8374 = vadd.f32 %v8335, %v8372
        %v8375 = vld [vmem:[%s5 + $0x2c0] sm:$0xff]
        %v8376 = vld [vmem:[%s5 + $0x2c8] sm:$0xff]
        %v8377 = vld [vmem:[%s5 + $0x2d0] sm:$0xff]
        %v8378 = vld [vmem:[%s5 + $0x2d8] sm:$0xff]
        %v8379 = vrot.slane %v8346, 1
        %v8380 = vsel %vm2530, %v8379, 0
        %8382 = vmatpush.msra.mxu0 0.0
        %8383 = vmatpush.msra.mxu0 0.0
        %8384 = vmatpush.msra.mxu0 0.0
        %8385 = vmatpush.msra.mxu0 0.0
        %8386 = vmatpush.msra.mxu0 0.0
        %8387 = vmatpush.msra.mxu0 0.0
        %8388 = vmatpush.msra.mxu0 0.0
        %8389 = vmatpush.msra.mxu0 0.0
        %8390 = vmatpush.msra.mxu0 0.0
        %8391 = vmatpush.msra.mxu0 0.0
        %8392 = vmatpush.msra.mxu0 0.0
        %8393 = vmatpush.msra.mxu0 0.0
        %8394 = vmatpush.msra.mxu0 %v8378
        %8395 = vmatpush.msra.mxu0 %v8377
        %8396 = vmatpush.msra.mxu0 %v8376
        %8397 = vmatpush.msra.mxu0 %v8375
        %8398 = vmatmul.f32.gmra.mxu0 %v8380
        %v8399 = vpop.f32.mrf.mxu0
        %v8400 = vadd.f32 0.0, %v8399
        %8401 = vdwg.mxu0
        %v8402 = vadd.f32 %v8374, %v8400
        %v8403 = vld [vmem:[%s5 + $0x2e0] sm:$0xff]
        %v8404 = vld [vmem:[%s5 + $0x2e8] sm:$0xff]
        %v8405 = vld [vmem:[%s5 + $0x2f0] sm:$0xff]
        %v8406 = vld [vmem:[%s5 + $0x2f8] sm:$0xff]
        %v8407 = vrot.slane %v8346, 2
        %v8408 = vsel %vm2530, %v8407, 0
        %8410 = vmatpush.msra.mxu0 0.0
        %8411 = vmatpush.msra.mxu0 0.0
        %8412 = vmatpush.msra.mxu0 0.0
        %8413 = vmatpush.msra.mxu0 0.0
        %8414 = vmatpush.msra.mxu0 0.0
        %8415 = vmatpush.msra.mxu0 0.0
        %8416 = vmatpush.msra.mxu0 0.0
        %8417 = vmatpush.msra.mxu0 0.0
        %8418 = vmatpush.msra.mxu0 0.0
        %8419 = vmatpush.msra.mxu0 0.0
        %8420 = vmatpush.msra.mxu0 0.0
        %8421 = vmatpush.msra.mxu0 0.0
        %8422 = vmatpush.msra.mxu0 %v8406
        %8423 = vmatpush.msra.mxu0 %v8405
        %8424 = vmatpush.msra.mxu0 %v8404
        %8425 = vmatpush.msra.mxu0 %v8403
        %8426 = vmatmul.f32.gmra.mxu0 %v8408
        %v8427 = vpop.f32.mrf.mxu0
        %v8428 = vadd.f32 0.0, %v8427
        %8429 = vdwg.mxu0
        %v8430 = vadd.f32 %v8402, %v8428
        %v8431 = vld [vmem:[%s5 + $0x300] sm:$0xff]
        %v8432 = vld [vmem:[%s5 + $0x308] sm:$0xff]
        %v8433 = vld [vmem:[%s5 + $0x310] sm:$0xff]
        %v8434 = vld [vmem:[%s5 + $0x318] sm:$0xff]
        %v8435 = vrot.slane %v8346, 3
        %v8436 = vsel %vm2530, %v8435, 0
        %8438 = vmatpush.msra.mxu0 0.0
        %8439 = vmatpush.msra.mxu0 0.0
        %8440 = vmatpush.msra.mxu0 0.0
        %8441 = vmatpush.msra.mxu0 0.0
        %8442 = vmatpush.msra.mxu0 0.0
        %8443 = vmatpush.msra.mxu0 0.0
        %8444 = vmatpush.msra.mxu0 0.0
        %8445 = vmatpush.msra.mxu0 0.0
        %8446 = vmatpush.msra.mxu0 0.0
        %8447 = vmatpush.msra.mxu0 0.0
        %8448 = vmatpush.msra.mxu0 0.0
        %8449 = vmatpush.msra.mxu0 0.0
        %8450 = vmatpush.msra.mxu0 %v8434
        %8451 = vmatpush.msra.mxu0 %v8433
        %8452 = vmatpush.msra.mxu0 %v8432
        %8453 = vmatpush.msra.mxu0 %v8431
        %8454 = vmatmul.f32.gmra.mxu0 %v8436
        %v8455 = vpop.f32.mrf.mxu0
        %v8456 = vadd.f32 0.0, %v8455
        %8457 = vdwg.mxu0
        %v8458 = vadd.f32 %v8430, %v8456
        %v8459 = vld [vmem:[%s5 + $0x320] sm:$0xff]
        %v8460 = vld [vmem:[%s5 + $0x328] sm:$0xff]
        %v8461 = vld [vmem:[%s5 + $0x330] sm:$0xff]
        %v8462 = vld [vmem:[%s5 + $0x338] sm:$0xff]
        %v8463 = vrot.slane %v8346, 4
        %v8464 = vsel %vm2530, %v8463, 0
        %8466 = vmatpush.msra.mxu0 0.0
        %8467 = vmatpush.msra.mxu0 0.0
        %8468 = vmatpush.msra.mxu0 0.0
        %8469 = vmatpush.msra.mxu0 0.0
        %8470 = vmatpush.msra.mxu0 0.0
        %8471 = vmatpush.msra.mxu0 0.0
        %8472 = vmatpush.msra.mxu0 0.0
        %8473 = vmatpush.msra.mxu0 0.0
        %8474 = vmatpush.msra.mxu0 0.0
        %8475 = vmatpush.msra.mxu0 0.0
        %8476 = vmatpush.msra.mxu0 0.0
        %8477 = vmatpush.msra.mxu0 0.0
        %8478 = vmatpush.msra.mxu0 %v8462
        %8479 = vmatpush.msra.mxu0 %v8461
        %8480 = vmatpush.msra.mxu0 %v8460
        %8481 = vmatpush.msra.mxu0 %v8459
        %8482 = vmatmul.f32.gmra.mxu0 %v8464
        %v8483 = vpop.f32.mrf.mxu0
        %v8484 = vadd.f32 0.0, %v8483
        %8485 = vdwg.mxu0
        %v8486 = vadd.f32 %v8458, %v8484
        %v8487 = vld [vmem:[%s5 + $0x340] sm:$0xff]
        %v8488 = vld [vmem:[%s5 + $0x348] sm:$0xff]
        %v8489 = vld [vmem:[%s5 + $0x350] sm:$0xff]
        %v8490 = vld [vmem:[%s5 + $0x358] sm:$0xff]
        %v8491 = vrot.slane %v8346, 5
        %v8492 = vsel %vm2530, %v8491, 0
        %8494 = vmatpush.msra.mxu0 0.0
        %8495 = vmatpush.msra.mxu0 0.0
        %8496 = vmatpush.msra.mxu0 0.0
        %8497 = vmatpush.msra.mxu0 0.0
        %8498 = vmatpush.msra.mxu0 0.0
        %8499 = vmatpush.msra.mxu0 0.0
        %8500 = vmatpush.msra.mxu0 0.0
        %8501 = vmatpush.msra.mxu0 0.0
        %8502 = vmatpush.msra.mxu0 0.0
        %8503 = vmatpush.msra.mxu0 0.0
        %8504 = vmatpush.msra.mxu0 0.0
        %8505 = vmatpush.msra.mxu0 0.0
        %8506 = vmatpush.msra.mxu0 %v8490
        %8507 = vmatpush.msra.mxu0 %v8489
        %8508 = vmatpush.msra.mxu0 %v8488
        %8509 = vmatpush.msra.mxu0 %v8487
        %8510 = vmatmul.f32.gmra.mxu0 %v8492
        %v8511 = vpop.f32.mrf.mxu0
        %v8512 = vadd.f32 0.0, %v8511
        %8513 = vdwg.mxu0
        %v8514 = vadd.f32 %v8486, %v8512
        %v8515 = vld [vmem:[%s5 + $0x360] sm:$0xff]
        %v8516 = vld [vmem:[%s5 + $0x368] sm:$0xff]
        %v8517 = vld [vmem:[%s5 + $0x370] sm:$0xff]
        %v8518 = vld [vmem:[%s5 + $0x378] sm:$0xff]
        %v8519 = vrot.slane %v8346, 6
        %v8520 = vsel %vm2530, %v8519, 0
        %8522 = vmatpush.msra.mxu0 0.0
        %8523 = vmatpush.msra.mxu0 0.0
        %8524 = vmatpush.msra.mxu0 0.0
        %8525 = vmatpush.msra.mxu0 0.0
        %8526 = vmatpush.msra.mxu0 0.0
        %8527 = vmatpush.msra.mxu0 0.0
        %8528 = vmatpush.msra.mxu0 0.0
        %8529 = vmatpush.msra.mxu0 0.0
        %8530 = vmatpush.msra.mxu0 0.0
        %8531 = vmatpush.msra.mxu0 0.0
        %8532 = vmatpush.msra.mxu0 0.0
        %8533 = vmatpush.msra.mxu0 0.0
        %8534 = vmatpush.msra.mxu0 %v8518
        %8535 = vmatpush.msra.mxu0 %v8517
        %8536 = vmatpush.msra.mxu0 %v8516
        %8537 = vmatpush.msra.mxu0 %v8515
        %8538 = vmatmul.f32.gmra.mxu0 %v8520
        %v8539 = vpop.f32.mrf.mxu0
        %v8540 = vadd.f32 0.0, %v8539
        %8541 = vdwg.mxu0
        %v8542 = vadd.f32 %v8514, %v8540
        %s8543 = scalar_lea.vmem [#allocation4], 160
        %v8544 = vld [vmem:[%s8543] ss:$2 sm:$0x7f]
        %s8545 = scalar_lea.vmem [#allocation4], 161
        %v8546 = vld [vmem:[%s8545] ss:$2 sm:$0x7f]
        %s8547 = scalar_lea.vmem [#allocation4], 180
        %v8548 = vld [vmem:[%s8547] ss:$2 sm:$0x7f]
        %s8549 = scalar_lea.vmem [#allocation4], 181
        %v8550 = vld [vmem:[%s8549] ss:$2 sm:$0x7f]
        %v8551 = vmax.f32 %v8544, %v8546
        %v8552 = vmax.f32 %v8548, %v8550
        %v8553 = vmax.f32 %v8551, %v8552
        %v8554 = vld [vmem:[%s5 + $0x380] sm:$0xff]
        %v8555 = vld [vmem:[%s5 + $0x388] sm:$0xff]
        %v8556 = vld [vmem:[%s5 + $0x390] sm:$0xff]
        %v8557 = vld [vmem:[%s5 + $0x398] sm:$0xff]
        %v8559 = vsel %vm2530, %v8553, 0
        %8561 = vmatpush.msra.mxu0 0.0
        %8562 = vmatpush.msra.mxu0 0.0
        %8563 = vmatpush.msra.mxu0 0.0
        %8564 = vmatpush.msra.mxu0 0.0
        %8565 = vmatpush.msra.mxu0 0.0
        %8566 = vmatpush.msra.mxu0 0.0
        %8567 = vmatpush.msra.mxu0 0.0
        %8568 = vmatpush.msra.mxu0 0.0
        %8569 = vmatpush.msra.mxu0 0.0
        %8570 = vmatpush.msra.mxu0 0.0
        %8571 = vmatpush.msra.mxu0 0.0
        %8572 = vmatpush.msra.mxu0 0.0
        %8573 = vmatpush.msra.mxu0 %v8557
        %8574 = vmatpush.msra.mxu0 %v8556
        %8575 = vmatpush.msra.mxu0 %v8555
        %8576 = vmatpush.msra.mxu0 %v8554
        %8577 = vmatmul.f32.gmra.mxu0 %v8559
        %v8578 = vpop.f32.mrf.mxu0
        %v8579 = vadd.f32 0.0, %v8578
        %8580 = vdwg.mxu0
        %v8581 = vadd.f32 %v8542, %v8579
        %v8582 = vld [vmem:[%s5 + $0x3a0] sm:$0xff]
        %v8583 = vld [vmem:[%s5 + $0x3a8] sm:$0xff]
        %v8584 = vld [vmem:[%s5 + $0x3b0] sm:$0xff]
        %v8585 = vld [vmem:[%s5 + $0x3b8] sm:$0xff]
        %v8586 = vrot.slane %v8553, 1
        %v8587 = vsel %vm2530, %v8586, 0
        %8589 = vmatpush.msra.mxu0 0.0
        %8590 = vmatpush.msra.mxu0 0.0
        %8591 = vmatpush.msra.mxu0 0.0
        %8592 = vmatpush.msra.mxu0 0.0
        %8593 = vmatpush.msra.mxu0 0.0
        %8594 = vmatpush.msra.mxu0 0.0
        %8595 = vmatpush.msra.mxu0 0.0
        %8596 = vmatpush.msra.mxu0 0.0
        %8597 = vmatpush.msra.mxu0 0.0
        %8598 = vmatpush.msra.mxu0 0.0
        %8599 = vmatpush.msra.mxu0 0.0
        %8600 = vmatpush.msra.mxu0 0.0
        %8601 = vmatpush.msra.mxu0 %v8585
        %8602 = vmatpush.msra.mxu0 %v8584
        %8603 = vmatpush.msra.mxu0 %v8583
        %8604 = vmatpush.msra.mxu0 %v8582
        %8605 = vmatmul.f32.gmra.mxu0 %v8587
        %v8606 = vpop.f32.mrf.mxu0
        %v8607 = vadd.f32 0.0, %v8606
        %8608 = vdwg.mxu0
        %v8609 = vadd.f32 %v8581, %v8607
        %v8610 = vld [vmem:[%s5 + $0x3c0] sm:$0xff]
        %v8611 = vld [vmem:[%s5 + $0x3c8] sm:$0xff]
        %v8612 = vld [vmem:[%s5 + $0x3d0] sm:$0xff]
        %v8613 = vld [vmem:[%s5 + $0x3d8] sm:$0xff]
        %v8614 = vrot.slane %v8553, 2
        %v8615 = vsel %vm2530, %v8614, 0
        %8617 = vmatpush.msra.mxu0 0.0
        %8618 = vmatpush.msra.mxu0 0.0
        %8619 = vmatpush.msra.mxu0 0.0
        %8620 = vmatpush.msra.mxu0 0.0
        %8621 = vmatpush.msra.mxu0 0.0
        %8622 = vmatpush.msra.mxu0 0.0
        %8623 = vmatpush.msra.mxu0 0.0
        %8624 = vmatpush.msra.mxu0 0.0
        %8625 = vmatpush.msra.mxu0 0.0
        %8626 = vmatpush.msra.mxu0 0.0
        %8627 = vmatpush.msra.mxu0 0.0
        %8628 = vmatpush.msra.mxu0 0.0
        %8629 = vmatpush.msra.mxu0 %v8613
        %8630 = vmatpush.msra.mxu0 %v8612
        %8631 = vmatpush.msra.mxu0 %v8611
        %8632 = vmatpush.msra.mxu0 %v8610
        %8633 = vmatmul.f32.gmra.mxu0 %v8615
        %v8634 = vpop.f32.mrf.mxu0
        %v8635 = vadd.f32 0.0, %v8634
        %8636 = vdwg.mxu0
        %v8637 = vadd.f32 %v8609, %v8635
        %v8638 = vld [vmem:[%s5 + $0x3e0] sm:$0xff]
        %v8639 = vld [vmem:[%s5 + $0x3e8] sm:$0xff]
        %v8640 = vld [vmem:[%s5 + $0x3f0] sm:$0xff]
        %v8641 = vld [vmem:[%s5 + $0x3f8] sm:$0xff]
        %v8642 = vrot.slane %v8553, 3
        %v8643 = vsel %vm2530, %v8642, 0
        %8645 = vmatpush.msra.mxu0 0.0
        %8646 = vmatpush.msra.mxu0 0.0
        %8647 = vmatpush.msra.mxu0 0.0
        %8648 = vmatpush.msra.mxu0 0.0
        %8649 = vmatpush.msra.mxu0 0.0
        %8650 = vmatpush.msra.mxu0 0.0
        %8651 = vmatpush.msra.mxu0 0.0
        %8652 = vmatpush.msra.mxu0 0.0
        %8653 = vmatpush.msra.mxu0 0.0
        %8654 = vmatpush.msra.mxu0 0.0
        %8655 = vmatpush.msra.mxu0 0.0
        %8656 = vmatpush.msra.mxu0 0.0
        %8657 = vmatpush.msra.mxu0 %v8641
        %8658 = vmatpush.msra.mxu0 %v8640
        %8659 = vmatpush.msra.mxu0 %v8639
        %8660 = vmatpush.msra.mxu0 %v8638
        %8661 = vmatmul.f32.gmra.mxu0 %v8643
        %v8662 = vpop.f32.mrf.mxu0
        %v8663 = vadd.f32 0.0, %v8662
        %8664 = vdwg.mxu0
        %v8665 = vadd.f32 %v8637, %v8663
        %v8666 = vld [vmem:[%s5 + $0x400] sm:$0xff]
        %v8667 = vld [vmem:[%s5 + $0x408] sm:$0xff]
        %v8668 = vld [vmem:[%s5 + $0x410] sm:$0xff]
        %v8669 = vld [vmem:[%s5 + $0x418] sm:$0xff]
        %v8670 = vrot.slane %v8553, 4
        %v8671 = vsel %vm2530, %v8670, 0
        %8673 = vmatpush.msra.mxu0 0.0
        %8674 = vmatpush.msra.mxu0 0.0
        %8675 = vmatpush.msra.mxu0 0.0
        %8676 = vmatpush.msra.mxu0 0.0
        %8677 = vmatpush.msra.mxu0 0.0
        %8678 = vmatpush.msra.mxu0 0.0
        %8679 = vmatpush.msra.mxu0 0.0
        %8680 = vmatpush.msra.mxu0 0.0
        %8681 = vmatpush.msra.mxu0 0.0
        %8682 = vmatpush.msra.mxu0 0.0
        %8683 = vmatpush.msra.mxu0 0.0
        %8684 = vmatpush.msra.mxu0 0.0
        %8685 = vmatpush.msra.mxu0 %v8669
        %8686 = vmatpush.msra.mxu0 %v8668
        %8687 = vmatpush.msra.mxu0 %v8667
        %8688 = vmatpush.msra.mxu0 %v8666
        %8689 = vmatmul.f32.gmra.mxu0 %v8671
        %v8690 = vpop.f32.mrf.mxu0
        %v8691 = vadd.f32 0.0, %v8690
        %8692 = vdwg.mxu0
        %v8693 = vadd.f32 %v8665, %v8691
        %v8694 = vld [vmem:[%s5 + $0x420] sm:$0xff]
        %v8695 = vld [vmem:[%s5 + $0x428] sm:$0xff]
        %v8696 = vld [vmem:[%s5 + $0x430] sm:$0xff]
        %v8697 = vld [vmem:[%s5 + $0x438] sm:$0xff]
        %v8698 = vrot.slane %v8553, 5
        %v8699 = vsel %vm2530, %v8698, 0
        %8701 = vmatpush.msra.mxu0 0.0
        %8702 = vmatpush.msra.mxu0 0.0
        %8703 = vmatpush.msra.mxu0 0.0
        %8704 = vmatpush.msra.mxu0 0.0
        %8705 = vmatpush.msra.mxu0 0.0
        %8706 = vmatpush.msra.mxu0 0.0
        %8707 = vmatpush.msra.mxu0 0.0
        %8708 = vmatpush.msra.mxu0 0.0
        %8709 = vmatpush.msra.mxu0 0.0
        %8710 = vmatpush.msra.mxu0 0.0
        %8711 = vmatpush.msra.mxu0 0.0
        %8712 = vmatpush.msra.mxu0 0.0
        %8713 = vmatpush.msra.mxu0 %v8697
        %8714 = vmatpush.msra.mxu0 %v8696
        %8715 = vmatpush.msra.mxu0 %v8695
        %8716 = vmatpush.msra.mxu0 %v8694
        %8717 = vmatmul.f32.gmra.mxu0 %v8699
        %v8718 = vpop.f32.mrf.mxu0
        %v8719 = vadd.f32 0.0, %v8718
        %8720 = vdwg.mxu0
        %v8721 = vadd.f32 %v8693, %v8719
        %v8722 = vld [vmem:[%s5 + $0x440] sm:$0xff]
        %v8723 = vld [vmem:[%s5 + $0x448] sm:$0xff]
        %v8724 = vld [vmem:[%s5 + $0x450] sm:$0xff]
        %v8725 = vld [vmem:[%s5 + $0x458] sm:$0xff]
        %v8726 = vrot.slane %v8553, 6
        %v8727 = vsel %vm2530, %v8726, 0
        %8729 = vmatpush.msra.mxu0 0.0
        %8730 = vmatpush.msra.mxu0 0.0
        %8731 = vmatpush.msra.mxu0 0.0
        %8732 = vmatpush.msra.mxu0 0.0
        %8733 = vmatpush.msra.mxu0 0.0
        %8734 = vmatpush.msra.mxu0 0.0
        %8735 = vmatpush.msra.mxu0 0.0
        %8736 = vmatpush.msra.mxu0 0.0
        %8737 = vmatpush.msra.mxu0 0.0
        %8738 = vmatpush.msra.mxu0 0.0
        %8739 = vmatpush.msra.mxu0 0.0
        %8740 = vmatpush.msra.mxu0 0.0
        %8741 = vmatpush.msra.mxu0 %v8725
        %8742 = vmatpush.msra.mxu0 %v8724
        %8743 = vmatpush.msra.mxu0 %v8723
        %8744 = vmatpush.msra.mxu0 %v8722
        %8745 = vmatmul.f32.gmra.mxu0 %v8727
        %v8746 = vpop.f32.mrf.mxu0
        %v8747 = vadd.f32 0.0, %v8746
        %8748 = vdwg.mxu0
        %v8749 = vadd.f32 %v8721, %v8747
        %s8750 = scalar_lea.vmem [#allocation4], 200
        %v8751 = vld [vmem:[%s8750] ss:$2 sm:$0x7f]
        %s8752 = scalar_lea.vmem [#allocation4], 201
        %v8753 = vld [vmem:[%s8752] ss:$2 sm:$0x7f]
        %s8754 = scalar_lea.vmem [#allocation4], 220
        %v8755 = vld [vmem:[%s8754] ss:$2 sm:$0x7f]
        %s8756 = scalar_lea.vmem [#allocation4], 221
        %v8757 = vld [vmem:[%s8756] ss:$2 sm:$0x7f]
        %v8758 = vmax.f32 %v8751, %v8753
        %v8759 = vmax.f32 %v8755, %v8757
        %v8760 = vmax.f32 %v8758, %v8759
        %v8761 = vld [vmem:[%s5 + $0x460] sm:$0xff]
        %v8762 = vld [vmem:[%s5 + $0x468] sm:$0xff]
        %v8763 = vld [vmem:[%s5 + $0x470] sm:$0xff]
        %v8764 = vld [vmem:[%s5 + $0x478] sm:$0xff]
        %v8766 = vsel %vm2530, %v8760, 0
        %8768 = vmatpush.msra.mxu0 0.0
        %8769 = vmatpush.msra.mxu0 0.0
        %8770 = vmatpush.msra.mxu0 0.0
        %8771 = vmatpush.msra.mxu0 0.0
        %8772 = vmatpush.msra.mxu0 0.0
        %8773 = vmatpush.msra.mxu0 0.0
        %8774 = vmatpush.msra.mxu0 0.0
        %8775 = vmatpush.msra.mxu0 0.0
        %8776 = vmatpush.msra.mxu0 0.0
        %8777 = vmatpush.msra.mxu0 0.0
        %8778 = vmatpush.msra.mxu0 0.0
        %8779 = vmatpush.msra.mxu0 0.0
        %8780 = vmatpush.msra.mxu0 %v8764
        %8781 = vmatpush.msra.mxu0 %v8763
        %8782 = vmatpush.msra.mxu0 %v8762
        %8783 = vmatpush.msra.mxu0 %v8761
        %8784 = vmatmul.f32.gmra.mxu0 %v8766
        %v8785 = vpop.f32.mrf.mxu0
        %v8786 = vadd.f32 0.0, %v8785
        %8787 = vdwg.mxu0
        %v8788 = vadd.f32 %v8749, %v8786
        %v8789 = vld [vmem:[%s5 + $0x480] sm:$0xff]
        %v8790 = vld [vmem:[%s5 + $0x488] sm:$0xff]
        %v8791 = vld [vmem:[%s5 + $0x490] sm:$0xff]
        %v8792 = vld [vmem:[%s5 + $0x498] sm:$0xff]
        %v8793 = vrot.slane %v8760, 1
        %v8794 = vsel %vm2530, %v8793, 0
        %8796 = vmatpush.msra.mxu0 0.0
        %8797 = vmatpush.msra.mxu0 0.0
        %8798 = vmatpush.msra.mxu0 0.0
        %8799 = vmatpush.msra.mxu0 0.0
        %8800 = vmatpush.msra.mxu0 0.0
        %8801 = vmatpush.msra.mxu0 0.0
        %8802 = vmatpush.msra.mxu0 0.0
        %8803 = vmatpush.msra.mxu0 0.0
        %8804 = vmatpush.msra.mxu0 0.0
        %8805 = vmatpush.msra.mxu0 0.0
        %8806 = vmatpush.msra.mxu0 0.0
        %8807 = vmatpush.msra.mxu0 0.0
        %8808 = vmatpush.msra.mxu0 %v8792
        %8809 = vmatpush.msra.mxu0 %v8791
        %8810 = vmatpush.msra.mxu0 %v8790
        %8811 = vmatpush.msra.mxu0 %v8789
        %8812 = vmatmul.f32.gmra.mxu0 %v8794
        %v8813 = vpop.f32.mrf.mxu0
        %v8814 = vadd.f32 0.0, %v8813
        %8815 = vdwg.mxu0
        %v8816 = vadd.f32 %v8788, %v8814
        %v8817 = vld [vmem:[%s5 + $0x4a0] sm:$0xff]
        %v8818 = vld [vmem:[%s5 + $0x4a8] sm:$0xff]
        %v8819 = vld [vmem:[%s5 + $0x4b0] sm:$0xff]
        %v8820 = vld [vmem:[%s5 + $0x4b8] sm:$0xff]
        %v8821 = vrot.slane %v8760, 2
        %v8822 = vsel %vm2530, %v8821, 0
        %8824 = vmatpush.msra.mxu0 0.0
        %8825 = vmatpush.msra.mxu0 0.0
        %8826 = vmatpush.msra.mxu0 0.0
        %8827 = vmatpush.msra.mxu0 0.0
        %8828 = vmatpush.msra.mxu0 0.0
        %8829 = vmatpush.msra.mxu0 0.0
        %8830 = vmatpush.msra.mxu0 0.0
        %8831 = vmatpush.msra.mxu0 0.0
        %8832 = vmatpush.msra.mxu0 0.0
        %8833 = vmatpush.msra.mxu0 0.0
        %8834 = vmatpush.msra.mxu0 0.0
        %8835 = vmatpush.msra.mxu0 0.0
        %8836 = vmatpush.msra.mxu0 %v8820
        %8837 = vmatpush.msra.mxu0 %v8819
        %8838 = vmatpush.msra.mxu0 %v8818
        %8839 = vmatpush.msra.mxu0 %v8817
        %8840 = vmatmul.f32.gmra.mxu0 %v8822
        %v8841 = vpop.f32.mrf.mxu0
        %v8842 = vadd.f32 0.0, %v8841
        %8843 = vdwg.mxu0
        %v8844 = vadd.f32 %v8816, %v8842
        %v8845 = vld [vmem:[%s5 + $0x4c0] sm:$0xff]
        %v8846 = vld [vmem:[%s5 + $0x4c8] sm:$0xff]
        %v8847 = vld [vmem:[%s5 + $0x4d0] sm:$0xff]
        %v8848 = vld [vmem:[%s5 + $0x4d8] sm:$0xff]
        %v8849 = vrot.slane %v8760, 3
        %v8850 = vsel %vm2530, %v8849, 0
        %8852 = vmatpush.msra.mxu0 0.0
        %8853 = vmatpush.msra.mxu0 0.0
        %8854 = vmatpush.msra.mxu0 0.0
        %8855 = vmatpush.msra.mxu0 0.0
        %8856 = vmatpush.msra.mxu0 0.0
        %8857 = vmatpush.msra.mxu0 0.0
        %8858 = vmatpush.msra.mxu0 0.0
        %8859 = vmatpush.msra.mxu0 0.0
        %8860 = vmatpush.msra.mxu0 0.0
        %8861 = vmatpush.msra.mxu0 0.0
        %8862 = vmatpush.msra.mxu0 0.0
        %8863 = vmatpush.msra.mxu0 0.0
        %8864 = vmatpush.msra.mxu0 %v8848
        %8865 = vmatpush.msra.mxu0 %v8847
        %8866 = vmatpush.msra.mxu0 %v8846
        %8867 = vmatpush.msra.mxu0 %v8845
        %8868 = vmatmul.f32.gmra.mxu0 %v8850
        %v8869 = vpop.f32.mrf.mxu0
        %v8870 = vadd.f32 0.0, %v8869
        %8871 = vdwg.mxu0
        %v8872 = vadd.f32 %v8844, %v8870
        %v8873 = vld [vmem:[%s5 + $0x4e0] sm:$0xff]
        %v8874 = vld [vmem:[%s5 + $0x4e8] sm:$0xff]
        %v8875 = vld [vmem:[%s5 + $0x4f0] sm:$0xff]
        %v8876 = vld [vmem:[%s5 + $0x4f8] sm:$0xff]
        %v8877 = vrot.slane %v8760, 4
        %v8878 = vsel %vm2530, %v8877, 0
        %8880 = vmatpush.msra.mxu0 0.0
        %8881 = vmatpush.msra.mxu0 0.0
        %8882 = vmatpush.msra.mxu0 0.0
        %8883 = vmatpush.msra.mxu0 0.0
        %8884 = vmatpush.msra.mxu0 0.0
        %8885 = vmatpush.msra.mxu0 0.0
        %8886 = vmatpush.msra.mxu0 0.0
        %8887 = vmatpush.msra.mxu0 0.0
        %8888 = vmatpush.msra.mxu0 0.0
        %8889 = vmatpush.msra.mxu0 0.0
        %8890 = vmatpush.msra.mxu0 0.0
        %8891 = vmatpush.msra.mxu0 0.0
        %8892 = vmatpush.msra.mxu0 %v8876
        %8893 = vmatpush.msra.mxu0 %v8875
        %8894 = vmatpush.msra.mxu0 %v8874
        %8895 = vmatpush.msra.mxu0 %v8873
        %8896 = vmatmul.f32.gmra.mxu0 %v8878
        %v8897 = vpop.f32.mrf.mxu0
        %v8898 = vadd.f32 0.0, %v8897
        %8899 = vdwg.mxu0
        %v8900 = vadd.f32 %v8872, %v8898
        %v8901 = vld [vmem:[%s5 + $0x500] sm:$0xff]
        %v8902 = vld [vmem:[%s5 + $0x508] sm:$0xff]
        %v8903 = vld [vmem:[%s5 + $0x510] sm:$0xff]
        %v8904 = vld [vmem:[%s5 + $0x518] sm:$0xff]
        %v8905 = vrot.slane %v8760, 5
        %v8906 = vsel %vm2530, %v8905, 0
        %8908 = vmatpush.msra.mxu0 0.0
        %8909 = vmatpush.msra.mxu0 0.0
        %8910 = vmatpush.msra.mxu0 0.0
        %8911 = vmatpush.msra.mxu0 0.0
        %8912 = vmatpush.msra.mxu0 0.0
        %8913 = vmatpush.msra.mxu0 0.0
        %8914 = vmatpush.msra.mxu0 0.0
        %8915 = vmatpush.msra.mxu0 0.0
        %8916 = vmatpush.msra.mxu0 0.0
        %8917 = vmatpush.msra.mxu0 0.0
        %8918 = vmatpush.msra.mxu0 0.0
        %8919 = vmatpush.msra.mxu0 0.0
        %8920 = vmatpush.msra.mxu0 %v8904
        %8921 = vmatpush.msra.mxu0 %v8903
        %8922 = vmatpush.msra.mxu0 %v8902
        %8923 = vmatpush.msra.mxu0 %v8901
        %8924 = vmatmul.f32.gmra.mxu0 %v8906
        %v8925 = vpop.f32.mrf.mxu0
        %v8926 = vadd.f32 0.0, %v8925
        %8927 = vdwg.mxu0
        %v8928 = vadd.f32 %v8900, %v8926
        %v8929 = vld [vmem:[%s5 + $0x520] sm:$0xff]
        %v8930 = vld [vmem:[%s5 + $0x528] sm:$0xff]
        %v8931 = vld [vmem:[%s5 + $0x530] sm:$0xff]
        %v8932 = vld [vmem:[%s5 + $0x538] sm:$0xff]
        %v8933 = vrot.slane %v8760, 6
        %v8934 = vsel %vm2530, %v8933, 0
        %8936 = vmatpush.msra.mxu0 0.0
        %8937 = vmatpush.msra.mxu0 0.0
        %8938 = vmatpush.msra.mxu0 0.0
        %8939 = vmatpush.msra.mxu0 0.0
        %8940 = vmatpush.msra.mxu0 0.0
        %8941 = vmatpush.msra.mxu0 0.0
        %8942 = vmatpush.msra.mxu0 0.0
        %8943 = vmatpush.msra.mxu0 0.0
        %8944 = vmatpush.msra.mxu0 0.0
        %8945 = vmatpush.msra.mxu0 0.0
        %8946 = vmatpush.msra.mxu0 0.0
        %8947 = vmatpush.msra.mxu0 0.0
        %8948 = vmatpush.msra.mxu0 %v8932
        %8949 = vmatpush.msra.mxu0 %v8931
        %8950 = vmatpush.msra.mxu0 %v8930
        %8951 = vmatpush.msra.mxu0 %v8929
        %8952 = vmatmul.f32.gmra.mxu0 %v8934
        %v8953 = vpop.f32.mrf.mxu0
        %v8954 = vadd.f32 0.0, %v8953
        %8955 = vdwg.mxu0
        %v8956 = vadd.f32 %v8928, %v8954
        %s8957 = scalar_lea.vmem [#allocation4], 240
        %v8958 = vld [vmem:[%s8957] ss:$2 sm:$0x7f]
        %s8959 = scalar_lea.vmem [#allocation4], 241
        %v8960 = vld [vmem:[%s8959] ss:$2 sm:$0x7f]
        %s8961 = scalar_lea.vmem [#allocation4], 260
        %v8962 = vld [vmem:[%s8961] ss:$2 sm:$0x7f]
        %s8963 = scalar_lea.vmem [#allocation4], 261
        %v8964 = vld [vmem:[%s8963] ss:$2 sm:$0x7f]
        %v8965 = vmax.f32 %v8958, %v8960
        %v8966 = vmax.f32 %v8962, %v8964
        %v8967 = vmax.f32 %v8965, %v8966
        %v8968 = vld [vmem:[%s5 + $0x540] sm:$0xff]
        %v8969 = vld [vmem:[%s5 + $0x548] sm:$0xff]
        %v8970 = vld [vmem:[%s5 + $0x550] sm:$0xff]
        %v8971 = vld [vmem:[%s5 + $0x558] sm:$0xff]
        %v8973 = vsel %vm2530, %v8967, 0
        %8975 = vmatpush.msra.mxu0 0.0
        %8976 = vmatpush.msra.mxu0 0.0
        %8977 = vmatpush.msra.mxu0 0.0
        %8978 = vmatpush.msra.mxu0 0.0
        %8979 = vmatpush.msra.mxu0 0.0
        %8980 = vmatpush.msra.mxu0 0.0
        %8981 = vmatpush.msra.mxu0 0.0
        %8982 = vmatpush.msra.mxu0 0.0
        %8983 = vmatpush.msra.mxu0 0.0
        %8984 = vmatpush.msra.mxu0 0.0
        %8985 = vmatpush.msra.mxu0 0.0
        %8986 = vmatpush.msra.mxu0 0.0
        %8987 = vmatpush.msra.mxu0 %v8971
        %8988 = vmatpush.msra.mxu0 %v8970
        %8989 = vmatpush.msra.mxu0 %v8969
        %8990 = vmatpush.msra.mxu0 %v8968
        %8991 = vmatmul.f32.gmra.mxu0 %v8973
        %v8992 = vpop.f32.mrf.mxu0
        %v8993 = vadd.f32 0.0, %v8992
        %8994 = vdwg.mxu0
        %v8995 = vadd.f32 %v8956, %v8993
        %v8996 = vld [vmem:[%s5 + $0x560] sm:$0xff]
        %v8997 = vld [vmem:[%s5 + $0x568] sm:$0xff]
        %v8998 = vld [vmem:[%s5 + $0x570] sm:$0xff]
        %v8999 = vld [vmem:[%s5 + $0x578] sm:$0xff]
        %v9000 = vrot.slane %v8967, 1
        %v9001 = vsel %vm2530, %v9000, 0
        %9003 = vmatpush.msra.mxu0 0.0
        %9004 = vmatpush.msra.mxu0 0.0
        %9005 = vmatpush.msra.mxu0 0.0
        %9006 = vmatpush.msra.mxu0 0.0
        %9007 = vmatpush.msra.mxu0 0.0
        %9008 = vmatpush.msra.mxu0 0.0
        %9009 = vmatpush.msra.mxu0 0.0
        %9010 = vmatpush.msra.mxu0 0.0
        %9011 = vmatpush.msra.mxu0 0.0
        %9012 = vmatpush.msra.mxu0 0.0
        %9013 = vmatpush.msra.mxu0 0.0
        %9014 = vmatpush.msra.mxu0 0.0
        %9015 = vmatpush.msra.mxu0 %v8999
        %9016 = vmatpush.msra.mxu0 %v8998
        %9017 = vmatpush.msra.mxu0 %v8997
        %9018 = vmatpush.msra.mxu0 %v8996
        %9019 = vmatmul.f32.gmra.mxu0 %v9001
        %v9020 = vpop.f32.mrf.mxu0
        %v9021 = vadd.f32 0.0, %v9020
        %9022 = vdwg.mxu0
        %v9023 = vadd.f32 %v8995, %v9021
        %v9024 = vld [vmem:[%s5 + $0x580] sm:$0xff]
        %v9025 = vld [vmem:[%s5 + $0x588] sm:$0xff]
        %v9026 = vld [vmem:[%s5 + $0x590] sm:$0xff]
        %v9027 = vld [vmem:[%s5 + $0x598] sm:$0xff]
        %v9028 = vrot.slane %v8967, 2
        %v9029 = vsel %vm2530, %v9028, 0
        %9031 = vmatpush.msra.mxu0 0.0
        %9032 = vmatpush.msra.mxu0 0.0
        %9033 = vmatpush.msra.mxu0 0.0
        %9034 = vmatpush.msra.mxu0 0.0
        %9035 = vmatpush.msra.mxu0 0.0
        %9036 = vmatpush.msra.mxu0 0.0
        %9037 = vmatpush.msra.mxu0 0.0
        %9038 = vmatpush.msra.mxu0 0.0
        %9039 = vmatpush.msra.mxu0 0.0
        %9040 = vmatpush.msra.mxu0 0.0
        %9041 = vmatpush.msra.mxu0 0.0
        %9042 = vmatpush.msra.mxu0 0.0
        %9043 = vmatpush.msra.mxu0 %v9027
        %9044 = vmatpush.msra.mxu0 %v9026
        %9045 = vmatpush.msra.mxu0 %v9025
        %9046 = vmatpush.msra.mxu0 %v9024
        %9047 = vmatmul.f32.gmra.mxu0 %v9029
        %v9048 = vpop.f32.mrf.mxu0
        %v9049 = vadd.f32 0.0, %v9048
        %9050 = vdwg.mxu0
        %v9051 = vadd.f32 %v9023, %v9049
        %v9052 = vld [vmem:[%s5 + $0x5a0] sm:$0xff]
        %v9053 = vld [vmem:[%s5 + $0x5a8] sm:$0xff]
        %v9054 = vld [vmem:[%s5 + $0x5b0] sm:$0xff]
        %v9055 = vld [vmem:[%s5 + $0x5b8] sm:$0xff]
        %v9056 = vrot.slane %v8967, 3
        %v9057 = vsel %vm2530, %v9056, 0
        %9059 = vmatpush.msra.mxu0 0.0
        %9060 = vmatpush.msra.mxu0 0.0
        %9061 = vmatpush.msra.mxu0 0.0
        %9062 = vmatpush.msra.mxu0 0.0
        %9063 = vmatpush.msra.mxu0 0.0
        %9064 = vmatpush.msra.mxu0 0.0
        %9065 = vmatpush.msra.mxu0 0.0
        %9066 = vmatpush.msra.mxu0 0.0
        %9067 = vmatpush.msra.mxu0 0.0
        %9068 = vmatpush.msra.mxu0 0.0
        %9069 = vmatpush.msra.mxu0 0.0
        %9070 = vmatpush.msra.mxu0 0.0
        %9071 = vmatpush.msra.mxu0 %v9055
        %9072 = vmatpush.msra.mxu0 %v9054
        %9073 = vmatpush.msra.mxu0 %v9053
        %9074 = vmatpush.msra.mxu0 %v9052
        %9075 = vmatmul.f32.gmra.mxu0 %v9057
        %v9076 = vpop.f32.mrf.mxu0
        %v9077 = vadd.f32 0.0, %v9076
        %9078 = vdwg.mxu0
        %v9079 = vadd.f32 %v9051, %v9077
        %v9080 = vld [vmem:[%s5 + $0x5c0] sm:$0xff]
        %v9081 = vld [vmem:[%s5 + $0x5c8] sm:$0xff]
        %v9082 = vld [vmem:[%s5 + $0x5d0] sm:$0xff]
        %v9083 = vld [vmem:[%s5 + $0x5d8] sm:$0xff]
        %v9084 = vrot.slane %v8967, 4
        %v9085 = vsel %vm2530, %v9084, 0
        %9087 = vmatpush.msra.mxu0 0.0
        %9088 = vmatpush.msra.mxu0 0.0
        %9089 = vmatpush.msra.mxu0 0.0
        %9090 = vmatpush.msra.mxu0 0.0
        %9091 = vmatpush.msra.mxu0 0.0
        %9092 = vmatpush.msra.mxu0 0.0
        %9093 = vmatpush.msra.mxu0 0.0
        %9094 = vmatpush.msra.mxu0 0.0
        %9095 = vmatpush.msra.mxu0 0.0
        %9096 = vmatpush.msra.mxu0 0.0
        %9097 = vmatpush.msra.mxu0 0.0
        %9098 = vmatpush.msra.mxu0 0.0
        %9099 = vmatpush.msra.mxu0 %v9083
        %9100 = vmatpush.msra.mxu0 %v9082
        %9101 = vmatpush.msra.mxu0 %v9081
        %9102 = vmatpush.msra.mxu0 %v9080
        %9103 = vmatmul.f32.gmra.mxu0 %v9085
        %v9104 = vpop.f32.mrf.mxu0
        %v9105 = vadd.f32 0.0, %v9104
        %9106 = vdwg.mxu0
        %v9107 = vadd.f32 %v9079, %v9105
        %v9108 = vld [vmem:[%s5 + $0x5e0] sm:$0xff]
        %v9109 = vld [vmem:[%s5 + $0x5e8] sm:$0xff]
        %v9110 = vld [vmem:[%s5 + $0x5f0] sm:$0xff]
        %v9111 = vld [vmem:[%s5 + $0x5f8] sm:$0xff]
        %v9112 = vrot.slane %v8967, 5
        %v9113 = vsel %vm2530, %v9112, 0
        %9115 = vmatpush.msra.mxu0 0.0
        %9116 = vmatpush.msra.mxu0 0.0
        %9117 = vmatpush.msra.mxu0 0.0
        %9118 = vmatpush.msra.mxu0 0.0
        %9119 = vmatpush.msra.mxu0 0.0
        %9120 = vmatpush.msra.mxu0 0.0
        %9121 = vmatpush.msra.mxu0 0.0
        %9122 = vmatpush.msra.mxu0 0.0
        %9123 = vmatpush.msra.mxu0 0.0
        %9124 = vmatpush.msra.mxu0 0.0
        %9125 = vmatpush.msra.mxu0 0.0
        %9126 = vmatpush.msra.mxu0 0.0
        %9127 = vmatpush.msra.mxu0 %v9111
        %9128 = vmatpush.msra.mxu0 %v9110
        %9129 = vmatpush.msra.mxu0 %v9109
        %9130 = vmatpush.msra.mxu0 %v9108
        %9131 = vmatmul.f32.gmra.mxu0 %v9113
        %v9132 = vpop.f32.mrf.mxu0
        %v9133 = vadd.f32 0.0, %v9132
        %9134 = vdwg.mxu0
        %v9135 = vadd.f32 %v9107, %v9133
        %v9136 = vld [vmem:[%s5 + $0x600] sm:$0xff]
        %v9137 = vld [vmem:[%s5 + $0x608] sm:$0xff]
        %v9138 = vld [vmem:[%s5 + $0x610] sm:$0xff]
        %v9139 = vld [vmem:[%s5 + $0x618] sm:$0xff]
        %v9140 = vrot.slane %v8967, 6
        %v9141 = vsel %vm2530, %v9140, 0
        %9143 = vmatpush.msra.mxu0 0.0
        %9144 = vmatpush.msra.mxu0 0.0
        %9145 = vmatpush.msra.mxu0 0.0
        %9146 = vmatpush.msra.mxu0 0.0
        %9147 = vmatpush.msra.mxu0 0.0
        %9148 = vmatpush.msra.mxu0 0.0
        %9149 = vmatpush.msra.mxu0 0.0
        %9150 = vmatpush.msra.mxu0 0.0
        %9151 = vmatpush.msra.mxu0 0.0
        %9152 = vmatpush.msra.mxu0 0.0
        %9153 = vmatpush.msra.mxu0 0.0
        %9154 = vmatpush.msra.mxu0 0.0
        %9155 = vmatpush.msra.mxu0 %v9139
        %9156 = vmatpush.msra.mxu0 %v9138
        %9157 = vmatpush.msra.mxu0 %v9137
        %9158 = vmatpush.msra.mxu0 %v9136
        %9159 = vmatmul.f32.gmra.mxu0 %v9141
        %v9160 = vpop.f32.mrf.mxu0
        %v9161 = vadd.f32 0.0, %v9160
        %9162 = vdwg.mxu0
        %v9163 = vadd.f32 %v9135, %v9161
        %v9164 = vld [vmem:[%s6] sm:$0x1]
        %v9165 = vadd.f32 %v9163, %v9164
        %vm9166 = vcmask 73728
        %9167 = vst.msk [vmem:[%s270] sm:$0x1] %vm9166, %v9165
        %s9168 = sand.u32 %s181, 1
        %s9169 = scalar_lea.sflag [#allocation6], %s9168
        %s9170 = sand.u32 %s181, 1
        %s9171 = scalar_lea.vmem [#allocation5], %s9170
        // Predicated region
        $region49: #{custom_cnn_forward.1} parent=47 // pred_check
          %p9172 = pneg %p191
        $region50: #{custom_cnn_forward.1} parent=47 // pred_check_branch
          %9174 = sbr.rel (%p9172) target = $region52
        $region51: #{custom_cnn_forward.1} parent=47 // pred_region
          %9176 = vsyncadd %s9169, 0
          %s9177 = scalar_lea.hbm %s7, %s21
          %s9179 = sshll.u32 %s9171, 4
          %s9180 = int_to_ptr.vmem [resolvable:$true] %s9179
          %s9181 = sshll.u32 %s9177, 4
          %s9182 = int_to_ptr.hbm [resolvable:$true] %s9181
          %9184 = dma.vmem_to_hbm [thread:$0]  %s9180, 16, %s9182, %s9169
        $region52: #{custom_cnn_forward.1} parent=47 // pred_fallthru
          _
      $region48: #{custom_cnn_forward.1} parent=5 // pred_fallthru
        _
      %p9185 = scmp.le.s32.totalorder 2, %s16
      // Predicated region
      $region53: #{custom_cnn_forward.1} parent=5 // pred_check
        %p9186 = pneg %p9185
      $region54: #{custom_cnn_forward.1} parent=5 // pred_check_branch
        %9188 = sbr.rel (%p9186) target = $region56
      $region55: #{custom_cnn_forward.1} parent=5 // pred_region
        %s9189 = ssub.s32 %s16, 2
        // Predicated region
        $region57: #{custom_cnn_forward.1} parent=55 // pred_check
          %p9190 = pneg %p197
        $region58: #{custom_cnn_forward.1} parent=55 // pred_check_branch
          %9192 = sbr.rel (%p9190) target = $region60
        $region59: #{custom_cnn_forward.1} parent=55 // pred_region
          %s9193 = sand.u32 %s182, 1
          %s9194 = scalar_lea.sflag [#allocation6], %s9193
          %s9195 = sand.u32 %s182, 1
          %s9196 = scalar_lea.vmem [#allocation5], %s9195
          %9198 = dma.done %s9194, 16
        $region60: #{custom_cnn_forward.1} parent=55 // pred_fallthru
          _
      $region56: #{custom_cnn_forward.1} parent=5 // pred_fallthru
        _
    $region6: #{custom_cnn_forward.1} parent=1 // loop_footer
      %s20 = sadd.s32 1, %s16
    $region7: #{custom_cnn_forward.1} parent=1 // loop_footer_branch
      %15 = sbr.rel target = $region3
    $region8: #{custom_cnn_forward.1} parent=1 // loop_exit
      _
    %9199 = vsyncpa [#allocation6], 1
    %s9200 = scalar_lea.sflag [#allocation6], 1
    %9201 = vsyncpa %s9200, 1

</llo_original>
